<compile_context>
chip_gen: v7x
topology: tpu7x:2x2x1
jax: 0.10.0
libtpu: 0.0.40
codegen_flags: <defaults>
</compile_context>

<pallas_src>
import functools
import numpy as np
import jax
import jax.numpy as jnp
from jax import lax
from jax.experimental import pallas as pl
from jax.experimental.pallas import tpu as pltpu


def _residual_block_kernel(H, W, HALO, Cin, Cmid, Cout,
                           x_ref, we_ref, w1_ref, w2_ref,
                           s1_ref, b1_ref, s2_ref, b2_ref,
                           out_ref, xbuf_ref, hbuf_ref):
    L = H * W
    f32 = jnp.float32
    bf16 = jnp.bfloat16

    # ---- column-edge masks (replace physical pad columns) --------------------
    # kw == 0 taps read (r, c-1): invalid at c == 0 (true neighbor is zero pad).
    # kw == 2 taps read (r, c+1): invalid at c == W-1.
    col = lax.broadcasted_iota(jnp.int32, (L, 1), 0) % W
    not_left_edge = col != 0
    not_right_edge = col != (W - 1)

    # ---- row halos zeroed, dense interior written with one aligned store -----
    # (every scratch byte that is read below is rewritten this grid step, so
    #  the "parallel" batch axis stays megacore-safe.)
    xbuf_ref[0:HALO, :] = jnp.zeros((HALO, Cin), bf16)
    xbuf_ref[HALO + L:HALO + L + HALO, :] = jnp.zeros((HALO, Cin), bf16)
    xbuf_ref[HALO:HALO + L, :] = x_ref[0]                      # bf16, contiguous

    hbuf_ref[0:HALO, :] = jnp.zeros((HALO, Cmid), bf16)
    hbuf_ref[HALO + L:HALO + L + HALO, :] = jnp.zeros((HALO, Cmid), bf16)

    def conv3x3(buf_ref, w_ref, cin, cout):
        # 9 accumulating tap matmuls, no materialized im2col tensor.
        acc = jnp.zeros((L, cout), f32)
        for t in range(9):
            kh, kw = t // 3, t % 3
            d = (kh - 1) * W + (kw - 1)
            tap = buf_ref[HALO + d:HALO + d + L, :]            # (L, cin) bf16
            if kw == 0:
                tap = jnp.where(not_left_edge, tap, 0)
            elif kw == 2:
                tap = jnp.where(not_right_edge, tap, 0)
            acc = acc + jnp.dot(tap, w_ref[t * cin:(t + 1) * cin, :],
                                preferred_element_type=f32)
        return acc

    # ---- conv1 -> folded BN1 -> LeakyReLU(0.2) --------------------------------
    acc1 = conv3x3(xbuf_ref, w1_ref, Cin, Cmid)                # (L, Cmid) f32
    h = acc1 * s1_ref[...] + b1_ref[...]
    h = jnp.maximum(h, 0.2 * h)                                # LeakyReLU(0.2)
    hbuf_ref[HALO:HALO + L, :] = h.astype(bf16)                # one aligned store

    # ---- conv2 -> folded BN2, + identity (1x1 conv_expand) -> LeakyReLU ------
    acc2 = conv3x3(hbuf_ref, w2_ref, Cmid, Cout)               # (L, Cout) f32
    o = acc2 * s2_ref[...] + b2_ref[...]
    ident = jnp.dot(x_ref[0], we_ref[...], preferred_element_type=f32)
    o = o + ident
    o = jnp.maximum(o, 0.2 * o)

    out_ref[0] = o.astype(out_ref.dtype)                       # dense block store


def residual_block_pallas(x_nchw, we, w1f, w2f, s1, b1, s2, b2):
    """Run the residual block. `we` is the (Cin, Cout) 1x1 conv_expand matrix;
    when inc == outc in the original module pass an identity matrix."""
    N, Cin, H, W = x_nchw.shape
    Cout = we.shape[-1]
    Cmid = w1f.shape[-1]
    # Row halo: >= W+1 (largest tap shift) and 16-aligned (bf16 sublane packing)
    # so the interior store starts on a tile boundary.
    HALO = ((W + 1 + 15) // 16) * 16
    P = 2 * HALO + H * W

    # Only host-side glue: NCHW -> (N, H*W, C) channel-minor, bf16.
    x_rows = (jnp.transpose(x_nchw, (0, 2, 3, 1))
              .reshape(N, H * W, Cin).astype(jnp.bfloat16))

    kernel = functools.partial(_residual_block_kernel, H, W, HALO,
                               Cin, Cmid, Cout)

    out = pl.pallas_call(
        kernel,
        out_shape=jax.ShapeDtypeStruct((N, H * W, Cout), jnp.float32),
        grid_spec=pltpu.PrefetchScalarGridSpec(
            num_scalar_prefetch=0,
            grid=(N,),
            in_specs=[
                pl.BlockSpec((1, H * W, Cin), lambda n: (n, 0, 0)),
                pl.BlockSpec((Cin, Cout), lambda n: (0, 0)),        # conv_expand
                pl.BlockSpec((9 * Cin, Cmid), lambda n: (0, 0)),    # conv1 (tap-major)
                pl.BlockSpec((9 * Cmid, Cout), lambda n: (0, 0)),   # conv2 (tap-major)
                pl.BlockSpec((1, Cmid), lambda n: (0, 0)),          # bn1 scale
                pl.BlockSpec((1, Cmid), lambda n: (0, 0)),          # bn1 bias
                pl.BlockSpec((1, Cout), lambda n: (0, 0)),          # bn2 scale
                pl.BlockSpec((1, Cout), lambda n: (0, 0)),          # bn2 bias
            ],
            out_specs=pl.BlockSpec((1, H * W, Cout), lambda n: (n, 0, 0)),
            scratch_shapes=[pltpu.VMEM((P, Cin), jnp.bfloat16),     # x + row halos
                            pltpu.VMEM((P, Cmid), jnp.bfloat16)],   # h + row halos
        ),
        compiler_params=pltpu.CompilerParams(
            dimension_semantics=("parallel",)),   # no reduction axis; v7x megacore
    )(x_rows, we, w1f, w2f, s1, b1, s2, b2)

    # (N, H*W, C) -> NCHW: reshape is free, a single transpose pass remains.
    return jnp.transpose(out.reshape(N, H, W, Cout), (0, 3, 1, 2))


def _bn_fold(gamma, beta, mean, var, eps=1e-5):
    s = gamma / jnp.sqrt(var + eps)
    return s, beta - mean * s


def reference_residual_block(x, WE, W1, W2, bn1, bn2, mxu_dtype=None):
    """Pure-JAX reference (PyTorch NCHW / OIHW conventions, eval-mode BN).

    If `mxu_dtype` is given, conv inputs/weights (and the hidden activation fed
    to conv2) are rounded to that dtype with f32 accumulation, mirroring the
    kernel's bf16 MXU input precision.
    """
    dn = ('NCHW', 'OIHW', 'NCHW')
    eps = 1e-5
    prec = lax.Precision.HIGHEST

    def cast(a):
        if mxu_dtype is None:
            return a
        return a.astype(mxu_dtype).astype(jnp.float32)

    def bn(h, params):
        g, b, m, v = params
        inv = g / jnp.sqrt(v + eps)
        return (h - m[None, :, None, None]) * inv[None, :, None, None] \
               + b[None, :, None, None]

    def leaky(h):
        return jnp.where(h >= 0, h, 0.2 * h)

    xc = cast(x)
    ident = lax.conv_general_dilated(xc, cast(WE), (1, 1), 'VALID',
                                     dimension_numbers=dn, precision=prec)
    h = lax.conv_general_dilated(xc, cast(W1), (1, 1), ((1, 1), (1, 1)),
                                 dimension_numbers=dn, precision=prec)
    h = leaky(bn(h, bn1))
    o = lax.conv_general_dilated(cast(h), cast(W2), (1, 1), ((1, 1), (1, 1)),
                                 dimension_numbers=dn, precision=prec)
    o = bn(o, bn2)
    return leaky(o + ident)


if __name__ == "__main__":
    key = jax.random.PRNGKey(0)
    N, inc, outc, H, W = 2, 4, 8, 16, 16   # inc != outc -> conv_expand branch active
    midc = outc                            # scale = 1.0
    ks = jax.random.split(key, 12)

    x = jax.random.normal(ks[0], (N, inc, H, W), jnp.float32)
    WE = 0.2 * jax.random.normal(ks[1], (outc, inc, 1, 1), jnp.float32)   # conv_expand
    W1 = 0.2 * jax.random.normal(ks[2], (midc, inc, 3, 3), jnp.float32)   # conv1
    W2 = 0.2 * jax.random.normal(ks[3], (outc, midc, 3, 3), jnp.float32)  # conv2

    g1 = 0.5 + jax.random.uniform(ks[4], (midc,), jnp.float32)
    b1 = 0.1 * jax.random.normal(ks[5], (midc,), jnp.float32)
    m1 = 0.1 * jax.random.normal(ks[6], (midc,), jnp.float32)
    v1 = 0.5 + jax.random.uniform(ks[7], (midc,), jnp.float32)
    g2 = 0.5 + jax.random.uniform(ks[8], (outc,), jnp.float32)
    b2 = 0.1 * jax.random.normal(ks[9], (outc,), jnp.float32)
    m2 = 0.1 * jax.random.normal(ks[10], (outc,), jnp.float32)
    v2 = 0.5 + jax.random.uniform(ks[11], (outc,), jnp.float32)

    s1f, b1f = _bn_fold(g1, b1, m1, v1)
    s2f, b2f = _bn_fold(g2, b2, m2, v2)

    # repack PyTorch OIHW weights for the kernel:
    #   conv_expand -> (Cin, Cout); 3x3 convs -> tap-major / channel-minor
    #   (9*Cin, Cout), matching the kernel's per-tap weight slices.
    we = jnp.transpose(WE[:, :, 0, 0], (1, 0)).astype(jnp.bfloat16)
    w1f = jnp.transpose(W1, (2, 3, 1, 0)).reshape(9 * inc, midc).astype(jnp.bfloat16)
    w2f = jnp.transpose(W2, (2, 3, 1, 0)).reshape(9 * midc, outc).astype(jnp.bfloat16)

    out = residual_block_pallas(x, we, w1f, w2f,
                                s1f[None, :], b1f[None, :],
                                s2f[None, :], b2f[None, :])
    out = jax.block_until_ready(out)

    # Check 1: reference using the SAME bf16 MXU input precision as the kernel
    # (tolerance covers f32 accumulation-order + one-ulp rounding of the hidden
    #  bf16 activation).
    ref_bf16 = reference_residual_block(x, WE, W1, W2,
                                        (g1, b1, m1, v1), (g2, b2, m2, v2),
                                        mxu_dtype=jnp.bfloat16)
    np.testing.assert_allclose(np.asarray(out), np.asarray(ref_bf16),
                               rtol=2e-2, atol=5e-2)

    # Check 2: loose sanity check against the full-f32 reference.
    ref_f32 = reference_residual_block(x, WE, W1, W2,
                                       (g1, b1, m1, v1), (g2, b2, m2, v2))
    np.testing.assert_allclose(np.asarray(out), np.asarray(ref_f32),
                               rtol=5e-2, atol=1e-1)

    print("KERNEL_OK")
</pallas_src>

<mosaic_0001>
module attributes {stable_mosaic.version = 11 : i64} {
  func.func @_residual_block_kernel(%arg0: i32, %arg1: memref<1x256x4xbf16, #tpu.memory_space<vmem>>, %arg2: memref<4x8xbf16, #tpu.memory_space<vmem>>, %arg3: memref<36x8xbf16, #tpu.memory_space<vmem>>, %arg4: memref<72x8xbf16, #tpu.memory_space<vmem>>, %arg5: memref<1x8xf32, #tpu.memory_space<vmem>>, %arg6: memref<1x8xf32, #tpu.memory_space<vmem>>, %arg7: memref<1x8xf32, #tpu.memory_space<vmem>>, %arg8: memref<1x8xf32, #tpu.memory_space<vmem>>, %arg9: memref<1x256x8xf32, #tpu.memory_space<vmem>>, %arg10: memref<320x4xbf16, #tpu.memory_space<vmem>>, %arg11: memref<320x8xbf16, #tpu.memory_space<vmem>>) attributes {dimension_semantics = [#tpu.dimension_semantics<parallel>], iteration_bounds = array<i64: 2>, scalar_prefetch = 0 : i64, scratch_operands = 2 : i64, tpu.core_type = #tpu.core_type<tc>, window_params = [{transform_indices = @transform_0, window_bounds = array<i64: 1, 256, 4>}, {pipeline_mode = #tpu.pipeline_mode<synchronous>, transform_indices = @transform_1, window_bounds = array<i64: 4, 8>}, {pipeline_mode = #tpu.pipeline_mode<synchronous>, transform_indices = @transform_2, window_bounds = array<i64: 36, 8>}, {pipeline_mode = #tpu.pipeline_mode<synchronous>, transform_indices = @transform_3, window_bounds = array<i64: 72, 8>}, {pipeline_mode = #tpu.pipeline_mode<synchronous>, transform_indices = @transform_4, window_bounds = array<i64: 1, 8>}, {pipeline_mode = #tpu.pipeline_mode<synchronous>, transform_indices = @transform_5, window_bounds = array<i64: 1, 8>}, {pipeline_mode = #tpu.pipeline_mode<synchronous>, transform_indices = @transform_6, window_bounds = array<i64: 1, 8>}, {pipeline_mode = #tpu.pipeline_mode<synchronous>, transform_indices = @transform_7, window_bounds = array<i64: 1, 8>}, {transform_indices = @transform_8, window_bounds = array<i64: 1, 256, 8>}]} {
    %0 = tpu.iota {dimensions = array<i32: 0>} : vector<256x1xi32>
    %c16_i32 = arith.constant 16 : i32
    %c0_i32 = arith.constant 0 : i32
    %1 = arith.cmpi eq, %c16_i32, %c0_i32 : i32
    %c1_i32 = arith.constant 1 : i32
    %2 = arith.select %1, %c1_i32, %c16_i32 : i32
    %3 = vector.broadcast %2 : i32 to vector<256x1xi32>
    %4 = arith.remsi %0, %3 : vector<256x1xi32>
    %c0_i32_0 = arith.constant 0 : i32
    %5 = vector.broadcast %c0_i32_0 : i32 to vector<256x1xi32>
    %6 = arith.cmpi ne, %4, %5 : vector<256x1xi32>
    %c0_i32_1 = arith.constant 0 : i32
    %7 = vector.broadcast %c0_i32_1 : i32 to vector<256x1xi32>
    %8 = arith.cmpi slt, %4, %7 : vector<256x1xi32>
    %c0_i32_2 = arith.constant 0 : i32
    %9 = arith.cmpi slt, %2, %c0_i32_2 : i32
    %10 = vector.broadcast %9 : i1 to vector<256x1xi1>
    %11 = vector.broadcast %10 : vector<256x1xi1> to vector<256x1xi1>
    %12 = arith.xori %8, %11 : vector<256x1xi1>
    %13 = arith.andi %12, %6 : vector<256x1xi1>
    %14 = vector.broadcast %2 : i32 to vector<256x1xi32>
    %15 = arith.addi %4, %14 : vector<256x1xi32>
    %16 = arith.select %13, %15, %4 : vector<256x1xi1>, vector<256x1xi32>
    %c0_i32_3 = arith.constant 0 : i32
    %17 = vector.broadcast %c0_i32_3 : i32 to vector<256x1xi32>
    %18 = arith.cmpi ne, %16, %17 : vector<256x1xi32>
    %c15_i32 = arith.constant 15 : i32
    %19 = vector.broadcast %c15_i32 : i32 to vector<256x1xi32>
    %20 = arith.cmpi ne, %16, %19 : vector<256x1xi32>
    %cst = arith.constant 0.000000e+00 : bf16
    %21 = vector.broadcast %cst : bf16 to vector<32x4xbf16>
    %c0 = arith.constant 0 : index
    %c0_4 = arith.constant 0 : index
    %22 = vector.load %arg10[%c0, %c0_4] : memref<320x4xbf16, #tpu.memory_space<vmem>>, vector<32x4xbf16>
    tpu.vector_store %arg10[%c0, %c0_4], %21 {strides = array<i32>} : memref<320x4xbf16, #tpu.memory_space<vmem>>, vector<32x4xbf16>,
    %cst_5 = arith.constant 0.000000e+00 : bf16
    %23 = vector.broadcast %cst_5 : bf16 to vector<32x4xbf16>
    %c288 = arith.constant 288 : index
    %c0_6 = arith.constant 0 : index
    %24 = vector.load %arg10[%c288, %c0_6] : memref<320x4xbf16, #tpu.memory_space<vmem>>, vector<32x4xbf16>
    tpu.vector_store %arg10[%c288, %c0_6], %23 {strides = array<i32>} : memref<320x4xbf16, #tpu.memory_space<vmem>>, vector<32x4xbf16>,
    %c0_7 = arith.constant 0 : index
    %c0_8 = arith.constant 0 : index
    %c0_9 = arith.constant 0 : index
    %25 = vector.load %arg1[%c0_7, %c0_8, %c0_9] : memref<1x256x4xbf16, #tpu.memory_space<vmem>>, vector<1x256x4xbf16>
    %26 = vector.shape_cast %25 : vector<1x256x4xbf16> to vector<256x4xbf16>
    %c32 = arith.constant 32 : index
    %c0_10 = arith.constant 0 : index
    %27 = vector.load %arg10[%c32, %c0_10] : memref<320x4xbf16, #tpu.memory_space<vmem>>, vector<256x4xbf16>
    tpu.vector_store %arg10[%c32, %c0_10], %26 {strides = array<i32>} : memref<320x4xbf16, #tpu.memory_space<vmem>>, vector<256x4xbf16>,
    %cst_11 = arith.constant 0.000000e+00 : bf16
    %28 = vector.broadcast %cst_11 : bf16 to vector<32x8xbf16>
    %c0_12 = arith.constant 0 : index
    %c0_13 = arith.constant 0 : index
    %29 = vector.load %arg11[%c0_12, %c0_13] : memref<320x8xbf16, #tpu.memory_space<vmem>>, vector<32x8xbf16>
    tpu.vector_store %arg11[%c0_12, %c0_13], %28 {strides = array<i32>} : memref<320x8xbf16, #tpu.memory_space<vmem>>, vector<32x8xbf16>,
    %cst_14 = arith.constant 0.000000e+00 : bf16
    %30 = vector.broadcast %cst_14 : bf16 to vector<32x8xbf16>
    %c288_15 = arith.constant 288 : index
    %c0_16 = arith.constant 0 : index
    %31 = vector.load %arg11[%c288_15, %c0_16] : memref<320x8xbf16, #tpu.memory_space<vmem>>, vector<32x8xbf16>
    tpu.vector_store %arg11[%c288_15, %c0_16], %30 {strides = array<i32>} : memref<320x8xbf16, #tpu.memory_space<vmem>>, vector<32x8xbf16>,
    %cst_17 = arith.constant 0.000000e+00 : f32
    %32 = vector.broadcast %cst_17 : f32 to vector<256x8xf32>
    %c15 = arith.constant 15 : index
    %c0_18 = arith.constant 0 : index
    %33 = vector.load %arg10[%c15, %c0_18] : memref<320x4xbf16, #tpu.memory_space<vmem>>, vector<256x4xbf16>
    %c0_i32_19 = arith.constant 0 : i32
    %34 = arith.sitofp %c0_i32_19 : i32 to bf16
    %35 = vector.shape_cast %18 : vector<256x1xi1> to vector<256x1xi1>
    %36 = vector.broadcast %35 : vector<256x1xi1> to vector<256x4xi1>
    %37 = vector.broadcast %34 : bf16 to vector<256x4xbf16>
    %38 = arith.select %36, %33, %37 : vector<256x4xi1>, vector<256x4xbf16>
    %c0_20 = arith.constant 0 : index
    %c0_21 = arith.constant 0 : index
    %39 = vector.load %arg3[%c0_20, %c0_21] : memref<36x8xbf16, #tpu.memory_space<vmem>>, vector<4x8xbf16>
    %cst_22 = arith.constant dense<0.000000e+00> : vector<256x8xf32>
    %40 = tpu.matmul %38, %39, %cst_22 {dimension_numbers = #tpu.dot_dimension_numbers<[1], [0], [0], [1], [0, 0, 1, 1], [], []>} : vector<256x4xbf16>, vector<4x8xbf16>, vector<256x8xf32> -> vector<256x8xf32>
    %41 = arith.addf %32, %40 : vector<256x8xf32>
    %c16 = arith.constant 16 : index
    %c0_23 = arith.constant 0 : index
    %42 = vector.load %arg10[%c16, %c0_23] : memref<320x4xbf16, #tpu.memory_space<vmem>>, vector<256x4xbf16>
    %c4 = arith.constant 4 : index
    %c0_24 = arith.constant 0 : index
    %43 = vector.load %arg3[%c4, %c0_24] : memref<36x8xbf16, #tpu.memory_space<vmem>>, vector<4x8xbf16>
    %cst_25 = arith.constant dense<0.000000e+00> : vector<256x8xf32>
    %44 = tpu.matmul %42, %43, %cst_25 {dimension_numbers = #tpu.dot_dimension_numbers<[1], [0], [0], [1], [0, 0, 1, 1], [], []>} : vector<256x4xbf16>, vector<4x8xbf16>, vector<256x8xf32> -> vector<256x8xf32>
    %45 = arith.addf %41, %44 : vector<256x8xf32>
    %c17 = arith.constant 17 : index
    %c0_26 = arith.constant 0 : index
    %46 = vector.load %arg10[%c17, %c0_26] : memref<320x4xbf16, #tpu.memory_space<vmem>>, vector<256x4xbf16>
    %c0_i32_27 = arith.constant 0 : i32
    %47 = arith.sitofp %c0_i32_27 : i32 to bf16
    %48 = vector.shape_cast %20 : vector<256x1xi1> to vector<256x1xi1>
    %49 = vector.broadcast %48 : vector<256x1xi1> to vector<256x4xi1>
    %50 = vector.broadcast %47 : bf16 to vector<256x4xbf16>
    %51 = arith.select %49, %46, %50 : vector<256x4xi1>, vector<256x4xbf16>
    %c8 = arith.constant 8 : index
    %c0_28 = arith.constant 0 : index
    %52 = vector.load %arg3[%c8, %c0_28] : memref<36x8xbf16, #tpu.memory_space<vmem>>, vector<4x8xbf16>
    %cst_29 = arith.constant dense<0.000000e+00> : vector<256x8xf32>
    %53 = tpu.matmul %51, %52, %cst_29 {dimension_numbers = #tpu.dot_dimension_numbers<[1], [0], [0], [1], [0, 0, 1, 1], [], []>} : vector<256x4xbf16>, vector<4x8xbf16>, vector<256x8xf32> -> vector<256x8xf32>
    %54 = arith.addf %45, %53 : vector<256x8xf32>
    %c31 = arith.constant 31 : index
    %c0_30 = arith.constant 0 : index
    %55 = vector.load %arg10[%c31, %c0_30] : memref<320x4xbf16, #tpu.memory_space<vmem>>, vector<256x4xbf16>
    %c0_i32_31 = arith.constant 0 : i32
    %56 = arith.sitofp %c0_i32_31 : i32 to bf16
    %57 = vector.shape_cast %18 : vector<256x1xi1> to vector<256x1xi1>
    %58 = vector.broadcast %57 : vector<256x1xi1> to vector<256x4xi1>
    %59 = vector.broadcast %56 : bf16 to vector<256x4xbf16>
    %60 = arith.select %58, %55, %59 : vector<256x4xi1>, vector<256x4xbf16>
    %c12 = arith.constant 12 : index
    %c0_32 = arith.constant 0 : index
    %61 = vector.load %arg3[%c12, %c0_32] : memref<36x8xbf16, #tpu.memory_space<vmem>>, vector<4x8xbf16>
    %cst_33 = arith.constant dense<0.000000e+00> : vector<256x8xf32>
    %62 = tpu.matmul %60, %61, %cst_33 {dimension_numbers = #tpu.dot_dimension_numbers<[1], [0], [0], [1], [0, 0, 1, 1], [], []>} : vector<256x4xbf16>, vector<4x8xbf16>, vector<256x8xf32> -> vector<256x8xf32>
    %63 = arith.addf %54, %62 : vector<256x8xf32>
    %c32_34 = arith.constant 32 : index
    %c0_35 = arith.constant 0 : index
    %64 = vector.load %arg10[%c32_34, %c0_35] : memref<320x4xbf16, #tpu.memory_space<vmem>>, vector<256x4xbf16>
    %c16_36 = arith.constant 16 : index
    %c0_37 = arith.constant 0 : index
    %65 = vector.load %arg3[%c16_36, %c0_37] : memref<36x8xbf16, #tpu.memory_space<vmem>>, vector<4x8xbf16>
    %cst_38 = arith.constant dense<0.000000e+00> : vector<256x8xf32>
    %66 = tpu.matmul %64, %65, %cst_38 {dimension_numbers = #tpu.dot_dimension_numbers<[1], [0], [0], [1], [0, 0, 1, 1], [], []>} : vector<256x4xbf16>, vector<4x8xbf16>, vector<256x8xf32> -> vector<256x8xf32>
    %67 = arith.addf %63, %66 : vector<256x8xf32>
    %c33 = arith.constant 33 : index
    %c0_39 = arith.constant 0 : index
    %68 = vector.load %arg10[%c33, %c0_39] : memref<320x4xbf16, #tpu.memory_space<vmem>>, vector<256x4xbf16>
    %c0_i32_40 = arith.constant 0 : i32
    %69 = arith.sitofp %c0_i32_40 : i32 to bf16
    %70 = vector.shape_cast %20 : vector<256x1xi1> to vector<256x1xi1>
    %71 = vector.broadcast %70 : vector<256x1xi1> to vector<256x4xi1>
    %72 = vector.broadcast %69 : bf16 to vector<256x4xbf16>
    %73 = arith.select %71, %68, %72 : vector<256x4xi1>, vector<256x4xbf16>
    %c20 = arith.constant 20 : index
    %c0_41 = arith.constant 0 : index
    %74 = vector.load %arg3[%c20, %c0_41] : memref<36x8xbf16, #tpu.memory_space<vmem>>, vector<4x8xbf16>
    %cst_42 = arith.constant dense<0.000000e+00> : vector<256x8xf32>
    %75 = tpu.matmul %73, %74, %cst_42 {dimension_numbers = #tpu.dot_dimension_numbers<[1], [0], [0], [1], [0, 0, 1, 1], [], []>} : vector<256x4xbf16>, vector<4x8xbf16>, vector<256x8xf32> -> vector<256x8xf32>
    %76 = arith.addf %67, %75 : vector<256x8xf32>
    %c47 = arith.constant 47 : index
    %c0_43 = arith.constant 0 : index
    %77 = vector.load %arg10[%c47, %c0_43] : memref<320x4xbf16, #tpu.memory_space<vmem>>, vector<256x4xbf16>
    %c0_i32_44 = arith.constant 0 : i32
    %78 = arith.sitofp %c0_i32_44 : i32 to bf16
    %79 = vector.shape_cast %18 : vector<256x1xi1> to vector<256x1xi1>
    %80 = vector.broadcast %79 : vector<256x1xi1> to vector<256x4xi1>
    %81 = vector.broadcast %78 : bf16 to vector<256x4xbf16>
    %82 = arith.select %80, %77, %81 : vector<256x4xi1>, vector<256x4xbf16>
    %c24 = arith.constant 24 : index
    %c0_45 = arith.constant 0 : index
    %83 = vector.load %arg3[%c24, %c0_45] : memref<36x8xbf16, #tpu.memory_space<vmem>>, vector<4x8xbf16>
    %cst_46 = arith.constant dense<0.000000e+00> : vector<256x8xf32>
    %84 = tpu.matmul %82, %83, %cst_46 {dimension_numbers = #tpu.dot_dimension_numbers<[1], [0], [0], [1], [0, 0, 1, 1], [], []>} : vector<256x4xbf16>, vector<4x8xbf16>, vector<256x8xf32> -> vector<256x8xf32>
    %85 = arith.addf %76, %84 : vector<256x8xf32>
    %c48 = arith.constant 48 : index
    %c0_47 = arith.constant 0 : index
    %86 = vector.load %arg10[%c48, %c0_47] : memref<320x4xbf16, #tpu.memory_space<vmem>>, vector<256x4xbf16>
    %c28 = arith.constant 28 : index
    %c0_48 = arith.constant 0 : index
    %87 = vector.load %arg3[%c28, %c0_48] : memref<36x8xbf16, #tpu.memory_space<vmem>>, vector<4x8xbf16>
    %cst_49 = arith.constant dense<0.000000e+00> : vector<256x8xf32>
    %88 = tpu.matmul %86, %87, %cst_49 {dimension_numbers = #tpu.dot_dimension_numbers<[1], [0], [0], [1], [0, 0, 1, 1], [], []>} : vector<256x4xbf16>, vector<4x8xbf16>, vector<256x8xf32> -> vector<256x8xf32>
    %89 = arith.addf %85, %88 : vector<256x8xf32>
    %c49 = arith.constant 49 : index
    %c0_50 = arith.constant 0 : index
    %90 = vector.load %arg10[%c49, %c0_50] : memref<320x4xbf16, #tpu.memory_space<vmem>>, vector<256x4xbf16>
    %c0_i32_51 = arith.constant 0 : i32
    %91 = arith.sitofp %c0_i32_51 : i32 to bf16
    %92 = vector.shape_cast %20 : vector<256x1xi1> to vector<256x1xi1>
    %93 = vector.broadcast %92 : vector<256x1xi1> to vector<256x4xi1>
    %94 = vector.broadcast %91 : bf16 to vector<256x4xbf16>
    %95 = arith.select %93, %90, %94 : vector<256x4xi1>, vector<256x4xbf16>
    %c32_52 = arith.constant 32 : index
    %c0_53 = arith.constant 0 : index
    %96 = vector.load %arg3[%c32_52, %c0_53] : memref<36x8xbf16, #tpu.memory_space<vmem>>, vector<4x8xbf16>
    %cst_54 = arith.constant dense<0.000000e+00> : vector<256x8xf32>
    %97 = tpu.matmul %95, %96, %cst_54 {dimension_numbers = #tpu.dot_dimension_numbers<[1], [0], [0], [1], [0, 0, 1, 1], [], []>} : vector<256x4xbf16>, vector<4x8xbf16>, vector<256x8xf32> -> vector<256x8xf32>
    %98 = arith.addf %89, %97 : vector<256x8xf32>
    %c0_55 = arith.constant 0 : index
    %c0_56 = arith.constant 0 : index
    %99 = vector.load %arg5[%c0_55, %c0_56] : memref<1x8xf32, #tpu.memory_space<vmem>>, vector<1x8xf32>
    %100 = vector.broadcast %99 : vector<1x8xf32> to vector<256x8xf32>
    %101 = arith.mulf %98, %100 : vector<256x8xf32>
    %c0_57 = arith.constant 0 : index
    %c0_58 = arith.constant 0 : index
    %102 = vector.load %arg6[%c0_57, %c0_58] : memref<1x8xf32, #tpu.memory_space<vmem>>, vector<1x8xf32>
    %103 = vector.broadcast %102 : vector<1x8xf32> to vector<256x8xf32>
    %104 = arith.addf %101, %103 : vector<256x8xf32>
    %cst_59 = arith.constant 2.000000e-01 : f32
    %105 = vector.broadcast %cst_59 : f32 to vector<256x8xf32>
    %106 = arith.mulf %105, %104 : vector<256x8xf32>
    %107 = arith.maximumf %104, %106 : vector<256x8xf32>
    %108 = arith.truncf %107 : vector<256x8xf32> to vector<256x8xbf16>
    %c32_60 = arith.constant 32 : index
    %c0_61 = arith.constant 0 : index
    %109 = vector.load %arg11[%c32_60, %c0_61] : memref<320x8xbf16, #tpu.memory_space<vmem>>, vector<256x8xbf16>
    tpu.vector_store %arg11[%c32_60, %c0_61], %108 {strides = array<i32>} : memref<320x8xbf16, #tpu.memory_space<vmem>>, vector<256x8xbf16>,
    %cst_62 = arith.constant 0.000000e+00 : f32
    %110 = vector.broadcast %cst_62 : f32 to vector<256x8xf32>
    %c15_63 = arith.constant 15 : index
    %c0_64 = arith.constant 0 : index
    %111 = vector.load %arg11[%c15_63, %c0_64] : memref<320x8xbf16, #tpu.memory_space<vmem>>, vector<256x8xbf16>
    %c0_i32_65 = arith.constant 0 : i32
    %112 = arith.sitofp %c0_i32_65 : i32 to bf16
    %113 = vector.shape_cast %18 : vector<256x1xi1> to vector<256x1xi1>
    %114 = vector.broadcast %113 : vector<256x1xi1> to vector<256x8xi1>
    %115 = vector.broadcast %112 : bf16 to vector<256x8xbf16>
    %116 = arith.select %114, %111, %115 : vector<256x8xi1>, vector<256x8xbf16>
    %c0_66 = arith.constant 0 : index
    %c0_67 = arith.constant 0 : index
    %117 = vector.load %arg4[%c0_66, %c0_67] : memref<72x8xbf16, #tpu.memory_space<vmem>>, vector<8x8xbf16>
    %cst_68 = arith.constant dense<0.000000e+00> : vector<256x8xf32>
    %118 = tpu.matmul %116, %117, %cst_68 {dimension_numbers = #tpu.dot_dimension_numbers<[1], [0], [0], [1], [0, 0, 1, 1], [], []>} : vector<256x8xbf16>, vector<8x8xbf16>, vector<256x8xf32> -> vector<256x8xf32>
    %119 = arith.addf %110, %118 : vector<256x8xf32>
    %c16_69 = arith.constant 16 : index
    %c0_70 = arith.constant 0 : index
    %120 = vector.load %arg11[%c16_69, %c0_70] : memref<320x8xbf16, #tpu.memory_space<vmem>>, vector<256x8xbf16>
    %c8_71 = arith.constant 8 : index
    %c0_72 = arith.constant 0 : index
    %121 = vector.load %arg4[%c8_71, %c0_72] : memref<72x8xbf16, #tpu.memory_space<vmem>>, vector<8x8xbf16>
    %cst_73 = arith.constant dense<0.000000e+00> : vector<256x8xf32>
    %122 = tpu.matmul %120, %121, %cst_73 {dimension_numbers = #tpu.dot_dimension_numbers<[1], [0], [0], [1], [0, 0, 1, 1], [], []>} : vector<256x8xbf16>, vector<8x8xbf16>, vector<256x8xf32> -> vector<256x8xf32>
    %123 = arith.addf %119, %122 : vector<256x8xf32>
    %c17_74 = arith.constant 17 : index
    %c0_75 = arith.constant 0 : index
    %124 = vector.load %arg11[%c17_74, %c0_75] : memref<320x8xbf16, #tpu.memory_space<vmem>>, vector<256x8xbf16>
    %c0_i32_76 = arith.constant 0 : i32
    %125 = arith.sitofp %c0_i32_76 : i32 to bf16
    %126 = vector.shape_cast %20 : vector<256x1xi1> to vector<256x1xi1>
    %127 = vector.broadcast %126 : vector<256x1xi1> to vector<256x8xi1>
    %128 = vector.broadcast %125 : bf16 to vector<256x8xbf16>
    %129 = arith.select %127, %124, %128 : vector<256x8xi1>, vector<256x8xbf16>
    %c16_77 = arith.constant 16 : index
    %c0_78 = arith.constant 0 : index
    %130 = vector.load %arg4[%c16_77, %c0_78] : memref<72x8xbf16, #tpu.memory_space<vmem>>, vector<8x8xbf16>
    %cst_79 = arith.constant dense<0.000000e+00> : vector<256x8xf32>
    %131 = tpu.matmul %129, %130, %cst_79 {dimension_numbers = #tpu.dot_dimension_numbers<[1], [0], [0], [1], [0, 0, 1, 1], [], []>} : vector<256x8xbf16>, vector<8x8xbf16>, vector<256x8xf32> -> vector<256x8xf32>
    %132 = arith.addf %123, %131 : vector<256x8xf32>
    %c31_80 = arith.constant 31 : index
    %c0_81 = arith.constant 0 : index
    %133 = vector.load %arg11[%c31_80, %c0_81] : memref<320x8xbf16, #tpu.memory_space<vmem>>, vector<256x8xbf16>
    %c0_i32_82 = arith.constant 0 : i32
    %134 = arith.sitofp %c0_i32_82 : i32 to bf16
    %135 = vector.shape_cast %18 : vector<256x1xi1> to vector<256x1xi1>
    %136 = vector.broadcast %135 : vector<256x1xi1> to vector<256x8xi1>
    %137 = vector.broadcast %134 : bf16 to vector<256x8xbf16>
    %138 = arith.select %136, %133, %137 : vector<256x8xi1>, vector<256x8xbf16>
    %c24_83 = arith.constant 24 : index
    %c0_84 = arith.constant 0 : index
    %139 = vector.load %arg4[%c24_83, %c0_84] : memref<72x8xbf16, #tpu.memory_space<vmem>>, vector<8x8xbf16>
    %cst_85 = arith.constant dense<0.000000e+00> : vector<256x8xf32>
    %140 = tpu.matmul %138, %139, %cst_85 {dimension_numbers = #tpu.dot_dimension_numbers<[1], [0], [0], [1], [0, 0, 1, 1], [], []>} : vector<256x8xbf16>, vector<8x8xbf16>, vector<256x8xf32> -> vector<256x8xf32>
    %141 = arith.addf %132, %140 : vector<256x8xf32>
    %c32_86 = arith.constant 32 : index
    %c0_87 = arith.constant 0 : index
    %142 = vector.load %arg11[%c32_86, %c0_87] : memref<320x8xbf16, #tpu.memory_space<vmem>>, vector<256x8xbf16>
    %c32_88 = arith.constant 32 : index
    %c0_89 = arith.constant 0 : index
    %143 = vector.load %arg4[%c32_88, %c0_89] : memref<72x8xbf16, #tpu.memory_space<vmem>>, vector<8x8xbf16>
    %cst_90 = arith.constant dense<0.000000e+00> : vector<256x8xf32>
    %144 = tpu.matmul %142, %143, %cst_90 {dimension_numbers = #tpu.dot_dimension_numbers<[1], [0], [0], [1], [0, 0, 1, 1], [], []>} : vector<256x8xbf16>, vector<8x8xbf16>, vector<256x8xf32> -> vector<256x8xf32>
    %145 = arith.addf %141, %144 : vector<256x8xf32>
    %c33_91 = arith.constant 33 : index
    %c0_92 = arith.constant 0 : index
    %146 = vector.load %arg11[%c33_91, %c0_92] : memref<320x8xbf16, #tpu.memory_space<vmem>>, vector<256x8xbf16>
    %c0_i32_93 = arith.constant 0 : i32
    %147 = arith.sitofp %c0_i32_93 : i32 to bf16
    %148 = vector.shape_cast %20 : vector<256x1xi1> to vector<256x1xi1>
    %149 = vector.broadcast %148 : vector<256x1xi1> to vector<256x8xi1>
    %150 = vector.broadcast %147 : bf16 to vector<256x8xbf16>
    %151 = arith.select %149, %146, %150 : vector<256x8xi1>, vector<256x8xbf16>
    %c40 = arith.constant 40 : index
    %c0_94 = arith.constant 0 : index
    %152 = vector.load %arg4[%c40, %c0_94] : memref<72x8xbf16, #tpu.memory_space<vmem>>, vector<8x8xbf16>
    %cst_95 = arith.constant dense<0.000000e+00> : vector<256x8xf32>
    %153 = tpu.matmul %151, %152, %cst_95 {dimension_numbers = #tpu.dot_dimension_numbers<[1], [0], [0], [1], [0, 0, 1, 1], [], []>} : vector<256x8xbf16>, vector<8x8xbf16>, vector<256x8xf32> -> vector<256x8xf32>
    %154 = arith.addf %145, %153 : vector<256x8xf32>
    %c47_96 = arith.constant 47 : index
    %c0_97 = arith.constant 0 : index
    %155 = vector.load %arg11[%c47_96, %c0_97] : memref<320x8xbf16, #tpu.memory_space<vmem>>, vector<256x8xbf16>
    %c0_i32_98 = arith.constant 0 : i32
    %156 = arith.sitofp %c0_i32_98 : i32 to bf16
    %157 = vector.shape_cast %18 : vector<256x1xi1> to vector<256x1xi1>
    %158 = vector.broadcast %157 : vector<256x1xi1> to vector<256x8xi1>
    %159 = vector.broadcast %156 : bf16 to vector<256x8xbf16>
    %160 = arith.select %158, %155, %159 : vector<256x8xi1>, vector<256x8xbf16>
    %c48_99 = arith.constant 48 : index
    %c0_100 = arith.constant 0 : index
    %161 = vector.load %arg4[%c48_99, %c0_100] : memref<72x8xbf16, #tpu.memory_space<vmem>>, vector<8x8xbf16>
    %cst_101 = arith.constant dense<0.000000e+00> : vector<256x8xf32>
    %162 = tpu.matmul %160, %161, %cst_101 {dimension_numbers = #tpu.dot_dimension_numbers<[1], [0], [0], [1], [0, 0, 1, 1], [], []>} : vector<256x8xbf16>, vector<8x8xbf16>, vector<256x8xf32> -> vector<256x8xf32>
    %163 = arith.addf %154, %162 : vector<256x8xf32>
    %c48_102 = arith.constant 48 : index
    %c0_103 = arith.constant 0 : index
    %164 = vector.load %arg11[%c48_102, %c0_103] : memref<320x8xbf16, #tpu.memory_space<vmem>>, vector<256x8xbf16>
    %c56 = arith.constant 56 : index
    %c0_104 = arith.constant 0 : index
    %165 = vector.load %arg4[%c56, %c0_104] : memref<72x8xbf16, #tpu.memory_space<vmem>>, vector<8x8xbf16>
    %cst_105 = arith.constant dense<0.000000e+00> : vector<256x8xf32>
    %166 = tpu.matmul %164, %165, %cst_105 {dimension_numbers = #tpu.dot_dimension_numbers<[1], [0], [0], [1], [0, 0, 1, 1], [], []>} : vector<256x8xbf16>, vector<8x8xbf16>, vector<256x8xf32> -> vector<256x8xf32>
    %167 = arith.addf %163, %166 : vector<256x8xf32>
    %c49_106 = arith.constant 49 : index
    %c0_107 = arith.constant 0 : index
    %168 = vector.load %arg11[%c49_106, %c0_107] : memref<320x8xbf16, #tpu.memory_space<vmem>>, vector<256x8xbf16>
    %c0_i32_108 = arith.constant 0 : i32
    %169 = arith.sitofp %c0_i32_108 : i32 to bf16
    %170 = vector.shape_cast %20 : vector<256x1xi1> to vector<256x1xi1>
    %171 = vector.broadcast %170 : vector<256x1xi1> to vector<256x8xi1>
    %172 = vector.broadcast %169 : bf16 to vector<256x8xbf16>
    %173 = arith.select %171, %168, %172 : vector<256x8xi1>, vector<256x8xbf16>
    %c64 = arith.constant 64 : index
    %c0_109 = arith.constant 0 : index
    %174 = vector.load %arg4[%c64, %c0_109] : memref<72x8xbf16, #tpu.memory_space<vmem>>, vector<8x8xbf16>
    %cst_110 = arith.constant dense<0.000000e+00> : vector<256x8xf32>
    %175 = tpu.matmul %173, %174, %cst_110 {dimension_numbers = #tpu.dot_dimension_numbers<[1], [0], [0], [1], [0, 0, 1, 1], [], []>} : vector<256x8xbf16>, vector<8x8xbf16>, vector<256x8xf32> -> vector<256x8xf32>
    %176 = arith.addf %167, %175 : vector<256x8xf32>
    %c0_111 = arith.constant 0 : index
    %c0_112 = arith.constant 0 : index
    %177 = vector.load %arg7[%c0_111, %c0_112] : memref<1x8xf32, #tpu.memory_space<vmem>>, vector<1x8xf32>
    %178 = vector.broadcast %177 : vector<1x8xf32> to vector<256x8xf32>
    %179 = arith.mulf %176, %178 : vector<256x8xf32>
    %c0_113 = arith.constant 0 : index
    %c0_114 = arith.constant 0 : index
    %180 = vector.load %arg8[%c0_113, %c0_114] : memref<1x8xf32, #tpu.memory_space<vmem>>, vector<1x8xf32>
    %181 = vector.broadcast %180 : vector<1x8xf32> to vector<256x8xf32>
    %182 = arith.addf %179, %181 : vector<256x8xf32>
    %c0_115 = arith.constant 0 : index
    %c0_116 = arith.constant 0 : index
    %c0_117 = arith.constant 0 : index
    %183 = vector.load %arg1[%c0_115, %c0_116, %c0_117] : memref<1x256x4xbf16, #tpu.memory_space<vmem>>, vector<1x256x4xbf16>
    %184 = vector.shape_cast %183 : vector<1x256x4xbf16> to vector<256x4xbf16>
    %c0_118 = arith.constant 0 : index
    %c0_119 = arith.constant 0 : index
    %185 = vector.load %arg2[%c0_118, %c0_119] : memref<4x8xbf16, #tpu.memory_space<vmem>>, vector<4x8xbf16>
    %cst_120 = arith.constant dense<0.000000e+00> : vector<256x8xf32>
    %186 = tpu.matmul %184, %185, %cst_120 {dimension_numbers = #tpu.dot_dimension_numbers<[1], [0], [0], [1], [0, 0, 1, 1], [], []>} : vector<256x4xbf16>, vector<4x8xbf16>, vector<256x8xf32> -> vector<256x8xf32>
    %187 = arith.addf %182, %186 : vector<256x8xf32>
    %cst_121 = arith.constant 2.000000e-01 : f32
    %188 = vector.broadcast %cst_121 : f32 to vector<256x8xf32>
    %189 = arith.mulf %188, %187 : vector<256x8xf32>
    %190 = arith.maximumf %187, %189 : vector<256x8xf32>
    %c0_122 = arith.constant 0 : index
    %c0_123 = arith.constant 0 : index
    %c0_124 = arith.constant 0 : index
    %191 = vector.load %arg9[%c0_122, %c0_123, %c0_124] : memref<1x256x8xf32, #tpu.memory_space<vmem>>, vector<1x256x8xf32>
    %192 = vector.shape_cast %191 : vector<1x256x8xf32> to vector<256x8xf32>
    %193 = vector.shape_cast %190 : vector<256x8xf32> to vector<1x256x8xf32>
    tpu.vector_store %arg9[%c0_122, %c0_123, %c0_124], %193 {strides = array<i32>} : memref<1x256x8xf32, #tpu.memory_space<vmem>>, vector<1x256x8xf32>,
    return
  }
  func.func @transform_0(%arg0: i32) -> (i32, i32, i32) {
    %c0_i32 = arith.constant 0 : i32
    %c0_i32_0 = arith.constant 0 : i32
    %c0_i32_1 = arith.constant 0 : i32
    return %arg0, %c0_i32, %c0_i32_0 : i32, i32, i32
  }
  func.func @transform_1(%arg0: i32) -> (i32, i32) {
    %c0_i32 = arith.constant 0 : i32
    %c0_i32_0 = arith.constant 0 : i32
    %c0_i32_1 = arith.constant 0 : i32
    return %c0_i32, %c0_i32_0 : i32, i32
  }
  func.func @transform_2(%arg0: i32) -> (i32, i32) {
    %c0_i32 = arith.constant 0 : i32
    %c0_i32_0 = arith.constant 0 : i32
    %c0_i32_1 = arith.constant 0 : i32
    return %c0_i32, %c0_i32_0 : i32, i32
  }
  func.func @transform_3(%arg0: i32) -> (i32, i32) {
    %c0_i32 = arith.constant 0 : i32
    %c0_i32_0 = arith.constant 0 : i32
    %c0_i32_1 = arith.constant 0 : i32
    return %c0_i32, %c0_i32_0 : i32, i32
  }
  func.func @transform_4(%arg0: i32) -> (i32, i32) {
    %c0_i32 = arith.constant 0 : i32
    %c0_i32_0 = arith.constant 0 : i32
    %c0_i32_1 = arith.constant 0 : i32
    return %c0_i32, %c0_i32_0 : i32, i32
  }
  func.func @transform_5(%arg0: i32) -> (i32, i32) {
    %c0_i32 = arith.constant 0 : i32
    %c0_i32_0 = arith.constant 0 : i32
    %c0_i32_1 = arith.constant 0 : i32
    return %c0_i32, %c0_i32_0 : i32, i32
  }
  func.func @transform_6(%arg0: i32) -> (i32, i32) {
    %c0_i32 = arith.constant 0 : i32
    %c0_i32_0 = arith.constant 0 : i32
    %c0_i32_1 = arith.constant 0 : i32
    return %c0_i32, %c0_i32_0 : i32, i32
  }
  func.func @transform_7(%arg0: i32) -> (i32, i32) {
    %c0_i32 = arith.constant 0 : i32
    %c0_i32_0 = arith.constant 0 : i32
    %c0_i32_1 = arith.constant 0 : i32
    return %c0_i32, %c0_i32_0 : i32, i32
  }
  func.func @transform_8(%arg0: i32) -> (i32, i32, i32) {
    %c0_i32 = arith.constant 0 : i32
    %c0_i32_0 = arith.constant 0 : i32
    %c0_i32_1 = arith.constant 0 : i32
    return %arg0, %c0_i32, %c0_i32_0 : i32, i32, i32
  }
}

</mosaic_0001>

<llo_original>
// kernel: tpu_custom_call.1
$region0: #{tpu_custom_call.1}
  #allocation0 [shape = 'u32[]', space=smem, size = 0x4, offset = 0x4, fixed_abs, tag = 'smem constant byte address 0x4 - core index']
  #allocation1 [shape = 'u32[144,128]{1,0:T(1,128)}', space=vmem, size = 0x12000, scoped, tag = 'internal scratch']
  #allocation2 [shape = 'bf16[320,4]{1,0:T(16,128)(2,1)}', space=vmem, size = 0x14000, scoped, tag = 'scratch operand']
  #allocation3 [shape = 'bf16[320,8]{1,0:T(16,128)(2,1)}', space=vmem, size = 0x14000, scoped, tag = 'scratch operand']
  %s0 = inlined_call_operand.vmem [shape: bf16[2,256,4], index: 0, kind: input, shape index: {}]
  %s1 = inlined_call_operand.vmem [shape: bf16[4,8], index: 1, kind: input, shape index: {}]
  %s2 = inlined_call_operand.vmem [shape: bf16[36,8], index: 2, kind: input, shape index: {}]
  %s3 = inlined_call_operand.vmem [shape: bf16[72,8], index: 3, kind: input, shape index: {}]
  %s4 = inlined_call_operand.vmem [shape: f32[1,8], index: 4, kind: input, shape index: {}]
  %s5 = inlined_call_operand.vmem [shape: f32[1,8], index: 5, kind: input, shape index: {}]
  %s6 = inlined_call_operand.vmem [shape: f32[1,8], index: 6, kind: input, shape index: {}]
  %s7 = inlined_call_operand.vmem [shape: f32[1,8], index: 7, kind: input, shape index: {}]
  %s8 = inlined_call_operand.vmem [shape: f32[2,256,8], index: 8, kind: output, shape index: {}]
  %s9 = sld [smem:[#allocation0]]
  $region65: #{tpu_custom_call.1} parent=0
    _
  %s11 = ssub.s32 1, %s9
  %s12 = scalar_select 0, %s11, %s9
  loop: start=0, step=1, limit=4
  $region2: #{tpu_custom_call.1} parent=0 // loop_pre_header
    _
  $region3: #{tpu_custom_call.1} parent=0 // loop_header
    %s14 = sphi 0, %s18
    %p15 = scmp.ge.s32.totalorder %s14, 4
    %s24 = sphi 0, %s26
    %s27 = sphi 0, %s24
    %s28 = sphi 0, %s27
    %s44 = sphi 0, %s28
    %s48 = sphi 0, %s48
    %s50 = sphi 0, %s48
    %s51 = sphi 0, %s50
    %s65 = sphi 0, %s51
    %s69 = sphi 0, %s69
    %s71 = sphi 0, %s69
    %s72 = sphi 0, %s71
    %s86 = sphi 0, %s72
    %s90 = sphi 0, %s90
    %s92 = sphi 0, %s90
    %s93 = sphi 0, %s92
    %s107 = sphi 0, %s93
    %s111 = sphi 0, %s111
    %s113 = sphi 0, %s111
    %s114 = sphi 0, %s113
    %s128 = sphi 0, %s114
    %s132 = sphi 0, %s132
    %s134 = sphi 0, %s132
    %s135 = sphi 0, %s134
    %s149 = sphi 0, %s135
    %s153 = sphi 0, %s153
    %s155 = sphi 0, %s153
    %s156 = sphi 0, %s155
    %s170 = sphi 0, %s156
    %s174 = sphi 0, %s174
    %s176 = sphi 0, %s174
    %s177 = sphi 0, %s176
    %s191 = sphi 0, %s177
    %s197 = sphi 0, %s199
    %s200 = sphi 0, %s197
    %s201 = sphi 0, %s200
    %s217 = sphi 0, %s201
  $region4: #{tpu_custom_call.1} parent=0 // loop_header_branch
    %17 = sbr.rel (%p15) target = $region8
  $region5: #{tpu_custom_call.1} parent=0 // loop_body
    %s19 = ssub.s32 %s14, 1
    %s20 = ssub.s32 %s14, 2
    %s21 = sadd.s32 %s14, 1
    %s22 = ssub.s32 %s14, %s21
    %p23 = scmp.eq.s32.totalorder %s22, 0
    %s25 = sadd.s32 %s24, 1
    %s26 = scalar_select %p23, %s24, %s25
    %p29 = pneg %p23
    %p30 = scmp.eq.s32.totalorder %s14, 1
    %p31 = por %p29, %p30
    %p32 = scmp.ne.s32.totalorder %s24, %s27
    %p33 = scmp.eq.s32.totalorder %s14, 0
    %p34 = por %p32, %p33
    %p35 = scmp.ne.s32.totalorder %s24, %s27
    %p36 = scmp.eq.s32.totalorder %s19, 1
    %p37 = por %p35, %p36
    %p38 = scmp.ne.s32.totalorder %s27, %s28
    %p39 = scmp.eq.s32.totalorder %s19, 0
    %p40 = por %p38, %p39
    %p41 = scmp.ne.s32.totalorder %s27, %s28
    %p42 = scmp.eq.s32.totalorder %s20, 1
    %p43 = por %p41, %p42
    %p45 = scmp.ne.s32.totalorder %s28, %s44
    %p46 = scmp.eq.s32.totalorder %s20, 0
    %p47 = por %p45, %p46
    %s49 = sadd.s32 %s48, 1
    %p52 = scmp.eq.s32.totalorder %s14, 1
    %p53 = scmp.ne.s32.totalorder %s48, %s50
    %p54 = scmp.eq.s32.totalorder %s14, 0
    %p55 = por %p53, %p54
    %p56 = scmp.ne.s32.totalorder %s48, %s50
    %p57 = scmp.eq.s32.totalorder %s19, 1
    %p58 = por %p56, %p57
    %p59 = scmp.ne.s32.totalorder %s50, %s51
    %p60 = scmp.eq.s32.totalorder %s19, 0
    %p61 = por %p59, %p60
    %p62 = scmp.ne.s32.totalorder %s50, %s51
    %p63 = scmp.eq.s32.totalorder %s20, 1
    %p64 = por %p62, %p63
    %p66 = scmp.ne.s32.totalorder %s51, %s65
    %p67 = scmp.eq.s32.totalorder %s20, 0
    %p68 = por %p66, %p67
    %s70 = sadd.s32 %s69, 1
    %p73 = scmp.eq.s32.totalorder %s14, 1
    %p74 = scmp.ne.s32.totalorder %s69, %s71
    %p75 = scmp.eq.s32.totalorder %s14, 0
    %p76 = por %p74, %p75
    %p77 = scmp.ne.s32.totalorder %s69, %s71
    %p78 = scmp.eq.s32.totalorder %s19, 1
    %p79 = por %p77, %p78
    %p80 = scmp.ne.s32.totalorder %s71, %s72
    %p81 = scmp.eq.s32.totalorder %s19, 0
    %p82 = por %p80, %p81
    %p83 = scmp.ne.s32.totalorder %s71, %s72
    %p84 = scmp.eq.s32.totalorder %s20, 1
    %p85 = por %p83, %p84
    %p87 = scmp.ne.s32.totalorder %s72, %s86
    %p88 = scmp.eq.s32.totalorder %s20, 0
    %p89 = por %p87, %p88
    %s91 = sadd.s32 %s90, 1
    %p94 = scmp.eq.s32.totalorder %s14, 1
    %p95 = scmp.ne.s32.totalorder %s90, %s92
    %p96 = scmp.eq.s32.totalorder %s14, 0
    %p97 = por %p95, %p96
    %p98 = scmp.ne.s32.totalorder %s90, %s92
    %p99 = scmp.eq.s32.totalorder %s19, 1
    %p100 = por %p98, %p99
    %p101 = scmp.ne.s32.totalorder %s92, %s93
    %p102 = scmp.eq.s32.totalorder %s19, 0
    %p103 = por %p101, %p102
    %p104 = scmp.ne.s32.totalorder %s92, %s93
    %p105 = scmp.eq.s32.totalorder %s20, 1
    %p106 = por %p104, %p105
    %p108 = scmp.ne.s32.totalorder %s93, %s107
    %p109 = scmp.eq.s32.totalorder %s20, 0
    %p110 = por %p108, %p109
    %s112 = sadd.s32 %s111, 1
    %p115 = scmp.eq.s32.totalorder %s14, 1
    %p116 = scmp.ne.s32.totalorder %s111, %s113
    %p117 = scmp.eq.s32.totalorder %s14, 0
    %p118 = por %p116, %p117
    %p119 = scmp.ne.s32.totalorder %s111, %s113
    %p120 = scmp.eq.s32.totalorder %s19, 1
    %p121 = por %p119, %p120
    %p122 = scmp.ne.s32.totalorder %s113, %s114
    %p123 = scmp.eq.s32.totalorder %s19, 0
    %p124 = por %p122, %p123
    %p125 = scmp.ne.s32.totalorder %s113, %s114
    %p126 = scmp.eq.s32.totalorder %s20, 1
    %p127 = por %p125, %p126
    %p129 = scmp.ne.s32.totalorder %s114, %s128
    %p130 = scmp.eq.s32.totalorder %s20, 0
    %p131 = por %p129, %p130
    %s133 = sadd.s32 %s132, 1
    %p136 = scmp.eq.s32.totalorder %s14, 1
    %p137 = scmp.ne.s32.totalorder %s132, %s134
    %p138 = scmp.eq.s32.totalorder %s14, 0
    %p139 = por %p137, %p138
    %p140 = scmp.ne.s32.totalorder %s132, %s134
    %p141 = scmp.eq.s32.totalorder %s19, 1
    %p142 = por %p140, %p141
    %p143 = scmp.ne.s32.totalorder %s134, %s135
    %p144 = scmp.eq.s32.totalorder %s19, 0
    %p145 = por %p143, %p144
    %p146 = scmp.ne.s32.totalorder %s134, %s135
    %p147 = scmp.eq.s32.totalorder %s20, 1
    %p148 = por %p146, %p147
    %p150 = scmp.ne.s32.totalorder %s135, %s149
    %p151 = scmp.eq.s32.totalorder %s20, 0
    %p152 = por %p150, %p151
    %s154 = sadd.s32 %s153, 1
    %p157 = scmp.eq.s32.totalorder %s14, 1
    %p158 = scmp.ne.s32.totalorder %s153, %s155
    %p159 = scmp.eq.s32.totalorder %s14, 0
    %p160 = por %p158, %p159
    %p161 = scmp.ne.s32.totalorder %s153, %s155
    %p162 = scmp.eq.s32.totalorder %s19, 1
    %p163 = por %p161, %p162
    %p164 = scmp.ne.s32.totalorder %s155, %s156
    %p165 = scmp.eq.s32.totalorder %s19, 0
    %p166 = por %p164, %p165
    %p167 = scmp.ne.s32.totalorder %s155, %s156
    %p168 = scmp.eq.s32.totalorder %s20, 1
    %p169 = por %p167, %p168
    %p171 = scmp.ne.s32.totalorder %s156, %s170
    %p172 = scmp.eq.s32.totalorder %s20, 0
    %p173 = por %p171, %p172
    %s175 = sadd.s32 %s174, 1
    %p178 = scmp.eq.s32.totalorder %s14, 1
    %p179 = scmp.ne.s32.totalorder %s174, %s176
    %p180 = scmp.eq.s32.totalorder %s14, 0
    %p181 = por %p179, %p180
    %p182 = scmp.ne.s32.totalorder %s174, %s176
    %p183 = scmp.eq.s32.totalorder %s19, 1
    %p184 = por %p182, %p183
    %p185 = scmp.ne.s32.totalorder %s176, %s177
    %p186 = scmp.eq.s32.totalorder %s19, 0
    %p187 = por %p185, %p186
    %p188 = scmp.ne.s32.totalorder %s176, %s177
    %p189 = scmp.eq.s32.totalorder %s20, 1
    %p190 = por %p188, %p189
    %p192 = scmp.ne.s32.totalorder %s177, %s191
    %p193 = scmp.eq.s32.totalorder %s20, 0
    %p194 = por %p192, %p193
    %s195 = ssub.s32 %s14, %s21
    %p196 = scmp.eq.s32.totalorder %s195, 0
    %s198 = sadd.s32 %s197, 1
    %s199 = scalar_select %p196, %s197, %s198
    %p202 = pneg %p196
    %p203 = scmp.eq.s32.totalorder %s14, 1
    %p204 = por %p202, %p203
    %p205 = scmp.ne.s32.totalorder %s197, %s200
    %p206 = scmp.eq.s32.totalorder %s14, 0
    %p207 = por %p205, %p206
    %p208 = scmp.ne.s32.totalorder %s197, %s200
    %p209 = scmp.eq.s32.totalorder %s19, 1
    %p210 = por %p208, %p209
    %p211 = scmp.ne.s32.totalorder %s200, %s201
    %p212 = scmp.eq.s32.totalorder %s19, 0
    %p213 = por %p211, %p212
    %p214 = scmp.ne.s32.totalorder %s200, %s201
    %p215 = scmp.eq.s32.totalorder %s20, 1
    %p216 = por %p214, %p215
    %p218 = scmp.ne.s32.totalorder %s201, %s217
    %p219 = scmp.eq.s32.totalorder %s20, 0
    %p220 = por %p218, %p219
    %p221 = scmp.le.s32.totalorder 1, %s14
    %p222 = scmp.lt.s32.totalorder %s14, 3
    %p223 = pnand %p221, %p222
    %p224 = pneg %p223
    // Predicated region
    $region9: #{tpu_custom_call.1} parent=5 // pred_check
      _
    $region10: #{tpu_custom_call.1} parent=5 // pred_check_branch
      %226 = sbr.rel (%p223) target = $region12
    $region11: #{tpu_custom_call.1} parent=5 // pred_region
      %s227 = ssub.s32 %s14, 1
      // Predicated region
      $region13: #{tpu_custom_call.1} parent=11 // pred_check
        %p228 = pneg %p61
      $region14: #{tpu_custom_call.1} parent=11 // pred_check_branch
        %230 = sbr.rel (%p228) target = $region16
      $region15: #{tpu_custom_call.1} parent=11 // pred_region
        _
      $region16: #{tpu_custom_call.1} parent=11 // pred_fallthru
        _
      // Predicated region
      $region17: #{tpu_custom_call.1} parent=11 // pred_check
        %p231 = pneg %p82
      $region18: #{tpu_custom_call.1} parent=11 // pred_check_branch
        %233 = sbr.rel (%p231) target = $region20
      $region19: #{tpu_custom_call.1} parent=11 // pred_region
        _
      $region20: #{tpu_custom_call.1} parent=11 // pred_fallthru
        _
      // Predicated region
      $region21: #{tpu_custom_call.1} parent=11 // pred_check
        %p234 = pneg %p103
      $region22: #{tpu_custom_call.1} parent=11 // pred_check_branch
        %236 = sbr.rel (%p234) target = $region24
      $region23: #{tpu_custom_call.1} parent=11 // pred_region
        _
      $region24: #{tpu_custom_call.1} parent=11 // pred_fallthru
        _
      // Predicated region
      $region25: #{tpu_custom_call.1} parent=11 // pred_check
        %p237 = pneg %p124
      $region26: #{tpu_custom_call.1} parent=11 // pred_check_branch
        %239 = sbr.rel (%p237) target = $region28
      $region27: #{tpu_custom_call.1} parent=11 // pred_region
        _
      $region28: #{tpu_custom_call.1} parent=11 // pred_fallthru
        _
      // Predicated region
      $region29: #{tpu_custom_call.1} parent=11 // pred_check
        %p240 = pneg %p145
      $region30: #{tpu_custom_call.1} parent=11 // pred_check_branch
        %242 = sbr.rel (%p240) target = $region32
      $region31: #{tpu_custom_call.1} parent=11 // pred_region
        _
      $region32: #{tpu_custom_call.1} parent=11 // pred_fallthru
        _
      // Predicated region
      $region33: #{tpu_custom_call.1} parent=11 // pred_check
        %p243 = pneg %p166
      $region34: #{tpu_custom_call.1} parent=11 // pred_check_branch
        %245 = sbr.rel (%p243) target = $region36
      $region35: #{tpu_custom_call.1} parent=11 // pred_region
        _
      $region36: #{tpu_custom_call.1} parent=11 // pred_fallthru
        _
      // Predicated region
      $region37: #{tpu_custom_call.1} parent=11 // pred_check
        %p246 = pneg %p187
      $region38: #{tpu_custom_call.1} parent=11 // pred_check_branch
        %248 = sbr.rel (%p246) target = $region40
      $region39: #{tpu_custom_call.1} parent=11 // pred_region
        _
      $region40: #{tpu_custom_call.1} parent=11 // pred_fallthru
        _
    $region12: #{tpu_custom_call.1} parent=5 // pred_fallthru
      _
    %p249 = scmp.lt.s32.totalorder %s14, 2
    // Predicated region
    $region41: #{tpu_custom_call.1} parent=5 // pred_check
      %p250 = pneg %p249
    $region42: #{tpu_custom_call.1} parent=5 // pred_check_branch
      %252 = sbr.rel (%p250) target = $region44
    $region43: #{tpu_custom_call.1} parent=5 // pred_region
      // Predicated region
      $region45: #{tpu_custom_call.1} parent=43 // pred_check
        %p253 = pneg %p34
      $region46: #{tpu_custom_call.1} parent=43 // pred_check_branch
        %255 = sbr.rel (%p253) target = $region48
      $region47: #{tpu_custom_call.1} parent=43 // pred_region
        %p256 = scmp.lt.s32.totalorder %s14, 1
        %s257 = scalar_select %p256, %s14, 1
        %s258 = smul.addr %s257, 32
        %s259 = smul.addr %s258, 4
        %s260 = scalar_lea.vmem %s0, %s259
      $region48: #{tpu_custom_call.1} parent=43 // pred_fallthru
        _
    $region44: #{tpu_custom_call.1} parent=5 // pred_fallthru
      _
    %p261 = scmp.le.s32.totalorder 1, %s14
    %p262 = scmp.lt.s32.totalorder %s14, 3
    %p263 = pnand %p261, %p262
    %p264 = pneg %p263
    // Predicated region
    $region49: #{tpu_custom_call.1} parent=5 // pred_check
      _
    $region50: #{tpu_custom_call.1} parent=5 // pred_check_branch
      %266 = sbr.rel (%p263) target = $region52
    $region51: #{tpu_custom_call.1} parent=5 // pred_region
      %s267 = ssub.s32 %s14, 1
      %p268 = scmp.lt.s32.totalorder %s19, 1
      %s269 = scalar_select %p268, %s19, 1
      %s270 = smul.addr %s269, 32
      %s271 = smul.addr %s270, 4
      %s272 = scalar_lea.vmem %s0, %s271
      %p273 = pneg %p40
      %p274 = pneg %p37
      %p275 = pneg %p61
      %p276 = pneg %p58
      %p277 = pneg %p82
      %p278 = pneg %p79
      %p279 = pneg %p103
      %p280 = pneg %p100
      %p281 = pneg %p124
      %p282 = pneg %p121
      %p283 = pneg %p145
      %p284 = pneg %p142
      %p285 = pneg %p166
      %p286 = pneg %p163
      %p287 = pneg %p187
      %p288 = pneg %p184
      %p289 = pneg %p213
      %p290 = pneg %p210
      %p291 = scmp.lt.s32.totalorder %s19, 1
      %s292 = scalar_select %p291, %s19, 1
      %s293 = smul.addr %s292, 32
      %s294 = smul.addr %s293, 8
      %s295 = scalar_lea.vmem %s8, %s294
      %p296 = scmp.lt.s32.totalorder %s19, 1
      %s297 = scalar_select %p296, %s19, 1
      %s298 = smul.addr %s297, 32
      %s299 = smul.addr %s298, 4
      %s300 = scalar_lea.vmem %s0, %s299
      %p301 = scmp.lt.s32.totalorder %s19, 1
      %s302 = scalar_select %p301, %s19, 1
      %s303 = smul.addr %s302, 32
      %s304 = smul.addr %s303, 8
      %s305 = scalar_lea.vmem %s8, %s304
      %v309 = vlaneseq
      %v310 = vshrl.u32 %v309, 7
      %v311 = vadd.s32 %v310, 8
      %v312 = vadd.s32 %v310, 16
      %v313 = vadd.s32 %v310, 24
      %v314 = vadd.s32 %v310, 32
      %v315 = vadd.s32 %v310, 40
      %v316 = vadd.s32 %v310, 48
      %v317 = vadd.s32 %v310, 56
      %v318 = vadd.s32 %v310, 64
      %v319 = vadd.s32 %v310, 72
      %v320 = vadd.s32 %v310, 80
      %v321 = vadd.s32 %v310, 88
      %v322 = vadd.s32 %v310, 96
      %v323 = vadd.s32 %v310, 104
      %v324 = vadd.s32 %v310, 112
      %v325 = vadd.s32 %v310, 120
      %v326 = vadd.s32 %v310, 128
      %v327 = vadd.s32 %v310, 136
      %v328 = vadd.s32 %v310, 144
      %v329 = vadd.s32 %v310, 152
      %v330 = vadd.s32 %v310, 160
      %v331 = vadd.s32 %v310, 168
      %v332 = vadd.s32 %v310, 176
      %v333 = vadd.s32 %v310, 184
      %v334 = vadd.s32 %v310, 192
      %v335 = vadd.s32 %v310, 200
      %v336 = vadd.s32 %v310, 208
      %v337 = vadd.s32 %v310, 216
      %v338 = vadd.s32 %v310, 224
      %v339 = vadd.s32 %v310, 232
      %v340 = vadd.s32 %v310, 240
      %v341 = vadd.s32 %v310, 248
      %vm342 = vcmp.lt.s32.totalorder %v310, 0
      %v343 = vsub.s32 0, %v310
      %v344 = vsel %vm342, %v343, %v310
      %v345 = vshrl.u32 %v344, 4
      %v346 = vand.u32 %v344, 15
      %v347 = vsub.s32 0, %v346
      %v348 = vsel %vm342, %v347, %v346
      %vm349 = vcmp.lt.s32.totalorder %v311, 0
      %v350 = vsub.s32 0, %v311
      %v351 = vsel %vm349, %v350, %v311
      %v352 = vshrl.u32 %v351, 4
      %v353 = vand.u32 %v351, 15
      %v354 = vsub.s32 0, %v353
      %v355 = vsel %vm349, %v354, %v353
      %vm356 = vcmp.lt.s32.totalorder %v312, 0
      %v357 = vsub.s32 0, %v312
      %v358 = vsel %vm356, %v357, %v312
      %v359 = vshrl.u32 %v358, 4
      %v360 = vand.u32 %v358, 15
      %v361 = vsub.s32 0, %v360
      %v362 = vsel %vm356, %v361, %v360
      %vm363 = vcmp.lt.s32.totalorder %v313, 0
      %v364 = vsub.s32 0, %v313
      %v365 = vsel %vm363, %v364, %v313
      %v366 = vshrl.u32 %v365, 4
      %v367 = vand.u32 %v365, 15
      %v368 = vsub.s32 0, %v367
      %v369 = vsel %vm363, %v368, %v367
      %vm370 = vcmp.lt.s32.totalorder %v314, 0
      %v371 = vsub.s32 0, %v314
      %v372 = vsel %vm370, %v371, %v314
      %v373 = vshrl.u32 %v372, 4
      %v374 = vand.u32 %v372, 15
      %v375 = vsub.s32 0, %v374
      %v376 = vsel %vm370, %v375, %v374
      %vm377 = vcmp.lt.s32.totalorder %v315, 0
      %v378 = vsub.s32 0, %v315
      %v379 = vsel %vm377, %v378, %v315
      %v380 = vshrl.u32 %v379, 4
      %v381 = vand.u32 %v379, 15
      %v382 = vsub.s32 0, %v381
      %v383 = vsel %vm377, %v382, %v381
      %vm384 = vcmp.lt.s32.totalorder %v316, 0
      %v385 = vsub.s32 0, %v316
      %v386 = vsel %vm384, %v385, %v316
      %v387 = vshrl.u32 %v386, 4
      %v388 = vand.u32 %v386, 15
      %v389 = vsub.s32 0, %v388
      %v390 = vsel %vm384, %v389, %v388
      %vm391 = vcmp.lt.s32.totalorder %v317, 0
      %v392 = vsub.s32 0, %v317
      %v393 = vsel %vm391, %v392, %v317
      %v394 = vshrl.u32 %v393, 4
      %v395 = vand.u32 %v393, 15
      %v396 = vsub.s32 0, %v395
      %v397 = vsel %vm391, %v396, %v395
      %vm398 = vcmp.lt.s32.totalorder %v318, 0
      %v399 = vsub.s32 0, %v318
      %v400 = vsel %vm398, %v399, %v318
      %v401 = vshrl.u32 %v400, 4
      %v402 = vand.u32 %v400, 15
      %v403 = vsub.s32 0, %v402
      %v404 = vsel %vm398, %v403, %v402
      %vm405 = vcmp.lt.s32.totalorder %v319, 0
      %v406 = vsub.s32 0, %v319
      %v407 = vsel %vm405, %v406, %v319
      %v408 = vshrl.u32 %v407, 4
      %v409 = vand.u32 %v407, 15
      %v410 = vsub.s32 0, %v409
      %v411 = vsel %vm405, %v410, %v409
      %vm412 = vcmp.lt.s32.totalorder %v320, 0
      %v413 = vsub.s32 0, %v320
      %v414 = vsel %vm412, %v413, %v320
      %v415 = vshrl.u32 %v414, 4
      %v416 = vand.u32 %v414, 15
      %v417 = vsub.s32 0, %v416
      %v418 = vsel %vm412, %v417, %v416
      %vm419 = vcmp.lt.s32.totalorder %v321, 0
      %v420 = vsub.s32 0, %v321
      %v421 = vsel %vm419, %v420, %v321
      %v422 = vshrl.u32 %v421, 4
      %v423 = vand.u32 %v421, 15
      %v424 = vsub.s32 0, %v423
      %v425 = vsel %vm419, %v424, %v423
      %vm426 = vcmp.lt.s32.totalorder %v322, 0
      %v427 = vsub.s32 0, %v322
      %v428 = vsel %vm426, %v427, %v322
      %v429 = vshrl.u32 %v428, 4
      %v430 = vand.u32 %v428, 15
      %v431 = vsub.s32 0, %v430
      %v432 = vsel %vm426, %v431, %v430
      %vm433 = vcmp.lt.s32.totalorder %v323, 0
      %v434 = vsub.s32 0, %v323
      %v435 = vsel %vm433, %v434, %v323
      %v436 = vshrl.u32 %v435, 4
      %v437 = vand.u32 %v435, 15
      %v438 = vsub.s32 0, %v437
      %v439 = vsel %vm433, %v438, %v437
      %vm440 = vcmp.lt.s32.totalorder %v324, 0
      %v441 = vsub.s32 0, %v324
      %v442 = vsel %vm440, %v441, %v324
      %v443 = vshrl.u32 %v442, 4
      %v444 = vand.u32 %v442, 15
      %v445 = vsub.s32 0, %v444
      %v446 = vsel %vm440, %v445, %v444
      %vm447 = vcmp.lt.s32.totalorder %v325, 0
      %v448 = vsub.s32 0, %v325
      %v449 = vsel %vm447, %v448, %v325
      %v450 = vshrl.u32 %v449, 4
      %v451 = vand.u32 %v449, 15
      %v452 = vsub.s32 0, %v451
      %v453 = vsel %vm447, %v452, %v451
      %vm454 = vcmp.lt.s32.totalorder %v326, 0
      %v455 = vsub.s32 0, %v326
      %v456 = vsel %vm454, %v455, %v326
      %v457 = vshrl.u32 %v456, 4
      %v458 = vand.u32 %v456, 15
      %v459 = vsub.s32 0, %v458
      %v460 = vsel %vm454, %v459, %v458
      %vm461 = vcmp.lt.s32.totalorder %v327, 0
      %v462 = vsub.s32 0, %v327
      %v463 = vsel %vm461, %v462, %v327
      %v464 = vshrl.u32 %v463, 4
      %v465 = vand.u32 %v463, 15
      %v466 = vsub.s32 0, %v465
      %v467 = vsel %vm461, %v466, %v465
      %vm468 = vcmp.lt.s32.totalorder %v328, 0
      %v469 = vsub.s32 0, %v328
      %v470 = vsel %vm468, %v469, %v328
      %v471 = vshrl.u32 %v470, 4
      %v472 = vand.u32 %v470, 15
      %v473 = vsub.s32 0, %v472
      %v474 = vsel %vm468, %v473, %v472
      %vm475 = vcmp.lt.s32.totalorder %v329, 0
      %v476 = vsub.s32 0, %v329
      %v477 = vsel %vm475, %v476, %v329
      %v478 = vshrl.u32 %v477, 4
      %v479 = vand.u32 %v477, 15
      %v480 = vsub.s32 0, %v479
      %v481 = vsel %vm475, %v480, %v479
      %vm482 = vcmp.lt.s32.totalorder %v330, 0
      %v483 = vsub.s32 0, %v330
      %v484 = vsel %vm482, %v483, %v330
      %v485 = vshrl.u32 %v484, 4
      %v486 = vand.u32 %v484, 15
      %v487 = vsub.s32 0, %v486
      %v488 = vsel %vm482, %v487, %v486
      %vm489 = vcmp.lt.s32.totalorder %v331, 0
      %v490 = vsub.s32 0, %v331
      %v491 = vsel %vm489, %v490, %v331
      %v492 = vshrl.u32 %v491, 4
      %v493 = vand.u32 %v491, 15
      %v494 = vsub.s32 0, %v493
      %v495 = vsel %vm489, %v494, %v493
      %vm496 = vcmp.lt.s32.totalorder %v332, 0
      %v497 = vsub.s32 0, %v332
      %v498 = vsel %vm496, %v497, %v332
      %v499 = vshrl.u32 %v498, 4
      %v500 = vand.u32 %v498, 15
      %v501 = vsub.s32 0, %v500
      %v502 = vsel %vm496, %v501, %v500
      %vm503 = vcmp.lt.s32.totalorder %v333, 0
      %v504 = vsub.s32 0, %v333
      %v505 = vsel %vm503, %v504, %v333
      %v506 = vshrl.u32 %v505, 4
      %v507 = vand.u32 %v505, 15
      %v508 = vsub.s32 0, %v507
      %v509 = vsel %vm503, %v508, %v507
      %vm510 = vcmp.lt.s32.totalorder %v334, 0
      %v511 = vsub.s32 0, %v334
      %v512 = vsel %vm510, %v511, %v334
      %v513 = vshrl.u32 %v512, 4
      %v514 = vand.u32 %v512, 15
      %v515 = vsub.s32 0, %v514
      %v516 = vsel %vm510, %v515, %v514
      %vm517 = vcmp.lt.s32.totalorder %v335, 0
      %v518 = vsub.s32 0, %v335
      %v519 = vsel %vm517, %v518, %v335
      %v520 = vshrl.u32 %v519, 4
      %v521 = vand.u32 %v519, 15
      %v522 = vsub.s32 0, %v521
      %v523 = vsel %vm517, %v522, %v521
      %vm524 = vcmp.lt.s32.totalorder %v336, 0
      %v525 = vsub.s32 0, %v336
      %v526 = vsel %vm524, %v525, %v336
      %v527 = vshrl.u32 %v526, 4
      %v528 = vand.u32 %v526, 15
      %v529 = vsub.s32 0, %v528
      %v530 = vsel %vm524, %v529, %v528
      %vm531 = vcmp.lt.s32.totalorder %v337, 0
      %v532 = vsub.s32 0, %v337
      %v533 = vsel %vm531, %v532, %v337
      %v534 = vshrl.u32 %v533, 4
      %v535 = vand.u32 %v533, 15
      %v536 = vsub.s32 0, %v535
      %v537 = vsel %vm531, %v536, %v535
      %vm538 = vcmp.lt.s32.totalorder %v338, 0
      %v539 = vsub.s32 0, %v338
      %v540 = vsel %vm538, %v539, %v338
      %v541 = vshrl.u32 %v540, 4
      %v542 = vand.u32 %v540, 15
      %v543 = vsub.s32 0, %v542
      %v544 = vsel %vm538, %v543, %v542
      %vm545 = vcmp.lt.s32.totalorder %v339, 0
      %v546 = vsub.s32 0, %v339
      %v547 = vsel %vm545, %v546, %v339
      %v548 = vshrl.u32 %v547, 4
      %v549 = vand.u32 %v547, 15
      %v550 = vsub.s32 0, %v549
      %v551 = vsel %vm545, %v550, %v549
      %vm552 = vcmp.lt.s32.totalorder %v340, 0
      %v553 = vsub.s32 0, %v340
      %v554 = vsel %vm552, %v553, %v340
      %v555 = vshrl.u32 %v554, 4
      %v556 = vand.u32 %v554, 15
      %v557 = vsub.s32 0, %v556
      %v558 = vsel %vm552, %v557, %v556
      %vm559 = vcmp.lt.s32.totalorder %v341, 0
      %v560 = vsub.s32 0, %v341
      %v561 = vsel %vm559, %v560, %v341
      %v562 = vshrl.u32 %v561, 4
      %v563 = vand.u32 %v561, 15
      %v564 = vsub.s32 0, %v563
      %v565 = vsel %vm559, %v564, %v563
      %vm566 = vcmp.ne.s32.totalorder %v348, 0
      %vm567 = vcmp.ne.s32.totalorder %v355, 0
      %vm568 = vcmp.ne.s32.totalorder %v362, 0
      %vm569 = vcmp.ne.s32.totalorder %v369, 0
      %vm570 = vcmp.ne.s32.totalorder %v376, 0
      %vm571 = vcmp.ne.s32.totalorder %v383, 0
      %vm572 = vcmp.ne.s32.totalorder %v390, 0
      %vm573 = vcmp.ne.s32.totalorder %v397, 0
      %vm574 = vcmp.ne.s32.totalorder %v404, 0
      %vm575 = vcmp.ne.s32.totalorder %v411, 0
      %vm576 = vcmp.ne.s32.totalorder %v418, 0
      %vm577 = vcmp.ne.s32.totalorder %v425, 0
      %vm578 = vcmp.ne.s32.totalorder %v432, 0
      %vm579 = vcmp.ne.s32.totalorder %v439, 0
      %vm580 = vcmp.ne.s32.totalorder %v446, 0
      %vm581 = vcmp.ne.s32.totalorder %v453, 0
      %vm582 = vcmp.ne.s32.totalorder %v460, 0
      %vm583 = vcmp.ne.s32.totalorder %v467, 0
      %vm584 = vcmp.ne.s32.totalorder %v474, 0
      %vm585 = vcmp.ne.s32.totalorder %v481, 0
      %vm586 = vcmp.ne.s32.totalorder %v488, 0
      %vm587 = vcmp.ne.s32.totalorder %v495, 0
      %vm588 = vcmp.ne.s32.totalorder %v502, 0
      %vm589 = vcmp.ne.s32.totalorder %v509, 0
      %vm590 = vcmp.ne.s32.totalorder %v516, 0
      %vm591 = vcmp.ne.s32.totalorder %v523, 0
      %vm592 = vcmp.ne.s32.totalorder %v530, 0
      %vm593 = vcmp.ne.s32.totalorder %v537, 0
      %vm594 = vcmp.ne.s32.totalorder %v544, 0
      %vm595 = vcmp.ne.s32.totalorder %v551, 0
      %vm596 = vcmp.ne.s32.totalorder %v558, 0
      %vm597 = vcmp.ne.s32.totalorder %v565, 0
      %vm598 = vcmp.lt.s32.totalorder %v348, 0
      %vm599 = vcmp.lt.s32.totalorder %v355, 0
      %vm600 = vcmp.lt.s32.totalorder %v362, 0
      %vm601 = vcmp.lt.s32.totalorder %v369, 0
      %vm602 = vcmp.lt.s32.totalorder %v376, 0
      %vm603 = vcmp.lt.s32.totalorder %v383, 0
      %vm604 = vcmp.lt.s32.totalorder %v390, 0
      %vm605 = vcmp.lt.s32.totalorder %v397, 0
      %vm606 = vcmp.lt.s32.totalorder %v404, 0
      %vm607 = vcmp.lt.s32.totalorder %v411, 0
      %vm608 = vcmp.lt.s32.totalorder %v418, 0
      %vm609 = vcmp.lt.s32.totalorder %v425, 0
      %vm610 = vcmp.lt.s32.totalorder %v432, 0
      %vm611 = vcmp.lt.s32.totalorder %v439, 0
      %vm612 = vcmp.lt.s32.totalorder %v446, 0
      %vm613 = vcmp.lt.s32.totalorder %v453, 0
      %vm614 = vcmp.lt.s32.totalorder %v460, 0
      %vm615 = vcmp.lt.s32.totalorder %v467, 0
      %vm616 = vcmp.lt.s32.totalorder %v474, 0
      %vm617 = vcmp.lt.s32.totalorder %v481, 0
      %vm618 = vcmp.lt.s32.totalorder %v488, 0
      %vm619 = vcmp.lt.s32.totalorder %v495, 0
      %vm620 = vcmp.lt.s32.totalorder %v502, 0
      %vm621 = vcmp.lt.s32.totalorder %v509, 0
      %vm622 = vcmp.lt.s32.totalorder %v516, 0
      %vm623 = vcmp.lt.s32.totalorder %v523, 0
      %vm624 = vcmp.lt.s32.totalorder %v530, 0
      %vm625 = vcmp.lt.s32.totalorder %v537, 0
      %vm626 = vcmp.lt.s32.totalorder %v544, 0
      %vm627 = vcmp.lt.s32.totalorder %v551, 0
      %vm628 = vcmp.lt.s32.totalorder %v558, 0
      %vm629 = vcmp.lt.s32.totalorder %v565, 0
      %vm630 = vmand %vm598, %vm566
      %vm631 = vmand %vm599, %vm567
      %vm632 = vmand %vm600, %vm568
      %vm633 = vmand %vm601, %vm569
      %vm634 = vmand %vm602, %vm570
      %vm635 = vmand %vm603, %vm571
      %vm636 = vmand %vm604, %vm572
      %vm637 = vmand %vm605, %vm573
      %vm638 = vmand %vm606, %vm574
      %vm639 = vmand %vm607, %vm575
      %vm640 = vmand %vm608, %vm576
      %vm641 = vmand %vm609, %vm577
      %vm642 = vmand %vm610, %vm578
      %vm643 = vmand %vm611, %vm579
      %vm644 = vmand %vm612, %vm580
      %vm645 = vmand %vm613, %vm581
      %vm646 = vmand %vm614, %vm582
      %vm647 = vmand %vm615, %vm583
      %vm648 = vmand %vm616, %vm584
      %vm649 = vmand %vm617, %vm585
      %vm650 = vmand %vm618, %vm586
      %vm651 = vmand %vm619, %vm587
      %vm652 = vmand %vm620, %vm588
      %vm653 = vmand %vm621, %vm589
      %vm654 = vmand %vm622, %vm590
      %vm655 = vmand %vm623, %vm591
      %vm656 = vmand %vm624, %vm592
      %vm657 = vmand %vm625, %vm593
      %vm658 = vmand %vm626, %vm594
      %vm659 = vmand %vm627, %vm595
      %vm660 = vmand %vm628, %vm596
      %vm661 = vmand %vm629, %vm597
      %v662 = vadd.s32 %v348, 16
      %v663 = vadd.s32 %v355, 16
      %v664 = vadd.s32 %v362, 16
      %v665 = vadd.s32 %v369, 16
      %v666 = vadd.s32 %v376, 16
      %v667 = vadd.s32 %v383, 16
      %v668 = vadd.s32 %v390, 16
      %v669 = vadd.s32 %v397, 16
      %v670 = vadd.s32 %v404, 16
      %v671 = vadd.s32 %v411, 16
      %v672 = vadd.s32 %v418, 16
      %v673 = vadd.s32 %v425, 16
      %v674 = vadd.s32 %v432, 16
      %v675 = vadd.s32 %v439, 16
      %v676 = vadd.s32 %v446, 16
      %v677 = vadd.s32 %v453, 16
      %v678 = vadd.s32 %v460, 16
      %v679 = vadd.s32 %v467, 16
      %v680 = vadd.s32 %v474, 16
      %v681 = vadd.s32 %v481, 16
      %v682 = vadd.s32 %v488, 16
      %v683 = vadd.s32 %v495, 16
      %v684 = vadd.s32 %v502, 16
      %v685 = vadd.s32 %v509, 16
      %v686 = vadd.s32 %v516, 16
      %v687 = vadd.s32 %v523, 16
      %v688 = vadd.s32 %v530, 16
      %v689 = vadd.s32 %v537, 16
      %v690 = vadd.s32 %v544, 16
      %v691 = vadd.s32 %v551, 16
      %v692 = vadd.s32 %v558, 16
      %v693 = vadd.s32 %v565, 16
      %v694 = vsel %vm630, %v662, %v348
      %v695 = vsel %vm631, %v663, %v355
      %v696 = vsel %vm632, %v664, %v362
      %v697 = vsel %vm633, %v665, %v369
      %v698 = vsel %vm634, %v666, %v376
      %v699 = vsel %vm635, %v667, %v383
      %v700 = vsel %vm636, %v668, %v390
      %v701 = vsel %vm637, %v669, %v397
      %v702 = vsel %vm638, %v670, %v404
      %v703 = vsel %vm639, %v671, %v411
      %v704 = vsel %vm640, %v672, %v418
      %v705 = vsel %vm641, %v673, %v425
      %v706 = vsel %vm642, %v674, %v432
      %v707 = vsel %vm643, %v675, %v439
      %v708 = vsel %vm644, %v676, %v446
      %v709 = vsel %vm645, %v677, %v453
      %v710 = vsel %vm646, %v678, %v460
      %v711 = vsel %vm647, %v679, %v467
      %v712 = vsel %vm648, %v680, %v474
      %v713 = vsel %vm649, %v681, %v481
      %v714 = vsel %vm650, %v682, %v488
      %v715 = vsel %vm651, %v683, %v495
      %v716 = vsel %vm652, %v684, %v502
      %v717 = vsel %vm653, %v685, %v509
      %v718 = vsel %vm654, %v686, %v516
      %v719 = vsel %vm655, %v687, %v523
      %v720 = vsel %vm656, %v688, %v530
      %v721 = vsel %vm657, %v689, %v537
      %v722 = vsel %vm658, %v690, %v544
      %v723 = vsel %vm659, %v691, %v551
      %v724 = vsel %vm660, %v692, %v558
      %v725 = vsel %vm661, %v693, %v565
      %vm726 = vcmp.ne.s32.totalorder %v694, 0
      %vm727 = vcmp.ne.s32.totalorder %v695, 0
      %vm728 = vcmp.ne.s32.totalorder %v696, 0
      %vm729 = vcmp.ne.s32.totalorder %v697, 0
      %vm730 = vcmp.ne.s32.totalorder %v698, 0
      %vm731 = vcmp.ne.s32.totalorder %v699, 0
      %vm732 = vcmp.ne.s32.totalorder %v700, 0
      %vm733 = vcmp.ne.s32.totalorder %v701, 0
      %vm734 = vcmp.ne.s32.totalorder %v702, 0
      %vm735 = vcmp.ne.s32.totalorder %v703, 0
      %vm736 = vcmp.ne.s32.totalorder %v704, 0
      %vm737 = vcmp.ne.s32.totalorder %v705, 0
      %vm738 = vcmp.ne.s32.totalorder %v706, 0
      %vm739 = vcmp.ne.s32.totalorder %v707, 0
      %vm740 = vcmp.ne.s32.totalorder %v708, 0
      %vm741 = vcmp.ne.s32.totalorder %v709, 0
      %vm742 = vcmp.ne.s32.totalorder %v710, 0
      %vm743 = vcmp.ne.s32.totalorder %v711, 0
      %vm744 = vcmp.ne.s32.totalorder %v712, 0
      %vm745 = vcmp.ne.s32.totalorder %v713, 0
      %vm746 = vcmp.ne.s32.totalorder %v714, 0
      %vm747 = vcmp.ne.s32.totalorder %v715, 0
      %vm748 = vcmp.ne.s32.totalorder %v716, 0
      %vm749 = vcmp.ne.s32.totalorder %v717, 0
      %vm750 = vcmp.ne.s32.totalorder %v718, 0
      %vm751 = vcmp.ne.s32.totalorder %v719, 0
      %vm752 = vcmp.ne.s32.totalorder %v720, 0
      %vm753 = vcmp.ne.s32.totalorder %v721, 0
      %vm754 = vcmp.ne.s32.totalorder %v722, 0
      %vm755 = vcmp.ne.s32.totalorder %v723, 0
      %vm756 = vcmp.ne.s32.totalorder %v724, 0
      %vm757 = vcmp.ne.s32.totalorder %v725, 0
      %vm758 = vcmp.ne.s32.totalorder %v694, 15
      %vm759 = vcmp.ne.s32.totalorder %v695, 15
      %vm760 = vcmp.ne.s32.totalorder %v696, 15
      %vm761 = vcmp.ne.s32.totalorder %v697, 15
      %vm762 = vcmp.ne.s32.totalorder %v698, 15
      %vm763 = vcmp.ne.s32.totalorder %v699, 15
      %vm764 = vcmp.ne.s32.totalorder %v700, 15
      %vm765 = vcmp.ne.s32.totalorder %v701, 15
      %vm766 = vcmp.ne.s32.totalorder %v702, 15
      %vm767 = vcmp.ne.s32.totalorder %v703, 15
      %vm768 = vcmp.ne.s32.totalorder %v704, 15
      %vm769 = vcmp.ne.s32.totalorder %v705, 15
      %vm770 = vcmp.ne.s32.totalorder %v706, 15
      %vm771 = vcmp.ne.s32.totalorder %v707, 15
      %vm772 = vcmp.ne.s32.totalorder %v708, 15
      %vm773 = vcmp.ne.s32.totalorder %v709, 15
      %vm774 = vcmp.ne.s32.totalorder %v710, 15
      %vm775 = vcmp.ne.s32.totalorder %v711, 15
      %vm776 = vcmp.ne.s32.totalorder %v712, 15
      %vm777 = vcmp.ne.s32.totalorder %v713, 15
      %vm778 = vcmp.ne.s32.totalorder %v714, 15
      %vm779 = vcmp.ne.s32.totalorder %v715, 15
      %vm780 = vcmp.ne.s32.totalorder %v716, 15
      %vm781 = vcmp.ne.s32.totalorder %v717, 15
      %vm782 = vcmp.ne.s32.totalorder %v718, 15
      %vm783 = vcmp.ne.s32.totalorder %v719, 15
      %vm784 = vcmp.ne.s32.totalorder %v720, 15
      %vm785 = vcmp.ne.s32.totalorder %v721, 15
      %vm786 = vcmp.ne.s32.totalorder %v722, 15
      %vm787 = vcmp.ne.s32.totalorder %v723, 15
      %vm788 = vcmp.ne.s32.totalorder %v724, 15
      %vm789 = vcmp.ne.s32.totalorder %v725, 15
      %vm790 = vcmask 31744
      %791 = vst.msk [vmem:[#allocation2] sm:$0xff] %vm790, 0
      %792 = vst.msk [vmem:[#allocation2 + $0x8] sm:$0xff] %vm790, 0
      %793 = vst.msk [vmem:[#allocation2 + $0x90] sm:$0xff] %vm790, 0
      %794 = vst.msk [vmem:[#allocation2 + $0x98] sm:$0xff] %vm790, 0
      %v795 = vld [vmem:[%s300] sm:$0xf]
      %v796 = vld [vmem:[%s300 + $0x4] sm:$0xf]
      %v797 = vld [vmem:[%s300 + $0x8] sm:$0xf]
      %v798 = vld [vmem:[%s300 + $0xc] sm:$0xf]
      %v799 = vld [vmem:[%s300 + $0x10] sm:$0xf]
      %v800 = vld [vmem:[%s300 + $0x14] sm:$0xf]
      %v801 = vld [vmem:[%s300 + $0x18] sm:$0xf]
      %v802 = vld [vmem:[%s300 + $0x1c] sm:$0xf]
      %v803 = vld [vmem:[%s300 + $0x20] sm:$0xf]
      %v804 = vld [vmem:[%s300 + $0x24] sm:$0xf]
      %v805 = vld [vmem:[%s300 + $0x28] sm:$0xf]
      %v806 = vld [vmem:[%s300 + $0x2c] sm:$0xf]
      %v807 = vld [vmem:[%s300 + $0x30] sm:$0xf]
      %v808 = vld [vmem:[%s300 + $0x34] sm:$0xf]
      %v809 = vld [vmem:[%s300 + $0x38] sm:$0xf]
      %v810 = vld [vmem:[%s300 + $0x3c] sm:$0xf]
      %v811 = vld [vmem:[%s300 + $0x40] sm:$0xf]
      %v812 = vld [vmem:[%s300 + $0x44] sm:$0xf]
      %v813 = vld [vmem:[%s300 + $0x48] sm:$0xf]
      %v814 = vld [vmem:[%s300 + $0x4c] sm:$0xf]
      %v815 = vld [vmem:[%s300 + $0x50] sm:$0xf]
      %v816 = vld [vmem:[%s300 + $0x54] sm:$0xf]
      %v817 = vld [vmem:[%s300 + $0x58] sm:$0xf]
      %v818 = vld [vmem:[%s300 + $0x5c] sm:$0xf]
      %v819 = vld [vmem:[%s300 + $0x60] sm:$0xf]
      %v820 = vld [vmem:[%s300 + $0x64] sm:$0xf]
      %v821 = vld [vmem:[%s300 + $0x68] sm:$0xf]
      %v822 = vld [vmem:[%s300 + $0x6c] sm:$0xf]
      %v823 = vld [vmem:[%s300 + $0x70] sm:$0xf]
      %v824 = vld [vmem:[%s300 + $0x74] sm:$0xf]
      %v825 = vld [vmem:[%s300 + $0x78] sm:$0xf]
      %v826 = vld [vmem:[%s300 + $0x7c] sm:$0xf]
      %v859 = vunpack.c.l.b16 %v795
      %v860 = vunpack.c.l.b16 %v796
      %v861 = vunpack.c.l.b16 %v797
      %v862 = vunpack.c.l.b16 %v798
      %v863 = vunpack.c.l.b16 %v799
      %v864 = vunpack.c.l.b16 %v800
      %v865 = vunpack.c.l.b16 %v801
      %v866 = vunpack.c.l.b16 %v802
      %v867 = vunpack.c.l.b16 %v803
      %v868 = vunpack.c.l.b16 %v804
      %v869 = vunpack.c.l.b16 %v805
      %v870 = vunpack.c.l.b16 %v806
      %v871 = vunpack.c.l.b16 %v807
      %v872 = vunpack.c.l.b16 %v808
      %v873 = vunpack.c.l.b16 %v809
      %v874 = vunpack.c.l.b16 %v810
      %v875 = vunpack.c.l.b16 %v811
      %v876 = vunpack.c.l.b16 %v812
      %v877 = vunpack.c.l.b16 %v813
      %v878 = vunpack.c.l.b16 %v814
      %v879 = vunpack.c.l.b16 %v815
      %v880 = vunpack.c.l.b16 %v816
      %v881 = vunpack.c.l.b16 %v817
      %v882 = vunpack.c.l.b16 %v818
      %v883 = vunpack.c.l.b16 %v819
      %v884 = vunpack.c.l.b16 %v820
      %v885 = vunpack.c.l.b16 %v821
      %v886 = vunpack.c.l.b16 %v822
      %v887 = vunpack.c.l.b16 %v823
      %v888 = vunpack.c.l.b16 %v824
      %v889 = vunpack.c.l.b16 %v825
      %v890 = vunpack.c.l.b16 %v826
      %v891 = vpack.c.b16 %v860, %v859
      %v892 = vpack.c.b16 %v862, %v861
      %v893 = vpack.c.b16 %v864, %v863
      %v894 = vpack.c.b16 %v866, %v865
      %v895 = vpack.c.b16 %v868, %v867
      %v896 = vpack.c.b16 %v870, %v869
      %v897 = vpack.c.b16 %v872, %v871
      %v898 = vpack.c.b16 %v874, %v873
      %v899 = vpack.c.b16 %v876, %v875
      %v900 = vpack.c.b16 %v878, %v877
      %v901 = vpack.c.b16 %v880, %v879
      %v902 = vpack.c.b16 %v882, %v881
      %v903 = vpack.c.b16 %v884, %v883
      %v904 = vpack.c.b16 %v886, %v885
      %v905 = vpack.c.b16 %v888, %v887
      %v906 = vpack.c.b16 %v890, %v889
      %923 = vst.msk [vmem:[#allocation2 + $0x10] sm:$0xff] %vm790, %v891
      %924 = vst.msk [vmem:[#allocation2 + $0x18] sm:$0xff] %vm790, %v892
      %925 = vst.msk [vmem:[#allocation2 + $0x20] sm:$0xff] %vm790, %v893
      %926 = vst.msk [vmem:[#allocation2 + $0x28] sm:$0xff] %vm790, %v894
      %927 = vst.msk [vmem:[#allocation2 + $0x30] sm:$0xff] %vm790, %v895
      %928 = vst.msk [vmem:[#allocation2 + $0x38] sm:$0xff] %vm790, %v896
      %929 = vst.msk [vmem:[#allocation2 + $0x40] sm:$0xff] %vm790, %v897
      %930 = vst.msk [vmem:[#allocation2 + $0x48] sm:$0xff] %vm790, %v898
      %931 = vst.msk [vmem:[#allocation2 + $0x50] sm:$0xff] %vm790, %v899
      %932 = vst.msk [vmem:[#allocation2 + $0x58] sm:$0xff] %vm790, %v900
      %933 = vst.msk [vmem:[#allocation2 + $0x60] sm:$0xff] %vm790, %v901
      %934 = vst.msk [vmem:[#allocation2 + $0x68] sm:$0xff] %vm790, %v902
      %935 = vst.msk [vmem:[#allocation2 + $0x70] sm:$0xff] %vm790, %v903
      %936 = vst.msk [vmem:[#allocation2 + $0x78] sm:$0xff] %vm790, %v904
      %937 = vst.msk [vmem:[#allocation2 + $0x80] sm:$0xff] %vm790, %v905
      %938 = vst.msk [vmem:[#allocation2 + $0x88] sm:$0xff] %vm790, %v906
      %vm939 = vcmask 64512
      %940 = vst.msk [vmem:[#allocation3] sm:$0xff] %vm939, 0
      %941 = vst.msk [vmem:[#allocation3 + $0x8] sm:$0xff] %vm939, 0
      %942 = vst.msk [vmem:[#allocation3 + $0x90] sm:$0xff] %vm939, 0
      %943 = vst.msk [vmem:[#allocation3 + $0x98] sm:$0xff] %vm939, 0
      %v944 = vld [vmem:[#allocation2] sm:$0x80]
      %v945 = vld [vmem:[#allocation2 + $0x8] sm:$0xff]
      %v946 = vld [vmem:[#allocation2 + $0x10] sm:$0xff]
      %v947 = vld [vmem:[#allocation2 + $0x18] sm:$0xff]
      %v948 = vld [vmem:[#allocation2 + $0x20] sm:$0xff]
      %v949 = vld [vmem:[#allocation2 + $0x28] sm:$0xff]
      %v950 = vld [vmem:[#allocation2 + $0x30] sm:$0xff]
      %v951 = vld [vmem:[#allocation2 + $0x38] sm:$0xff]
      %v952 = vld [vmem:[#allocation2 + $0x40] sm:$0xff]
      %v953 = vld [vmem:[#allocation2 + $0x48] sm:$0xff]
      %v954 = vld [vmem:[#allocation2 + $0x50] sm:$0xff]
      %v955 = vld [vmem:[#allocation2 + $0x58] sm:$0xff]
      %v956 = vld [vmem:[#allocation2 + $0x60] sm:$0xff]
      %v957 = vld [vmem:[#allocation2 + $0x68] sm:$0xff]
      %v958 = vld [vmem:[#allocation2 + $0x70] sm:$0xff]
      %v959 = vld [vmem:[#allocation2 + $0x78] sm:$0xff]
      %v960 = vld [vmem:[#allocation2 + $0x80] sm:$0xff]
      %v961 = vsel %vm726, 1, 0
      %v962 = vsel %vm727, 1, 0
      %v963 = vsel %vm728, 1, 0
      %v964 = vsel %vm729, 1, 0
      %v965 = vsel %vm730, 1, 0
      %v966 = vsel %vm731, 1, 0
      %v967 = vsel %vm732, 1, 0
      %v968 = vsel %vm733, 1, 0
      %v969 = vsel %vm734, 1, 0
      %v970 = vsel %vm735, 1, 0
      %v971 = vsel %vm736, 1, 0
      %v972 = vsel %vm737, 1, 0
      %v973 = vsel %vm738, 1, 0
      %v974 = vsel %vm739, 1, 0
      %v975 = vsel %vm740, 1, 0
      %v976 = vsel %vm741, 1, 0
      %v977 = vsel %vm742, 1, 0
      %v978 = vsel %vm743, 1, 0
      %v979 = vsel %vm744, 1, 0
      %v980 = vsel %vm745, 1, 0
      %v981 = vsel %vm746, 1, 0
      %v982 = vsel %vm747, 1, 0
      %v983 = vsel %vm748, 1, 0
      %v984 = vsel %vm749, 1, 0
      %v985 = vsel %vm750, 1, 0
      %v986 = vsel %vm751, 1, 0
      %v987 = vsel %vm752, 1, 0
      %v988 = vsel %vm753, 1, 0
      %v989 = vsel %vm754, 1, 0
      %v990 = vsel %vm755, 1, 0
      %v991 = vsel %vm756, 1, 0
      %v992 = vsel %vm757, 1, 0
      %vm993 = vcmp.eq.s32.totalorder %v961, 1
      %vm994 = vcmp.eq.s32.totalorder %v962, 1
      %vm995 = vcmp.eq.s32.totalorder %v963, 1
      %vm996 = vcmp.eq.s32.totalorder %v964, 1
      %vm997 = vcmp.eq.s32.totalorder %v965, 1
      %vm998 = vcmp.eq.s32.totalorder %v966, 1
      %vm999 = vcmp.eq.s32.totalorder %v967, 1
      %vm1000 = vcmp.eq.s32.totalorder %v968, 1
      %vm1001 = vcmp.eq.s32.totalorder %v969, 1
      %vm1002 = vcmp.eq.s32.totalorder %v970, 1
      %vm1003 = vcmp.eq.s32.totalorder %v971, 1
      %vm1004 = vcmp.eq.s32.totalorder %v972, 1
      %vm1005 = vcmp.eq.s32.totalorder %v973, 1
      %vm1006 = vcmp.eq.s32.totalorder %v974, 1
      %vm1007 = vcmp.eq.s32.totalorder %v975, 1
      %vm1008 = vcmp.eq.s32.totalorder %v976, 1
      %vm1009 = vcmp.eq.s32.totalorder %v977, 1
      %vm1010 = vcmp.eq.s32.totalorder %v978, 1
      %vm1011 = vcmp.eq.s32.totalorder %v979, 1
      %vm1012 = vcmp.eq.s32.totalorder %v980, 1
      %vm1013 = vcmp.eq.s32.totalorder %v981, 1
      %vm1014 = vcmp.eq.s32.totalorder %v982, 1
      %vm1015 = vcmp.eq.s32.totalorder %v983, 1
      %vm1016 = vcmp.eq.s32.totalorder %v984, 1
      %vm1017 = vcmp.eq.s32.totalorder %v985, 1
      %vm1018 = vcmp.eq.s32.totalorder %v986, 1
      %vm1019 = vcmp.eq.s32.totalorder %v987, 1
      %vm1020 = vcmp.eq.s32.totalorder %v988, 1
      %vm1021 = vcmp.eq.s32.totalorder %v989, 1
      %vm1022 = vcmp.eq.s32.totalorder %v990, 1
      %vm1023 = vcmp.eq.s32.totalorder %v991, 1
      %vm1024 = vcmp.eq.s32.totalorder %v992, 1
      %vm1025 = vmpackc.low %vm993, %vm993
      %vm1026 = vmpackc.low %vm994, %vm994
      %vm1027 = vmpackc.low %vm995, %vm995
      %vm1028 = vmpackc.low %vm996, %vm996
      %vm1029 = vmpackc.low %vm997, %vm997
      %vm1030 = vmpackc.low %vm998, %vm998
      %vm1031 = vmpackc.low %vm999, %vm999
      %vm1032 = vmpackc.low %vm1000, %vm1000
      %vm1033 = vmpackc.low %vm1001, %vm1001
      %vm1034 = vmpackc.low %vm1002, %vm1002
      %vm1035 = vmpackc.low %vm1003, %vm1003
      %vm1036 = vmpackc.low %vm1004, %vm1004
      %vm1037 = vmpackc.low %vm1005, %vm1005
      %vm1038 = vmpackc.low %vm1006, %vm1006
      %vm1039 = vmpackc.low %vm1007, %vm1007
      %vm1040 = vmpackc.low %vm1008, %vm1008
      %vm1041 = vmpackc.low %vm1009, %vm1009
      %vm1042 = vmpackc.low %vm1010, %vm1010
      %vm1043 = vmpackc.low %vm1011, %vm1011
      %vm1044 = vmpackc.low %vm1012, %vm1012
      %vm1045 = vmpackc.low %vm1013, %vm1013
      %vm1046 = vmpackc.low %vm1014, %vm1014
      %vm1047 = vmpackc.low %vm1015, %vm1015
      %vm1048 = vmpackc.low %vm1016, %vm1016
      %vm1049 = vmpackc.low %vm1017, %vm1017
      %vm1050 = vmpackc.low %vm1018, %vm1018
      %vm1051 = vmpackc.low %vm1019, %vm1019
      %vm1052 = vmpackc.low %vm1020, %vm1020
      %vm1053 = vmpackc.low %vm1021, %vm1021
      %vm1054 = vmpackc.low %vm1022, %vm1022
      %vm1055 = vmpackc.low %vm1023, %vm1023
      %vm1056 = vmpackc.low %vm1024, %vm1024
      %v1057 = vsel %vm1025, 65537, 0
      %v1058 = vsel %vm1026, 65537, 0
      %v1059 = vsel %vm1027, 65537, 0
      %v1060 = vsel %vm1028, 65537, 0
      %v1061 = vsel %vm1029, 65537, 0
      %v1062 = vsel %vm1030, 65537, 0
      %v1063 = vsel %vm1031, 65537, 0
      %v1064 = vsel %vm1032, 65537, 0
      %v1065 = vsel %vm1033, 65537, 0
      %v1066 = vsel %vm1034, 65537, 0
      %v1067 = vsel %vm1035, 65537, 0
      %v1068 = vsel %vm1036, 65537, 0
      %v1069 = vsel %vm1037, 65537, 0
      %v1070 = vsel %vm1038, 65537, 0
      %v1071 = vsel %vm1039, 65537, 0
      %v1072 = vsel %vm1040, 65537, 0
      %v1073 = vsel %vm1041, 65537, 0
      %v1074 = vsel %vm1042, 65537, 0
      %v1075 = vsel %vm1043, 65537, 0
      %v1076 = vsel %vm1044, 65537, 0
      %v1077 = vsel %vm1045, 65537, 0
      %v1078 = vsel %vm1046, 65537, 0
      %v1079 = vsel %vm1047, 65537, 0
      %v1080 = vsel %vm1048, 65537, 0
      %v1081 = vsel %vm1049, 65537, 0
      %v1082 = vsel %vm1050, 65537, 0
      %v1083 = vsel %vm1051, 65537, 0
      %v1084 = vsel %vm1052, 65537, 0
      %v1085 = vsel %vm1053, 65537, 0
      %v1086 = vsel %vm1054, 65537, 0
      %v1087 = vsel %vm1055, 65537, 0
      %v1088 = vsel %vm1056, 65537, 0
      %v1089 = vunpack.c.l.b16 %v1057
      %v1090 = vunpack.c.l.b16 %v1058
      %v1091 = vunpack.c.l.b16 %v1059
      %v1092 = vunpack.c.l.b16 %v1060
      %v1093 = vunpack.c.l.b16 %v1061
      %v1094 = vunpack.c.l.b16 %v1062
      %v1095 = vunpack.c.l.b16 %v1063
      %v1096 = vunpack.c.l.b16 %v1064
      %v1097 = vunpack.c.l.b16 %v1065
      %v1098 = vunpack.c.l.b16 %v1066
      %v1099 = vunpack.c.l.b16 %v1067
      %v1100 = vunpack.c.l.b16 %v1068
      %v1101 = vunpack.c.l.b16 %v1069
      %v1102 = vunpack.c.l.b16 %v1070
      %v1103 = vunpack.c.l.b16 %v1071
      %v1104 = vunpack.c.l.b16 %v1072
      %v1105 = vunpack.c.l.b16 %v1073
      %v1106 = vunpack.c.l.b16 %v1074
      %v1107 = vunpack.c.l.b16 %v1075
      %v1108 = vunpack.c.l.b16 %v1076
      %v1109 = vunpack.c.l.b16 %v1077
      %v1110 = vunpack.c.l.b16 %v1078
      %v1111 = vunpack.c.l.b16 %v1079
      %v1112 = vunpack.c.l.b16 %v1080
      %v1113 = vunpack.c.l.b16 %v1081
      %v1114 = vunpack.c.l.b16 %v1082
      %v1115 = vunpack.c.l.b16 %v1083
      %v1116 = vunpack.c.l.b16 %v1084
      %v1117 = vunpack.c.l.b16 %v1085
      %v1118 = vunpack.c.l.b16 %v1086
      %v1119 = vunpack.c.l.b16 %v1087
      %v1120 = vunpack.c.l.b16 %v1088
      %v1121 = vpack.c.b16 %v1090, %v1089
      %v1122 = vpack.c.b16 %v1092, %v1091
      %v1123 = vpack.c.b16 %v1094, %v1093
      %v1124 = vpack.c.b16 %v1096, %v1095
      %v1125 = vpack.c.b16 %v1098, %v1097
      %v1126 = vpack.c.b16 %v1100, %v1099
      %v1127 = vpack.c.b16 %v1102, %v1101
      %v1128 = vpack.c.b16 %v1104, %v1103
      %v1129 = vpack.c.b16 %v1106, %v1105
      %v1130 = vpack.c.b16 %v1108, %v1107
      %v1131 = vpack.c.b16 %v1110, %v1109
      %v1132 = vpack.c.b16 %v1112, %v1111
      %v1133 = vpack.c.b16 %v1114, %v1113
      %v1134 = vpack.c.b16 %v1116, %v1115
      %v1135 = vpack.c.b16 %v1118, %v1117
      %v1136 = vpack.c.b16 %v1120, %v1119
      %vm1137 = vsmask.f32 7424
      %v1139 = vshll.u32 %v1121, 16
      %v1141 = vrot.slane %v1139, 1
      %v1142 = vshrl.u32 %v1121, 16
      %v1144 = vor.u32 %v1142, %v1141
      %v1146 = vshll.u32 %v1122, 16
      %v1148 = vrot.slane %v1146, 1
      %v1149 = vsel %vm1137, %v1144, %v1148
      %v1150 = vshrl.u32 %v1122, 16
      %v1152 = vor.u32 %v1150, %v1148
      %v1154 = vshll.u32 %v1123, 16
      %v1156 = vrot.slane %v1154, 1
      %v1157 = vsel %vm1137, %v1152, %v1156
      %v1158 = vshrl.u32 %v1123, 16
      %v1160 = vor.u32 %v1158, %v1156
      %v1162 = vshll.u32 %v1124, 16
      %v1164 = vrot.slane %v1162, 1
      %v1165 = vsel %vm1137, %v1160, %v1164
      %v1166 = vshrl.u32 %v1124, 16
      %v1168 = vor.u32 %v1166, %v1164
      %v1170 = vshll.u32 %v1125, 16
      %v1172 = vrot.slane %v1170, 1
      %v1173 = vsel %vm1137, %v1168, %v1172
      %v1174 = vshrl.u32 %v1125, 16
      %v1176 = vor.u32 %v1174, %v1172
      %v1178 = vshll.u32 %v1126, 16
      %v1180 = vrot.slane %v1178, 1
      %v1181 = vsel %vm1137, %v1176, %v1180
      %v1182 = vshrl.u32 %v1126, 16
      %v1184 = vor.u32 %v1182, %v1180
      %v1186 = vshll.u32 %v1127, 16
      %v1188 = vrot.slane %v1186, 1
      %v1189 = vsel %vm1137, %v1184, %v1188
      %v1190 = vshrl.u32 %v1127, 16
      %v1192 = vor.u32 %v1190, %v1188
      %v1194 = vshll.u32 %v1128, 16
      %v1196 = vrot.slane %v1194, 1
      %v1197 = vsel %vm1137, %v1192, %v1196
      %v1198 = vshrl.u32 %v1128, 16
      %v1200 = vor.u32 %v1198, %v1196
      %v1202 = vshll.u32 %v1129, 16
      %v1204 = vrot.slane %v1202, 1
      %v1205 = vsel %vm1137, %v1200, %v1204
      %v1206 = vshrl.u32 %v1129, 16
      %v1208 = vor.u32 %v1206, %v1204
      %v1210 = vshll.u32 %v1130, 16
      %v1212 = vrot.slane %v1210, 1
      %v1213 = vsel %vm1137, %v1208, %v1212
      %v1214 = vshrl.u32 %v1130, 16
      %v1216 = vor.u32 %v1214, %v1212
      %v1218 = vshll.u32 %v1131, 16
      %v1220 = vrot.slane %v1218, 1
      %v1221 = vsel %vm1137, %v1216, %v1220
      %v1222 = vshrl.u32 %v1131, 16
      %v1224 = vor.u32 %v1222, %v1220
      %v1226 = vshll.u32 %v1132, 16
      %v1228 = vrot.slane %v1226, 1
      %v1229 = vsel %vm1137, %v1224, %v1228
      %v1230 = vshrl.u32 %v1132, 16
      %v1232 = vor.u32 %v1230, %v1228
      %v1234 = vshll.u32 %v1133, 16
      %v1236 = vrot.slane %v1234, 1
      %v1237 = vsel %vm1137, %v1232, %v1236
      %v1238 = vshrl.u32 %v1133, 16
      %v1240 = vor.u32 %v1238, %v1236
      %v1242 = vshll.u32 %v1134, 16
      %v1244 = vrot.slane %v1242, 1
      %v1245 = vsel %vm1137, %v1240, %v1244
      %v1246 = vshrl.u32 %v1134, 16
      %v1248 = vor.u32 %v1246, %v1244
      %v1250 = vshll.u32 %v1135, 16
      %v1252 = vrot.slane %v1250, 1
      %v1253 = vsel %vm1137, %v1248, %v1252
      %v1254 = vshrl.u32 %v1135, 16
      %v1256 = vor.u32 %v1254, %v1252
      %v1258 = vshll.u32 %v1136, 16
      %v1260 = vrot.slane %v1258, 1
      %v1261 = vsel %vm1137, %v1256, %v1260
      %v1262 = vshrl.u32 %v1136, 16
      %v1264 = vor.u32 %v1262, %v1260
      %vm1265 = vcmp.ne.s16.totalorder %v1141, 0
      %vm1266 = vcmp.ne.s16.totalorder %v1149, 0
      %vm1267 = vcmp.ne.s16.totalorder %v1157, 0
      %vm1268 = vcmp.ne.s16.totalorder %v1165, 0
      %vm1269 = vcmp.ne.s16.totalorder %v1173, 0
      %vm1270 = vcmp.ne.s16.totalorder %v1181, 0
      %vm1271 = vcmp.ne.s16.totalorder %v1189, 0
      %vm1272 = vcmp.ne.s16.totalorder %v1197, 0
      %vm1273 = vcmp.ne.s16.totalorder %v1205, 0
      %vm1274 = vcmp.ne.s16.totalorder %v1213, 0
      %vm1275 = vcmp.ne.s16.totalorder %v1221, 0
      %vm1276 = vcmp.ne.s16.totalorder %v1229, 0
      %vm1277 = vcmp.ne.s16.totalorder %v1237, 0
      %vm1278 = vcmp.ne.s16.totalorder %v1245, 0
      %vm1279 = vcmp.ne.s16.totalorder %v1253, 0
      %vm1280 = vcmp.ne.s16.totalorder %v1261, 0
      %vm1281 = vcmp.ne.s16.totalorder %v1264, 0
      %v1282 = vsel %vm1265, %v944, 0
      %v1283 = vsel %vm1266, %v945, 0
      %v1284 = vsel %vm1267, %v946, 0
      %v1285 = vsel %vm1268, %v947, 0
      %v1286 = vsel %vm1269, %v948, 0
      %v1287 = vsel %vm1270, %v949, 0
      %v1288 = vsel %vm1271, %v950, 0
      %v1289 = vsel %vm1272, %v951, 0
      %v1290 = vsel %vm1273, %v952, 0
      %v1291 = vsel %vm1274, %v953, 0
      %v1292 = vsel %vm1275, %v954, 0
      %v1293 = vsel %vm1276, %v955, 0
      %v1294 = vsel %vm1277, %v956, 0
      %v1295 = vsel %vm1278, %v957, 0
      %v1296 = vsel %vm1279, %v958, 0
      %v1297 = vsel %vm1280, %v959, 0
      %v1298 = vsel %vm1281, %v960, 0
      %v1299 = vld [vmem:[%s2] sm:$0x3]
      %v1300 = vld [vmem:[%s2] sm:$0xc]
      %v1302 = vunpack.c.l.b16 %v1300
      %v1303 = vpack.c.b16 %v1302, %v1302
      %v1304 = vrot.slane %v1303, 2
      %v1306 = vsel %vm790, %v945, 0
      %v1309 = vsel %vm790, %v946, 0
      %v1312 = vsel %vm790, %v947, 0
      %v1315 = vsel %vm790, %v948, 0
      %v1318 = vsel %vm790, %v949, 0
      %v1321 = vsel %vm790, %v950, 0
      %v1324 = vsel %vm790, %v951, 0
      %v1327 = vsel %vm790, %v952, 0
      %v1330 = vsel %vm790, %v953, 0
      %v1333 = vsel %vm790, %v954, 0
      %v1336 = vsel %vm790, %v955, 0
      %v1339 = vsel %vm790, %v956, 0
      %v1342 = vsel %vm790, %v957, 0
      %v1345 = vsel %vm790, %v958, 0
      %v1348 = vsel %vm790, %v959, 0
      %v1351 = vsel %vm790, %v960, 0
      %vm1353 = vcmask 1041408
      %v1355 = vsel %vm1353, %v1304, 0
      %1357 = vmatprep.subr.bf16.mxu0 0
      %1358 = vmatpush1.bf16.msra.mxu0 %v1355
      %1359 = vmatprep.subr.bf16.mxu0 0
      %1360 = vmatpush1.bf16.msra.mxu0 0
      %1361 = vmatprep.subr.bf16.mxu0 0
      %1362 = vmatpush1.bf16.msra.mxu0 0
      %1363 = vmatprep.subr.bf16.mxu0 0
      %1364 = vmatpush1.bf16.msra.mxu0 0
      %1365 = vmatprep.subr.bf16.mxu0 0
      %1366 = vmatpush1.bf16.msra.mxu0 0
      %1367 = vmatprep.subr.bf16.mxu0 0
      %1368 = vmatpush1.bf16.msra.mxu0 0
      %1369 = vmatprep.subr.bf16.mxu0 0
      %1370 = vmatpush1.bf16.msra.mxu0 0
      %1371 = vmatprep.subr.bf16.mxu0 0
      %1372 = vmatpush1.bf16.msra.mxu0 0
      %1373 = vmatprep.subr.bf16.mxu0 0
      %1374 = vmatpush1.bf16.msra.mxu0 0
      %1375 = vmatprep.subr.bf16.mxu0 0
      %1376 = vmatpush1.bf16.msra.mxu0 0
      %1377 = vmatprep.subr.bf16.mxu0 0
      %1378 = vmatpush1.bf16.msra.mxu0 0
      %1379 = vmatprep.subr.bf16.mxu0 0
      %1380 = vmatpush1.bf16.msra.mxu0 0
      %1381 = vmatprep.subr.bf16.mxu0 0
      %1382 = vmatpush1.bf16.msra.mxu0 0
      %1383 = vmatprep.subr.bf16.mxu0 0
      %1384 = vmatpush1.bf16.msra.mxu0 0
      %1385 = vmatprep.subr.bf16.mxu0 0
      %1386 = vmatpush1.bf16.msra.mxu0 0
      %1387 = vmatprep.subr.bf16.mxu0 0
      %1388 = vmatpush1.bf16.msra.mxu0 0
      %1389 = vmatprep.mubr.bf16.mxu0 0
      %1390 = vmatmul.mubr.bf16.gmra.mrb[0].mxu0 %v1306
      %v1391 = vpop.f32.mrb[0].mxu0
      %v1392 = vadd.f32 0.0, %v1391
      %v1393 = vpop.f32.mrb[0].mxu0
      %v1394 = vpop.f32.mrb[0].mxu0
      %v1395 = vadd.f32 0.0, %v1394
      %v1396 = vpop.f32.mrb[0].mxu0
      %1397 = vmatprep.mubr.bf16.mxu0 0
      %1398 = vmatmul.mubr.bf16.gmra.mrb[0].mxu0 %v1309
      %v1399 = vpop.f32.mrb[0].mxu0
      %v1400 = vadd.f32 0.0, %v1399
      %v1401 = vpop.f32.mrb[0].mxu0
      %v1402 = vpop.f32.mrb[0].mxu0
      %v1403 = vadd.f32 0.0, %v1402
      %v1404 = vpop.f32.mrb[0].mxu0
      %1405 = vmatprep.mubr.bf16.mxu0 0
      %1406 = vmatmul.mubr.bf16.gmra.mrb[0].mxu0 %v1312
      %v1407 = vpop.f32.mrb[0].mxu0
      %v1408 = vadd.f32 0.0, %v1407
      %v1409 = vpop.f32.mrb[0].mxu0
      %v1410 = vpop.f32.mrb[0].mxu0
      %v1411 = vadd.f32 0.0, %v1410
      %v1412 = vpop.f32.mrb[0].mxu0
      %1413 = vmatprep.mubr.bf16.mxu0 0
      %1414 = vmatmul.mubr.bf16.gmra.mrb[0].mxu0 %v1315
      %v1415 = vpop.f32.mrb[0].mxu0
      %v1416 = vadd.f32 0.0, %v1415
      %v1417 = vpop.f32.mrb[0].mxu0
      %v1418 = vpop.f32.mrb[0].mxu0
      %v1419 = vadd.f32 0.0, %v1418
      %v1420 = vpop.f32.mrb[0].mxu0
      %1421 = vmatprep.mubr.bf16.mxu0 0
      %1422 = vmatmul.mubr.bf16.gmra.mrb[0].mxu0 %v1318
      %v1423 = vpop.f32.mrb[0].mxu0
      %v1424 = vadd.f32 0.0, %v1423
      %v1425 = vpop.f32.mrb[0].mxu0
      %v1426 = vpop.f32.mrb[0].mxu0
      %v1427 = vadd.f32 0.0, %v1426
      %v1428 = vpop.f32.mrb[0].mxu0
      %1429 = vmatprep.mubr.bf16.mxu0 0
      %1430 = vmatmul.mubr.bf16.gmra.mrb[0].mxu0 %v1321
      %v1431 = vpop.f32.mrb[0].mxu0
      %v1432 = vadd.f32 0.0, %v1431
      %v1433 = vpop.f32.mrb[0].mxu0
      %v1434 = vpop.f32.mrb[0].mxu0
      %v1435 = vadd.f32 0.0, %v1434
      %v1436 = vpop.f32.mrb[0].mxu0
      %1437 = vmatprep.mubr.bf16.mxu0 0
      %1438 = vmatmul.mubr.bf16.gmra.mrb[0].mxu0 %v1324
      %v1439 = vpop.f32.mrb[0].mxu0
      %v1440 = vadd.f32 0.0, %v1439
      %v1441 = vpop.f32.mrb[0].mxu0
      %v1442 = vpop.f32.mrb[0].mxu0
      %v1443 = vadd.f32 0.0, %v1442
      %v1444 = vpop.f32.mrb[0].mxu0
      %1445 = vmatprep.mubr.bf16.mxu0 0
      %1446 = vmatmul.mubr.bf16.gmra.mrb[0].mxu0 %v1327
      %v1447 = vpop.f32.mrb[0].mxu0
      %v1448 = vadd.f32 0.0, %v1447
      %v1449 = vpop.f32.mrb[0].mxu0
      %v1450 = vpop.f32.mrb[0].mxu0
      %v1451 = vadd.f32 0.0, %v1450
      %v1452 = vpop.f32.mrb[0].mxu0
      %1453 = vmatprep.mubr.bf16.mxu0 0
      %1454 = vmatmul.mubr.bf16.gmra.mrb[0].mxu0 %v1330
      %v1455 = vpop.f32.mrb[0].mxu0
      %v1456 = vadd.f32 0.0, %v1455
      %v1457 = vpop.f32.mrb[0].mxu0
      %v1458 = vpop.f32.mrb[0].mxu0
      %v1459 = vadd.f32 0.0, %v1458
      %v1460 = vpop.f32.mrb[0].mxu0
      %1461 = vmatprep.mubr.bf16.mxu0 0
      %1462 = vmatmul.mubr.bf16.gmra.mrb[0].mxu0 %v1333
      %v1463 = vpop.f32.mrb[0].mxu0
      %v1464 = vadd.f32 0.0, %v1463
      %v1465 = vpop.f32.mrb[0].mxu0
      %v1466 = vpop.f32.mrb[0].mxu0
      %v1467 = vadd.f32 0.0, %v1466
      %v1468 = vpop.f32.mrb[0].mxu0
      %1469 = vmatprep.mubr.bf16.mxu0 0
      %1470 = vmatmul.mubr.bf16.gmra.mrb[0].mxu0 %v1336
      %v1471 = vpop.f32.mrb[0].mxu0
      %v1472 = vadd.f32 0.0, %v1471
      %v1473 = vpop.f32.mrb[0].mxu0
      %v1474 = vpop.f32.mrb[0].mxu0
      %v1475 = vadd.f32 0.0, %v1474
      %v1476 = vpop.f32.mrb[0].mxu0
      %1477 = vmatprep.mubr.bf16.mxu0 0
      %1478 = vmatmul.mubr.bf16.gmra.mrb[0].mxu0 %v1339
      %v1479 = vpop.f32.mrb[0].mxu0
      %v1480 = vadd.f32 0.0, %v1479
      %v1481 = vpop.f32.mrb[0].mxu0
      %v1482 = vpop.f32.mrb[0].mxu0
      %v1483 = vadd.f32 0.0, %v1482
      %v1484 = vpop.f32.mrb[0].mxu0
      %1485 = vmatprep.mubr.bf16.mxu0 0
      %1486 = vmatmul.mubr.bf16.gmra.mrb[0].mxu0 %v1342
      %v1487 = vpop.f32.mrb[0].mxu0
      %v1488 = vadd.f32 0.0, %v1487
      %v1489 = vpop.f32.mrb[0].mxu0
      %v1490 = vpop.f32.mrb[0].mxu0
      %v1491 = vadd.f32 0.0, %v1490
      %v1492 = vpop.f32.mrb[0].mxu0
      %1493 = vmatprep.mubr.bf16.mxu0 0
      %1494 = vmatmul.mubr.bf16.gmra.mrb[0].mxu0 %v1345
      %v1495 = vpop.f32.mrb[0].mxu0
      %v1496 = vadd.f32 0.0, %v1495
      %v1497 = vpop.f32.mrb[0].mxu0
      %v1498 = vpop.f32.mrb[0].mxu0
      %v1499 = vadd.f32 0.0, %v1498
      %v1500 = vpop.f32.mrb[0].mxu0
      %1501 = vmatprep.mubr.bf16.mxu0 0
      %1502 = vmatmul.mubr.bf16.gmra.mrb[0].mxu0 %v1348
      %v1503 = vpop.f32.mrb[0].mxu0
      %v1504 = vadd.f32 0.0, %v1503
      %v1505 = vpop.f32.mrb[0].mxu0
      %v1506 = vpop.f32.mrb[0].mxu0
      %v1507 = vadd.f32 0.0, %v1506
      %v1508 = vpop.f32.mrb[0].mxu0
      %1509 = vmatprep.mubr.bf16.mxu0 0
      %1510 = vmatmul.mubr.bf16.gmra.mrb[0].mxu0 %v1351
      %v1511 = vpop.f32.mrb[0].mxu0
      %v1512 = vadd.f32 0.0, %v1511
      %v1513 = vpop.f32.mrb[0].mxu0
      %v1514 = vpop.f32.mrb[0].mxu0
      %v1515 = vadd.f32 0.0, %v1514
      %v1516 = vpop.f32.mrb[0].mxu0
      %1517 = vdwg.mxu0
      %vm1518 = vsmask.f32 256
      %v1520 = vshrl.u32 %v1282, 16
      %v1522 = vrot.slane %v1520, 7
      %v1524 = vshrl.u32 %v1283, 16
      %v1526 = vrot.slane %v1524, 7
      %v1527 = vshll.u32 %v1283, 16
      %v1529 = vor.u32 %v1526, %v1527
      %v1530 = vsel %vm1518, %v1522, %v1529
      %v1532 = vshrl.u32 %v1284, 16
      %v1534 = vrot.slane %v1532, 7
      %v1535 = vshll.u32 %v1284, 16
      %v1537 = vor.u32 %v1534, %v1535
      %v1538 = vsel %vm1518, %v1526, %v1537
      %v1540 = vshrl.u32 %v1285, 16
      %v1542 = vrot.slane %v1540, 7
      %v1543 = vshll.u32 %v1285, 16
      %v1545 = vor.u32 %v1542, %v1543
      %v1546 = vsel %vm1518, %v1534, %v1545
      %v1548 = vshrl.u32 %v1286, 16
      %v1550 = vrot.slane %v1548, 7
      %v1551 = vshll.u32 %v1286, 16
      %v1553 = vor.u32 %v1550, %v1551
      %v1554 = vsel %vm1518, %v1542, %v1553
      %v1556 = vshrl.u32 %v1287, 16
      %v1558 = vrot.slane %v1556, 7
      %v1559 = vshll.u32 %v1287, 16
      %v1561 = vor.u32 %v1558, %v1559
      %v1562 = vsel %vm1518, %v1550, %v1561
      %v1564 = vshrl.u32 %v1288, 16
      %v1566 = vrot.slane %v1564, 7
      %v1567 = vshll.u32 %v1288, 16
      %v1569 = vor.u32 %v1566, %v1567
      %v1570 = vsel %vm1518, %v1558, %v1569
      %v1572 = vshrl.u32 %v1289, 16
      %v1574 = vrot.slane %v1572, 7
      %v1575 = vshll.u32 %v1289, 16
      %v1577 = vor.u32 %v1574, %v1575
      %v1578 = vsel %vm1518, %v1566, %v1577
      %v1580 = vshrl.u32 %v1290, 16
      %v1582 = vrot.slane %v1580, 7
      %v1583 = vshll.u32 %v1290, 16
      %v1585 = vor.u32 %v1582, %v1583
      %v1586 = vsel %vm1518, %v1574, %v1585
      %v1588 = vshrl.u32 %v1291, 16
      %v1590 = vrot.slane %v1588, 7
      %v1591 = vshll.u32 %v1291, 16
      %v1593 = vor.u32 %v1590, %v1591
      %v1594 = vsel %vm1518, %v1582, %v1593
      %v1596 = vshrl.u32 %v1292, 16
      %v1598 = vrot.slane %v1596, 7
      %v1599 = vshll.u32 %v1292, 16
      %v1601 = vor.u32 %v1598, %v1599
      %v1602 = vsel %vm1518, %v1590, %v1601
      %v1604 = vshrl.u32 %v1293, 16
      %v1606 = vrot.slane %v1604, 7
      %v1607 = vshll.u32 %v1293, 16
      %v1609 = vor.u32 %v1606, %v1607
      %v1610 = vsel %vm1518, %v1598, %v1609
      %v1612 = vshrl.u32 %v1294, 16
      %v1614 = vrot.slane %v1612, 7
      %v1615 = vshll.u32 %v1294, 16
      %v1617 = vor.u32 %v1614, %v1615
      %v1618 = vsel %vm1518, %v1606, %v1617
      %v1620 = vshrl.u32 %v1295, 16
      %v1622 = vrot.slane %v1620, 7
      %v1623 = vshll.u32 %v1295, 16
      %v1625 = vor.u32 %v1622, %v1623
      %v1626 = vsel %vm1518, %v1614, %v1625
      %v1628 = vshrl.u32 %v1296, 16
      %v1630 = vrot.slane %v1628, 7
      %v1631 = vshll.u32 %v1296, 16
      %v1633 = vor.u32 %v1630, %v1631
      %v1634 = vsel %vm1518, %v1622, %v1633
      %v1636 = vshrl.u32 %v1297, 16
      %v1638 = vrot.slane %v1636, 7
      %v1639 = vshll.u32 %v1297, 16
      %v1641 = vor.u32 %v1638, %v1639
      %v1642 = vsel %vm1518, %v1630, %v1641
      %v1644 = vshrl.u32 %v1298, 16
      %v1646 = vrot.slane %v1644, 7
      %v1647 = vshll.u32 %v1298, 16
      %v1649 = vor.u32 %v1646, %v1647
      %v1650 = vsel %vm1518, %v1638, %v1649
      %v1652 = vsel %vm790, %v1530, 0
      %v1655 = vsel %vm790, %v1538, 0
      %v1658 = vsel %vm790, %v1546, 0
      %v1661 = vsel %vm790, %v1554, 0
      %v1664 = vsel %vm790, %v1562, 0
      %v1667 = vsel %vm790, %v1570, 0
      %v1670 = vsel %vm790, %v1578, 0
      %v1673 = vsel %vm790, %v1586, 0
      %v1676 = vsel %vm790, %v1594, 0
      %v1679 = vsel %vm790, %v1602, 0
      %v1682 = vsel %vm790, %v1610, 0
      %v1685 = vsel %vm790, %v1618, 0
      %v1688 = vsel %vm790, %v1626, 0
      %v1691 = vsel %vm790, %v1634, 0
      %v1694 = vsel %vm790, %v1642, 0
      %v1697 = vsel %vm790, %v1650, 0
      %v1700 = vsel %vm1353, %v1299, 0
      %1702 = vmatprep.subr.bf16.mxu0 0
      %1703 = vmatpush1.bf16.msra.mxu0 %v1700
      %1704 = vmatprep.subr.bf16.mxu0 0
      %1705 = vmatpush1.bf16.msra.mxu0 0
      %1706 = vmatprep.subr.bf16.mxu0 0
      %1707 = vmatpush1.bf16.msra.mxu0 0
      %1708 = vmatprep.subr.bf16.mxu0 0
      %1709 = vmatpush1.bf16.msra.mxu0 0
      %1710 = vmatprep.subr.bf16.mxu0 0
      %1711 = vmatpush1.bf16.msra.mxu0 0
      %1712 = vmatprep.subr.bf16.mxu0 0
      %1713 = vmatpush1.bf16.msra.mxu0 0
      %1714 = vmatprep.subr.bf16.mxu0 0
      %1715 = vmatpush1.bf16.msra.mxu0 0
      %1716 = vmatprep.subr.bf16.mxu0 0
      %1717 = vmatpush1.bf16.msra.mxu0 0
      %1718 = vmatprep.subr.bf16.mxu0 0
      %1719 = vmatpush1.bf16.msra.mxu0 0
      %1720 = vmatprep.subr.bf16.mxu0 0
      %1721 = vmatpush1.bf16.msra.mxu0 0
      %1722 = vmatprep.subr.bf16.mxu0 0
      %1723 = vmatpush1.bf16.msra.mxu0 0
      %1724 = vmatprep.subr.bf16.mxu0 0
      %1725 = vmatpush1.bf16.msra.mxu0 0
      %1726 = vmatprep.subr.bf16.mxu0 0
      %1727 = vmatpush1.bf16.msra.mxu0 0
      %1728 = vmatprep.subr.bf16.mxu0 0
      %1729 = vmatpush1.bf16.msra.mxu0 0
      %1730 = vmatprep.subr.bf16.mxu0 0
      %1731 = vmatpush1.bf16.msra.mxu0 0
      %1732 = vmatprep.subr.bf16.mxu0 0
      %1733 = vmatpush1.bf16.msra.mxu0 0
      %1734 = vmatprep.mubr.bf16.mxu0 0
      %1735 = vmatmul.mubr.bf16.gmra.mrb[0].mxu0 %v1652
      %v1736 = vpop.f32.mrb[0].mxu0
      %v1737 = vadd.f32 %v1392, %v1736
      %v1738 = vpop.f32.mrb[0].mxu0
      %v1739 = vpop.f32.mrb[0].mxu0
      %v1740 = vadd.f32 %v1395, %v1739
      %v1741 = vpop.f32.mrb[0].mxu0
      %1742 = vmatprep.mubr.bf16.mxu0 0
      %1743 = vmatmul.mubr.bf16.gmra.mrb[0].mxu0 %v1655
      %v1744 = vpop.f32.mrb[0].mxu0
      %v1745 = vadd.f32 %v1400, %v1744
      %v1746 = vpop.f32.mrb[0].mxu0
      %v1747 = vpop.f32.mrb[0].mxu0
      %v1748 = vadd.f32 %v1403, %v1747
      %v1749 = vpop.f32.mrb[0].mxu0
      %1750 = vmatprep.mubr.bf16.mxu0 0
      %1751 = vmatmul.mubr.bf16.gmra.mrb[0].mxu0 %v1658
      %v1752 = vpop.f32.mrb[0].mxu0
      %v1753 = vadd.f32 %v1408, %v1752
      %v1754 = vpop.f32.mrb[0].mxu0
      %v1755 = vpop.f32.mrb[0].mxu0
      %v1756 = vadd.f32 %v1411, %v1755
      %v1757 = vpop.f32.mrb[0].mxu0
      %1758 = vmatprep.mubr.bf16.mxu0 0
      %1759 = vmatmul.mubr.bf16.gmra.mrb[0].mxu0 %v1661
      %v1760 = vpop.f32.mrb[0].mxu0
      %v1761 = vadd.f32 %v1416, %v1760
      %v1762 = vpop.f32.mrb[0].mxu0
      %v1763 = vpop.f32.mrb[0].mxu0
      %v1764 = vadd.f32 %v1419, %v1763
      %v1765 = vpop.f32.mrb[0].mxu0
      %1766 = vmatprep.mubr.bf16.mxu0 0
      %1767 = vmatmul.mubr.bf16.gmra.mrb[0].mxu0 %v1664
      %v1768 = vpop.f32.mrb[0].mxu0
      %v1769 = vadd.f32 %v1424, %v1768
      %v1770 = vpop.f32.mrb[0].mxu0
      %v1771 = vpop.f32.mrb[0].mxu0
      %v1772 = vadd.f32 %v1427, %v1771
      %v1773 = vpop.f32.mrb[0].mxu0
      %1774 = vmatprep.mubr.bf16.mxu0 0
      %1775 = vmatmul.mubr.bf16.gmra.mrb[0].mxu0 %v1667
      %v1776 = vpop.f32.mrb[0].mxu0
      %v1777 = vadd.f32 %v1432, %v1776
      %v1778 = vpop.f32.mrb[0].mxu0
      %v1779 = vpop.f32.mrb[0].mxu0
      %v1780 = vadd.f32 %v1435, %v1779
      %v1781 = vpop.f32.mrb[0].mxu0
      %1782 = vmatprep.mubr.bf16.mxu0 0
      %1783 = vmatmul.mubr.bf16.gmra.mrb[0].mxu0 %v1670
      %v1784 = vpop.f32.mrb[0].mxu0
      %v1785 = vadd.f32 %v1440, %v1784
      %v1786 = vpop.f32.mrb[0].mxu0
      %v1787 = vpop.f32.mrb[0].mxu0
      %v1788 = vadd.f32 %v1443, %v1787
      %v1789 = vpop.f32.mrb[0].mxu0
      %1790 = vmatprep.mubr.bf16.mxu0 0
      %1791 = vmatmul.mubr.bf16.gmra.mrb[0].mxu0 %v1673
      %v1792 = vpop.f32.mrb[0].mxu0
      %v1793 = vadd.f32 %v1448, %v1792
      %v1794 = vpop.f32.mrb[0].mxu0
      %v1795 = vpop.f32.mrb[0].mxu0
      %v1796 = vadd.f32 %v1451, %v1795
      %v1797 = vpop.f32.mrb[0].mxu0
      %1798 = vmatprep.mubr.bf16.mxu0 0
      %1799 = vmatmul.mubr.bf16.gmra.mrb[0].mxu0 %v1676
      %v1800 = vpop.f32.mrb[0].mxu0
      %v1801 = vadd.f32 %v1456, %v1800
      %v1802 = vpop.f32.mrb[0].mxu0
      %v1803 = vpop.f32.mrb[0].mxu0
      %v1804 = vadd.f32 %v1459, %v1803
      %v1805 = vpop.f32.mrb[0].mxu0
      %1806 = vmatprep.mubr.bf16.mxu0 0
      %1807 = vmatmul.mubr.bf16.gmra.mrb[0].mxu0 %v1679
      %v1808 = vpop.f32.mrb[0].mxu0
      %v1809 = vadd.f32 %v1464, %v1808
      %v1810 = vpop.f32.mrb[0].mxu0
      %v1811 = vpop.f32.mrb[0].mxu0
      %v1812 = vadd.f32 %v1467, %v1811
      %v1813 = vpop.f32.mrb[0].mxu0
      %1814 = vmatprep.mubr.bf16.mxu0 0
      %1815 = vmatmul.mubr.bf16.gmra.mrb[0].mxu0 %v1682
      %v1816 = vpop.f32.mrb[0].mxu0
      %v1817 = vadd.f32 %v1472, %v1816
      %v1818 = vpop.f32.mrb[0].mxu0
      %v1819 = vpop.f32.mrb[0].mxu0
      %v1820 = vadd.f32 %v1475, %v1819
      %v1821 = vpop.f32.mrb[0].mxu0
      %1822 = vmatprep.mubr.bf16.mxu0 0
      %1823 = vmatmul.mubr.bf16.gmra.mrb[0].mxu0 %v1685
      %v1824 = vpop.f32.mrb[0].mxu0
      %v1825 = vadd.f32 %v1480, %v1824
      %v1826 = vpop.f32.mrb[0].mxu0
      %v1827 = vpop.f32.mrb[0].mxu0
      %v1828 = vadd.f32 %v1483, %v1827
      %v1829 = vpop.f32.mrb[0].mxu0
      %1830 = vmatprep.mubr.bf16.mxu0 0
      %1831 = vmatmul.mubr.bf16.gmra.mrb[0].mxu0 %v1688
      %v1832 = vpop.f32.mrb[0].mxu0
      %v1833 = vadd.f32 %v1488, %v1832
      %v1834 = vpop.f32.mrb[0].mxu0
      %v1835 = vpop.f32.mrb[0].mxu0
      %v1836 = vadd.f32 %v1491, %v1835
      %v1837 = vpop.f32.mrb[0].mxu0
      %1838 = vmatprep.mubr.bf16.mxu0 0
      %1839 = vmatmul.mubr.bf16.gmra.mrb[0].mxu0 %v1691
      %v1840 = vpop.f32.mrb[0].mxu0
      %v1841 = vadd.f32 %v1496, %v1840
      %v1842 = vpop.f32.mrb[0].mxu0
      %v1843 = vpop.f32.mrb[0].mxu0
      %v1844 = vadd.f32 %v1499, %v1843
      %v1845 = vpop.f32.mrb[0].mxu0
      %1846 = vmatprep.mubr.bf16.mxu0 0
      %1847 = vmatmul.mubr.bf16.gmra.mrb[0].mxu0 %v1694
      %v1848 = vpop.f32.mrb[0].mxu0
      %v1849 = vadd.f32 %v1504, %v1848
      %v1850 = vpop.f32.mrb[0].mxu0
      %v1851 = vpop.f32.mrb[0].mxu0
      %v1852 = vadd.f32 %v1507, %v1851
      %v1853 = vpop.f32.mrb[0].mxu0
      %1854 = vmatprep.mubr.bf16.mxu0 0
      %1855 = vmatmul.mubr.bf16.gmra.mrb[0].mxu0 %v1697
      %v1856 = vpop.f32.mrb[0].mxu0
      %v1857 = vadd.f32 %v1512, %v1856
      %v1858 = vpop.f32.mrb[0].mxu0
      %v1859 = vpop.f32.mrb[0].mxu0
      %v1860 = vadd.f32 %v1515, %v1859
      %v1861 = vpop.f32.mrb[0].mxu0
      %1862 = vdwg.mxu0
      %v1863 = vld [vmem:[#allocation2 + $0x8] sm:$0xff]
      %v1864 = vld [vmem:[#allocation2 + $0x10] sm:$0xff]
      %v1865 = vld [vmem:[#allocation2 + $0x18] sm:$0xff]
      %v1866 = vld [vmem:[#allocation2 + $0x20] sm:$0xff]
      %v1867 = vld [vmem:[#allocation2 + $0x28] sm:$0xff]
      %v1868 = vld [vmem:[#allocation2 + $0x30] sm:$0xff]
      %v1869 = vld [vmem:[#allocation2 + $0x38] sm:$0xff]
      %v1870 = vld [vmem:[#allocation2 + $0x40] sm:$0xff]
      %v1871 = vld [vmem:[#allocation2 + $0x48] sm:$0xff]
      %v1872 = vld [vmem:[#allocation2 + $0x50] sm:$0xff]
      %v1873 = vld [vmem:[#allocation2 + $0x58] sm:$0xff]
      %v1874 = vld [vmem:[#allocation2 + $0x60] sm:$0xff]
      %v1875 = vld [vmem:[#allocation2 + $0x68] sm:$0xff]
      %v1876 = vld [vmem:[#allocation2 + $0x70] sm:$0xff]
      %v1877 = vld [vmem:[#allocation2 + $0x78] sm:$0xff]
      %v1878 = vld [vmem:[#allocation2 + $0x80] sm:$0xff]
      %v1879 = vld [vmem:[#allocation2 + $0x88] sm:$0x1]
      %v1880 = vsel %vm758, 1, 0
      %v1881 = vsel %vm759, 1, 0
      %v1882 = vsel %vm760, 1, 0
      %v1883 = vsel %vm761, 1, 0
      %v1884 = vsel %vm762, 1, 0
      %v1885 = vsel %vm763, 1, 0
      %v1886 = vsel %vm764, 1, 0
      %v1887 = vsel %vm765, 1, 0
      %v1888 = vsel %vm766, 1, 0
      %v1889 = vsel %vm767, 1, 0
      %v1890 = vsel %vm768, 1, 0
      %v1891 = vsel %vm769, 1, 0
      %v1892 = vsel %vm770, 1, 0
      %v1893 = vsel %vm771, 1, 0
      %v1894 = vsel %vm772, 1, 0
      %v1895 = vsel %vm773, 1, 0
      %v1896 = vsel %vm774, 1, 0
      %v1897 = vsel %vm775, 1, 0
      %v1898 = vsel %vm776, 1, 0
      %v1899 = vsel %vm777, 1, 0
      %v1900 = vsel %vm778, 1, 0
      %v1901 = vsel %vm779, 1, 0
      %v1902 = vsel %vm780, 1, 0
      %v1903 = vsel %vm781, 1, 0
      %v1904 = vsel %vm782, 1, 0
      %v1905 = vsel %vm783, 1, 0
      %v1906 = vsel %vm784, 1, 0
      %v1907 = vsel %vm785, 1, 0
      %v1908 = vsel %vm786, 1, 0
      %v1909 = vsel %vm787, 1, 0
      %v1910 = vsel %vm788, 1, 0
      %v1911 = vsel %vm789, 1, 0
      %vm1912 = vcmp.eq.s32.totalorder %v1880, 1
      %vm1913 = vcmp.eq.s32.totalorder %v1881, 1
      %vm1914 = vcmp.eq.s32.totalorder %v1882, 1
      %vm1915 = vcmp.eq.s32.totalorder %v1883, 1
      %vm1916 = vcmp.eq.s32.totalorder %v1884, 1
      %vm1917 = vcmp.eq.s32.totalorder %v1885, 1
      %vm1918 = vcmp.eq.s32.totalorder %v1886, 1
      %vm1919 = vcmp.eq.s32.totalorder %v1887, 1
      %vm1920 = vcmp.eq.s32.totalorder %v1888, 1
      %vm1921 = vcmp.eq.s32.totalorder %v1889, 1
      %vm1922 = vcmp.eq.s32.totalorder %v1890, 1
      %vm1923 = vcmp.eq.s32.totalorder %v1891, 1
      %vm1924 = vcmp.eq.s32.totalorder %v1892, 1
      %vm1925 = vcmp.eq.s32.totalorder %v1893, 1
      %vm1926 = vcmp.eq.s32.totalorder %v1894, 1
      %vm1927 = vcmp.eq.s32.totalorder %v1895, 1
      %vm1928 = vcmp.eq.s32.totalorder %v1896, 1
      %vm1929 = vcmp.eq.s32.totalorder %v1897, 1
      %vm1930 = vcmp.eq.s32.totalorder %v1898, 1
      %vm1931 = vcmp.eq.s32.totalorder %v1899, 1
      %vm1932 = vcmp.eq.s32.totalorder %v1900, 1
      %vm1933 = vcmp.eq.s32.totalorder %v1901, 1
      %vm1934 = vcmp.eq.s32.totalorder %v1902, 1
      %vm1935 = vcmp.eq.s32.totalorder %v1903, 1
      %vm1936 = vcmp.eq.s32.totalorder %v1904, 1
      %vm1937 = vcmp.eq.s32.totalorder %v1905, 1
      %vm1938 = vcmp.eq.s32.totalorder %v1906, 1
      %vm1939 = vcmp.eq.s32.totalorder %v1907, 1
      %vm1940 = vcmp.eq.s32.totalorder %v1908, 1
      %vm1941 = vcmp.eq.s32.totalorder %v1909, 1
      %vm1942 = vcmp.eq.s32.totalorder %v1910, 1
      %vm1943 = vcmp.eq.s32.totalorder %v1911, 1
      %vm1944 = vmpackc.low %vm1912, %vm1912
      %vm1945 = vmpackc.low %vm1913, %vm1913
      %vm1946 = vmpackc.low %vm1914, %vm1914
      %vm1947 = vmpackc.low %vm1915, %vm1915
      %vm1948 = vmpackc.low %vm1916, %vm1916
      %vm1949 = vmpackc.low %vm1917, %vm1917
      %vm1950 = vmpackc.low %vm1918, %vm1918
      %vm1951 = vmpackc.low %vm1919, %vm1919
      %vm1952 = vmpackc.low %vm1920, %vm1920
      %vm1953 = vmpackc.low %vm1921, %vm1921
      %vm1954 = vmpackc.low %vm1922, %vm1922
      %vm1955 = vmpackc.low %vm1923, %vm1923
      %vm1956 = vmpackc.low %vm1924, %vm1924
      %vm1957 = vmpackc.low %vm1925, %vm1925
      %vm1958 = vmpackc.low %vm1926, %vm1926
      %vm1959 = vmpackc.low %vm1927, %vm1927
      %vm1960 = vmpackc.low %vm1928, %vm1928
      %vm1961 = vmpackc.low %vm1929, %vm1929
      %vm1962 = vmpackc.low %vm1930, %vm1930
      %vm1963 = vmpackc.low %vm1931, %vm1931
      %vm1964 = vmpackc.low %vm1932, %vm1932
      %vm1965 = vmpackc.low %vm1933, %vm1933
      %vm1966 = vmpackc.low %vm1934, %vm1934
      %vm1967 = vmpackc.low %vm1935, %vm1935
      %vm1968 = vmpackc.low %vm1936, %vm1936
      %vm1969 = vmpackc.low %vm1937, %vm1937
      %vm1970 = vmpackc.low %vm1938, %vm1938
      %vm1971 = vmpackc.low %vm1939, %vm1939
      %vm1972 = vmpackc.low %vm1940, %vm1940
      %vm1973 = vmpackc.low %vm1941, %vm1941
      %vm1974 = vmpackc.low %vm1942, %vm1942
      %vm1975 = vmpackc.low %vm1943, %vm1943
      %v1976 = vsel %vm1944, 65537, 0
      %v1977 = vsel %vm1945, 65537, 0
      %v1978 = vsel %vm1946, 65537, 0
      %v1979 = vsel %vm1947, 65537, 0
      %v1980 = vsel %vm1948, 65537, 0
      %v1981 = vsel %vm1949, 65537, 0
      %v1982 = vsel %vm1950, 65537, 0
      %v1983 = vsel %vm1951, 65537, 0
      %v1984 = vsel %vm1952, 65537, 0
      %v1985 = vsel %vm1953, 65537, 0
      %v1986 = vsel %vm1954, 65537, 0
      %v1987 = vsel %vm1955, 65537, 0
      %v1988 = vsel %vm1956, 65537, 0
      %v1989 = vsel %vm1957, 65537, 0
      %v1990 = vsel %vm1958, 65537, 0
      %v1991 = vsel %vm1959, 65537, 0
      %v1992 = vsel %vm1960, 65537, 0
      %v1993 = vsel %vm1961, 65537, 0
      %v1994 = vsel %vm1962, 65537, 0
      %v1995 = vsel %vm1963, 65537, 0
      %v1996 = vsel %vm1964, 65537, 0
      %v1997 = vsel %vm1965, 65537, 0
      %v1998 = vsel %vm1966, 65537, 0
      %v1999 = vsel %vm1967, 65537, 0
      %v2000 = vsel %vm1968, 65537, 0
      %v2001 = vsel %vm1969, 65537, 0
      %v2002 = vsel %vm1970, 65537, 0
      %v2003 = vsel %vm1971, 65537, 0
      %v2004 = vsel %vm1972, 65537, 0
      %v2005 = vsel %vm1973, 65537, 0
      %v2006 = vsel %vm1974, 65537, 0
      %v2007 = vsel %vm1975, 65537, 0
      %v2008 = vunpack.c.l.b16 %v1976
      %v2009 = vunpack.c.l.b16 %v1977
      %v2010 = vunpack.c.l.b16 %v1978
      %v2011 = vunpack.c.l.b16 %v1979
      %v2012 = vunpack.c.l.b16 %v1980
      %v2013 = vunpack.c.l.b16 %v1981
      %v2014 = vunpack.c.l.b16 %v1982
      %v2015 = vunpack.c.l.b16 %v1983
      %v2016 = vunpack.c.l.b16 %v1984
      %v2017 = vunpack.c.l.b16 %v1985
      %v2018 = vunpack.c.l.b16 %v1986
      %v2019 = vunpack.c.l.b16 %v1987
      %v2020 = vunpack.c.l.b16 %v1988
      %v2021 = vunpack.c.l.b16 %v1989
      %v2022 = vunpack.c.l.b16 %v1990
      %v2023 = vunpack.c.l.b16 %v1991
      %v2024 = vunpack.c.l.b16 %v1992
      %v2025 = vunpack.c.l.b16 %v1993
      %v2026 = vunpack.c.l.b16 %v1994
      %v2027 = vunpack.c.l.b16 %v1995
      %v2028 = vunpack.c.l.b16 %v1996
      %v2029 = vunpack.c.l.b16 %v1997
      %v2030 = vunpack.c.l.b16 %v1998
      %v2031 = vunpack.c.l.b16 %v1999
      %v2032 = vunpack.c.l.b16 %v2000
      %v2033 = vunpack.c.l.b16 %v2001
      %v2034 = vunpack.c.l.b16 %v2002
      %v2035 = vunpack.c.l.b16 %v2003
      %v2036 = vunpack.c.l.b16 %v2004
      %v2037 = vunpack.c.l.b16 %v2005
      %v2038 = vunpack.c.l.b16 %v2006
      %v2039 = vunpack.c.l.b16 %v2007
      %v2040 = vpack.c.b16 %v2009, %v2008
      %v2041 = vpack.c.b16 %v2011, %v2010
      %v2042 = vpack.c.b16 %v2013, %v2012
      %v2043 = vpack.c.b16 %v2015, %v2014
      %v2044 = vpack.c.b16 %v2017, %v2016
      %v2045 = vpack.c.b16 %v2019, %v2018
      %v2046 = vpack.c.b16 %v2021, %v2020
      %v2047 = vpack.c.b16 %v2023, %v2022
      %v2048 = vpack.c.b16 %v2025, %v2024
      %v2049 = vpack.c.b16 %v2027, %v2026
      %v2050 = vpack.c.b16 %v2029, %v2028
      %v2051 = vpack.c.b16 %v2031, %v2030
      %v2052 = vpack.c.b16 %v2033, %v2032
      %v2053 = vpack.c.b16 %v2035, %v2034
      %v2054 = vpack.c.b16 %v2037, %v2036
      %v2055 = vpack.c.b16 %v2039, %v2038
      %v2057 = vshrl.u32 %v2040, 16
      %v2059 = vrot.slane %v2057, 7
      %v2060 = vshll.u32 %v2040, 16
      %v2062 = vor.u32 %v2059, %v2060
      %v2064 = vshrl.u32 %v2041, 16
      %v2066 = vrot.slane %v2064, 7
      %v2067 = vshll.u32 %v2041, 16
      %v2069 = vor.u32 %v2066, %v2067
      %v2070 = vsel %vm1518, %v2059, %v2069
      %v2072 = vshrl.u32 %v2042, 16
      %v2074 = vrot.slane %v2072, 7
      %v2075 = vshll.u32 %v2042, 16
      %v2077 = vor.u32 %v2074, %v2075
      %v2078 = vsel %vm1518, %v2066, %v2077
      %v2080 = vshrl.u32 %v2043, 16
      %v2082 = vrot.slane %v2080, 7
      %v2083 = vshll.u32 %v2043, 16
      %v2085 = vor.u32 %v2082, %v2083
      %v2086 = vsel %vm1518, %v2074, %v2085
      %v2088 = vshrl.u32 %v2044, 16
      %v2090 = vrot.slane %v2088, 7
      %v2091 = vshll.u32 %v2044, 16
      %v2093 = vor.u32 %v2090, %v2091
      %v2094 = vsel %vm1518, %v2082, %v2093
      %v2096 = vshrl.u32 %v2045, 16
      %v2098 = vrot.slane %v2096, 7
      %v2099 = vshll.u32 %v2045, 16
      %v2101 = vor.u32 %v2098, %v2099
      %v2102 = vsel %vm1518, %v2090, %v2101
      %v2104 = vshrl.u32 %v2046, 16
      %v2106 = vrot.slane %v2104, 7
      %v2107 = vshll.u32 %v2046, 16
      %v2109 = vor.u32 %v2106, %v2107
      %v2110 = vsel %vm1518, %v2098, %v2109
      %v2112 = vshrl.u32 %v2047, 16
      %v2114 = vrot.slane %v2112, 7
      %v2115 = vshll.u32 %v2047, 16
      %v2117 = vor.u32 %v2114, %v2115
      %v2118 = vsel %vm1518, %v2106, %v2117
      %v2120 = vshrl.u32 %v2048, 16
      %v2122 = vrot.slane %v2120, 7
      %v2123 = vshll.u32 %v2048, 16
      %v2125 = vor.u32 %v2122, %v2123
      %v2126 = vsel %vm1518, %v2114, %v2125
      %v2128 = vshrl.u32 %v2049, 16
      %v2130 = vrot.slane %v2128, 7
      %v2131 = vshll.u32 %v2049, 16
      %v2133 = vor.u32 %v2130, %v2131
      %v2134 = vsel %vm1518, %v2122, %v2133
      %v2136 = vshrl.u32 %v2050, 16
      %v2138 = vrot.slane %v2136, 7
      %v2139 = vshll.u32 %v2050, 16
      %v2141 = vor.u32 %v2138, %v2139
      %v2142 = vsel %vm1518, %v2130, %v2141
      %v2144 = vshrl.u32 %v2051, 16
      %v2146 = vrot.slane %v2144, 7
      %v2147 = vshll.u32 %v2051, 16
      %v2149 = vor.u32 %v2146, %v2147
      %v2150 = vsel %vm1518, %v2138, %v2149
      %v2152 = vshrl.u32 %v2052, 16
      %v2154 = vrot.slane %v2152, 7
      %v2155 = vshll.u32 %v2052, 16
      %v2157 = vor.u32 %v2154, %v2155
      %v2158 = vsel %vm1518, %v2146, %v2157
      %v2160 = vshrl.u32 %v2053, 16
      %v2162 = vrot.slane %v2160, 7
      %v2163 = vshll.u32 %v2053, 16
      %v2165 = vor.u32 %v2162, %v2163
      %v2166 = vsel %vm1518, %v2154, %v2165
      %v2168 = vshrl.u32 %v2054, 16
      %v2170 = vrot.slane %v2168, 7
      %v2171 = vshll.u32 %v2054, 16
      %v2173 = vor.u32 %v2170, %v2171
      %v2174 = vsel %vm1518, %v2162, %v2173
      %v2176 = vshrl.u32 %v2055, 16
      %v2178 = vrot.slane %v2176, 7
      %v2179 = vshll.u32 %v2055, 16
      %v2181 = vor.u32 %v2178, %v2179
      %v2182 = vsel %vm1518, %v2170, %v2181
      %vm2183 = vcmp.ne.s16.totalorder %v2062, 0
      %vm2184 = vcmp.ne.s16.totalorder %v2070, 0
      %vm2185 = vcmp.ne.s16.totalorder %v2078, 0
      %vm2186 = vcmp.ne.s16.totalorder %v2086, 0
      %vm2187 = vcmp.ne.s16.totalorder %v2094, 0
      %vm2188 = vcmp.ne.s16.totalorder %v2102, 0
      %vm2189 = vcmp.ne.s16.totalorder %v2110, 0
      %vm2190 = vcmp.ne.s16.totalorder %v2118, 0
      %vm2191 = vcmp.ne.s16.totalorder %v2126, 0
      %vm2192 = vcmp.ne.s16.totalorder %v2134, 0
      %vm2193 = vcmp.ne.s16.totalorder %v2142, 0
      %vm2194 = vcmp.ne.s16.totalorder %v2150, 0
      %vm2195 = vcmp.ne.s16.totalorder %v2158, 0
      %vm2196 = vcmp.ne.s16.totalorder %v2166, 0
      %vm2197 = vcmp.ne.s16.totalorder %v2174, 0
      %vm2198 = vcmp.ne.s16.totalorder %v2182, 0
      %vm2199 = vcmp.ne.s16.totalorder %v2178, 0
      %v2200 = vsel %vm2183, %v1863, 0
      %v2201 = vsel %vm2184, %v1864, 0
      %v2202 = vsel %vm2185, %v1865, 0
      %v2203 = vsel %vm2186, %v1866, 0
      %v2204 = vsel %vm2187, %v1867, 0
      %v2205 = vsel %vm2188, %v1868, 0
      %v2206 = vsel %vm2189, %v1869, 0
      %v2207 = vsel %vm2190, %v1870, 0
      %v2208 = vsel %vm2191, %v1871, 0
      %v2209 = vsel %vm2192, %v1872, 0
      %v2210 = vsel %vm2193, %v1873, 0
      %v2211 = vsel %vm2194, %v1874, 0
      %v2212 = vsel %vm2195, %v1875, 0
      %v2213 = vsel %vm2196, %v1876, 0
      %v2214 = vsel %vm2197, %v1877, 0
      %v2215 = vsel %vm2198, %v1878, 0
      %v2216 = vsel %vm2199, %v1879, 0
      %v2217 = vld [vmem:[%s2 + $0x4] sm:$0x3]
      %v2219 = vshrl.u32 %v2200, 16
      %v2221 = vshll.u32 %v2200, 16
      %v2223 = vrot.slane %v2221, 1
      %v2224 = vor.u32 %v2219, %v2223
      %v2226 = vshll.u32 %v2201, 16
      %v2228 = vrot.slane %v2226, 1
      %v2229 = vsel %vm1137, %v2224, %v2228
      %v2230 = vshrl.u32 %v2201, 16
      %v2232 = vor.u32 %v2230, %v2228
      %v2234 = vshll.u32 %v2202, 16
      %v2236 = vrot.slane %v2234, 1
      %v2237 = vsel %vm1137, %v2232, %v2236
      %v2238 = vshrl.u32 %v2202, 16
      %v2240 = vor.u32 %v2238, %v2236
      %v2242 = vshll.u32 %v2203, 16
      %v2244 = vrot.slane %v2242, 1
      %v2245 = vsel %vm1137, %v2240, %v2244
      %v2246 = vshrl.u32 %v2203, 16
      %v2248 = vor.u32 %v2246, %v2244
      %v2250 = vshll.u32 %v2204, 16
      %v2252 = vrot.slane %v2250, 1
      %v2253 = vsel %vm1137, %v2248, %v2252
      %v2254 = vshrl.u32 %v2204, 16
      %v2256 = vor.u32 %v2254, %v2252
      %v2258 = vshll.u32 %v2205, 16
      %v2260 = vrot.slane %v2258, 1
      %v2261 = vsel %vm1137, %v2256, %v2260
      %v2262 = vshrl.u32 %v2205, 16
      %v2264 = vor.u32 %v2262, %v2260
      %v2266 = vshll.u32 %v2206, 16
      %v2268 = vrot.slane %v2266, 1
      %v2269 = vsel %vm1137, %v2264, %v2268
      %v2270 = vshrl.u32 %v2206, 16
      %v2272 = vor.u32 %v2270, %v2268
      %v2274 = vshll.u32 %v2207, 16
      %v2276 = vrot.slane %v2274, 1
      %v2277 = vsel %vm1137, %v2272, %v2276
      %v2278 = vshrl.u32 %v2207, 16
      %v2280 = vor.u32 %v2278, %v2276
      %v2282 = vshll.u32 %v2208, 16
      %v2284 = vrot.slane %v2282, 1
      %v2285 = vsel %vm1137, %v2280, %v2284
      %v2286 = vshrl.u32 %v2208, 16
      %v2288 = vor.u32 %v2286, %v2284
      %v2290 = vshll.u32 %v2209, 16
      %v2292 = vrot.slane %v2290, 1
      %v2293 = vsel %vm1137, %v2288, %v2292
      %v2294 = vshrl.u32 %v2209, 16
      %v2296 = vor.u32 %v2294, %v2292
      %v2298 = vshll.u32 %v2210, 16
      %v2300 = vrot.slane %v2298, 1
      %v2301 = vsel %vm1137, %v2296, %v2300
      %v2302 = vshrl.u32 %v2210, 16
      %v2304 = vor.u32 %v2302, %v2300
      %v2306 = vshll.u32 %v2211, 16
      %v2308 = vrot.slane %v2306, 1
      %v2309 = vsel %vm1137, %v2304, %v2308
      %v2310 = vshrl.u32 %v2211, 16
      %v2312 = vor.u32 %v2310, %v2308
      %v2314 = vshll.u32 %v2212, 16
      %v2316 = vrot.slane %v2314, 1
      %v2317 = vsel %vm1137, %v2312, %v2316
      %v2318 = vshrl.u32 %v2212, 16
      %v2320 = vor.u32 %v2318, %v2316
      %v2322 = vshll.u32 %v2213, 16
      %v2324 = vrot.slane %v2322, 1
      %v2325 = vsel %vm1137, %v2320, %v2324
      %v2326 = vshrl.u32 %v2213, 16
      %v2328 = vor.u32 %v2326, %v2324
      %v2330 = vshll.u32 %v2214, 16
      %v2332 = vrot.slane %v2330, 1
      %v2333 = vsel %vm1137, %v2328, %v2332
      %v2334 = vshrl.u32 %v2214, 16
      %v2336 = vor.u32 %v2334, %v2332
      %v2338 = vshll.u32 %v2215, 16
      %v2340 = vrot.slane %v2338, 1
      %v2341 = vsel %vm1137, %v2336, %v2340
      %v2342 = vshrl.u32 %v2215, 16
      %v2344 = vor.u32 %v2342, %v2340
      %v2346 = vshll.u32 %v2216, 16
      %v2348 = vrot.slane %v2346, 1
      %v2349 = vsel %vm1137, %v2344, %v2348
      %v2351 = vsel %vm790, %v2229, 0
      %v2354 = vsel %vm790, %v2237, 0
      %v2357 = vsel %vm790, %v2245, 0
      %v2360 = vsel %vm790, %v2253, 0
      %v2363 = vsel %vm790, %v2261, 0
      %v2366 = vsel %vm790, %v2269, 0
      %v2369 = vsel %vm790, %v2277, 0
      %v2372 = vsel %vm790, %v2285, 0
      %v2375 = vsel %vm790, %v2293, 0
      %v2378 = vsel %vm790, %v2301, 0
      %v2381 = vsel %vm790, %v2309, 0
      %v2384 = vsel %vm790, %v2317, 0
      %v2387 = vsel %vm790, %v2325, 0
      %v2390 = vsel %vm790, %v2333, 0
      %v2393 = vsel %vm790, %v2341, 0
      %v2396 = vsel %vm790, %v2349, 0
      %v2399 = vsel %vm1353, %v2217, 0
      %2401 = vmatprep.subr.bf16.mxu0 0
      %2402 = vmatpush1.bf16.msra.mxu0 %v2399
      %2403 = vmatprep.subr.bf16.mxu0 0
      %2404 = vmatpush1.bf16.msra.mxu0 0
      %2405 = vmatprep.subr.bf16.mxu0 0
      %2406 = vmatpush1.bf16.msra.mxu0 0
      %2407 = vmatprep.subr.bf16.mxu0 0
      %2408 = vmatpush1.bf16.msra.mxu0 0
      %2409 = vmatprep.subr.bf16.mxu0 0
      %2410 = vmatpush1.bf16.msra.mxu0 0
      %2411 = vmatprep.subr.bf16.mxu0 0
      %2412 = vmatpush1.bf16.msra.mxu0 0
      %2413 = vmatprep.subr.bf16.mxu0 0
      %2414 = vmatpush1.bf16.msra.mxu0 0
      %2415 = vmatprep.subr.bf16.mxu0 0
      %2416 = vmatpush1.bf16.msra.mxu0 0
      %2417 = vmatprep.subr.bf16.mxu0 0
      %2418 = vmatpush1.bf16.msra.mxu0 0
      %2419 = vmatprep.subr.bf16.mxu0 0
      %2420 = vmatpush1.bf16.msra.mxu0 0
      %2421 = vmatprep.subr.bf16.mxu0 0
      %2422 = vmatpush1.bf16.msra.mxu0 0
      %2423 = vmatprep.subr.bf16.mxu0 0
      %2424 = vmatpush1.bf16.msra.mxu0 0
      %2425 = vmatprep.subr.bf16.mxu0 0
      %2426 = vmatpush1.bf16.msra.mxu0 0
      %2427 = vmatprep.subr.bf16.mxu0 0
      %2428 = vmatpush1.bf16.msra.mxu0 0
      %2429 = vmatprep.subr.bf16.mxu0 0
      %2430 = vmatpush1.bf16.msra.mxu0 0
      %2431 = vmatprep.subr.bf16.mxu0 0
      %2432 = vmatpush1.bf16.msra.mxu0 0
      %2433 = vmatprep.mubr.bf16.mxu0 0
      %2434 = vmatmul.mubr.bf16.gmra.mrb[0].mxu0 %v2351
      %v2435 = vpop.f32.mrb[0].mxu0
      %v2436 = vadd.f32 0.0, %v2435
      %v2437 = vpop.f32.mrb[0].mxu0
      %v2438 = vpop.f32.mrb[0].mxu0
      %v2439 = vadd.f32 0.0, %v2438
      %v2440 = vpop.f32.mrb[0].mxu0
      %2441 = vmatprep.mubr.bf16.mxu0 0
      %2442 = vmatmul.mubr.bf16.gmra.mrb[0].mxu0 %v2354
      %v2443 = vpop.f32.mrb[0].mxu0
      %v2444 = vadd.f32 0.0, %v2443
      %v2445 = vpop.f32.mrb[0].mxu0
      %v2446 = vpop.f32.mrb[0].mxu0
      %v2447 = vadd.f32 0.0, %v2446
      %v2448 = vpop.f32.mrb[0].mxu0
      %2449 = vmatprep.mubr.bf16.mxu0 0
      %2450 = vmatmul.mubr.bf16.gmra.mrb[0].mxu0 %v2357
      %v2451 = vpop.f32.mrb[0].mxu0
      %v2452 = vadd.f32 0.0, %v2451
      %v2453 = vpop.f32.mrb[0].mxu0
      %v2454 = vpop.f32.mrb[0].mxu0
      %v2455 = vadd.f32 0.0, %v2454
      %v2456 = vpop.f32.mrb[0].mxu0
      %2457 = vmatprep.mubr.bf16.mxu0 0
      %2458 = vmatmul.mubr.bf16.gmra.mrb[0].mxu0 %v2360
      %v2459 = vpop.f32.mrb[0].mxu0
      %v2460 = vadd.f32 0.0, %v2459
      %v2461 = vpop.f32.mrb[0].mxu0
      %v2462 = vpop.f32.mrb[0].mxu0
      %v2463 = vadd.f32 0.0, %v2462
      %v2464 = vpop.f32.mrb[0].mxu0
      %2465 = vmatprep.mubr.bf16.mxu0 0
      %2466 = vmatmul.mubr.bf16.gmra.mrb[0].mxu0 %v2363
      %v2467 = vpop.f32.mrb[0].mxu0
      %v2468 = vadd.f32 0.0, %v2467
      %v2469 = vpop.f32.mrb[0].mxu0
      %v2470 = vpop.f32.mrb[0].mxu0
      %v2471 = vadd.f32 0.0, %v2470
      %v2472 = vpop.f32.mrb[0].mxu0
      %2473 = vmatprep.mubr.bf16.mxu0 0
      %2474 = vmatmul.mubr.bf16.gmra.mrb[0].mxu0 %v2366
      %v2475 = vpop.f32.mrb[0].mxu0
      %v2476 = vadd.f32 0.0, %v2475
      %v2477 = vpop.f32.mrb[0].mxu0
      %v2478 = vpop.f32.mrb[0].mxu0
      %v2479 = vadd.f32 0.0, %v2478
      %v2480 = vpop.f32.mrb[0].mxu0
      %2481 = vmatprep.mubr.bf16.mxu0 0
      %2482 = vmatmul.mubr.bf16.gmra.mrb[0].mxu0 %v2369
      %v2483 = vpop.f32.mrb[0].mxu0
      %v2484 = vadd.f32 0.0, %v2483
      %v2485 = vpop.f32.mrb[0].mxu0
      %v2486 = vpop.f32.mrb[0].mxu0
      %v2487 = vadd.f32 0.0, %v2486
      %v2488 = vpop.f32.mrb[0].mxu0
      %2489 = vmatprep.mubr.bf16.mxu0 0
      %2490 = vmatmul.mubr.bf16.gmra.mrb[0].mxu0 %v2372
      %v2491 = vpop.f32.mrb[0].mxu0
      %v2492 = vadd.f32 0.0, %v2491
      %v2493 = vpop.f32.mrb[0].mxu0
      %v2494 = vpop.f32.mrb[0].mxu0
      %v2495 = vadd.f32 0.0, %v2494
      %v2496 = vpop.f32.mrb[0].mxu0
      %2497 = vmatprep.mubr.bf16.mxu0 0
      %2498 = vmatmul.mubr.bf16.gmra.mrb[0].mxu0 %v2375
      %v2499 = vpop.f32.mrb[0].mxu0
      %v2500 = vadd.f32 0.0, %v2499
      %v2501 = vpop.f32.mrb[0].mxu0
      %v2502 = vpop.f32.mrb[0].mxu0
      %v2503 = vadd.f32 0.0, %v2502
      %v2504 = vpop.f32.mrb[0].mxu0
      %2505 = vmatprep.mubr.bf16.mxu0 0
      %2506 = vmatmul.mubr.bf16.gmra.mrb[0].mxu0 %v2378
      %v2507 = vpop.f32.mrb[0].mxu0
      %v2508 = vadd.f32 0.0, %v2507
      %v2509 = vpop.f32.mrb[0].mxu0
      %v2510 = vpop.f32.mrb[0].mxu0
      %v2511 = vadd.f32 0.0, %v2510
      %v2512 = vpop.f32.mrb[0].mxu0
      %2513 = vmatprep.mubr.bf16.mxu0 0
      %2514 = vmatmul.mubr.bf16.gmra.mrb[0].mxu0 %v2381
      %v2515 = vpop.f32.mrb[0].mxu0
      %v2516 = vadd.f32 0.0, %v2515
      %v2517 = vpop.f32.mrb[0].mxu0
      %v2518 = vpop.f32.mrb[0].mxu0
      %v2519 = vadd.f32 0.0, %v2518
      %v2520 = vpop.f32.mrb[0].mxu0
      %2521 = vmatprep.mubr.bf16.mxu0 0
      %2522 = vmatmul.mubr.bf16.gmra.mrb[0].mxu0 %v2384
      %v2523 = vpop.f32.mrb[0].mxu0
      %v2524 = vadd.f32 0.0, %v2523
      %v2525 = vpop.f32.mrb[0].mxu0
      %v2526 = vpop.f32.mrb[0].mxu0
      %v2527 = vadd.f32 0.0, %v2526
      %v2528 = vpop.f32.mrb[0].mxu0
      %2529 = vmatprep.mubr.bf16.mxu0 0
      %2530 = vmatmul.mubr.bf16.gmra.mrb[0].mxu0 %v2387
      %v2531 = vpop.f32.mrb[0].mxu0
      %v2532 = vadd.f32 0.0, %v2531
      %v2533 = vpop.f32.mrb[0].mxu0
      %v2534 = vpop.f32.mrb[0].mxu0
      %v2535 = vadd.f32 0.0, %v2534
      %v2536 = vpop.f32.mrb[0].mxu0
      %2537 = vmatprep.mubr.bf16.mxu0 0
      %2538 = vmatmul.mubr.bf16.gmra.mrb[0].mxu0 %v2390
      %v2539 = vpop.f32.mrb[0].mxu0
      %v2540 = vadd.f32 0.0, %v2539
      %v2541 = vpop.f32.mrb[0].mxu0
      %v2542 = vpop.f32.mrb[0].mxu0
      %v2543 = vadd.f32 0.0, %v2542
      %v2544 = vpop.f32.mrb[0].mxu0
      %2545 = vmatprep.mubr.bf16.mxu0 0
      %2546 = vmatmul.mubr.bf16.gmra.mrb[0].mxu0 %v2393
      %v2547 = vpop.f32.mrb[0].mxu0
      %v2548 = vadd.f32 0.0, %v2547
      %v2549 = vpop.f32.mrb[0].mxu0
      %v2550 = vpop.f32.mrb[0].mxu0
      %v2551 = vadd.f32 0.0, %v2550
      %v2552 = vpop.f32.mrb[0].mxu0
      %2553 = vmatprep.mubr.bf16.mxu0 0
      %2554 = vmatmul.mubr.bf16.gmra.mrb[0].mxu0 %v2396
      %v2555 = vpop.f32.mrb[0].mxu0
      %v2556 = vadd.f32 0.0, %v2555
      %v2557 = vpop.f32.mrb[0].mxu0
      %v2558 = vpop.f32.mrb[0].mxu0
      %v2559 = vadd.f32 0.0, %v2558
      %v2560 = vpop.f32.mrb[0].mxu0
      %2561 = vdwg.mxu0
      %v2562 = vadd.f32 %v1737, %v2436
      %v2563 = vadd.f32 %v1740, %v2439
      %v2564 = vadd.f32 %v1745, %v2444
      %v2565 = vadd.f32 %v1748, %v2447
      %v2566 = vadd.f32 %v1753, %v2452
      %v2567 = vadd.f32 %v1756, %v2455
      %v2568 = vadd.f32 %v1761, %v2460
      %v2569 = vadd.f32 %v1764, %v2463
      %v2570 = vadd.f32 %v1769, %v2468
      %v2571 = vadd.f32 %v1772, %v2471
      %v2572 = vadd.f32 %v1777, %v2476
      %v2573 = vadd.f32 %v1780, %v2479
      %v2574 = vadd.f32 %v1785, %v2484
      %v2575 = vadd.f32 %v1788, %v2487
      %v2576 = vadd.f32 %v1793, %v2492
      %v2577 = vadd.f32 %v1796, %v2495
      %v2578 = vadd.f32 %v1801, %v2500
      %v2579 = vadd.f32 %v1804, %v2503
      %v2580 = vadd.f32 %v1809, %v2508
      %v2581 = vadd.f32 %v1812, %v2511
      %v2582 = vadd.f32 %v1817, %v2516
      %v2583 = vadd.f32 %v1820, %v2519
      %v2584 = vadd.f32 %v1825, %v2524
      %v2585 = vadd.f32 %v1828, %v2527
      %v2586 = vadd.f32 %v1833, %v2532
      %v2587 = vadd.f32 %v1836, %v2535
      %v2588 = vadd.f32 %v1841, %v2540
      %v2589 = vadd.f32 %v1844, %v2543
      %v2590 = vadd.f32 %v1849, %v2548
      %v2591 = vadd.f32 %v1852, %v2551
      %v2592 = vadd.f32 %v1857, %v2556
      %v2593 = vadd.f32 %v1860, %v2559
      %v2594 = vld [vmem:[#allocation2 + $0x8] sm:$0x80]
      %v2595 = vld [vmem:[#allocation2 + $0x88] sm:$0xff]
      %v2596 = vsel %vm1265, %v2594, 0
      %v2597 = vsel %vm1266, %v1864, 0
      %v2598 = vsel %vm1267, %v1865, 0
      %v2599 = vsel %vm1268, %v1866, 0
      %v2600 = vsel %vm1269, %v1867, 0
      %v2601 = vsel %vm1270, %v1868, 0
      %v2602 = vsel %vm1271, %v1869, 0
      %v2603 = vsel %vm1272, %v1870, 0
      %v2604 = vsel %vm1273, %v1871, 0
      %v2605 = vsel %vm1274, %v1872, 0
      %v2606 = vsel %vm1275, %v1873, 0
      %v2607 = vsel %vm1276, %v1874, 0
      %v2608 = vsel %vm1277, %v1875, 0
      %v2609 = vsel %vm1278, %v1876, 0
      %v2610 = vsel %vm1279, %v1877, 0
      %v2611 = vsel %vm1280, %v1878, 0
      %v2612 = vsel %vm1281, %v2595, 0
      %v2613 = vld [vmem:[%s2 + $0x4] sm:$0xc]
      %v2615 = vshrl.u32 %v2596, 16
      %v2617 = vrot.slane %v2615, 7
      %v2619 = vshrl.u32 %v2597, 16
      %v2621 = vrot.slane %v2619, 7
      %v2622 = vshll.u32 %v2597, 16
      %v2624 = vor.u32 %v2621, %v2622
      %v2625 = vsel %vm1518, %v2617, %v2624
      %v2627 = vshrl.u32 %v2598, 16
      %v2629 = vrot.slane %v2627, 7
      %v2630 = vshll.u32 %v2598, 16
      %v2632 = vor.u32 %v2629, %v2630
      %v2633 = vsel %vm1518, %v2621, %v2632
      %v2635 = vshrl.u32 %v2599, 16
      %v2637 = vrot.slane %v2635, 7
      %v2638 = vshll.u32 %v2599, 16
      %v2640 = vor.u32 %v2637, %v2638
      %v2641 = vsel %vm1518, %v2629, %v2640
      %v2643 = vshrl.u32 %v2600, 16
      %v2645 = vrot.slane %v2643, 7
      %v2646 = vshll.u32 %v2600, 16
      %v2648 = vor.u32 %v2645, %v2646
      %v2649 = vsel %vm1518, %v2637, %v2648
      %v2651 = vshrl.u32 %v2601, 16
      %v2653 = vrot.slane %v2651, 7
      %v2654 = vshll.u32 %v2601, 16
      %v2656 = vor.u32 %v2653, %v2654
      %v2657 = vsel %vm1518, %v2645, %v2656
      %v2659 = vshrl.u32 %v2602, 16
      %v2661 = vrot.slane %v2659, 7
      %v2662 = vshll.u32 %v2602, 16
      %v2664 = vor.u32 %v2661, %v2662
      %v2665 = vsel %vm1518, %v2653, %v2664
      %v2667 = vshrl.u32 %v2603, 16
      %v2669 = vrot.slane %v2667, 7
      %v2670 = vshll.u32 %v2603, 16
      %v2672 = vor.u32 %v2669, %v2670
      %v2673 = vsel %vm1518, %v2661, %v2672
      %v2675 = vshrl.u32 %v2604, 16
      %v2677 = vrot.slane %v2675, 7
      %v2678 = vshll.u32 %v2604, 16
      %v2680 = vor.u32 %v2677, %v2678
      %v2681 = vsel %vm1518, %v2669, %v2680
      %v2683 = vshrl.u32 %v2605, 16
      %v2685 = vrot.slane %v2683, 7
      %v2686 = vshll.u32 %v2605, 16
      %v2688 = vor.u32 %v2685, %v2686
      %v2689 = vsel %vm1518, %v2677, %v2688
      %v2691 = vshrl.u32 %v2606, 16
      %v2693 = vrot.slane %v2691, 7
      %v2694 = vshll.u32 %v2606, 16
      %v2696 = vor.u32 %v2693, %v2694
      %v2697 = vsel %vm1518, %v2685, %v2696
      %v2699 = vshrl.u32 %v2607, 16
      %v2701 = vrot.slane %v2699, 7
      %v2702 = vshll.u32 %v2607, 16
      %v2704 = vor.u32 %v2701, %v2702
      %v2705 = vsel %vm1518, %v2693, %v2704
      %v2707 = vshrl.u32 %v2608, 16
      %v2709 = vrot.slane %v2707, 7
      %v2710 = vshll.u32 %v2608, 16
      %v2712 = vor.u32 %v2709, %v2710
      %v2713 = vsel %vm1518, %v2701, %v2712
      %v2715 = vshrl.u32 %v2609, 16
      %v2717 = vrot.slane %v2715, 7
      %v2718 = vshll.u32 %v2609, 16
      %v2720 = vor.u32 %v2717, %v2718
      %v2721 = vsel %vm1518, %v2709, %v2720
      %v2723 = vshrl.u32 %v2610, 16
      %v2725 = vrot.slane %v2723, 7
      %v2726 = vshll.u32 %v2610, 16
      %v2728 = vor.u32 %v2725, %v2726
      %v2729 = vsel %vm1518, %v2717, %v2728
      %v2731 = vshrl.u32 %v2611, 16
      %v2733 = vrot.slane %v2731, 7
      %v2734 = vshll.u32 %v2611, 16
      %v2736 = vor.u32 %v2733, %v2734
      %v2737 = vsel %vm1518, %v2725, %v2736
      %v2739 = vshrl.u32 %v2612, 16
      %v2741 = vrot.slane %v2739, 7
      %v2742 = vshll.u32 %v2612, 16
      %v2744 = vor.u32 %v2741, %v2742
      %v2745 = vsel %vm1518, %v2733, %v2744
      %v2747 = vunpack.c.l.b16 %v2613
      %v2748 = vpack.c.b16 %v2747, %v2747
      %v2749 = vrot.slane %v2748, 2
      %v2751 = vsel %vm790, %v2625, 0
      %v2754 = vsel %vm790, %v2633, 0
      %v2757 = vsel %vm790, %v2641, 0
      %v2760 = vsel %vm790, %v2649, 0
      %v2763 = vsel %vm790, %v2657, 0
      %v2766 = vsel %vm790, %v2665, 0
      %v2769 = vsel %vm790, %v2673, 0
      %v2772 = vsel %vm790, %v2681, 0
      %v2775 = vsel %vm790, %v2689, 0
      %v2778 = vsel %vm790, %v2697, 0
      %v2781 = vsel %vm790, %v2705, 0
      %v2784 = vsel %vm790, %v2713, 0
      %v2787 = vsel %vm790, %v2721, 0
      %v2790 = vsel %vm790, %v2729, 0
      %v2793 = vsel %vm790, %v2737, 0
      %v2796 = vsel %vm790, %v2745, 0
      %v2799 = vsel %vm1353, %v2749, 0
      %2801 = vmatprep.subr.bf16.mxu0 0
      %2802 = vmatpush1.bf16.msra.mxu0 %v2799
      %2803 = vmatprep.subr.bf16.mxu0 0
      %2804 = vmatpush1.bf16.msra.mxu0 0
      %2805 = vmatprep.subr.bf16.mxu0 0
      %2806 = vmatpush1.bf16.msra.mxu0 0
      %2807 = vmatprep.subr.bf16.mxu0 0
      %2808 = vmatpush1.bf16.msra.mxu0 0
      %2809 = vmatprep.subr.bf16.mxu0 0
      %2810 = vmatpush1.bf16.msra.mxu0 0
      %2811 = vmatprep.subr.bf16.mxu0 0
      %2812 = vmatpush1.bf16.msra.mxu0 0
      %2813 = vmatprep.subr.bf16.mxu0 0
      %2814 = vmatpush1.bf16.msra.mxu0 0
      %2815 = vmatprep.subr.bf16.mxu0 0
      %2816 = vmatpush1.bf16.msra.mxu0 0
      %2817 = vmatprep.subr.bf16.mxu0 0
      %2818 = vmatpush1.bf16.msra.mxu0 0
      %2819 = vmatprep.subr.bf16.mxu0 0
      %2820 = vmatpush1.bf16.msra.mxu0 0
      %2821 = vmatprep.subr.bf16.mxu0 0
      %2822 = vmatpush1.bf16.msra.mxu0 0
      %2823 = vmatprep.subr.bf16.mxu0 0
      %2824 = vmatpush1.bf16.msra.mxu0 0
      %2825 = vmatprep.subr.bf16.mxu0 0
      %2826 = vmatpush1.bf16.msra.mxu0 0
      %2827 = vmatprep.subr.bf16.mxu0 0
      %2828 = vmatpush1.bf16.msra.mxu0 0
      %2829 = vmatprep.subr.bf16.mxu0 0
      %2830 = vmatpush1.bf16.msra.mxu0 0
      %2831 = vmatprep.subr.bf16.mxu0 0
      %2832 = vmatpush1.bf16.msra.mxu0 0
      %2833 = vmatprep.mubr.bf16.mxu0 0
      %2834 = vmatmul.mubr.bf16.gmra.mrb[0].mxu0 %v2751
      %v2835 = vpop.f32.mrb[0].mxu0
      %v2836 = vadd.f32 0.0, %v2835
      %v2837 = vpop.f32.mrb[0].mxu0
      %v2838 = vpop.f32.mrb[0].mxu0
      %v2839 = vadd.f32 0.0, %v2838
      %v2840 = vpop.f32.mrb[0].mxu0
      %2841 = vmatprep.mubr.bf16.mxu0 0
      %2842 = vmatmul.mubr.bf16.gmra.mrb[0].mxu0 %v2754
      %v2843 = vpop.f32.mrb[0].mxu0
      %v2844 = vadd.f32 0.0, %v2843
      %v2845 = vpop.f32.mrb[0].mxu0
      %v2846 = vpop.f32.mrb[0].mxu0
      %v2847 = vadd.f32 0.0, %v2846
      %v2848 = vpop.f32.mrb[0].mxu0
      %2849 = vmatprep.mubr.bf16.mxu0 0
      %2850 = vmatmul.mubr.bf16.gmra.mrb[0].mxu0 %v2757
      %v2851 = vpop.f32.mrb[0].mxu0
      %v2852 = vadd.f32 0.0, %v2851
      %v2853 = vpop.f32.mrb[0].mxu0
      %v2854 = vpop.f32.mrb[0].mxu0
      %v2855 = vadd.f32 0.0, %v2854
      %v2856 = vpop.f32.mrb[0].mxu0
      %2857 = vmatprep.mubr.bf16.mxu0 0
      %2858 = vmatmul.mubr.bf16.gmra.mrb[0].mxu0 %v2760
      %v2859 = vpop.f32.mrb[0].mxu0
      %v2860 = vadd.f32 0.0, %v2859
      %v2861 = vpop.f32.mrb[0].mxu0
      %v2862 = vpop.f32.mrb[0].mxu0
      %v2863 = vadd.f32 0.0, %v2862
      %v2864 = vpop.f32.mrb[0].mxu0
      %2865 = vmatprep.mubr.bf16.mxu0 0
      %2866 = vmatmul.mubr.bf16.gmra.mrb[0].mxu0 %v2763
      %v2867 = vpop.f32.mrb[0].mxu0
      %v2868 = vadd.f32 0.0, %v2867
      %v2869 = vpop.f32.mrb[0].mxu0
      %v2870 = vpop.f32.mrb[0].mxu0
      %v2871 = vadd.f32 0.0, %v2870
      %v2872 = vpop.f32.mrb[0].mxu0
      %2873 = vmatprep.mubr.bf16.mxu0 0
      %2874 = vmatmul.mubr.bf16.gmra.mrb[0].mxu0 %v2766
      %v2875 = vpop.f32.mrb[0].mxu0
      %v2876 = vadd.f32 0.0, %v2875
      %v2877 = vpop.f32.mrb[0].mxu0
      %v2878 = vpop.f32.mrb[0].mxu0
      %v2879 = vadd.f32 0.0, %v2878
      %v2880 = vpop.f32.mrb[0].mxu0
      %2881 = vmatprep.mubr.bf16.mxu0 0
      %2882 = vmatmul.mubr.bf16.gmra.mrb[0].mxu0 %v2769
      %v2883 = vpop.f32.mrb[0].mxu0
      %v2884 = vadd.f32 0.0, %v2883
      %v2885 = vpop.f32.mrb[0].mxu0
      %v2886 = vpop.f32.mrb[0].mxu0
      %v2887 = vadd.f32 0.0, %v2886
      %v2888 = vpop.f32.mrb[0].mxu0
      %2889 = vmatprep.mubr.bf16.mxu0 0
      %2890 = vmatmul.mubr.bf16.gmra.mrb[0].mxu0 %v2772
      %v2891 = vpop.f32.mrb[0].mxu0
      %v2892 = vadd.f32 0.0, %v2891
      %v2893 = vpop.f32.mrb[0].mxu0
      %v2894 = vpop.f32.mrb[0].mxu0
      %v2895 = vadd.f32 0.0, %v2894
      %v2896 = vpop.f32.mrb[0].mxu0
      %2897 = vmatprep.mubr.bf16.mxu0 0
      %2898 = vmatmul.mubr.bf16.gmra.mrb[0].mxu0 %v2775
      %v2899 = vpop.f32.mrb[0].mxu0
      %v2900 = vadd.f32 0.0, %v2899
      %v2901 = vpop.f32.mrb[0].mxu0
      %v2902 = vpop.f32.mrb[0].mxu0
      %v2903 = vadd.f32 0.0, %v2902
      %v2904 = vpop.f32.mrb[0].mxu0
      %2905 = vmatprep.mubr.bf16.mxu0 0
      %2906 = vmatmul.mubr.bf16.gmra.mrb[0].mxu0 %v2778
      %v2907 = vpop.f32.mrb[0].mxu0
      %v2908 = vadd.f32 0.0, %v2907
      %v2909 = vpop.f32.mrb[0].mxu0
      %v2910 = vpop.f32.mrb[0].mxu0
      %v2911 = vadd.f32 0.0, %v2910
      %v2912 = vpop.f32.mrb[0].mxu0
      %2913 = vmatprep.mubr.bf16.mxu0 0
      %2914 = vmatmul.mubr.bf16.gmra.mrb[0].mxu0 %v2781
      %v2915 = vpop.f32.mrb[0].mxu0
      %v2916 = vadd.f32 0.0, %v2915
      %v2917 = vpop.f32.mrb[0].mxu0
      %v2918 = vpop.f32.mrb[0].mxu0
      %v2919 = vadd.f32 0.0, %v2918
      %v2920 = vpop.f32.mrb[0].mxu0
      %2921 = vmatprep.mubr.bf16.mxu0 0
      %2922 = vmatmul.mubr.bf16.gmra.mrb[0].mxu0 %v2784
      %v2923 = vpop.f32.mrb[0].mxu0
      %v2924 = vadd.f32 0.0, %v2923
      %v2925 = vpop.f32.mrb[0].mxu0
      %v2926 = vpop.f32.mrb[0].mxu0
      %v2927 = vadd.f32 0.0, %v2926
      %v2928 = vpop.f32.mrb[0].mxu0
      %2929 = vmatprep.mubr.bf16.mxu0 0
      %2930 = vmatmul.mubr.bf16.gmra.mrb[0].mxu0 %v2787
      %v2931 = vpop.f32.mrb[0].mxu0
      %v2932 = vadd.f32 0.0, %v2931
      %v2933 = vpop.f32.mrb[0].mxu0
      %v2934 = vpop.f32.mrb[0].mxu0
      %v2935 = vadd.f32 0.0, %v2934
      %v2936 = vpop.f32.mrb[0].mxu0
      %2937 = vmatprep.mubr.bf16.mxu0 0
      %2938 = vmatmul.mubr.bf16.gmra.mrb[0].mxu0 %v2790
      %v2939 = vpop.f32.mrb[0].mxu0
      %v2940 = vadd.f32 0.0, %v2939
      %v2941 = vpop.f32.mrb[0].mxu0
      %v2942 = vpop.f32.mrb[0].mxu0
      %v2943 = vadd.f32 0.0, %v2942
      %v2944 = vpop.f32.mrb[0].mxu0
      %2945 = vmatprep.mubr.bf16.mxu0 0
      %2946 = vmatmul.mubr.bf16.gmra.mrb[0].mxu0 %v2793
      %v2947 = vpop.f32.mrb[0].mxu0
      %v2948 = vadd.f32 0.0, %v2947
      %v2949 = vpop.f32.mrb[0].mxu0
      %v2950 = vpop.f32.mrb[0].mxu0
      %v2951 = vadd.f32 0.0, %v2950
      %v2952 = vpop.f32.mrb[0].mxu0
      %2953 = vmatprep.mubr.bf16.mxu0 0
      %2954 = vmatmul.mubr.bf16.gmra.mrb[0].mxu0 %v2796
      %v2955 = vpop.f32.mrb[0].mxu0
      %v2956 = vadd.f32 0.0, %v2955
      %v2957 = vpop.f32.mrb[0].mxu0
      %v2958 = vpop.f32.mrb[0].mxu0
      %v2959 = vadd.f32 0.0, %v2958
      %v2960 = vpop.f32.mrb[0].mxu0
      %2961 = vdwg.mxu0
      %v2962 = vadd.f32 %v2562, %v2836
      %v2963 = vadd.f32 %v2563, %v2839
      %v2964 = vadd.f32 %v2564, %v2844
      %v2965 = vadd.f32 %v2565, %v2847
      %v2966 = vadd.f32 %v2566, %v2852
      %v2967 = vadd.f32 %v2567, %v2855
      %v2968 = vadd.f32 %v2568, %v2860
      %v2969 = vadd.f32 %v2569, %v2863
      %v2970 = vadd.f32 %v2570, %v2868
      %v2971 = vadd.f32 %v2571, %v2871
      %v2972 = vadd.f32 %v2572, %v2876
      %v2973 = vadd.f32 %v2573, %v2879
      %v2974 = vadd.f32 %v2574, %v2884
      %v2975 = vadd.f32 %v2575, %v2887
      %v2976 = vadd.f32 %v2576, %v2892
      %v2977 = vadd.f32 %v2577, %v2895
      %v2978 = vadd.f32 %v2578, %v2900
      %v2979 = vadd.f32 %v2579, %v2903
      %v2980 = vadd.f32 %v2580, %v2908
      %v2981 = vadd.f32 %v2581, %v2911
      %v2982 = vadd.f32 %v2582, %v2916
      %v2983 = vadd.f32 %v2583, %v2919
      %v2984 = vadd.f32 %v2584, %v2924
      %v2985 = vadd.f32 %v2585, %v2927
      %v2986 = vadd.f32 %v2586, %v2932
      %v2987 = vadd.f32 %v2587, %v2935
      %v2988 = vadd.f32 %v2588, %v2940
      %v2989 = vadd.f32 %v2589, %v2943
      %v2990 = vadd.f32 %v2590, %v2948
      %v2991 = vadd.f32 %v2591, %v2951
      %v2992 = vadd.f32 %v2592, %v2956
      %v2993 = vadd.f32 %v2593, %v2959
      %v2994 = vld [vmem:[%s2 + $0x8] sm:$0x3]
      %v2996 = vsel %vm790, %v1864, 0
      %v2999 = vsel %vm790, %v1865, 0
      %v3002 = vsel %vm790, %v1866, 0
      %v3005 = vsel %vm790, %v1867, 0
      %v3008 = vsel %vm790, %v1868, 0
      %v3011 = vsel %vm790, %v1869, 0
      %v3014 = vsel %vm790, %v1870, 0
      %v3017 = vsel %vm790, %v1871, 0
      %v3020 = vsel %vm790, %v1872, 0
      %v3023 = vsel %vm790, %v1873, 0
      %v3026 = vsel %vm790, %v1874, 0
      %v3029 = vsel %vm790, %v1875, 0
      %v3032 = vsel %vm790, %v1876, 0
      %v3035 = vsel %vm790, %v1877, 0
      %v3038 = vsel %vm790, %v1878, 0
      %v3041 = vsel %vm790, %v2595, 0
      %v3044 = vsel %vm1353, %v2994, 0
      %3046 = vmatprep.subr.bf16.mxu0 0
      %3047 = vmatpush1.bf16.msra.mxu0 %v3044
      %3048 = vmatprep.subr.bf16.mxu0 0
      %3049 = vmatpush1.bf16.msra.mxu0 0
      %3050 = vmatprep.subr.bf16.mxu0 0
      %3051 = vmatpush1.bf16.msra.mxu0 0
      %3052 = vmatprep.subr.bf16.mxu0 0
      %3053 = vmatpush1.bf16.msra.mxu0 0
      %3054 = vmatprep.subr.bf16.mxu0 0
      %3055 = vmatpush1.bf16.msra.mxu0 0
      %3056 = vmatprep.subr.bf16.mxu0 0
      %3057 = vmatpush1.bf16.msra.mxu0 0
      %3058 = vmatprep.subr.bf16.mxu0 0
      %3059 = vmatpush1.bf16.msra.mxu0 0
      %3060 = vmatprep.subr.bf16.mxu0 0
      %3061 = vmatpush1.bf16.msra.mxu0 0
      %3062 = vmatprep.subr.bf16.mxu0 0
      %3063 = vmatpush1.bf16.msra.mxu0 0
      %3064 = vmatprep.subr.bf16.mxu0 0
      %3065 = vmatpush1.bf16.msra.mxu0 0
      %3066 = vmatprep.subr.bf16.mxu0 0
      %3067 = vmatpush1.bf16.msra.mxu0 0
      %3068 = vmatprep.subr.bf16.mxu0 0
      %3069 = vmatpush1.bf16.msra.mxu0 0
      %3070 = vmatprep.subr.bf16.mxu0 0
      %3071 = vmatpush1.bf16.msra.mxu0 0
      %3072 = vmatprep.subr.bf16.mxu0 0
      %3073 = vmatpush1.bf16.msra.mxu0 0
      %3074 = vmatprep.subr.bf16.mxu0 0
      %3075 = vmatpush1.bf16.msra.mxu0 0
      %3076 = vmatprep.subr.bf16.mxu0 0
      %3077 = vmatpush1.bf16.msra.mxu0 0
      %3078 = vmatprep.mubr.bf16.mxu0 0
      %3079 = vmatmul.mubr.bf16.gmra.mrb[0].mxu0 %v2996
      %v3080 = vpop.f32.mrb[0].mxu0
      %v3081 = vadd.f32 0.0, %v3080
      %v3082 = vpop.f32.mrb[0].mxu0
      %v3083 = vpop.f32.mrb[0].mxu0
      %v3084 = vadd.f32 0.0, %v3083
      %v3085 = vpop.f32.mrb[0].mxu0
      %3086 = vmatprep.mubr.bf16.mxu0 0
      %3087 = vmatmul.mubr.bf16.gmra.mrb[0].mxu0 %v2999
      %v3088 = vpop.f32.mrb[0].mxu0
      %v3089 = vadd.f32 0.0, %v3088
      %v3090 = vpop.f32.mrb[0].mxu0
      %v3091 = vpop.f32.mrb[0].mxu0
      %v3092 = vadd.f32 0.0, %v3091
      %v3093 = vpop.f32.mrb[0].mxu0
      %3094 = vmatprep.mubr.bf16.mxu0 0
      %3095 = vmatmul.mubr.bf16.gmra.mrb[0].mxu0 %v3002
      %v3096 = vpop.f32.mrb[0].mxu0
      %v3097 = vadd.f32 0.0, %v3096
      %v3098 = vpop.f32.mrb[0].mxu0
      %v3099 = vpop.f32.mrb[0].mxu0
      %v3100 = vadd.f32 0.0, %v3099
      %v3101 = vpop.f32.mrb[0].mxu0
      %3102 = vmatprep.mubr.bf16.mxu0 0
      %3103 = vmatmul.mubr.bf16.gmra.mrb[0].mxu0 %v3005
      %v3104 = vpop.f32.mrb[0].mxu0
      %v3105 = vadd.f32 0.0, %v3104
      %v3106 = vpop.f32.mrb[0].mxu0
      %v3107 = vpop.f32.mrb[0].mxu0
      %v3108 = vadd.f32 0.0, %v3107
      %v3109 = vpop.f32.mrb[0].mxu0
      %3110 = vmatprep.mubr.bf16.mxu0 0
      %3111 = vmatmul.mubr.bf16.gmra.mrb[0].mxu0 %v3008
      %v3112 = vpop.f32.mrb[0].mxu0
      %v3113 = vadd.f32 0.0, %v3112
      %v3114 = vpop.f32.mrb[0].mxu0
      %v3115 = vpop.f32.mrb[0].mxu0
      %v3116 = vadd.f32 0.0, %v3115
      %v3117 = vpop.f32.mrb[0].mxu0
      %3118 = vmatprep.mubr.bf16.mxu0 0
      %3119 = vmatmul.mubr.bf16.gmra.mrb[0].mxu0 %v3011
      %v3120 = vpop.f32.mrb[0].mxu0
      %v3121 = vadd.f32 0.0, %v3120
      %v3122 = vpop.f32.mrb[0].mxu0
      %v3123 = vpop.f32.mrb[0].mxu0
      %v3124 = vadd.f32 0.0, %v3123
      %v3125 = vpop.f32.mrb[0].mxu0
      %3126 = vmatprep.mubr.bf16.mxu0 0
      %3127 = vmatmul.mubr.bf16.gmra.mrb[0].mxu0 %v3014
      %v3128 = vpop.f32.mrb[0].mxu0
      %v3129 = vadd.f32 0.0, %v3128
      %v3130 = vpop.f32.mrb[0].mxu0
      %v3131 = vpop.f32.mrb[0].mxu0
      %v3132 = vadd.f32 0.0, %v3131
      %v3133 = vpop.f32.mrb[0].mxu0
      %3134 = vmatprep.mubr.bf16.mxu0 0
      %3135 = vmatmul.mubr.bf16.gmra.mrb[0].mxu0 %v3017
      %v3136 = vpop.f32.mrb[0].mxu0
      %v3137 = vadd.f32 0.0, %v3136
      %v3138 = vpop.f32.mrb[0].mxu0
      %v3139 = vpop.f32.mrb[0].mxu0
      %v3140 = vadd.f32 0.0, %v3139
      %v3141 = vpop.f32.mrb[0].mxu0
      %3142 = vmatprep.mubr.bf16.mxu0 0
      %3143 = vmatmul.mubr.bf16.gmra.mrb[0].mxu0 %v3020
      %v3144 = vpop.f32.mrb[0].mxu0
      %v3145 = vadd.f32 0.0, %v3144
      %v3146 = vpop.f32.mrb[0].mxu0
      %v3147 = vpop.f32.mrb[0].mxu0
      %v3148 = vadd.f32 0.0, %v3147
      %v3149 = vpop.f32.mrb[0].mxu0
      %3150 = vmatprep.mubr.bf16.mxu0 0
      %3151 = vmatmul.mubr.bf16.gmra.mrb[0].mxu0 %v3023
      %v3152 = vpop.f32.mrb[0].mxu0
      %v3153 = vadd.f32 0.0, %v3152
      %v3154 = vpop.f32.mrb[0].mxu0
      %v3155 = vpop.f32.mrb[0].mxu0
      %v3156 = vadd.f32 0.0, %v3155
      %v3157 = vpop.f32.mrb[0].mxu0
      %3158 = vmatprep.mubr.bf16.mxu0 0
      %3159 = vmatmul.mubr.bf16.gmra.mrb[0].mxu0 %v3026
      %v3160 = vpop.f32.mrb[0].mxu0
      %v3161 = vadd.f32 0.0, %v3160
      %v3162 = vpop.f32.mrb[0].mxu0
      %v3163 = vpop.f32.mrb[0].mxu0
      %v3164 = vadd.f32 0.0, %v3163
      %v3165 = vpop.f32.mrb[0].mxu0
      %3166 = vmatprep.mubr.bf16.mxu0 0
      %3167 = vmatmul.mubr.bf16.gmra.mrb[0].mxu0 %v3029
      %v3168 = vpop.f32.mrb[0].mxu0
      %v3169 = vadd.f32 0.0, %v3168
      %v3170 = vpop.f32.mrb[0].mxu0
      %v3171 = vpop.f32.mrb[0].mxu0
      %v3172 = vadd.f32 0.0, %v3171
      %v3173 = vpop.f32.mrb[0].mxu0
      %3174 = vmatprep.mubr.bf16.mxu0 0
      %3175 = vmatmul.mubr.bf16.gmra.mrb[0].mxu0 %v3032
      %v3176 = vpop.f32.mrb[0].mxu0
      %v3177 = vadd.f32 0.0, %v3176
      %v3178 = vpop.f32.mrb[0].mxu0
      %v3179 = vpop.f32.mrb[0].mxu0
      %v3180 = vadd.f32 0.0, %v3179
      %v3181 = vpop.f32.mrb[0].mxu0
      %3182 = vmatprep.mubr.bf16.mxu0 0
      %3183 = vmatmul.mubr.bf16.gmra.mrb[0].mxu0 %v3035
      %v3184 = vpop.f32.mrb[0].mxu0
      %v3185 = vadd.f32 0.0, %v3184
      %v3186 = vpop.f32.mrb[0].mxu0
      %v3187 = vpop.f32.mrb[0].mxu0
      %v3188 = vadd.f32 0.0, %v3187
      %v3189 = vpop.f32.mrb[0].mxu0
      %3190 = vmatprep.mubr.bf16.mxu0 0
      %3191 = vmatmul.mubr.bf16.gmra.mrb[0].mxu0 %v3038
      %v3192 = vpop.f32.mrb[0].mxu0
      %v3193 = vadd.f32 0.0, %v3192
      %v3194 = vpop.f32.mrb[0].mxu0
      %v3195 = vpop.f32.mrb[0].mxu0
      %v3196 = vadd.f32 0.0, %v3195
      %v3197 = vpop.f32.mrb[0].mxu0
      %3198 = vmatprep.mubr.bf16.mxu0 0
      %3199 = vmatmul.mubr.bf16.gmra.mrb[0].mxu0 %v3041
      %v3200 = vpop.f32.mrb[0].mxu0
      %v3201 = vadd.f32 0.0, %v3200
      %v3202 = vpop.f32.mrb[0].mxu0
      %v3203 = vpop.f32.mrb[0].mxu0
      %v3204 = vadd.f32 0.0, %v3203
      %v3205 = vpop.f32.mrb[0].mxu0
      %3206 = vdwg.mxu0
      %v3207 = vadd.f32 %v2962, %v3081
      %v3208 = vadd.f32 %v2963, %v3084
      %v3209 = vadd.f32 %v2964, %v3089
      %v3210 = vadd.f32 %v2965, %v3092
      %v3211 = vadd.f32 %v2966, %v3097
      %v3212 = vadd.f32 %v2967, %v3100
      %v3213 = vadd.f32 %v2968, %v3105
      %v3214 = vadd.f32 %v2969, %v3108
      %v3215 = vadd.f32 %v2970, %v3113
      %v3216 = vadd.f32 %v2971, %v3116
      %v3217 = vadd.f32 %v2972, %v3121
      %v3218 = vadd.f32 %v2973, %v3124
      %v3219 = vadd.f32 %v2974, %v3129
      %v3220 = vadd.f32 %v2975, %v3132
      %v3221 = vadd.f32 %v2976, %v3137
      %v3222 = vadd.f32 %v2977, %v3140
      %v3223 = vadd.f32 %v2978, %v3145
      %v3224 = vadd.f32 %v2979, %v3148
      %v3225 = vadd.f32 %v2980, %v3153
      %v3226 = vadd.f32 %v2981, %v3156
      %v3227 = vadd.f32 %v2982, %v3161
      %v3228 = vadd.f32 %v2983, %v3164
      %v3229 = vadd.f32 %v2984, %v3169
      %v3230 = vadd.f32 %v2985, %v3172
      %v3231 = vadd.f32 %v2986, %v3177
      %v3232 = vadd.f32 %v2987, %v3180
      %v3233 = vadd.f32 %v2988, %v3185
      %v3234 = vadd.f32 %v2989, %v3188
      %v3235 = vadd.f32 %v2990, %v3193
      %v3236 = vadd.f32 %v2991, %v3196
      %v3237 = vadd.f32 %v2992, %v3201
      %v3238 = vadd.f32 %v2993, %v3204
      %v3239 = vld [vmem:[#allocation2 + $0x10] sm:$0xff]
      %v3240 = vld [vmem:[#allocation2 + $0x18] sm:$0xff]
      %v3241 = vld [vmem:[#allocation2 + $0x20] sm:$0xff]
      %v3242 = vld [vmem:[#allocation2 + $0x28] sm:$0xff]
      %v3243 = vld [vmem:[#allocation2 + $0x30] sm:$0xff]
      %v3244 = vld [vmem:[#allocation2 + $0x38] sm:$0xff]
      %v3245 = vld [vmem:[#allocation2 + $0x40] sm:$0xff]
      %v3246 = vld [vmem:[#allocation2 + $0x48] sm:$0xff]
      %v3247 = vld [vmem:[#allocation2 + $0x50] sm:$0xff]
      %v3248 = vld [vmem:[#allocation2 + $0x58] sm:$0xff]
      %v3249 = vld [vmem:[#allocation2 + $0x60] sm:$0xff]
      %v3250 = vld [vmem:[#allocation2 + $0x68] sm:$0xff]
      %v3251 = vld [vmem:[#allocation2 + $0x70] sm:$0xff]
      %v3252 = vld [vmem:[#allocation2 + $0x78] sm:$0xff]
      %v3253 = vld [vmem:[#allocation2 + $0x80] sm:$0xff]
      %v3254 = vld [vmem:[#allocation2 + $0x88] sm:$0xff]
      %v3255 = vld [vmem:[#allocation2 + $0x90] sm:$0x1]
      %v3256 = vsel %vm2183, %v3239, 0
      %v3257 = vsel %vm2184, %v3240, 0
      %v3258 = vsel %vm2185, %v3241, 0
      %v3259 = vsel %vm2186, %v3242, 0
      %v3260 = vsel %vm2187, %v3243, 0
      %v3261 = vsel %vm2188, %v3244, 0
      %v3262 = vsel %vm2189, %v3245, 0
      %v3263 = vsel %vm2190, %v3246, 0
      %v3264 = vsel %vm2191, %v3247, 0
      %v3265 = vsel %vm2192, %v3248, 0
      %v3266 = vsel %vm2193, %v3249, 0
      %v3267 = vsel %vm2194, %v3250, 0
      %v3268 = vsel %vm2195, %v3251, 0
      %v3269 = vsel %vm2196, %v3252, 0
      %v3270 = vsel %vm2197, %v3253, 0
      %v3271 = vsel %vm2198, %v3254, 0
      %v3272 = vsel %vm2199, %v3255, 0
      %v3273 = vld [vmem:[%s2 + $0x8] sm:$0xc]
      %v3275 = vshrl.u32 %v3256, 16
      %v3277 = vshll.u32 %v3256, 16
      %v3279 = vrot.slane %v3277, 1
      %v3280 = vor.u32 %v3275, %v3279
      %v3282 = vshll.u32 %v3257, 16
      %v3284 = vrot.slane %v3282, 1
      %v3285 = vsel %vm1137, %v3280, %v3284
      %v3286 = vshrl.u32 %v3257, 16
      %v3288 = vor.u32 %v3286, %v3284
      %v3290 = vshll.u32 %v3258, 16
      %v3292 = vrot.slane %v3290, 1
      %v3293 = vsel %vm1137, %v3288, %v3292
      %v3294 = vshrl.u32 %v3258, 16
      %v3296 = vor.u32 %v3294, %v3292
      %v3298 = vshll.u32 %v3259, 16
      %v3300 = vrot.slane %v3298, 1
      %v3301 = vsel %vm1137, %v3296, %v3300
      %v3302 = vshrl.u32 %v3259, 16
      %v3304 = vor.u32 %v3302, %v3300
      %v3306 = vshll.u32 %v3260, 16
      %v3308 = vrot.slane %v3306, 1
      %v3309 = vsel %vm1137, %v3304, %v3308
      %v3310 = vshrl.u32 %v3260, 16
      %v3312 = vor.u32 %v3310, %v3308
      %v3314 = vshll.u32 %v3261, 16
      %v3316 = vrot.slane %v3314, 1
      %v3317 = vsel %vm1137, %v3312, %v3316
      %v3318 = vshrl.u32 %v3261, 16
      %v3320 = vor.u32 %v3318, %v3316
      %v3322 = vshll.u32 %v3262, 16
      %v3324 = vrot.slane %v3322, 1
      %v3325 = vsel %vm1137, %v3320, %v3324
      %v3326 = vshrl.u32 %v3262, 16
      %v3328 = vor.u32 %v3326, %v3324
      %v3330 = vshll.u32 %v3263, 16
      %v3332 = vrot.slane %v3330, 1
      %v3333 = vsel %vm1137, %v3328, %v3332
      %v3334 = vshrl.u32 %v3263, 16
      %v3336 = vor.u32 %v3334, %v3332
      %v3338 = vshll.u32 %v3264, 16
      %v3340 = vrot.slane %v3338, 1
      %v3341 = vsel %vm1137, %v3336, %v3340
      %v3342 = vshrl.u32 %v3264, 16
      %v3344 = vor.u32 %v3342, %v3340
      %v3346 = vshll.u32 %v3265, 16
      %v3348 = vrot.slane %v3346, 1
      %v3349 = vsel %vm1137, %v3344, %v3348
      %v3350 = vshrl.u32 %v3265, 16
      %v3352 = vor.u32 %v3350, %v3348
      %v3354 = vshll.u32 %v3266, 16
      %v3356 = vrot.slane %v3354, 1
      %v3357 = vsel %vm1137, %v3352, %v3356
      %v3358 = vshrl.u32 %v3266, 16
      %v3360 = vor.u32 %v3358, %v3356
      %v3362 = vshll.u32 %v3267, 16
      %v3364 = vrot.slane %v3362, 1
      %v3365 = vsel %vm1137, %v3360, %v3364
      %v3366 = vshrl.u32 %v3267, 16
      %v3368 = vor.u32 %v3366, %v3364
      %v3370 = vshll.u32 %v3268, 16
      %v3372 = vrot.slane %v3370, 1
      %v3373 = vsel %vm1137, %v3368, %v3372
      %v3374 = vshrl.u32 %v3268, 16
      %v3376 = vor.u32 %v3374, %v3372
      %v3378 = vshll.u32 %v3269, 16
      %v3380 = vrot.slane %v3378, 1
      %v3381 = vsel %vm1137, %v3376, %v3380
      %v3382 = vshrl.u32 %v3269, 16
      %v3384 = vor.u32 %v3382, %v3380
      %v3386 = vshll.u32 %v3270, 16
      %v3388 = vrot.slane %v3386, 1
      %v3389 = vsel %vm1137, %v3384, %v3388
      %v3390 = vshrl.u32 %v3270, 16
      %v3392 = vor.u32 %v3390, %v3388
      %v3394 = vshll.u32 %v3271, 16
      %v3396 = vrot.slane %v3394, 1
      %v3397 = vsel %vm1137, %v3392, %v3396
      %v3398 = vshrl.u32 %v3271, 16
      %v3400 = vor.u32 %v3398, %v3396
      %v3402 = vshll.u32 %v3272, 16
      %v3404 = vrot.slane %v3402, 1
      %v3405 = vsel %vm1137, %v3400, %v3404
      %v3407 = vunpack.c.l.b16 %v3273
      %v3408 = vpack.c.b16 %v3407, %v3407
      %v3409 = vrot.slane %v3408, 2
      %v3411 = vsel %vm790, %v3285, 0
      %v3414 = vsel %vm790, %v3293, 0
      %v3417 = vsel %vm790, %v3301, 0
      %v3420 = vsel %vm790, %v3309, 0
      %v3423 = vsel %vm790, %v3317, 0
      %v3426 = vsel %vm790, %v3325, 0
      %v3429 = vsel %vm790, %v3333, 0
      %v3432 = vsel %vm790, %v3341, 0
      %v3435 = vsel %vm790, %v3349, 0
      %v3438 = vsel %vm790, %v3357, 0
      %v3441 = vsel %vm790, %v3365, 0
      %v3444 = vsel %vm790, %v3373, 0
      %v3447 = vsel %vm790, %v3381, 0
      %v3450 = vsel %vm790, %v3389, 0
      %v3453 = vsel %vm790, %v3397, 0
      %v3456 = vsel %vm790, %v3405, 0
      %v3459 = vsel %vm1353, %v3409, 0
      %3461 = vmatprep.subr.bf16.mxu0 0
      %3462 = vmatpush1.bf16.msra.mxu0 %v3459
      %3463 = vmatprep.subr.bf16.mxu0 0
      %3464 = vmatpush1.bf16.msra.mxu0 0
      %3465 = vmatprep.subr.bf16.mxu0 0
      %3466 = vmatpush1.bf16.msra.mxu0 0
      %3467 = vmatprep.subr.bf16.mxu0 0
      %3468 = vmatpush1.bf16.msra.mxu0 0
      %3469 = vmatprep.subr.bf16.mxu0 0
      %3470 = vmatpush1.bf16.msra.mxu0 0
      %3471 = vmatprep.subr.bf16.mxu0 0
      %3472 = vmatpush1.bf16.msra.mxu0 0
      %3473 = vmatprep.subr.bf16.mxu0 0
      %3474 = vmatpush1.bf16.msra.mxu0 0
      %3475 = vmatprep.subr.bf16.mxu0 0
      %3476 = vmatpush1.bf16.msra.mxu0 0
      %3477 = vmatprep.subr.bf16.mxu0 0
      %3478 = vmatpush1.bf16.msra.mxu0 0
      %3479 = vmatprep.subr.bf16.mxu0 0
      %3480 = vmatpush1.bf16.msra.mxu0 0
      %3481 = vmatprep.subr.bf16.mxu0 0
      %3482 = vmatpush1.bf16.msra.mxu0 0
      %3483 = vmatprep.subr.bf16.mxu0 0
      %3484 = vmatpush1.bf16.msra.mxu0 0
      %3485 = vmatprep.subr.bf16.mxu0 0
      %3486 = vmatpush1.bf16.msra.mxu0 0
      %3487 = vmatprep.subr.bf16.mxu0 0
      %3488 = vmatpush1.bf16.msra.mxu0 0
      %3489 = vmatprep.subr.bf16.mxu0 0
      %3490 = vmatpush1.bf16.msra.mxu0 0
      %3491 = vmatprep.subr.bf16.mxu0 0
      %3492 = vmatpush1.bf16.msra.mxu0 0
      %3493 = vmatprep.mubr.bf16.mxu0 0
      %3494 = vmatmul.mubr.bf16.gmra.mrb[0].mxu0 %v3411
      %v3495 = vpop.f32.mrb[0].mxu0
      %v3496 = vadd.f32 0.0, %v3495
      %v3497 = vpop.f32.mrb[0].mxu0
      %v3498 = vpop.f32.mrb[0].mxu0
      %v3499 = vadd.f32 0.0, %v3498
      %v3500 = vpop.f32.mrb[0].mxu0
      %3501 = vmatprep.mubr.bf16.mxu0 0
      %3502 = vmatmul.mubr.bf16.gmra.mrb[0].mxu0 %v3414
      %v3503 = vpop.f32.mrb[0].mxu0
      %v3504 = vadd.f32 0.0, %v3503
      %v3505 = vpop.f32.mrb[0].mxu0
      %v3506 = vpop.f32.mrb[0].mxu0
      %v3507 = vadd.f32 0.0, %v3506
      %v3508 = vpop.f32.mrb[0].mxu0
      %3509 = vmatprep.mubr.bf16.mxu0 0
      %3510 = vmatmul.mubr.bf16.gmra.mrb[0].mxu0 %v3417
      %v3511 = vpop.f32.mrb[0].mxu0
      %v3512 = vadd.f32 0.0, %v3511
      %v3513 = vpop.f32.mrb[0].mxu0
      %v3514 = vpop.f32.mrb[0].mxu0
      %v3515 = vadd.f32 0.0, %v3514
      %v3516 = vpop.f32.mrb[0].mxu0
      %3517 = vmatprep.mubr.bf16.mxu0 0
      %3518 = vmatmul.mubr.bf16.gmra.mrb[0].mxu0 %v3420
      %v3519 = vpop.f32.mrb[0].mxu0
      %v3520 = vadd.f32 0.0, %v3519
      %v3521 = vpop.f32.mrb[0].mxu0
      %v3522 = vpop.f32.mrb[0].mxu0
      %v3523 = vadd.f32 0.0, %v3522
      %v3524 = vpop.f32.mrb[0].mxu0
      %3525 = vmatprep.mubr.bf16.mxu0 0
      %3526 = vmatmul.mubr.bf16.gmra.mrb[0].mxu0 %v3423
      %v3527 = vpop.f32.mrb[0].mxu0
      %v3528 = vadd.f32 0.0, %v3527
      %v3529 = vpop.f32.mrb[0].mxu0
      %v3530 = vpop.f32.mrb[0].mxu0
      %v3531 = vadd.f32 0.0, %v3530
      %v3532 = vpop.f32.mrb[0].mxu0
      %3533 = vmatprep.mubr.bf16.mxu0 0
      %3534 = vmatmul.mubr.bf16.gmra.mrb[0].mxu0 %v3426
      %v3535 = vpop.f32.mrb[0].mxu0
      %v3536 = vadd.f32 0.0, %v3535
      %v3537 = vpop.f32.mrb[0].mxu0
      %v3538 = vpop.f32.mrb[0].mxu0
      %v3539 = vadd.f32 0.0, %v3538
      %v3540 = vpop.f32.mrb[0].mxu0
      %3541 = vmatprep.mubr.bf16.mxu0 0
      %3542 = vmatmul.mubr.bf16.gmra.mrb[0].mxu0 %v3429
      %v3543 = vpop.f32.mrb[0].mxu0
      %v3544 = vadd.f32 0.0, %v3543
      %v3545 = vpop.f32.mrb[0].mxu0
      %v3546 = vpop.f32.mrb[0].mxu0
      %v3547 = vadd.f32 0.0, %v3546
      %v3548 = vpop.f32.mrb[0].mxu0
      %3549 = vmatprep.mubr.bf16.mxu0 0
      %3550 = vmatmul.mubr.bf16.gmra.mrb[0].mxu0 %v3432
      %v3551 = vpop.f32.mrb[0].mxu0
      %v3552 = vadd.f32 0.0, %v3551
      %v3553 = vpop.f32.mrb[0].mxu0
      %v3554 = vpop.f32.mrb[0].mxu0
      %v3555 = vadd.f32 0.0, %v3554
      %v3556 = vpop.f32.mrb[0].mxu0
      %3557 = vmatprep.mubr.bf16.mxu0 0
      %3558 = vmatmul.mubr.bf16.gmra.mrb[0].mxu0 %v3435
      %v3559 = vpop.f32.mrb[0].mxu0
      %v3560 = vadd.f32 0.0, %v3559
      %v3561 = vpop.f32.mrb[0].mxu0
      %v3562 = vpop.f32.mrb[0].mxu0
      %v3563 = vadd.f32 0.0, %v3562
      %v3564 = vpop.f32.mrb[0].mxu0
      %3565 = vmatprep.mubr.bf16.mxu0 0
      %3566 = vmatmul.mubr.bf16.gmra.mrb[0].mxu0 %v3438
      %v3567 = vpop.f32.mrb[0].mxu0
      %v3568 = vadd.f32 0.0, %v3567
      %v3569 = vpop.f32.mrb[0].mxu0
      %v3570 = vpop.f32.mrb[0].mxu0
      %v3571 = vadd.f32 0.0, %v3570
      %v3572 = vpop.f32.mrb[0].mxu0
      %3573 = vmatprep.mubr.bf16.mxu0 0
      %3574 = vmatmul.mubr.bf16.gmra.mrb[0].mxu0 %v3441
      %v3575 = vpop.f32.mrb[0].mxu0
      %v3576 = vadd.f32 0.0, %v3575
      %v3577 = vpop.f32.mrb[0].mxu0
      %v3578 = vpop.f32.mrb[0].mxu0
      %v3579 = vadd.f32 0.0, %v3578
      %v3580 = vpop.f32.mrb[0].mxu0
      %3581 = vmatprep.mubr.bf16.mxu0 0
      %3582 = vmatmul.mubr.bf16.gmra.mrb[0].mxu0 %v3444
      %v3583 = vpop.f32.mrb[0].mxu0
      %v3584 = vadd.f32 0.0, %v3583
      %v3585 = vpop.f32.mrb[0].mxu0
      %v3586 = vpop.f32.mrb[0].mxu0
      %v3587 = vadd.f32 0.0, %v3586
      %v3588 = vpop.f32.mrb[0].mxu0
      %3589 = vmatprep.mubr.bf16.mxu0 0
      %3590 = vmatmul.mubr.bf16.gmra.mrb[0].mxu0 %v3447
      %v3591 = vpop.f32.mrb[0].mxu0
      %v3592 = vadd.f32 0.0, %v3591
      %v3593 = vpop.f32.mrb[0].mxu0
      %v3594 = vpop.f32.mrb[0].mxu0
      %v3595 = vadd.f32 0.0, %v3594
      %v3596 = vpop.f32.mrb[0].mxu0
      %3597 = vmatprep.mubr.bf16.mxu0 0
      %3598 = vmatmul.mubr.bf16.gmra.mrb[0].mxu0 %v3450
      %v3599 = vpop.f32.mrb[0].mxu0
      %v3600 = vadd.f32 0.0, %v3599
      %v3601 = vpop.f32.mrb[0].mxu0
      %v3602 = vpop.f32.mrb[0].mxu0
      %v3603 = vadd.f32 0.0, %v3602
      %v3604 = vpop.f32.mrb[0].mxu0
      %3605 = vmatprep.mubr.bf16.mxu0 0
      %3606 = vmatmul.mubr.bf16.gmra.mrb[0].mxu0 %v3453
      %v3607 = vpop.f32.mrb[0].mxu0
      %v3608 = vadd.f32 0.0, %v3607
      %v3609 = vpop.f32.mrb[0].mxu0
      %v3610 = vpop.f32.mrb[0].mxu0
      %v3611 = vadd.f32 0.0, %v3610
      %v3612 = vpop.f32.mrb[0].mxu0
      %3613 = vmatprep.mubr.bf16.mxu0 0
      %3614 = vmatmul.mubr.bf16.gmra.mrb[0].mxu0 %v3456
      %v3615 = vpop.f32.mrb[0].mxu0
      %v3616 = vadd.f32 0.0, %v3615
      %v3617 = vpop.f32.mrb[0].mxu0
      %v3618 = vpop.f32.mrb[0].mxu0
      %v3619 = vadd.f32 0.0, %v3618
      %v3620 = vpop.f32.mrb[0].mxu0
      %3621 = vdwg.mxu0
      %v3622 = vadd.f32 %v3207, %v3496
      %v3623 = vadd.f32 %v3208, %v3499
      %v3624 = vadd.f32 %v3209, %v3504
      %v3625 = vadd.f32 %v3210, %v3507
      %v3626 = vadd.f32 %v3211, %v3512
      %v3627 = vadd.f32 %v3212, %v3515
      %v3628 = vadd.f32 %v3213, %v3520
      %v3629 = vadd.f32 %v3214, %v3523
      %v3630 = vadd.f32 %v3215, %v3528
      %v3631 = vadd.f32 %v3216, %v3531
      %v3632 = vadd.f32 %v3217, %v3536
      %v3633 = vadd.f32 %v3218, %v3539
      %v3634 = vadd.f32 %v3219, %v3544
      %v3635 = vadd.f32 %v3220, %v3547
      %v3636 = vadd.f32 %v3221, %v3552
      %v3637 = vadd.f32 %v3222, %v3555
      %v3638 = vadd.f32 %v3223, %v3560
      %v3639 = vadd.f32 %v3224, %v3563
      %v3640 = vadd.f32 %v3225, %v3568
      %v3641 = vadd.f32 %v3226, %v3571
      %v3642 = vadd.f32 %v3227, %v3576
      %v3643 = vadd.f32 %v3228, %v3579
      %v3644 = vadd.f32 %v3229, %v3584
      %v3645 = vadd.f32 %v3230, %v3587
      %v3646 = vadd.f32 %v3231, %v3592
      %v3647 = vadd.f32 %v3232, %v3595
      %v3648 = vadd.f32 %v3233, %v3600
      %v3649 = vadd.f32 %v3234, %v3603
      %v3650 = vadd.f32 %v3235, %v3608
      %v3651 = vadd.f32 %v3236, %v3611
      %v3652 = vadd.f32 %v3237, %v3616
      %v3653 = vadd.f32 %v3238, %v3619
      %v3654 = vld [vmem:[#allocation2 + $0x10] sm:$0x80]
      %v3655 = vld [vmem:[#allocation2 + $0x90] sm:$0xff]
      %v3656 = vsel %vm1265, %v3654, 0
      %v3657 = vsel %vm1266, %v3240, 0
      %v3658 = vsel %vm1267, %v3241, 0
      %v3659 = vsel %vm1268, %v3242, 0
      %v3660 = vsel %vm1269, %v3243, 0
      %v3661 = vsel %vm1270, %v3244, 0
      %v3662 = vsel %vm1271, %v3245, 0
      %v3663 = vsel %vm1272, %v3246, 0
      %v3664 = vsel %vm1273, %v3247, 0
      %v3665 = vsel %vm1274, %v3248, 0
      %v3666 = vsel %vm1275, %v3249, 0
      %v3667 = vsel %vm1276, %v3250, 0
      %v3668 = vsel %vm1277, %v3251, 0
      %v3669 = vsel %vm1278, %v3252, 0
      %v3670 = vsel %vm1279, %v3253, 0
      %v3671 = vsel %vm1280, %v3254, 0
      %v3672 = vsel %vm1281, %v3655, 0
      %v3673 = vld [vmem:[%s2 + $0xc] sm:$0x3]
      %v3675 = vshrl.u32 %v3656, 16
      %v3677 = vrot.slane %v3675, 7
      %v3679 = vshrl.u32 %v3657, 16
      %v3681 = vrot.slane %v3679, 7
      %v3682 = vshll.u32 %v3657, 16
      %v3684 = vor.u32 %v3681, %v3682
      %v3685 = vsel %vm1518, %v3677, %v3684
      %v3687 = vshrl.u32 %v3658, 16
      %v3689 = vrot.slane %v3687, 7
      %v3690 = vshll.u32 %v3658, 16
      %v3692 = vor.u32 %v3689, %v3690
      %v3693 = vsel %vm1518, %v3681, %v3692
      %v3695 = vshrl.u32 %v3659, 16
      %v3697 = vrot.slane %v3695, 7
      %v3698 = vshll.u32 %v3659, 16
      %v3700 = vor.u32 %v3697, %v3698
      %v3701 = vsel %vm1518, %v3689, %v3700
      %v3703 = vshrl.u32 %v3660, 16
      %v3705 = vrot.slane %v3703, 7
      %v3706 = vshll.u32 %v3660, 16
      %v3708 = vor.u32 %v3705, %v3706
      %v3709 = vsel %vm1518, %v3697, %v3708
      %v3711 = vshrl.u32 %v3661, 16
      %v3713 = vrot.slane %v3711, 7
      %v3714 = vshll.u32 %v3661, 16
      %v3716 = vor.u32 %v3713, %v3714
      %v3717 = vsel %vm1518, %v3705, %v3716
      %v3719 = vshrl.u32 %v3662, 16
      %v3721 = vrot.slane %v3719, 7
      %v3722 = vshll.u32 %v3662, 16
      %v3724 = vor.u32 %v3721, %v3722
      %v3725 = vsel %vm1518, %v3713, %v3724
      %v3727 = vshrl.u32 %v3663, 16
      %v3729 = vrot.slane %v3727, 7
      %v3730 = vshll.u32 %v3663, 16
      %v3732 = vor.u32 %v3729, %v3730
      %v3733 = vsel %vm1518, %v3721, %v3732
      %v3735 = vshrl.u32 %v3664, 16
      %v3737 = vrot.slane %v3735, 7
      %v3738 = vshll.u32 %v3664, 16
      %v3740 = vor.u32 %v3737, %v3738
      %v3741 = vsel %vm1518, %v3729, %v3740
      %v3743 = vshrl.u32 %v3665, 16
      %v3745 = vrot.slane %v3743, 7
      %v3746 = vshll.u32 %v3665, 16
      %v3748 = vor.u32 %v3745, %v3746
      %v3749 = vsel %vm1518, %v3737, %v3748
      %v3751 = vshrl.u32 %v3666, 16
      %v3753 = vrot.slane %v3751, 7
      %v3754 = vshll.u32 %v3666, 16
      %v3756 = vor.u32 %v3753, %v3754
      %v3757 = vsel %vm1518, %v3745, %v3756
      %v3759 = vshrl.u32 %v3667, 16
      %v3761 = vrot.slane %v3759, 7
      %v3762 = vshll.u32 %v3667, 16
      %v3764 = vor.u32 %v3761, %v3762
      %v3765 = vsel %vm1518, %v3753, %v3764
      %v3767 = vshrl.u32 %v3668, 16
      %v3769 = vrot.slane %v3767, 7
      %v3770 = vshll.u32 %v3668, 16
      %v3772 = vor.u32 %v3769, %v3770
      %v3773 = vsel %vm1518, %v3761, %v3772
      %v3775 = vshrl.u32 %v3669, 16
      %v3777 = vrot.slane %v3775, 7
      %v3778 = vshll.u32 %v3669, 16
      %v3780 = vor.u32 %v3777, %v3778
      %v3781 = vsel %vm1518, %v3769, %v3780
      %v3783 = vshrl.u32 %v3670, 16
      %v3785 = vrot.slane %v3783, 7
      %v3786 = vshll.u32 %v3670, 16
      %v3788 = vor.u32 %v3785, %v3786
      %v3789 = vsel %vm1518, %v3777, %v3788
      %v3791 = vshrl.u32 %v3671, 16
      %v3793 = vrot.slane %v3791, 7
      %v3794 = vshll.u32 %v3671, 16
      %v3796 = vor.u32 %v3793, %v3794
      %v3797 = vsel %vm1518, %v3785, %v3796
      %v3799 = vshrl.u32 %v3672, 16
      %v3801 = vrot.slane %v3799, 7
      %v3802 = vshll.u32 %v3672, 16
      %v3804 = vor.u32 %v3801, %v3802
      %v3805 = vsel %vm1518, %v3793, %v3804
      %v3807 = vsel %vm790, %v3685, 0
      %v3810 = vsel %vm790, %v3693, 0
      %v3813 = vsel %vm790, %v3701, 0
      %v3816 = vsel %vm790, %v3709, 0
      %v3819 = vsel %vm790, %v3717, 0
      %v3822 = vsel %vm790, %v3725, 0
      %v3825 = vsel %vm790, %v3733, 0
      %v3828 = vsel %vm790, %v3741, 0
      %v3831 = vsel %vm790, %v3749, 0
      %v3834 = vsel %vm790, %v3757, 0
      %v3837 = vsel %vm790, %v3765, 0
      %v3840 = vsel %vm790, %v3773, 0
      %v3843 = vsel %vm790, %v3781, 0
      %v3846 = vsel %vm790, %v3789, 0
      %v3849 = vsel %vm790, %v3797, 0
      %v3852 = vsel %vm790, %v3805, 0
      %v3855 = vsel %vm1353, %v3673, 0
      %3857 = vmatprep.subr.bf16.mxu0 0
      %3858 = vmatpush1.bf16.msra.mxu0 %v3855
      %3859 = vmatprep.subr.bf16.mxu0 0
      %3860 = vmatpush1.bf16.msra.mxu0 0
      %3861 = vmatprep.subr.bf16.mxu0 0
      %3862 = vmatpush1.bf16.msra.mxu0 0
      %3863 = vmatprep.subr.bf16.mxu0 0
      %3864 = vmatpush1.bf16.msra.mxu0 0
      %3865 = vmatprep.subr.bf16.mxu0 0
      %3866 = vmatpush1.bf16.msra.mxu0 0
      %3867 = vmatprep.subr.bf16.mxu0 0
      %3868 = vmatpush1.bf16.msra.mxu0 0
      %3869 = vmatprep.subr.bf16.mxu0 0
      %3870 = vmatpush1.bf16.msra.mxu0 0
      %3871 = vmatprep.subr.bf16.mxu0 0
      %3872 = vmatpush1.bf16.msra.mxu0 0
      %3873 = vmatprep.subr.bf16.mxu0 0
      %3874 = vmatpush1.bf16.msra.mxu0 0
      %3875 = vmatprep.subr.bf16.mxu0 0
      %3876 = vmatpush1.bf16.msra.mxu0 0
      %3877 = vmatprep.subr.bf16.mxu0 0
      %3878 = vmatpush1.bf16.msra.mxu0 0
      %3879 = vmatprep.subr.bf16.mxu0 0
      %3880 = vmatpush1.bf16.msra.mxu0 0
      %3881 = vmatprep.subr.bf16.mxu0 0
      %3882 = vmatpush1.bf16.msra.mxu0 0
      %3883 = vmatprep.subr.bf16.mxu0 0
      %3884 = vmatpush1.bf16.msra.mxu0 0
      %3885 = vmatprep.subr.bf16.mxu0 0
      %3886 = vmatpush1.bf16.msra.mxu0 0
      %3887 = vmatprep.subr.bf16.mxu0 0
      %3888 = vmatpush1.bf16.msra.mxu0 0
      %3889 = vmatprep.mubr.bf16.mxu0 0
      %3890 = vmatmul.mubr.bf16.gmra.mrb[0].mxu0 %v3807
      %v3891 = vpop.f32.mrb[0].mxu0
      %v3892 = vadd.f32 0.0, %v3891
      %v3893 = vpop.f32.mrb[0].mxu0
      %v3894 = vpop.f32.mrb[0].mxu0
      %v3895 = vadd.f32 0.0, %v3894
      %v3896 = vpop.f32.mrb[0].mxu0
      %3897 = vmatprep.mubr.bf16.mxu0 0
      %3898 = vmatmul.mubr.bf16.gmra.mrb[0].mxu0 %v3810
      %v3899 = vpop.f32.mrb[0].mxu0
      %v3900 = vadd.f32 0.0, %v3899
      %v3901 = vpop.f32.mrb[0].mxu0
      %v3902 = vpop.f32.mrb[0].mxu0
      %v3903 = vadd.f32 0.0, %v3902
      %v3904 = vpop.f32.mrb[0].mxu0
      %3905 = vmatprep.mubr.bf16.mxu0 0
      %3906 = vmatmul.mubr.bf16.gmra.mrb[0].mxu0 %v3813
      %v3907 = vpop.f32.mrb[0].mxu0
      %v3908 = vadd.f32 0.0, %v3907
      %v3909 = vpop.f32.mrb[0].mxu0
      %v3910 = vpop.f32.mrb[0].mxu0
      %v3911 = vadd.f32 0.0, %v3910
      %v3912 = vpop.f32.mrb[0].mxu0
      %3913 = vmatprep.mubr.bf16.mxu0 0
      %3914 = vmatmul.mubr.bf16.gmra.mrb[0].mxu0 %v3816
      %v3915 = vpop.f32.mrb[0].mxu0
      %v3916 = vadd.f32 0.0, %v3915
      %v3917 = vpop.f32.mrb[0].mxu0
      %v3918 = vpop.f32.mrb[0].mxu0
      %v3919 = vadd.f32 0.0, %v3918
      %v3920 = vpop.f32.mrb[0].mxu0
      %3921 = vmatprep.mubr.bf16.mxu0 0
      %3922 = vmatmul.mubr.bf16.gmra.mrb[0].mxu0 %v3819
      %v3923 = vpop.f32.mrb[0].mxu0
      %v3924 = vadd.f32 0.0, %v3923
      %v3925 = vpop.f32.mrb[0].mxu0
      %v3926 = vpop.f32.mrb[0].mxu0
      %v3927 = vadd.f32 0.0, %v3926
      %v3928 = vpop.f32.mrb[0].mxu0
      %3929 = vmatprep.mubr.bf16.mxu0 0
      %3930 = vmatmul.mubr.bf16.gmra.mrb[0].mxu0 %v3822
      %v3931 = vpop.f32.mrb[0].mxu0
      %v3932 = vadd.f32 0.0, %v3931
      %v3933 = vpop.f32.mrb[0].mxu0
      %v3934 = vpop.f32.mrb[0].mxu0
      %v3935 = vadd.f32 0.0, %v3934
      %v3936 = vpop.f32.mrb[0].mxu0
      %3937 = vmatprep.mubr.bf16.mxu0 0
      %3938 = vmatmul.mubr.bf16.gmra.mrb[0].mxu0 %v3825
      %v3939 = vpop.f32.mrb[0].mxu0
      %v3940 = vadd.f32 0.0, %v3939
      %v3941 = vpop.f32.mrb[0].mxu0
      %v3942 = vpop.f32.mrb[0].mxu0
      %v3943 = vadd.f32 0.0, %v3942
      %v3944 = vpop.f32.mrb[0].mxu0
      %3945 = vmatprep.mubr.bf16.mxu0 0
      %3946 = vmatmul.mubr.bf16.gmra.mrb[0].mxu0 %v3828
      %v3947 = vpop.f32.mrb[0].mxu0
      %v3948 = vadd.f32 0.0, %v3947
      %v3949 = vpop.f32.mrb[0].mxu0
      %v3950 = vpop.f32.mrb[0].mxu0
      %v3951 = vadd.f32 0.0, %v3950
      %v3952 = vpop.f32.mrb[0].mxu0
      %3953 = vmatprep.mubr.bf16.mxu0 0
      %3954 = vmatmul.mubr.bf16.gmra.mrb[0].mxu0 %v3831
      %v3955 = vpop.f32.mrb[0].mxu0
      %v3956 = vadd.f32 0.0, %v3955
      %v3957 = vpop.f32.mrb[0].mxu0
      %v3958 = vpop.f32.mrb[0].mxu0
      %v3959 = vadd.f32 0.0, %v3958
      %v3960 = vpop.f32.mrb[0].mxu0
      %3961 = vmatprep.mubr.bf16.mxu0 0
      %3962 = vmatmul.mubr.bf16.gmra.mrb[0].mxu0 %v3834
      %v3963 = vpop.f32.mrb[0].mxu0
      %v3964 = vadd.f32 0.0, %v3963
      %v3965 = vpop.f32.mrb[0].mxu0
      %v3966 = vpop.f32.mrb[0].mxu0
      %v3967 = vadd.f32 0.0, %v3966
      %v3968 = vpop.f32.mrb[0].mxu0
      %3969 = vmatprep.mubr.bf16.mxu0 0
      %3970 = vmatmul.mubr.bf16.gmra.mrb[0].mxu0 %v3837
      %v3971 = vpop.f32.mrb[0].mxu0
      %v3972 = vadd.f32 0.0, %v3971
      %v3973 = vpop.f32.mrb[0].mxu0
      %v3974 = vpop.f32.mrb[0].mxu0
      %v3975 = vadd.f32 0.0, %v3974
      %v3976 = vpop.f32.mrb[0].mxu0
      %3977 = vmatprep.mubr.bf16.mxu0 0
      %3978 = vmatmul.mubr.bf16.gmra.mrb[0].mxu0 %v3840
      %v3979 = vpop.f32.mrb[0].mxu0
      %v3980 = vadd.f32 0.0, %v3979
      %v3981 = vpop.f32.mrb[0].mxu0
      %v3982 = vpop.f32.mrb[0].mxu0
      %v3983 = vadd.f32 0.0, %v3982
      %v3984 = vpop.f32.mrb[0].mxu0
      %3985 = vmatprep.mubr.bf16.mxu0 0
      %3986 = vmatmul.mubr.bf16.gmra.mrb[0].mxu0 %v3843
      %v3987 = vpop.f32.mrb[0].mxu0
      %v3988 = vadd.f32 0.0, %v3987
      %v3989 = vpop.f32.mrb[0].mxu0
      %v3990 = vpop.f32.mrb[0].mxu0
      %v3991 = vadd.f32 0.0, %v3990
      %v3992 = vpop.f32.mrb[0].mxu0
      %3993 = vmatprep.mubr.bf16.mxu0 0
      %3994 = vmatmul.mubr.bf16.gmra.mrb[0].mxu0 %v3846
      %v3995 = vpop.f32.mrb[0].mxu0
      %v3996 = vadd.f32 0.0, %v3995
      %v3997 = vpop.f32.mrb[0].mxu0
      %v3998 = vpop.f32.mrb[0].mxu0
      %v3999 = vadd.f32 0.0, %v3998
      %v4000 = vpop.f32.mrb[0].mxu0
      %4001 = vmatprep.mubr.bf16.mxu0 0
      %4002 = vmatmul.mubr.bf16.gmra.mrb[0].mxu0 %v3849
      %v4003 = vpop.f32.mrb[0].mxu0
      %v4004 = vadd.f32 0.0, %v4003
      %v4005 = vpop.f32.mrb[0].mxu0
      %v4006 = vpop.f32.mrb[0].mxu0
      %v4007 = vadd.f32 0.0, %v4006
      %v4008 = vpop.f32.mrb[0].mxu0
      %4009 = vmatprep.mubr.bf16.mxu0 0
      %4010 = vmatmul.mubr.bf16.gmra.mrb[0].mxu0 %v3852
      %v4011 = vpop.f32.mrb[0].mxu0
      %v4012 = vadd.f32 0.0, %v4011
      %v4013 = vpop.f32.mrb[0].mxu0
      %v4014 = vpop.f32.mrb[0].mxu0
      %v4015 = vadd.f32 0.0, %v4014
      %v4016 = vpop.f32.mrb[0].mxu0
      %4017 = vdwg.mxu0
      %v4018 = vadd.f32 %v3622, %v3892
      %v4019 = vadd.f32 %v3623, %v3895
      %v4020 = vadd.f32 %v3624, %v3900
      %v4021 = vadd.f32 %v3625, %v3903
      %v4022 = vadd.f32 %v3626, %v3908
      %v4023 = vadd.f32 %v3627, %v3911
      %v4024 = vadd.f32 %v3628, %v3916
      %v4025 = vadd.f32 %v3629, %v3919
      %v4026 = vadd.f32 %v3630, %v3924
      %v4027 = vadd.f32 %v3631, %v3927
      %v4028 = vadd.f32 %v3632, %v3932
      %v4029 = vadd.f32 %v3633, %v3935
      %v4030 = vadd.f32 %v3634, %v3940
      %v4031 = vadd.f32 %v3635, %v3943
      %v4032 = vadd.f32 %v3636, %v3948
      %v4033 = vadd.f32 %v3637, %v3951
      %v4034 = vadd.f32 %v3638, %v3956
      %v4035 = vadd.f32 %v3639, %v3959
      %v4036 = vadd.f32 %v3640, %v3964
      %v4037 = vadd.f32 %v3641, %v3967
      %v4038 = vadd.f32 %v3642, %v3972
      %v4039 = vadd.f32 %v3643, %v3975
      %v4040 = vadd.f32 %v3644, %v3980
      %v4041 = vadd.f32 %v3645, %v3983
      %v4042 = vadd.f32 %v3646, %v3988
      %v4043 = vadd.f32 %v3647, %v3991
      %v4044 = vadd.f32 %v3648, %v3996
      %v4045 = vadd.f32 %v3649, %v3999
      %v4046 = vadd.f32 %v3650, %v4004
      %v4047 = vadd.f32 %v3651, %v4007
      %v4048 = vadd.f32 %v3652, %v4012
      %v4049 = vadd.f32 %v3653, %v4015
      %v4050 = vld [vmem:[%s2 + $0xc] sm:$0xc]
      %v4052 = vunpack.c.l.b16 %v4050
      %v4053 = vpack.c.b16 %v4052, %v4052
      %v4054 = vrot.slane %v4053, 2
      %v4056 = vsel %vm790, %v3240, 0
      %v4059 = vsel %vm790, %v3241, 0
      %v4062 = vsel %vm790, %v3242, 0
      %v4065 = vsel %vm790, %v3243, 0
      %v4068 = vsel %vm790, %v3244, 0
      %v4071 = vsel %vm790, %v3245, 0
      %v4074 = vsel %vm790, %v3246, 0
      %v4077 = vsel %vm790, %v3247, 0
      %v4080 = vsel %vm790, %v3248, 0
      %v4083 = vsel %vm790, %v3249, 0
      %v4086 = vsel %vm790, %v3250, 0
      %v4089 = vsel %vm790, %v3251, 0
      %v4092 = vsel %vm790, %v3252, 0
      %v4095 = vsel %vm790, %v3253, 0
      %v4098 = vsel %vm790, %v3254, 0
      %v4101 = vsel %vm790, %v3655, 0
      %v4104 = vsel %vm1353, %v4054, 0
      %4106 = vmatprep.subr.bf16.mxu0 0
      %4107 = vmatpush1.bf16.msra.mxu0 %v4104
      %4108 = vmatprep.subr.bf16.mxu0 0
      %4109 = vmatpush1.bf16.msra.mxu0 0
      %4110 = vmatprep.subr.bf16.mxu0 0
      %4111 = vmatpush1.bf16.msra.mxu0 0
      %4112 = vmatprep.subr.bf16.mxu0 0
      %4113 = vmatpush1.bf16.msra.mxu0 0
      %4114 = vmatprep.subr.bf16.mxu0 0
      %4115 = vmatpush1.bf16.msra.mxu0 0
      %4116 = vmatprep.subr.bf16.mxu0 0
      %4117 = vmatpush1.bf16.msra.mxu0 0
      %4118 = vmatprep.subr.bf16.mxu0 0
      %4119 = vmatpush1.bf16.msra.mxu0 0
      %4120 = vmatprep.subr.bf16.mxu0 0
      %4121 = vmatpush1.bf16.msra.mxu0 0
      %4122 = vmatprep.subr.bf16.mxu0 0
      %4123 = vmatpush1.bf16.msra.mxu0 0
      %4124 = vmatprep.subr.bf16.mxu0 0
      %4125 = vmatpush1.bf16.msra.mxu0 0
      %4126 = vmatprep.subr.bf16.mxu0 0
      %4127 = vmatpush1.bf16.msra.mxu0 0
      %4128 = vmatprep.subr.bf16.mxu0 0
      %4129 = vmatpush1.bf16.msra.mxu0 0
      %4130 = vmatprep.subr.bf16.mxu0 0
      %4131 = vmatpush1.bf16.msra.mxu0 0
      %4132 = vmatprep.subr.bf16.mxu0 0
      %4133 = vmatpush1.bf16.msra.mxu0 0
      %4134 = vmatprep.subr.bf16.mxu0 0
      %4135 = vmatpush1.bf16.msra.mxu0 0
      %4136 = vmatprep.subr.bf16.mxu0 0
      %4137 = vmatpush1.bf16.msra.mxu0 0
      %4138 = vmatprep.mubr.bf16.mxu0 0
      %4139 = vmatmul.mubr.bf16.gmra.mrb[0].mxu0 %v4056
      %v4140 = vpop.f32.mrb[0].mxu0
      %v4141 = vadd.f32 0.0, %v4140
      %v4142 = vpop.f32.mrb[0].mxu0
      %v4143 = vpop.f32.mrb[0].mxu0
      %v4144 = vadd.f32 0.0, %v4143
      %v4145 = vpop.f32.mrb[0].mxu0
      %4146 = vmatprep.mubr.bf16.mxu0 0
      %4147 = vmatmul.mubr.bf16.gmra.mrb[0].mxu0 %v4059
      %v4148 = vpop.f32.mrb[0].mxu0
      %v4149 = vadd.f32 0.0, %v4148
      %v4150 = vpop.f32.mrb[0].mxu0
      %v4151 = vpop.f32.mrb[0].mxu0
      %v4152 = vadd.f32 0.0, %v4151
      %v4153 = vpop.f32.mrb[0].mxu0
      %4154 = vmatprep.mubr.bf16.mxu0 0
      %4155 = vmatmul.mubr.bf16.gmra.mrb[0].mxu0 %v4062
      %v4156 = vpop.f32.mrb[0].mxu0
      %v4157 = vadd.f32 0.0, %v4156
      %v4158 = vpop.f32.mrb[0].mxu0
      %v4159 = vpop.f32.mrb[0].mxu0
      %v4160 = vadd.f32 0.0, %v4159
      %v4161 = vpop.f32.mrb[0].mxu0
      %4162 = vmatprep.mubr.bf16.mxu0 0
      %4163 = vmatmul.mubr.bf16.gmra.mrb[0].mxu0 %v4065
      %v4164 = vpop.f32.mrb[0].mxu0
      %v4165 = vadd.f32 0.0, %v4164
      %v4166 = vpop.f32.mrb[0].mxu0
      %v4167 = vpop.f32.mrb[0].mxu0
      %v4168 = vadd.f32 0.0, %v4167
      %v4169 = vpop.f32.mrb[0].mxu0
      %4170 = vmatprep.mubr.bf16.mxu0 0
      %4171 = vmatmul.mubr.bf16.gmra.mrb[0].mxu0 %v4068
      %v4172 = vpop.f32.mrb[0].mxu0
      %v4173 = vadd.f32 0.0, %v4172
      %v4174 = vpop.f32.mrb[0].mxu0
      %v4175 = vpop.f32.mrb[0].mxu0
      %v4176 = vadd.f32 0.0, %v4175
      %v4177 = vpop.f32.mrb[0].mxu0
      %4178 = vmatprep.mubr.bf16.mxu0 0
      %4179 = vmatmul.mubr.bf16.gmra.mrb[0].mxu0 %v4071
      %v4180 = vpop.f32.mrb[0].mxu0
      %v4181 = vadd.f32 0.0, %v4180
      %v4182 = vpop.f32.mrb[0].mxu0
      %v4183 = vpop.f32.mrb[0].mxu0
      %v4184 = vadd.f32 0.0, %v4183
      %v4185 = vpop.f32.mrb[0].mxu0
      %4186 = vmatprep.mubr.bf16.mxu0 0
      %4187 = vmatmul.mubr.bf16.gmra.mrb[0].mxu0 %v4074
      %v4188 = vpop.f32.mrb[0].mxu0
      %v4189 = vadd.f32 0.0, %v4188
      %v4190 = vpop.f32.mrb[0].mxu0
      %v4191 = vpop.f32.mrb[0].mxu0
      %v4192 = vadd.f32 0.0, %v4191
      %v4193 = vpop.f32.mrb[0].mxu0
      %4194 = vmatprep.mubr.bf16.mxu0 0
      %4195 = vmatmul.mubr.bf16.gmra.mrb[0].mxu0 %v4077
      %v4196 = vpop.f32.mrb[0].mxu0
      %v4197 = vadd.f32 0.0, %v4196
      %v4198 = vpop.f32.mrb[0].mxu0
      %v4199 = vpop.f32.mrb[0].mxu0
      %v4200 = vadd.f32 0.0, %v4199
      %v4201 = vpop.f32.mrb[0].mxu0
      %4202 = vmatprep.mubr.bf16.mxu0 0
      %4203 = vmatmul.mubr.bf16.gmra.mrb[0].mxu0 %v4080
      %v4204 = vpop.f32.mrb[0].mxu0
      %v4205 = vadd.f32 0.0, %v4204
      %v4206 = vpop.f32.mrb[0].mxu0
      %v4207 = vpop.f32.mrb[0].mxu0
      %v4208 = vadd.f32 0.0, %v4207
      %v4209 = vpop.f32.mrb[0].mxu0
      %4210 = vmatprep.mubr.bf16.mxu0 0
      %4211 = vmatmul.mubr.bf16.gmra.mrb[0].mxu0 %v4083
      %v4212 = vpop.f32.mrb[0].mxu0
      %v4213 = vadd.f32 0.0, %v4212
      %v4214 = vpop.f32.mrb[0].mxu0
      %v4215 = vpop.f32.mrb[0].mxu0
      %v4216 = vadd.f32 0.0, %v4215
      %v4217 = vpop.f32.mrb[0].mxu0
      %4218 = vmatprep.mubr.bf16.mxu0 0
      %4219 = vmatmul.mubr.bf16.gmra.mrb[0].mxu0 %v4086
      %v4220 = vpop.f32.mrb[0].mxu0
      %v4221 = vadd.f32 0.0, %v4220
      %v4222 = vpop.f32.mrb[0].mxu0
      %v4223 = vpop.f32.mrb[0].mxu0
      %v4224 = vadd.f32 0.0, %v4223
      %v4225 = vpop.f32.mrb[0].mxu0
      %4226 = vmatprep.mubr.bf16.mxu0 0
      %4227 = vmatmul.mubr.bf16.gmra.mrb[0].mxu0 %v4089
      %v4228 = vpop.f32.mrb[0].mxu0
      %v4229 = vadd.f32 0.0, %v4228
      %v4230 = vpop.f32.mrb[0].mxu0
      %v4231 = vpop.f32.mrb[0].mxu0
      %v4232 = vadd.f32 0.0, %v4231
      %v4233 = vpop.f32.mrb[0].mxu0
      %4234 = vmatprep.mubr.bf16.mxu0 0
      %4235 = vmatmul.mubr.bf16.gmra.mrb[0].mxu0 %v4092
      %v4236 = vpop.f32.mrb[0].mxu0
      %v4237 = vadd.f32 0.0, %v4236
      %v4238 = vpop.f32.mrb[0].mxu0
      %v4239 = vpop.f32.mrb[0].mxu0
      %v4240 = vadd.f32 0.0, %v4239
      %v4241 = vpop.f32.mrb[0].mxu0
      %4242 = vmatprep.mubr.bf16.mxu0 0
      %4243 = vmatmul.mubr.bf16.gmra.mrb[0].mxu0 %v4095
      %v4244 = vpop.f32.mrb[0].mxu0
      %v4245 = vadd.f32 0.0, %v4244
      %v4246 = vpop.f32.mrb[0].mxu0
      %v4247 = vpop.f32.mrb[0].mxu0
      %v4248 = vadd.f32 0.0, %v4247
      %v4249 = vpop.f32.mrb[0].mxu0
      %4250 = vmatprep.mubr.bf16.mxu0 0
      %4251 = vmatmul.mubr.bf16.gmra.mrb[0].mxu0 %v4098
      %v4252 = vpop.f32.mrb[0].mxu0
      %v4253 = vadd.f32 0.0, %v4252
      %v4254 = vpop.f32.mrb[0].mxu0
      %v4255 = vpop.f32.mrb[0].mxu0
      %v4256 = vadd.f32 0.0, %v4255
      %v4257 = vpop.f32.mrb[0].mxu0
      %4258 = vmatprep.mubr.bf16.mxu0 0
      %4259 = vmatmul.mubr.bf16.gmra.mrb[0].mxu0 %v4101
      %v4260 = vpop.f32.mrb[0].mxu0
      %v4261 = vadd.f32 0.0, %v4260
      %v4262 = vpop.f32.mrb[0].mxu0
      %v4263 = vpop.f32.mrb[0].mxu0
      %v4264 = vadd.f32 0.0, %v4263
      %v4265 = vpop.f32.mrb[0].mxu0
      %4266 = vdwg.mxu0
      %v4267 = vadd.f32 %v4018, %v4141
      %v4268 = vadd.f32 %v4019, %v4144
      %v4269 = vadd.f32 %v4020, %v4149
      %v4270 = vadd.f32 %v4021, %v4152
      %v4271 = vadd.f32 %v4022, %v4157
      %v4272 = vadd.f32 %v4023, %v4160
      %v4273 = vadd.f32 %v4024, %v4165
      %v4274 = vadd.f32 %v4025, %v4168
      %v4275 = vadd.f32 %v4026, %v4173
      %v4276 = vadd.f32 %v4027, %v4176
      %v4277 = vadd.f32 %v4028, %v4181
      %v4278 = vadd.f32 %v4029, %v4184
      %v4279 = vadd.f32 %v4030, %v4189
      %v4280 = vadd.f32 %v4031, %v4192
      %v4281 = vadd.f32 %v4032, %v4197
      %v4282 = vadd.f32 %v4033, %v4200
      %v4283 = vadd.f32 %v4034, %v4205
      %v4284 = vadd.f32 %v4035, %v4208
      %v4285 = vadd.f32 %v4036, %v4213
      %v4286 = vadd.f32 %v4037, %v4216
      %v4287 = vadd.f32 %v4038, %v4221
      %v4288 = vadd.f32 %v4039, %v4224
      %v4289 = vadd.f32 %v4040, %v4229
      %v4290 = vadd.f32 %v4041, %v4232
      %v4291 = vadd.f32 %v4042, %v4237
      %v4292 = vadd.f32 %v4043, %v4240
      %v4293 = vadd.f32 %v4044, %v4245
      %v4294 = vadd.f32 %v4045, %v4248
      %v4295 = vadd.f32 %v4046, %v4253
      %v4296 = vadd.f32 %v4047, %v4256
      %v4297 = vadd.f32 %v4048, %v4261
      %v4298 = vadd.f32 %v4049, %v4264
      %v4299 = vld [vmem:[#allocation2 + $0x18] sm:$0xff]
      %v4300 = vld [vmem:[#allocation2 + $0x20] sm:$0xff]
      %v4301 = vld [vmem:[#allocation2 + $0x28] sm:$0xff]
      %v4302 = vld [vmem:[#allocation2 + $0x30] sm:$0xff]
      %v4303 = vld [vmem:[#allocation2 + $0x38] sm:$0xff]
      %v4304 = vld [vmem:[#allocation2 + $0x40] sm:$0xff]
      %v4305 = vld [vmem:[#allocation2 + $0x48] sm:$0xff]
      %v4306 = vld [vmem:[#allocation2 + $0x50] sm:$0xff]
      %v4307 = vld [vmem:[#allocation2 + $0x58] sm:$0xff]
      %v4308 = vld [vmem:[#allocation2 + $0x60] sm:$0xff]
      %v4309 = vld [vmem:[#allocation2 + $0x68] sm:$0xff]
      %v4310 = vld [vmem:[#allocation2 + $0x70] sm:$0xff]
      %v4311 = vld [vmem:[#allocation2 + $0x78] sm:$0xff]
      %v4312 = vld [vmem:[#allocation2 + $0x80] sm:$0xff]
      %v4313 = vld [vmem:[#allocation2 + $0x88] sm:$0xff]
      %v4314 = vld [vmem:[#allocation2 + $0x90] sm:$0xff]
      %v4315 = vld [vmem:[#allocation2 + $0x98] sm:$0x1]
      %v4316 = vsel %vm2183, %v4299, 0
      %v4317 = vsel %vm2184, %v4300, 0
      %v4318 = vsel %vm2185, %v4301, 0
      %v4319 = vsel %vm2186, %v4302, 0
      %v4320 = vsel %vm2187, %v4303, 0
      %v4321 = vsel %vm2188, %v4304, 0
      %v4322 = vsel %vm2189, %v4305, 0
      %v4323 = vsel %vm2190, %v4306, 0
      %v4324 = vsel %vm2191, %v4307, 0
      %v4325 = vsel %vm2192, %v4308, 0
      %v4326 = vsel %vm2193, %v4309, 0
      %v4327 = vsel %vm2194, %v4310, 0
      %v4328 = vsel %vm2195, %v4311, 0
      %v4329 = vsel %vm2196, %v4312, 0
      %v4330 = vsel %vm2197, %v4313, 0
      %v4331 = vsel %vm2198, %v4314, 0
      %v4332 = vsel %vm2199, %v4315, 0
      %v4333 = vld [vmem:[%s2 + $0x10] sm:$0x3]
      %v4335 = vshrl.u32 %v4316, 16
      %v4337 = vshll.u32 %v4316, 16
      %v4339 = vrot.slane %v4337, 1
      %v4340 = vor.u32 %v4335, %v4339
      %v4342 = vshll.u32 %v4317, 16
      %v4344 = vrot.slane %v4342, 1
      %v4345 = vsel %vm1137, %v4340, %v4344
      %v4346 = vshrl.u32 %v4317, 16
      %v4348 = vor.u32 %v4346, %v4344
      %v4350 = vshll.u32 %v4318, 16
      %v4352 = vrot.slane %v4350, 1
      %v4353 = vsel %vm1137, %v4348, %v4352
      %v4354 = vshrl.u32 %v4318, 16
      %v4356 = vor.u32 %v4354, %v4352
      %v4358 = vshll.u32 %v4319, 16
      %v4360 = vrot.slane %v4358, 1
      %v4361 = vsel %vm1137, %v4356, %v4360
      %v4362 = vshrl.u32 %v4319, 16
      %v4364 = vor.u32 %v4362, %v4360
      %v4366 = vshll.u32 %v4320, 16
      %v4368 = vrot.slane %v4366, 1
      %v4369 = vsel %vm1137, %v4364, %v4368
      %v4370 = vshrl.u32 %v4320, 16
      %v4372 = vor.u32 %v4370, %v4368
      %v4374 = vshll.u32 %v4321, 16
      %v4376 = vrot.slane %v4374, 1
      %v4377 = vsel %vm1137, %v4372, %v4376
      %v4378 = vshrl.u32 %v4321, 16
      %v4380 = vor.u32 %v4378, %v4376
      %v4382 = vshll.u32 %v4322, 16
      %v4384 = vrot.slane %v4382, 1
      %v4385 = vsel %vm1137, %v4380, %v4384
      %v4386 = vshrl.u32 %v4322, 16
      %v4388 = vor.u32 %v4386, %v4384
      %v4390 = vshll.u32 %v4323, 16
      %v4392 = vrot.slane %v4390, 1
      %v4393 = vsel %vm1137, %v4388, %v4392
      %v4394 = vshrl.u32 %v4323, 16
      %v4396 = vor.u32 %v4394, %v4392
      %v4398 = vshll.u32 %v4324, 16
      %v4400 = vrot.slane %v4398, 1
      %v4401 = vsel %vm1137, %v4396, %v4400
      %v4402 = vshrl.u32 %v4324, 16
      %v4404 = vor.u32 %v4402, %v4400
      %v4406 = vshll.u32 %v4325, 16
      %v4408 = vrot.slane %v4406, 1
      %v4409 = vsel %vm1137, %v4404, %v4408
      %v4410 = vshrl.u32 %v4325, 16
      %v4412 = vor.u32 %v4410, %v4408
      %v4414 = vshll.u32 %v4326, 16
      %v4416 = vrot.slane %v4414, 1
      %v4417 = vsel %vm1137, %v4412, %v4416
      %v4418 = vshrl.u32 %v4326, 16
      %v4420 = vor.u32 %v4418, %v4416
      %v4422 = vshll.u32 %v4327, 16
      %v4424 = vrot.slane %v4422, 1
      %v4425 = vsel %vm1137, %v4420, %v4424
      %v4426 = vshrl.u32 %v4327, 16
      %v4428 = vor.u32 %v4426, %v4424
      %v4430 = vshll.u32 %v4328, 16
      %v4432 = vrot.slane %v4430, 1
      %v4433 = vsel %vm1137, %v4428, %v4432
      %v4434 = vshrl.u32 %v4328, 16
      %v4436 = vor.u32 %v4434, %v4432
      %v4438 = vshll.u32 %v4329, 16
      %v4440 = vrot.slane %v4438, 1
      %v4441 = vsel %vm1137, %v4436, %v4440
      %v4442 = vshrl.u32 %v4329, 16
      %v4444 = vor.u32 %v4442, %v4440
      %v4446 = vshll.u32 %v4330, 16
      %v4448 = vrot.slane %v4446, 1
      %v4449 = vsel %vm1137, %v4444, %v4448
      %v4450 = vshrl.u32 %v4330, 16
      %v4452 = vor.u32 %v4450, %v4448
      %v4454 = vshll.u32 %v4331, 16
      %v4456 = vrot.slane %v4454, 1
      %v4457 = vsel %vm1137, %v4452, %v4456
      %v4458 = vshrl.u32 %v4331, 16
      %v4460 = vor.u32 %v4458, %v4456
      %v4462 = vshll.u32 %v4332, 16
      %v4464 = vrot.slane %v4462, 1
      %v4465 = vsel %vm1137, %v4460, %v4464
      %v4467 = vsel %vm790, %v4345, 0
      %v4470 = vsel %vm790, %v4353, 0
      %v4473 = vsel %vm790, %v4361, 0
      %v4476 = vsel %vm790, %v4369, 0
      %v4479 = vsel %vm790, %v4377, 0
      %v4482 = vsel %vm790, %v4385, 0
      %v4485 = vsel %vm790, %v4393, 0
      %v4488 = vsel %vm790, %v4401, 0
      %v4491 = vsel %vm790, %v4409, 0
      %v4494 = vsel %vm790, %v4417, 0
      %v4497 = vsel %vm790, %v4425, 0
      %v4500 = vsel %vm790, %v4433, 0
      %v4503 = vsel %vm790, %v4441, 0
      %v4506 = vsel %vm790, %v4449, 0
      %v4509 = vsel %vm790, %v4457, 0
      %v4512 = vsel %vm790, %v4465, 0
      %v4515 = vsel %vm1353, %v4333, 0
      %4517 = vmatprep.subr.bf16.mxu0 0
      %4518 = vmatpush1.bf16.msra.mxu0 %v4515
      %4519 = vmatprep.subr.bf16.mxu0 0
      %4520 = vmatpush1.bf16.msra.mxu0 0
      %4521 = vmatprep.subr.bf16.mxu0 0
      %4522 = vmatpush1.bf16.msra.mxu0 0
      %4523 = vmatprep.subr.bf16.mxu0 0
      %4524 = vmatpush1.bf16.msra.mxu0 0
      %4525 = vmatprep.subr.bf16.mxu0 0
      %4526 = vmatpush1.bf16.msra.mxu0 0
      %4527 = vmatprep.subr.bf16.mxu0 0
      %4528 = vmatpush1.bf16.msra.mxu0 0
      %4529 = vmatprep.subr.bf16.mxu0 0
      %4530 = vmatpush1.bf16.msra.mxu0 0
      %4531 = vmatprep.subr.bf16.mxu0 0
      %4532 = vmatpush1.bf16.msra.mxu0 0
      %4533 = vmatprep.subr.bf16.mxu0 0
      %4534 = vmatpush1.bf16.msra.mxu0 0
      %4535 = vmatprep.subr.bf16.mxu0 0
      %4536 = vmatpush1.bf16.msra.mxu0 0
      %4537 = vmatprep.subr.bf16.mxu0 0
      %4538 = vmatpush1.bf16.msra.mxu0 0
      %4539 = vmatprep.subr.bf16.mxu0 0
      %4540 = vmatpush1.bf16.msra.mxu0 0
      %4541 = vmatprep.subr.bf16.mxu0 0
      %4542 = vmatpush1.bf16.msra.mxu0 0
      %4543 = vmatprep.subr.bf16.mxu0 0
      %4544 = vmatpush1.bf16.msra.mxu0 0
      %4545 = vmatprep.subr.bf16.mxu0 0
      %4546 = vmatpush1.bf16.msra.mxu0 0
      %4547 = vmatprep.subr.bf16.mxu0 0
      %4548 = vmatpush1.bf16.msra.mxu0 0
      %4549 = vmatprep.mubr.bf16.mxu0 0
      %4550 = vmatmul.mubr.bf16.gmra.mrb[0].mxu0 %v4467
      %v4551 = vpop.f32.mrb[0].mxu0
      %v4552 = vadd.f32 0.0, %v4551
      %v4553 = vpop.f32.mrb[0].mxu0
      %v4554 = vpop.f32.mrb[0].mxu0
      %v4555 = vadd.f32 0.0, %v4554
      %v4556 = vpop.f32.mrb[0].mxu0
      %4557 = vmatprep.mubr.bf16.mxu0 0
      %4558 = vmatmul.mubr.bf16.gmra.mrb[0].mxu0 %v4470
      %v4559 = vpop.f32.mrb[0].mxu0
      %v4560 = vadd.f32 0.0, %v4559
      %v4561 = vpop.f32.mrb[0].mxu0
      %v4562 = vpop.f32.mrb[0].mxu0
      %v4563 = vadd.f32 0.0, %v4562
      %v4564 = vpop.f32.mrb[0].mxu0
      %4565 = vmatprep.mubr.bf16.mxu0 0
      %4566 = vmatmul.mubr.bf16.gmra.mrb[0].mxu0 %v4473
      %v4567 = vpop.f32.mrb[0].mxu0
      %v4568 = vadd.f32 0.0, %v4567
      %v4569 = vpop.f32.mrb[0].mxu0
      %v4570 = vpop.f32.mrb[0].mxu0
      %v4571 = vadd.f32 0.0, %v4570
      %v4572 = vpop.f32.mrb[0].mxu0
      %4573 = vmatprep.mubr.bf16.mxu0 0
      %4574 = vmatmul.mubr.bf16.gmra.mrb[0].mxu0 %v4476
      %v4575 = vpop.f32.mrb[0].mxu0
      %v4576 = vadd.f32 0.0, %v4575
      %v4577 = vpop.f32.mrb[0].mxu0
      %v4578 = vpop.f32.mrb[0].mxu0
      %v4579 = vadd.f32 0.0, %v4578
      %v4580 = vpop.f32.mrb[0].mxu0
      %4581 = vmatprep.mubr.bf16.mxu0 0
      %4582 = vmatmul.mubr.bf16.gmra.mrb[0].mxu0 %v4479
      %v4583 = vpop.f32.mrb[0].mxu0
      %v4584 = vadd.f32 0.0, %v4583
      %v4585 = vpop.f32.mrb[0].mxu0
      %v4586 = vpop.f32.mrb[0].mxu0
      %v4587 = vadd.f32 0.0, %v4586
      %v4588 = vpop.f32.mrb[0].mxu0
      %4589 = vmatprep.mubr.bf16.mxu0 0
      %4590 = vmatmul.mubr.bf16.gmra.mrb[0].mxu0 %v4482
      %v4591 = vpop.f32.mrb[0].mxu0
      %v4592 = vadd.f32 0.0, %v4591
      %v4593 = vpop.f32.mrb[0].mxu0
      %v4594 = vpop.f32.mrb[0].mxu0
      %v4595 = vadd.f32 0.0, %v4594
      %v4596 = vpop.f32.mrb[0].mxu0
      %4597 = vmatprep.mubr.bf16.mxu0 0
      %4598 = vmatmul.mubr.bf16.gmra.mrb[0].mxu0 %v4485
      %v4599 = vpop.f32.mrb[0].mxu0
      %v4600 = vadd.f32 0.0, %v4599
      %v4601 = vpop.f32.mrb[0].mxu0
      %v4602 = vpop.f32.mrb[0].mxu0
      %v4603 = vadd.f32 0.0, %v4602
      %v4604 = vpop.f32.mrb[0].mxu0
      %4605 = vmatprep.mubr.bf16.mxu0 0
      %4606 = vmatmul.mubr.bf16.gmra.mrb[0].mxu0 %v4488
      %v4607 = vpop.f32.mrb[0].mxu0
      %v4608 = vadd.f32 0.0, %v4607
      %v4609 = vpop.f32.mrb[0].mxu0
      %v4610 = vpop.f32.mrb[0].mxu0
      %v4611 = vadd.f32 0.0, %v4610
      %v4612 = vpop.f32.mrb[0].mxu0
      %4613 = vmatprep.mubr.bf16.mxu0 0
      %4614 = vmatmul.mubr.bf16.gmra.mrb[0].mxu0 %v4491
      %v4615 = vpop.f32.mrb[0].mxu0
      %v4616 = vadd.f32 0.0, %v4615
      %v4617 = vpop.f32.mrb[0].mxu0
      %v4618 = vpop.f32.mrb[0].mxu0
      %v4619 = vadd.f32 0.0, %v4618
      %v4620 = vpop.f32.mrb[0].mxu0
      %4621 = vmatprep.mubr.bf16.mxu0 0
      %4622 = vmatmul.mubr.bf16.gmra.mrb[0].mxu0 %v4494
      %v4623 = vpop.f32.mrb[0].mxu0
      %v4624 = vadd.f32 0.0, %v4623
      %v4625 = vpop.f32.mrb[0].mxu0
      %v4626 = vpop.f32.mrb[0].mxu0
      %v4627 = vadd.f32 0.0, %v4626
      %v4628 = vpop.f32.mrb[0].mxu0
      %4629 = vmatprep.mubr.bf16.mxu0 0
      %4630 = vmatmul.mubr.bf16.gmra.mrb[0].mxu0 %v4497
      %v4631 = vpop.f32.mrb[0].mxu0
      %v4632 = vadd.f32 0.0, %v4631
      %v4633 = vpop.f32.mrb[0].mxu0
      %v4634 = vpop.f32.mrb[0].mxu0
      %v4635 = vadd.f32 0.0, %v4634
      %v4636 = vpop.f32.mrb[0].mxu0
      %4637 = vmatprep.mubr.bf16.mxu0 0
      %4638 = vmatmul.mubr.bf16.gmra.mrb[0].mxu0 %v4500
      %v4639 = vpop.f32.mrb[0].mxu0
      %v4640 = vadd.f32 0.0, %v4639
      %v4641 = vpop.f32.mrb[0].mxu0
      %v4642 = vpop.f32.mrb[0].mxu0
      %v4643 = vadd.f32 0.0, %v4642
      %v4644 = vpop.f32.mrb[0].mxu0
      %4645 = vmatprep.mubr.bf16.mxu0 0
      %4646 = vmatmul.mubr.bf16.gmra.mrb[0].mxu0 %v4503
      %v4647 = vpop.f32.mrb[0].mxu0
      %v4648 = vadd.f32 0.0, %v4647
      %v4649 = vpop.f32.mrb[0].mxu0
      %v4650 = vpop.f32.mrb[0].mxu0
      %v4651 = vadd.f32 0.0, %v4650
      %v4652 = vpop.f32.mrb[0].mxu0
      %4653 = vmatprep.mubr.bf16.mxu0 0
      %4654 = vmatmul.mubr.bf16.gmra.mrb[0].mxu0 %v4506
      %v4655 = vpop.f32.mrb[0].mxu0
      %v4656 = vadd.f32 0.0, %v4655
      %v4657 = vpop.f32.mrb[0].mxu0
      %v4658 = vpop.f32.mrb[0].mxu0
      %v4659 = vadd.f32 0.0, %v4658
      %v4660 = vpop.f32.mrb[0].mxu0
      %4661 = vmatprep.mubr.bf16.mxu0 0
      %4662 = vmatmul.mubr.bf16.gmra.mrb[0].mxu0 %v4509
      %v4663 = vpop.f32.mrb[0].mxu0
      %v4664 = vadd.f32 0.0, %v4663
      %v4665 = vpop.f32.mrb[0].mxu0
      %v4666 = vpop.f32.mrb[0].mxu0
      %v4667 = vadd.f32 0.0, %v4666
      %v4668 = vpop.f32.mrb[0].mxu0
      %4669 = vmatprep.mubr.bf16.mxu0 0
      %4670 = vmatmul.mubr.bf16.gmra.mrb[0].mxu0 %v4512
      %v4671 = vpop.f32.mrb[0].mxu0
      %v4672 = vadd.f32 0.0, %v4671
      %v4673 = vpop.f32.mrb[0].mxu0
      %v4674 = vpop.f32.mrb[0].mxu0
      %v4675 = vadd.f32 0.0, %v4674
      %v4676 = vpop.f32.mrb[0].mxu0
      %4677 = vdwg.mxu0
      %v4678 = vadd.f32 %v4267, %v4552
      %v4679 = vadd.f32 %v4268, %v4555
      %v4680 = vadd.f32 %v4269, %v4560
      %v4681 = vadd.f32 %v4270, %v4563
      %v4682 = vadd.f32 %v4271, %v4568
      %v4683 = vadd.f32 %v4272, %v4571
      %v4684 = vadd.f32 %v4273, %v4576
      %v4685 = vadd.f32 %v4274, %v4579
      %v4686 = vadd.f32 %v4275, %v4584
      %v4687 = vadd.f32 %v4276, %v4587
      %v4688 = vadd.f32 %v4277, %v4592
      %v4689 = vadd.f32 %v4278, %v4595
      %v4690 = vadd.f32 %v4279, %v4600
      %v4691 = vadd.f32 %v4280, %v4603
      %v4692 = vadd.f32 %v4281, %v4608
      %v4693 = vadd.f32 %v4282, %v4611
      %v4694 = vadd.f32 %v4283, %v4616
      %v4695 = vadd.f32 %v4284, %v4619
      %v4696 = vadd.f32 %v4285, %v4624
      %v4697 = vadd.f32 %v4286, %v4627
      %v4698 = vadd.f32 %v4287, %v4632
      %v4699 = vadd.f32 %v4288, %v4635
      %v4700 = vadd.f32 %v4289, %v4640
      %v4701 = vadd.f32 %v4290, %v4643
      %v4702 = vadd.f32 %v4291, %v4648
      %v4703 = vadd.f32 %v4292, %v4651
      %v4704 = vadd.f32 %v4293, %v4656
      %v4705 = vadd.f32 %v4294, %v4659
      %v4706 = vadd.f32 %v4295, %v4664
      %v4707 = vadd.f32 %v4296, %v4667
      %v4708 = vadd.f32 %v4297, %v4672
      %v4709 = vadd.f32 %v4298, %v4675
      %v4710 = vld [vmem:[%s4] sm:$0x1]
      %v4712 = vlaneseq
      %v4713 = vshrl.u32 %v4712, 7
      %v4714 = vsub.s32 0, %v4713
      %v4715 = vrot.slane %v4710, %v4714
      %v4717 = vmul.f32 %v4678, %v4715
      %v4718 = vmul.f32 %v4679, %v4715
      %v4719 = vmul.f32 %v4680, %v4715
      %v4720 = vmul.f32 %v4681, %v4715
      %v4721 = vmul.f32 %v4682, %v4715
      %v4722 = vmul.f32 %v4683, %v4715
      %v4723 = vmul.f32 %v4684, %v4715
      %v4724 = vmul.f32 %v4685, %v4715
      %v4725 = vmul.f32 %v4686, %v4715
      %v4726 = vmul.f32 %v4687, %v4715
      %v4727 = vmul.f32 %v4688, %v4715
      %v4728 = vmul.f32 %v4689, %v4715
      %v4729 = vmul.f32 %v4690, %v4715
      %v4730 = vmul.f32 %v4691, %v4715
      %v4731 = vmul.f32 %v4692, %v4715
      %v4732 = vmul.f32 %v4693, %v4715
      %v4733 = vmul.f32 %v4694, %v4715
      %v4734 = vmul.f32 %v4695, %v4715
      %v4735 = vmul.f32 %v4696, %v4715
      %v4736 = vmul.f32 %v4697, %v4715
      %v4737 = vmul.f32 %v4698, %v4715
      %v4738 = vmul.f32 %v4699, %v4715
      %v4739 = vmul.f32 %v4700, %v4715
      %v4740 = vmul.f32 %v4701, %v4715
      %v4741 = vmul.f32 %v4702, %v4715
      %v4742 = vmul.f32 %v4703, %v4715
      %v4743 = vmul.f32 %v4704, %v4715
      %v4744 = vmul.f32 %v4705, %v4715
      %v4745 = vmul.f32 %v4706, %v4715
      %v4746 = vmul.f32 %v4707, %v4715
      %v4747 = vmul.f32 %v4708, %v4715
      %v4748 = vmul.f32 %v4709, %v4715
      %v4749 = vld [vmem:[%s5] sm:$0x1]
      %v4751 = vlaneseq
      %v4752 = vshrl.u32 %v4751, 7
      %v4753 = vsub.s32 0, %v4752
      %v4754 = vrot.slane %v4749, %v4753
      %v4756 = vadd.f32 %v4717, %v4754
      %v4757 = vadd.f32 %v4718, %v4754
      %v4758 = vadd.f32 %v4719, %v4754
      %v4759 = vadd.f32 %v4720, %v4754
      %v4760 = vadd.f32 %v4721, %v4754
      %v4761 = vadd.f32 %v4722, %v4754
      %v4762 = vadd.f32 %v4723, %v4754
      %v4763 = vadd.f32 %v4724, %v4754
      %v4764 = vadd.f32 %v4725, %v4754
      %v4765 = vadd.f32 %v4726, %v4754
      %v4766 = vadd.f32 %v4727, %v4754
      %v4767 = vadd.f32 %v4728, %v4754
      %v4768 = vadd.f32 %v4729, %v4754
      %v4769 = vadd.f32 %v4730, %v4754
      %v4770 = vadd.f32 %v4731, %v4754
      %v4771 = vadd.f32 %v4732, %v4754
      %v4772 = vadd.f32 %v4733, %v4754
      %v4773 = vadd.f32 %v4734, %v4754
      %v4774 = vadd.f32 %v4735, %v4754
      %v4775 = vadd.f32 %v4736, %v4754
      %v4776 = vadd.f32 %v4737, %v4754
      %v4777 = vadd.f32 %v4738, %v4754
      %v4778 = vadd.f32 %v4739, %v4754
      %v4779 = vadd.f32 %v4740, %v4754
      %v4780 = vadd.f32 %v4741, %v4754
      %v4781 = vadd.f32 %v4742, %v4754
      %v4782 = vadd.f32 %v4743, %v4754
      %v4783 = vadd.f32 %v4744, %v4754
      %v4784 = vadd.f32 %v4745, %v4754
      %v4785 = vadd.f32 %v4746, %v4754
      %v4786 = vadd.f32 %v4747, %v4754
      %v4787 = vadd.f32 %v4748, %v4754
      %v4788 = vmul.f32 %v4756, 0.2
      %v4789 = vmul.f32 %v4757, 0.2
      %v4790 = vmul.f32 %v4758, 0.2
      %v4791 = vmul.f32 %v4759, 0.2
      %v4792 = vmul.f32 %v4760, 0.2
      %v4793 = vmul.f32 %v4761, 0.2
      %v4794 = vmul.f32 %v4762, 0.2
      %v4795 = vmul.f32 %v4763, 0.2
      %v4796 = vmul.f32 %v4764, 0.2
      %v4797 = vmul.f32 %v4765, 0.2
      %v4798 = vmul.f32 %v4766, 0.2
      %v4799 = vmul.f32 %v4767, 0.2
      %v4800 = vmul.f32 %v4768, 0.2
      %v4801 = vmul.f32 %v4769, 0.2
      %v4802 = vmul.f32 %v4770, 0.2
      %v4803 = vmul.f32 %v4771, 0.2
      %v4804 = vmul.f32 %v4772, 0.2
      %v4805 = vmul.f32 %v4773, 0.2
      %v4806 = vmul.f32 %v4774, 0.2
      %v4807 = vmul.f32 %v4775, 0.2
      %v4808 = vmul.f32 %v4776, 0.2
      %v4809 = vmul.f32 %v4777, 0.2
      %v4810 = vmul.f32 %v4778, 0.2
      %v4811 = vmul.f32 %v4779, 0.2
      %v4812 = vmul.f32 %v4780, 0.2
      %v4813 = vmul.f32 %v4781, 0.2
      %v4814 = vmul.f32 %v4782, 0.2
      %v4815 = vmul.f32 %v4783, 0.2
      %v4816 = vmul.f32 %v4784, 0.2
      %v4817 = vmul.f32 %v4785, 0.2
      %v4818 = vmul.f32 %v4786, 0.2
      %v4819 = vmul.f32 %v4787, 0.2
      %v4820 = vmax.f32 %v4756, %v4788
      %v4821 = vmax.f32 %v4757, %v4789
      %v4822 = vmax.f32 %v4758, %v4790
      %v4823 = vmax.f32 %v4759, %v4791
      %v4824 = vmax.f32 %v4760, %v4792
      %v4825 = vmax.f32 %v4761, %v4793
      %v4826 = vmax.f32 %v4762, %v4794
      %v4827 = vmax.f32 %v4763, %v4795
      %v4828 = vmax.f32 %v4764, %v4796
      %v4829 = vmax.f32 %v4765, %v4797
      %v4830 = vmax.f32 %v4766, %v4798
      %v4831 = vmax.f32 %v4767, %v4799
      %v4832 = vmax.f32 %v4768, %v4800
      %v4833 = vmax.f32 %v4769, %v4801
      %v4834 = vmax.f32 %v4770, %v4802
      %v4835 = vmax.f32 %v4771, %v4803
      %v4836 = vmax.f32 %v4772, %v4804
      %v4837 = vmax.f32 %v4773, %v4805
      %v4838 = vmax.f32 %v4774, %v4806
      %v4839 = vmax.f32 %v4775, %v4807
      %v4840 = vmax.f32 %v4776, %v4808
      %v4841 = vmax.f32 %v4777, %v4809
      %v4842 = vmax.f32 %v4778, %v4810
      %v4843 = vmax.f32 %v4779, %v4811
      %v4844 = vmax.f32 %v4780, %v4812
      %v4845 = vmax.f32 %v4781, %v4813
      %v4846 = vmax.f32 %v4782, %v4814
      %v4847 = vmax.f32 %v4783, %v4815
      %v4848 = vmax.f32 %v4784, %v4816
      %v4849 = vmax.f32 %v4785, %v4817
      %v4850 = vmax.f32 %v4786, %v4818
      %v4851 = vmax.f32 %v4787, %v4819
      %v4852 = vpack.c.bf16 %v4821, %v4820
      %v4853 = vpack.c.bf16 %v4823, %v4822
      %v4854 = vpack.c.bf16 %v4825, %v4824
      %v4855 = vpack.c.bf16 %v4827, %v4826
      %v4856 = vpack.c.bf16 %v4829, %v4828
      %v4857 = vpack.c.bf16 %v4831, %v4830
      %v4858 = vpack.c.bf16 %v4833, %v4832
      %v4859 = vpack.c.bf16 %v4835, %v4834
      %v4860 = vpack.c.bf16 %v4837, %v4836
      %v4861 = vpack.c.bf16 %v4839, %v4838
      %v4862 = vpack.c.bf16 %v4841, %v4840
      %v4863 = vpack.c.bf16 %v4843, %v4842
      %v4864 = vpack.c.bf16 %v4845, %v4844
      %v4865 = vpack.c.bf16 %v4847, %v4846
      %v4866 = vpack.c.bf16 %v4849, %v4848
      %v4867 = vpack.c.bf16 %v4851, %v4850
      %4868 = vst.msk [vmem:[#allocation3 + $0x10] sm:$0xff] %vm939, %v4852
      %4869 = vst.msk [vmem:[#allocation3 + $0x18] sm:$0xff] %vm939, %v4853
      %4870 = vst.msk [vmem:[#allocation3 + $0x20] sm:$0xff] %vm939, %v4854
      %4871 = vst.msk [vmem:[#allocation3 + $0x28] sm:$0xff] %vm939, %v4855
      %4872 = vst.msk [vmem:[#allocation3 + $0x30] sm:$0xff] %vm939, %v4856
      %4873 = vst.msk [vmem:[#allocation3 + $0x38] sm:$0xff] %vm939, %v4857
      %4874 = vst.msk [vmem:[#allocation3 + $0x40] sm:$0xff] %vm939, %v4858
      %4875 = vst.msk [vmem:[#allocation3 + $0x48] sm:$0xff] %vm939, %v4859
      %4876 = vst.msk [vmem:[#allocation3 + $0x50] sm:$0xff] %vm939, %v4860
      %4877 = vst.msk [vmem:[#allocation3 + $0x58] sm:$0xff] %vm939, %v4861
      %4878 = vst.msk [vmem:[#allocation3 + $0x60] sm:$0xff] %vm939, %v4862
      %4879 = vst.msk [vmem:[#allocation3 + $0x68] sm:$0xff] %vm939, %v4863
      %4880 = vst.msk [vmem:[#allocation3 + $0x70] sm:$0xff] %vm939, %v4864
      %4881 = vst.msk [vmem:[#allocation3 + $0x78] sm:$0xff] %vm939, %v4865
      %4882 = vst.msk [vmem:[#allocation3 + $0x80] sm:$0xff] %vm939, %v4866
      %4883 = vst.msk [vmem:[#allocation3 + $0x88] sm:$0xff] %vm939, %v4867
      %v4884 = vld [vmem:[#allocation3] sm:$0x80]
      %v4885 = vld [vmem:[#allocation3 + $0x8] sm:$0xff]
      %v4886 = vld [vmem:[#allocation3 + $0x10] sm:$0xff]
      %v4887 = vld [vmem:[#allocation3 + $0x18] sm:$0xff]
      %v4888 = vld [vmem:[#allocation3 + $0x20] sm:$0xff]
      %v4889 = vld [vmem:[#allocation3 + $0x28] sm:$0xff]
      %v4890 = vld [vmem:[#allocation3 + $0x30] sm:$0xff]
      %v4891 = vld [vmem:[#allocation3 + $0x38] sm:$0xff]
      %v4892 = vld [vmem:[#allocation3 + $0x40] sm:$0xff]
      %v4893 = vld [vmem:[#allocation3 + $0x48] sm:$0xff]
      %v4894 = vld [vmem:[#allocation3 + $0x50] sm:$0xff]
      %v4895 = vld [vmem:[#allocation3 + $0x58] sm:$0xff]
      %v4896 = vld [vmem:[#allocation3 + $0x60] sm:$0xff]
      %v4897 = vld [vmem:[#allocation3 + $0x68] sm:$0xff]
      %v4898 = vld [vmem:[#allocation3 + $0x70] sm:$0xff]
      %v4899 = vld [vmem:[#allocation3 + $0x78] sm:$0xff]
      %v4900 = vld [vmem:[#allocation3 + $0x80] sm:$0xff]
      %v4901 = vsel %vm1265, %v4884, 0
      %v4902 = vsel %vm1266, %v4885, 0
      %v4903 = vsel %vm1267, %v4886, 0
      %v4904 = vsel %vm1268, %v4887, 0
      %v4905 = vsel %vm1269, %v4888, 0
      %v4906 = vsel %vm1270, %v4889, 0
      %v4907 = vsel %vm1271, %v4890, 0
      %v4908 = vsel %vm1272, %v4891, 0
      %v4909 = vsel %vm1273, %v4892, 0
      %v4910 = vsel %vm1274, %v4893, 0
      %v4911 = vsel %vm1275, %v4894, 0
      %v4912 = vsel %vm1276, %v4895, 0
      %v4913 = vsel %vm1277, %v4896, 0
      %v4914 = vsel %vm1278, %v4897, 0
      %v4915 = vsel %vm1279, %v4898, 0
      %v4916 = vsel %vm1280, %v4899, 0
      %v4917 = vsel %vm1281, %v4900, 0
      %v4918 = vld [vmem:[%s3] sm:$0xf]
      %v4919 = vld [vmem:[%s3 + $0x4] sm:$0xf]
      %v4921 = vsel %vm939, %v4885, 0
      %v4924 = vsel %vm939, %v4886, 0
      %v4927 = vsel %vm939, %v4887, 0
      %v4930 = vsel %vm939, %v4888, 0
      %v4933 = vsel %vm939, %v4889, 0
      %v4936 = vsel %vm939, %v4890, 0
      %v4939 = vsel %vm939, %v4891, 0
      %v4942 = vsel %vm939, %v4892, 0
      %v4945 = vsel %vm939, %v4893, 0
      %v4948 = vsel %vm939, %v4894, 0
      %v4951 = vsel %vm939, %v4895, 0
      %v4954 = vsel %vm939, %v4896, 0
      %v4957 = vsel %vm939, %v4897, 0
      %v4960 = vsel %vm939, %v4898, 0
      %v4963 = vsel %vm939, %v4899, 0
      %v4966 = vsel %vm939, %v4900, 0
      %vm4968 = vcmask 1043456
      %v4970 = vsel %vm4968, %v4919, 0
      %4972 = vmatprep.subr.bf16.mxu0 0
      %4973 = vmatpush1.bf16.msra.mxu0 %v4970
      %4974 = vmatprep.subr.bf16.mxu0 0
      %4975 = vmatpush1.bf16.msra.mxu0 0
      %4976 = vmatprep.subr.bf16.mxu0 0
      %4977 = vmatpush1.bf16.msra.mxu0 0
      %4978 = vmatprep.subr.bf16.mxu0 0
      %4979 = vmatpush1.bf16.msra.mxu0 0
      %4980 = vmatprep.subr.bf16.mxu0 0
      %4981 = vmatpush1.bf16.msra.mxu0 0
      %4982 = vmatprep.subr.bf16.mxu0 0
      %4983 = vmatpush1.bf16.msra.mxu0 0
      %4984 = vmatprep.subr.bf16.mxu0 0
      %4985 = vmatpush1.bf16.msra.mxu0 0
      %4986 = vmatprep.subr.bf16.mxu0 0
      %4987 = vmatpush1.bf16.msra.mxu0 0
      %4988 = vmatprep.subr.bf16.mxu0 0
      %4989 = vmatpush1.bf16.msra.mxu0 0
      %4990 = vmatprep.subr.bf16.mxu0 0
      %4991 = vmatpush1.bf16.msra.mxu0 0
      %4992 = vmatprep.subr.bf16.mxu0 0
      %4993 = vmatpush1.bf16.msra.mxu0 0
      %4994 = vmatprep.subr.bf16.mxu0 0
      %4995 = vmatpush1.bf16.msra.mxu0 0
      %4996 = vmatprep.subr.bf16.mxu0 0
      %4997 = vmatpush1.bf16.msra.mxu0 0
      %4998 = vmatprep.subr.bf16.mxu0 0
      %4999 = vmatpush1.bf16.msra.mxu0 0
      %5000 = vmatprep.subr.bf16.mxu0 0
      %5001 = vmatpush1.bf16.msra.mxu0 0
      %5002 = vmatprep.subr.bf16.mxu0 0
      %5003 = vmatpush1.bf16.msra.mxu0 0
      %5004 = vmatprep.mubr.bf16.mxu0 0
      %5005 = vmatmul.mubr.bf16.gmra.mrb[0].mxu0 %v4921
      %v5006 = vpop.f32.mrb[0].mxu0
      %v5007 = vadd.f32 0.0, %v5006
      %v5008 = vpop.f32.mrb[0].mxu0
      %v5009 = vpop.f32.mrb[0].mxu0
      %v5010 = vadd.f32 0.0, %v5009
      %v5011 = vpop.f32.mrb[0].mxu0
      %5012 = vmatprep.mubr.bf16.mxu0 0
      %5013 = vmatmul.mubr.bf16.gmra.mrb[0].mxu0 %v4924
      %v5014 = vpop.f32.mrb[0].mxu0
      %v5015 = vadd.f32 0.0, %v5014
      %v5016 = vpop.f32.mrb[0].mxu0
      %v5017 = vpop.f32.mrb[0].mxu0
      %v5018 = vadd.f32 0.0, %v5017
      %v5019 = vpop.f32.mrb[0].mxu0
      %5020 = vmatprep.mubr.bf16.mxu0 0
      %5021 = vmatmul.mubr.bf16.gmra.mrb[0].mxu0 %v4927
      %v5022 = vpop.f32.mrb[0].mxu0
      %v5023 = vadd.f32 0.0, %v5022
      %v5024 = vpop.f32.mrb[0].mxu0
      %v5025 = vpop.f32.mrb[0].mxu0
      %v5026 = vadd.f32 0.0, %v5025
      %v5027 = vpop.f32.mrb[0].mxu0
      %5028 = vmatprep.mubr.bf16.mxu0 0
      %5029 = vmatmul.mubr.bf16.gmra.mrb[0].mxu0 %v4930
      %v5030 = vpop.f32.mrb[0].mxu0
      %v5031 = vadd.f32 0.0, %v5030
      %v5032 = vpop.f32.mrb[0].mxu0
      %v5033 = vpop.f32.mrb[0].mxu0
      %v5034 = vadd.f32 0.0, %v5033
      %v5035 = vpop.f32.mrb[0].mxu0
      %5036 = vmatprep.mubr.bf16.mxu0 0
      %5037 = vmatmul.mubr.bf16.gmra.mrb[0].mxu0 %v4933
      %v5038 = vpop.f32.mrb[0].mxu0
      %v5039 = vadd.f32 0.0, %v5038
      %v5040 = vpop.f32.mrb[0].mxu0
      %v5041 = vpop.f32.mrb[0].mxu0
      %v5042 = vadd.f32 0.0, %v5041
      %v5043 = vpop.f32.mrb[0].mxu0
      %5044 = vmatprep.mubr.bf16.mxu0 0
      %5045 = vmatmul.mubr.bf16.gmra.mrb[0].mxu0 %v4936
      %v5046 = vpop.f32.mrb[0].mxu0
      %v5047 = vadd.f32 0.0, %v5046
      %v5048 = vpop.f32.mrb[0].mxu0
      %v5049 = vpop.f32.mrb[0].mxu0
      %v5050 = vadd.f32 0.0, %v5049
      %v5051 = vpop.f32.mrb[0].mxu0
      %5052 = vmatprep.mubr.bf16.mxu0 0
      %5053 = vmatmul.mubr.bf16.gmra.mrb[0].mxu0 %v4939
      %v5054 = vpop.f32.mrb[0].mxu0
      %v5055 = vadd.f32 0.0, %v5054
      %v5056 = vpop.f32.mrb[0].mxu0
      %v5057 = vpop.f32.mrb[0].mxu0
      %v5058 = vadd.f32 0.0, %v5057
      %v5059 = vpop.f32.mrb[0].mxu0
      %5060 = vmatprep.mubr.bf16.mxu0 0
      %5061 = vmatmul.mubr.bf16.gmra.mrb[0].mxu0 %v4942
      %v5062 = vpop.f32.mrb[0].mxu0
      %v5063 = vadd.f32 0.0, %v5062
      %v5064 = vpop.f32.mrb[0].mxu0
      %v5065 = vpop.f32.mrb[0].mxu0
      %v5066 = vadd.f32 0.0, %v5065
      %v5067 = vpop.f32.mrb[0].mxu0
      %5068 = vmatprep.mubr.bf16.mxu0 0
      %5069 = vmatmul.mubr.bf16.gmra.mrb[0].mxu0 %v4945
      %v5070 = vpop.f32.mrb[0].mxu0
      %v5071 = vadd.f32 0.0, %v5070
      %v5072 = vpop.f32.mrb[0].mxu0
      %v5073 = vpop.f32.mrb[0].mxu0
      %v5074 = vadd.f32 0.0, %v5073
      %v5075 = vpop.f32.mrb[0].mxu0
      %5076 = vmatprep.mubr.bf16.mxu0 0
      %5077 = vmatmul.mubr.bf16.gmra.mrb[0].mxu0 %v4948
      %v5078 = vpop.f32.mrb[0].mxu0
      %v5079 = vadd.f32 0.0, %v5078
      %v5080 = vpop.f32.mrb[0].mxu0
      %v5081 = vpop.f32.mrb[0].mxu0
      %v5082 = vadd.f32 0.0, %v5081
      %v5083 = vpop.f32.mrb[0].mxu0
      %5084 = vmatprep.mubr.bf16.mxu0 0
      %5085 = vmatmul.mubr.bf16.gmra.mrb[0].mxu0 %v4951
      %v5086 = vpop.f32.mrb[0].mxu0
      %v5087 = vadd.f32 0.0, %v5086
      %v5088 = vpop.f32.mrb[0].mxu0
      %v5089 = vpop.f32.mrb[0].mxu0
      %v5090 = vadd.f32 0.0, %v5089
      %v5091 = vpop.f32.mrb[0].mxu0
      %5092 = vmatprep.mubr.bf16.mxu0 0
      %5093 = vmatmul.mubr.bf16.gmra.mrb[0].mxu0 %v4954
      %v5094 = vpop.f32.mrb[0].mxu0
      %v5095 = vadd.f32 0.0, %v5094
      %v5096 = vpop.f32.mrb[0].mxu0
      %v5097 = vpop.f32.mrb[0].mxu0
      %v5098 = vadd.f32 0.0, %v5097
      %v5099 = vpop.f32.mrb[0].mxu0
      %5100 = vmatprep.mubr.bf16.mxu0 0
      %5101 = vmatmul.mubr.bf16.gmra.mrb[0].mxu0 %v4957
      %v5102 = vpop.f32.mrb[0].mxu0
      %v5103 = vadd.f32 0.0, %v5102
      %v5104 = vpop.f32.mrb[0].mxu0
      %v5105 = vpop.f32.mrb[0].mxu0
      %v5106 = vadd.f32 0.0, %v5105
      %v5107 = vpop.f32.mrb[0].mxu0
      %5108 = vmatprep.mubr.bf16.mxu0 0
      %5109 = vmatmul.mubr.bf16.gmra.mrb[0].mxu0 %v4960
      %v5110 = vpop.f32.mrb[0].mxu0
      %v5111 = vadd.f32 0.0, %v5110
      %v5112 = vpop.f32.mrb[0].mxu0
      %v5113 = vpop.f32.mrb[0].mxu0
      %v5114 = vadd.f32 0.0, %v5113
      %v5115 = vpop.f32.mrb[0].mxu0
      %5116 = vmatprep.mubr.bf16.mxu0 0
      %5117 = vmatmul.mubr.bf16.gmra.mrb[0].mxu0 %v4963
      %v5118 = vpop.f32.mrb[0].mxu0
      %v5119 = vadd.f32 0.0, %v5118
      %v5120 = vpop.f32.mrb[0].mxu0
      %v5121 = vpop.f32.mrb[0].mxu0
      %v5122 = vadd.f32 0.0, %v5121
      %v5123 = vpop.f32.mrb[0].mxu0
      %5124 = vmatprep.mubr.bf16.mxu0 0
      %5125 = vmatmul.mubr.bf16.gmra.mrb[0].mxu0 %v4966
      %v5126 = vpop.f32.mrb[0].mxu0
      %v5127 = vadd.f32 0.0, %v5126
      %v5128 = vpop.f32.mrb[0].mxu0
      %v5129 = vpop.f32.mrb[0].mxu0
      %v5130 = vadd.f32 0.0, %v5129
      %v5131 = vpop.f32.mrb[0].mxu0
      %5132 = vdwg.mxu0
      %v5134 = vshrl.u32 %v4901, 16
      %v5136 = vrot.slane %v5134, 7
      %v5138 = vshrl.u32 %v4902, 16
      %v5140 = vrot.slane %v5138, 7
      %v5141 = vshll.u32 %v4902, 16
      %v5143 = vor.u32 %v5140, %v5141
      %v5144 = vsel %vm1518, %v5136, %v5143
      %v5146 = vshrl.u32 %v4903, 16
      %v5148 = vrot.slane %v5146, 7
      %v5149 = vshll.u32 %v4903, 16
      %v5151 = vor.u32 %v5148, %v5149
      %v5152 = vsel %vm1518, %v5140, %v5151
      %v5154 = vshrl.u32 %v4904, 16
      %v5156 = vrot.slane %v5154, 7
      %v5157 = vshll.u32 %v4904, 16
      %v5159 = vor.u32 %v5156, %v5157
      %v5160 = vsel %vm1518, %v5148, %v5159
      %v5162 = vshrl.u32 %v4905, 16
      %v5164 = vrot.slane %v5162, 7
      %v5165 = vshll.u32 %v4905, 16
      %v5167 = vor.u32 %v5164, %v5165
      %v5168 = vsel %vm1518, %v5156, %v5167
      %v5170 = vshrl.u32 %v4906, 16
      %v5172 = vrot.slane %v5170, 7
      %v5173 = vshll.u32 %v4906, 16
      %v5175 = vor.u32 %v5172, %v5173
      %v5176 = vsel %vm1518, %v5164, %v5175
      %v5178 = vshrl.u32 %v4907, 16
      %v5180 = vrot.slane %v5178, 7
      %v5181 = vshll.u32 %v4907, 16
      %v5183 = vor.u32 %v5180, %v5181
      %v5184 = vsel %vm1518, %v5172, %v5183
      %v5186 = vshrl.u32 %v4908, 16
      %v5188 = vrot.slane %v5186, 7
      %v5189 = vshll.u32 %v4908, 16
      %v5191 = vor.u32 %v5188, %v5189
      %v5192 = vsel %vm1518, %v5180, %v5191
      %v5194 = vshrl.u32 %v4909, 16
      %v5196 = vrot.slane %v5194, 7
      %v5197 = vshll.u32 %v4909, 16
      %v5199 = vor.u32 %v5196, %v5197
      %v5200 = vsel %vm1518, %v5188, %v5199
      %v5202 = vshrl.u32 %v4910, 16
      %v5204 = vrot.slane %v5202, 7
      %v5205 = vshll.u32 %v4910, 16
      %v5207 = vor.u32 %v5204, %v5205
      %v5208 = vsel %vm1518, %v5196, %v5207
      %v5210 = vshrl.u32 %v4911, 16
      %v5212 = vrot.slane %v5210, 7
      %v5213 = vshll.u32 %v4911, 16
      %v5215 = vor.u32 %v5212, %v5213
      %v5216 = vsel %vm1518, %v5204, %v5215
      %v5218 = vshrl.u32 %v4912, 16
      %v5220 = vrot.slane %v5218, 7
      %v5221 = vshll.u32 %v4912, 16
      %v5223 = vor.u32 %v5220, %v5221
      %v5224 = vsel %vm1518, %v5212, %v5223
      %v5226 = vshrl.u32 %v4913, 16
      %v5228 = vrot.slane %v5226, 7
      %v5229 = vshll.u32 %v4913, 16
      %v5231 = vor.u32 %v5228, %v5229
      %v5232 = vsel %vm1518, %v5220, %v5231
      %v5234 = vshrl.u32 %v4914, 16
      %v5236 = vrot.slane %v5234, 7
      %v5237 = vshll.u32 %v4914, 16
      %v5239 = vor.u32 %v5236, %v5237
      %v5240 = vsel %vm1518, %v5228, %v5239
      %v5242 = vshrl.u32 %v4915, 16
      %v5244 = vrot.slane %v5242, 7
      %v5245 = vshll.u32 %v4915, 16
      %v5247 = vor.u32 %v5244, %v5245
      %v5248 = vsel %vm1518, %v5236, %v5247
      %v5250 = vshrl.u32 %v4916, 16
      %v5252 = vrot.slane %v5250, 7
      %v5253 = vshll.u32 %v4916, 16
      %v5255 = vor.u32 %v5252, %v5253
      %v5256 = vsel %vm1518, %v5244, %v5255
      %v5258 = vshrl.u32 %v4917, 16
      %v5260 = vrot.slane %v5258, 7
      %v5261 = vshll.u32 %v4917, 16
      %v5263 = vor.u32 %v5260, %v5261
      %v5264 = vsel %vm1518, %v5252, %v5263
      %v5266 = vsel %vm939, %v5144, 0
      %v5269 = vsel %vm939, %v5152, 0
      %v5272 = vsel %vm939, %v5160, 0
      %v5275 = vsel %vm939, %v5168, 0
      %v5278 = vsel %vm939, %v5176, 0
      %v5281 = vsel %vm939, %v5184, 0
      %v5284 = vsel %vm939, %v5192, 0
      %v5287 = vsel %vm939, %v5200, 0
      %v5290 = vsel %vm939, %v5208, 0
      %v5293 = vsel %vm939, %v5216, 0
      %v5296 = vsel %vm939, %v5224, 0
      %v5299 = vsel %vm939, %v5232, 0
      %v5302 = vsel %vm939, %v5240, 0
      %v5305 = vsel %vm939, %v5248, 0
      %v5308 = vsel %vm939, %v5256, 0
      %v5311 = vsel %vm939, %v5264, 0
      %v5314 = vsel %vm4968, %v4918, 0
      %5316 = vmatprep.subr.bf16.mxu0 0
      %5317 = vmatpush1.bf16.msra.mxu0 %v5314
      %5318 = vmatprep.subr.bf16.mxu0 0
      %5319 = vmatpush1.bf16.msra.mxu0 0
      %5320 = vmatprep.subr.bf16.mxu0 0
      %5321 = vmatpush1.bf16.msra.mxu0 0
      %5322 = vmatprep.subr.bf16.mxu0 0
      %5323 = vmatpush1.bf16.msra.mxu0 0
      %5324 = vmatprep.subr.bf16.mxu0 0
      %5325 = vmatpush1.bf16.msra.mxu0 0
      %5326 = vmatprep.subr.bf16.mxu0 0
      %5327 = vmatpush1.bf16.msra.mxu0 0
      %5328 = vmatprep.subr.bf16.mxu0 0
      %5329 = vmatpush1.bf16.msra.mxu0 0
      %5330 = vmatprep.subr.bf16.mxu0 0
      %5331 = vmatpush1.bf16.msra.mxu0 0
      %5332 = vmatprep.subr.bf16.mxu0 0
      %5333 = vmatpush1.bf16.msra.mxu0 0
      %5334 = vmatprep.subr.bf16.mxu0 0
      %5335 = vmatpush1.bf16.msra.mxu0 0
      %5336 = vmatprep.subr.bf16.mxu0 0
      %5337 = vmatpush1.bf16.msra.mxu0 0
      %5338 = vmatprep.subr.bf16.mxu0 0
      %5339 = vmatpush1.bf16.msra.mxu0 0
      %5340 = vmatprep.subr.bf16.mxu0 0
      %5341 = vmatpush1.bf16.msra.mxu0 0
      %5342 = vmatprep.subr.bf16.mxu0 0
      %5343 = vmatpush1.bf16.msra.mxu0 0
      %5344 = vmatprep.subr.bf16.mxu0 0
      %5345 = vmatpush1.bf16.msra.mxu0 0
      %5346 = vmatprep.subr.bf16.mxu0 0
      %5347 = vmatpush1.bf16.msra.mxu0 0
      %5348 = vmatprep.mubr.bf16.mxu0 0
      %5349 = vmatmul.mubr.bf16.gmra.mrb[0].mxu0 %v5266
      %v5350 = vpop.f32.mrb[0].mxu0
      %v5351 = vadd.f32 %v5007, %v5350
      %v5352 = vpop.f32.mrb[0].mxu0
      %v5353 = vpop.f32.mrb[0].mxu0
      %v5354 = vadd.f32 %v5010, %v5353
      %v5355 = vpop.f32.mrb[0].mxu0
      %5356 = vmatprep.mubr.bf16.mxu0 0
      %5357 = vmatmul.mubr.bf16.gmra.mrb[0].mxu0 %v5269
      %v5358 = vpop.f32.mrb[0].mxu0
      %v5359 = vadd.f32 %v5015, %v5358
      %v5360 = vpop.f32.mrb[0].mxu0
      %v5361 = vpop.f32.mrb[0].mxu0
      %v5362 = vadd.f32 %v5018, %v5361
      %v5363 = vpop.f32.mrb[0].mxu0
      %5364 = vmatprep.mubr.bf16.mxu0 0
      %5365 = vmatmul.mubr.bf16.gmra.mrb[0].mxu0 %v5272
      %v5366 = vpop.f32.mrb[0].mxu0
      %v5367 = vadd.f32 %v5023, %v5366
      %v5368 = vpop.f32.mrb[0].mxu0
      %v5369 = vpop.f32.mrb[0].mxu0
      %v5370 = vadd.f32 %v5026, %v5369
      %v5371 = vpop.f32.mrb[0].mxu0
      %5372 = vmatprep.mubr.bf16.mxu0 0
      %5373 = vmatmul.mubr.bf16.gmra.mrb[0].mxu0 %v5275
      %v5374 = vpop.f32.mrb[0].mxu0
      %v5375 = vadd.f32 %v5031, %v5374
      %v5376 = vpop.f32.mrb[0].mxu0
      %v5377 = vpop.f32.mrb[0].mxu0
      %v5378 = vadd.f32 %v5034, %v5377
      %v5379 = vpop.f32.mrb[0].mxu0
      %5380 = vmatprep.mubr.bf16.mxu0 0
      %5381 = vmatmul.mubr.bf16.gmra.mrb[0].mxu0 %v5278
      %v5382 = vpop.f32.mrb[0].mxu0
      %v5383 = vadd.f32 %v5039, %v5382
      %v5384 = vpop.f32.mrb[0].mxu0
      %v5385 = vpop.f32.mrb[0].mxu0
      %v5386 = vadd.f32 %v5042, %v5385
      %v5387 = vpop.f32.mrb[0].mxu0
      %5388 = vmatprep.mubr.bf16.mxu0 0
      %5389 = vmatmul.mubr.bf16.gmra.mrb[0].mxu0 %v5281
      %v5390 = vpop.f32.mrb[0].mxu0
      %v5391 = vadd.f32 %v5047, %v5390
      %v5392 = vpop.f32.mrb[0].mxu0
      %v5393 = vpop.f32.mrb[0].mxu0
      %v5394 = vadd.f32 %v5050, %v5393
      %v5395 = vpop.f32.mrb[0].mxu0
      %5396 = vmatprep.mubr.bf16.mxu0 0
      %5397 = vmatmul.mubr.bf16.gmra.mrb[0].mxu0 %v5284
      %v5398 = vpop.f32.mrb[0].mxu0
      %v5399 = vadd.f32 %v5055, %v5398
      %v5400 = vpop.f32.mrb[0].mxu0
      %v5401 = vpop.f32.mrb[0].mxu0
      %v5402 = vadd.f32 %v5058, %v5401
      %v5403 = vpop.f32.mrb[0].mxu0
      %5404 = vmatprep.mubr.bf16.mxu0 0
      %5405 = vmatmul.mubr.bf16.gmra.mrb[0].mxu0 %v5287
      %v5406 = vpop.f32.mrb[0].mxu0
      %v5407 = vadd.f32 %v5063, %v5406
      %v5408 = vpop.f32.mrb[0].mxu0
      %v5409 = vpop.f32.mrb[0].mxu0
      %v5410 = vadd.f32 %v5066, %v5409
      %v5411 = vpop.f32.mrb[0].mxu0
      %5412 = vmatprep.mubr.bf16.mxu0 0
      %5413 = vmatmul.mubr.bf16.gmra.mrb[0].mxu0 %v5290
      %v5414 = vpop.f32.mrb[0].mxu0
      %v5415 = vadd.f32 %v5071, %v5414
      %v5416 = vpop.f32.mrb[0].mxu0
      %v5417 = vpop.f32.mrb[0].mxu0
      %v5418 = vadd.f32 %v5074, %v5417
      %v5419 = vpop.f32.mrb[0].mxu0
      %5420 = vmatprep.mubr.bf16.mxu0 0
      %5421 = vmatmul.mubr.bf16.gmra.mrb[0].mxu0 %v5293
      %v5422 = vpop.f32.mrb[0].mxu0
      %v5423 = vadd.f32 %v5079, %v5422
      %v5424 = vpop.f32.mrb[0].mxu0
      %v5425 = vpop.f32.mrb[0].mxu0
      %v5426 = vadd.f32 %v5082, %v5425
      %v5427 = vpop.f32.mrb[0].mxu0
      %5428 = vmatprep.mubr.bf16.mxu0 0
      %5429 = vmatmul.mubr.bf16.gmra.mrb[0].mxu0 %v5296
      %v5430 = vpop.f32.mrb[0].mxu0
      %v5431 = vadd.f32 %v5087, %v5430
      %v5432 = vpop.f32.mrb[0].mxu0
      %v5433 = vpop.f32.mrb[0].mxu0
      %v5434 = vadd.f32 %v5090, %v5433
      %v5435 = vpop.f32.mrb[0].mxu0
      %5436 = vmatprep.mubr.bf16.mxu0 0
      %5437 = vmatmul.mubr.bf16.gmra.mrb[0].mxu0 %v5299
      %v5438 = vpop.f32.mrb[0].mxu0
      %v5439 = vadd.f32 %v5095, %v5438
      %v5440 = vpop.f32.mrb[0].mxu0
      %v5441 = vpop.f32.mrb[0].mxu0
      %v5442 = vadd.f32 %v5098, %v5441
      %v5443 = vpop.f32.mrb[0].mxu0
      %5444 = vmatprep.mubr.bf16.mxu0 0
      %5445 = vmatmul.mubr.bf16.gmra.mrb[0].mxu0 %v5302
      %v5446 = vpop.f32.mrb[0].mxu0
      %v5447 = vadd.f32 %v5103, %v5446
      %v5448 = vpop.f32.mrb[0].mxu0
      %v5449 = vpop.f32.mrb[0].mxu0
      %v5450 = vadd.f32 %v5106, %v5449
      %v5451 = vpop.f32.mrb[0].mxu0
      %5452 = vmatprep.mubr.bf16.mxu0 0
      %5453 = vmatmul.mubr.bf16.gmra.mrb[0].mxu0 %v5305
      %v5454 = vpop.f32.mrb[0].mxu0
      %v5455 = vadd.f32 %v5111, %v5454
      %v5456 = vpop.f32.mrb[0].mxu0
      %v5457 = vpop.f32.mrb[0].mxu0
      %v5458 = vadd.f32 %v5114, %v5457
      %v5459 = vpop.f32.mrb[0].mxu0
      %5460 = vmatprep.mubr.bf16.mxu0 0
      %5461 = vmatmul.mubr.bf16.gmra.mrb[0].mxu0 %v5308
      %v5462 = vpop.f32.mrb[0].mxu0
      %v5463 = vadd.f32 %v5119, %v5462
      %v5464 = vpop.f32.mrb[0].mxu0
      %v5465 = vpop.f32.mrb[0].mxu0
      %v5466 = vadd.f32 %v5122, %v5465
      %v5467 = vpop.f32.mrb[0].mxu0
      %5468 = vmatprep.mubr.bf16.mxu0 0
      %5469 = vmatmul.mubr.bf16.gmra.mrb[0].mxu0 %v5311
      %v5470 = vpop.f32.mrb[0].mxu0
      %v5471 = vadd.f32 %v5127, %v5470
      %v5472 = vpop.f32.mrb[0].mxu0
      %v5473 = vpop.f32.mrb[0].mxu0
      %v5474 = vadd.f32 %v5130, %v5473
      %v5475 = vpop.f32.mrb[0].mxu0
      %5476 = vdwg.mxu0
      %v5477 = vld [vmem:[#allocation3 + $0x8] sm:$0xff]
      %v5478 = vld [vmem:[#allocation3 + $0x10] sm:$0xff]
      %v5479 = vld [vmem:[#allocation3 + $0x18] sm:$0xff]
      %v5480 = vld [vmem:[#allocation3 + $0x20] sm:$0xff]
      %v5481 = vld [vmem:[#allocation3 + $0x28] sm:$0xff]
      %v5482 = vld [vmem:[#allocation3 + $0x30] sm:$0xff]
      %v5483 = vld [vmem:[#allocation3 + $0x38] sm:$0xff]
      %v5484 = vld [vmem:[#allocation3 + $0x40] sm:$0xff]
      %v5485 = vld [vmem:[#allocation3 + $0x48] sm:$0xff]
      %v5486 = vld [vmem:[#allocation3 + $0x50] sm:$0xff]
      %v5487 = vld [vmem:[#allocation3 + $0x58] sm:$0xff]
      %v5488 = vld [vmem:[#allocation3 + $0x60] sm:$0xff]
      %v5489 = vld [vmem:[#allocation3 + $0x68] sm:$0xff]
      %v5490 = vld [vmem:[#allocation3 + $0x70] sm:$0xff]
      %v5491 = vld [vmem:[#allocation3 + $0x78] sm:$0xff]
      %v5492 = vld [vmem:[#allocation3 + $0x80] sm:$0xff]
      %v5493 = vld [vmem:[#allocation3 + $0x88] sm:$0x1]
      %v5494 = vsel %vm2183, %v5477, 0
      %v5495 = vsel %vm2184, %v5478, 0
      %v5496 = vsel %vm2185, %v5479, 0
      %v5497 = vsel %vm2186, %v5480, 0
      %v5498 = vsel %vm2187, %v5481, 0
      %v5499 = vsel %vm2188, %v5482, 0
      %v5500 = vsel %vm2189, %v5483, 0
      %v5501 = vsel %vm2190, %v5484, 0
      %v5502 = vsel %vm2191, %v5485, 0
      %v5503 = vsel %vm2192, %v5486, 0
      %v5504 = vsel %vm2193, %v5487, 0
      %v5505 = vsel %vm2194, %v5488, 0
      %v5506 = vsel %vm2195, %v5489, 0
      %v5507 = vsel %vm2196, %v5490, 0
      %v5508 = vsel %vm2197, %v5491, 0
      %v5509 = vsel %vm2198, %v5492, 0
      %v5510 = vsel %vm2199, %v5493, 0
      %v5511 = vld [vmem:[%s3 + $0x8] sm:$0xf]
      %v5513 = vshrl.u32 %v5494, 16
      %v5515 = vshll.u32 %v5494, 16
      %v5517 = vrot.slane %v5515, 1
      %v5518 = vor.u32 %v5513, %v5517
      %v5520 = vshll.u32 %v5495, 16
      %v5522 = vrot.slane %v5520, 1
      %v5523 = vsel %vm1137, %v5518, %v5522
      %v5524 = vshrl.u32 %v5495, 16
      %v5526 = vor.u32 %v5524, %v5522
      %v5528 = vshll.u32 %v5496, 16
      %v5530 = vrot.slane %v5528, 1
      %v5531 = vsel %vm1137, %v5526, %v5530
      %v5532 = vshrl.u32 %v5496, 16
      %v5534 = vor.u32 %v5532, %v5530
      %v5536 = vshll.u32 %v5497, 16
      %v5538 = vrot.slane %v5536, 1
      %v5539 = vsel %vm1137, %v5534, %v5538
      %v5540 = vshrl.u32 %v5497, 16
      %v5542 = vor.u32 %v5540, %v5538
      %v5544 = vshll.u32 %v5498, 16
      %v5546 = vrot.slane %v5544, 1
      %v5547 = vsel %vm1137, %v5542, %v5546
      %v5548 = vshrl.u32 %v5498, 16
      %v5550 = vor.u32 %v5548, %v5546
      %v5552 = vshll.u32 %v5499, 16
      %v5554 = vrot.slane %v5552, 1
      %v5555 = vsel %vm1137, %v5550, %v5554
      %v5556 = vshrl.u32 %v5499, 16
      %v5558 = vor.u32 %v5556, %v5554
      %v5560 = vshll.u32 %v5500, 16
      %v5562 = vrot.slane %v5560, 1
      %v5563 = vsel %vm1137, %v5558, %v5562
      %v5564 = vshrl.u32 %v5500, 16
      %v5566 = vor.u32 %v5564, %v5562
      %v5568 = vshll.u32 %v5501, 16
      %v5570 = vrot.slane %v5568, 1
      %v5571 = vsel %vm1137, %v5566, %v5570
      %v5572 = vshrl.u32 %v5501, 16
      %v5574 = vor.u32 %v5572, %v5570
      %v5576 = vshll.u32 %v5502, 16
      %v5578 = vrot.slane %v5576, 1
      %v5579 = vsel %vm1137, %v5574, %v5578
      %v5580 = vshrl.u32 %v5502, 16
      %v5582 = vor.u32 %v5580, %v5578
      %v5584 = vshll.u32 %v5503, 16
      %v5586 = vrot.slane %v5584, 1
      %v5587 = vsel %vm1137, %v5582, %v5586
      %v5588 = vshrl.u32 %v5503, 16
      %v5590 = vor.u32 %v5588, %v5586
      %v5592 = vshll.u32 %v5504, 16
      %v5594 = vrot.slane %v5592, 1
      %v5595 = vsel %vm1137, %v5590, %v5594
      %v5596 = vshrl.u32 %v5504, 16
      %v5598 = vor.u32 %v5596, %v5594
      %v5600 = vshll.u32 %v5505, 16
      %v5602 = vrot.slane %v5600, 1
      %v5603 = vsel %vm1137, %v5598, %v5602
      %v5604 = vshrl.u32 %v5505, 16
      %v5606 = vor.u32 %v5604, %v5602
      %v5608 = vshll.u32 %v5506, 16
      %v5610 = vrot.slane %v5608, 1
      %v5611 = vsel %vm1137, %v5606, %v5610
      %v5612 = vshrl.u32 %v5506, 16
      %v5614 = vor.u32 %v5612, %v5610
      %v5616 = vshll.u32 %v5507, 16
      %v5618 = vrot.slane %v5616, 1
      %v5619 = vsel %vm1137, %v5614, %v5618
      %v5620 = vshrl.u32 %v5507, 16
      %v5622 = vor.u32 %v5620, %v5618
      %v5624 = vshll.u32 %v5508, 16
      %v5626 = vrot.slane %v5624, 1
      %v5627 = vsel %vm1137, %v5622, %v5626
      %v5628 = vshrl.u32 %v5508, 16
      %v5630 = vor.u32 %v5628, %v5626
      %v5632 = vshll.u32 %v5509, 16
      %v5634 = vrot.slane %v5632, 1
      %v5635 = vsel %vm1137, %v5630, %v5634
      %v5636 = vshrl.u32 %v5509, 16
      %v5638 = vor.u32 %v5636, %v5634
      %v5640 = vshll.u32 %v5510, 16
      %v5642 = vrot.slane %v5640, 1
      %v5643 = vsel %vm1137, %v5638, %v5642
      %v5645 = vsel %vm939, %v5523, 0
      %v5648 = vsel %vm939, %v5531, 0
      %v5651 = vsel %vm939, %v5539, 0
      %v5654 = vsel %vm939, %v5547, 0
      %v5657 = vsel %vm939, %v5555, 0
      %v5660 = vsel %vm939, %v5563, 0
      %v5663 = vsel %vm939, %v5571, 0
      %v5666 = vsel %vm939, %v5579, 0
      %v5669 = vsel %vm939, %v5587, 0
      %v5672 = vsel %vm939, %v5595, 0
      %v5675 = vsel %vm939, %v5603, 0
      %v5678 = vsel %vm939, %v5611, 0
      %v5681 = vsel %vm939, %v5619, 0
      %v5684 = vsel %vm939, %v5627, 0
      %v5687 = vsel %vm939, %v5635, 0
      %v5690 = vsel %vm939, %v5643, 0
      %v5693 = vsel %vm4968, %v5511, 0
      %5695 = vmatprep.subr.bf16.mxu0 0
      %5696 = vmatpush1.bf16.msra.mxu0 %v5693
      %5697 = vmatprep.subr.bf16.mxu0 0
      %5698 = vmatpush1.bf16.msra.mxu0 0
      %5699 = vmatprep.subr.bf16.mxu0 0
      %5700 = vmatpush1.bf16.msra.mxu0 0
      %5701 = vmatprep.subr.bf16.mxu0 0
      %5702 = vmatpush1.bf16.msra.mxu0 0
      %5703 = vmatprep.subr.bf16.mxu0 0
      %5704 = vmatpush1.bf16.msra.mxu0 0
      %5705 = vmatprep.subr.bf16.mxu0 0
      %5706 = vmatpush1.bf16.msra.mxu0 0
      %5707 = vmatprep.subr.bf16.mxu0 0
      %5708 = vmatpush1.bf16.msra.mxu0 0
      %5709 = vmatprep.subr.bf16.mxu0 0
      %5710 = vmatpush1.bf16.msra.mxu0 0
      %5711 = vmatprep.subr.bf16.mxu0 0
      %5712 = vmatpush1.bf16.msra.mxu0 0
      %5713 = vmatprep.subr.bf16.mxu0 0
      %5714 = vmatpush1.bf16.msra.mxu0 0
      %5715 = vmatprep.subr.bf16.mxu0 0
      %5716 = vmatpush1.bf16.msra.mxu0 0
      %5717 = vmatprep.subr.bf16.mxu0 0
      %5718 = vmatpush1.bf16.msra.mxu0 0
      %5719 = vmatprep.subr.bf16.mxu0 0
      %5720 = vmatpush1.bf16.msra.mxu0 0
      %5721 = vmatprep.subr.bf16.mxu0 0
      %5722 = vmatpush1.bf16.msra.mxu0 0
      %5723 = vmatprep.subr.bf16.mxu0 0
      %5724 = vmatpush1.bf16.msra.mxu0 0
      %5725 = vmatprep.subr.bf16.mxu0 0
      %5726 = vmatpush1.bf16.msra.mxu0 0
      %5727 = vmatprep.mubr.bf16.mxu0 0
      %5728 = vmatmul.mubr.bf16.gmra.mrb[0].mxu0 %v5645
      %v5729 = vpop.f32.mrb[0].mxu0
      %v5730 = vadd.f32 0.0, %v5729
      %v5731 = vpop.f32.mrb[0].mxu0
      %v5732 = vpop.f32.mrb[0].mxu0
      %v5733 = vadd.f32 0.0, %v5732
      %v5734 = vpop.f32.mrb[0].mxu0
      %5735 = vmatprep.mubr.bf16.mxu0 0
      %5736 = vmatmul.mubr.bf16.gmra.mrb[0].mxu0 %v5648
      %v5737 = vpop.f32.mrb[0].mxu0
      %v5738 = vadd.f32 0.0, %v5737
      %v5739 = vpop.f32.mrb[0].mxu0
      %v5740 = vpop.f32.mrb[0].mxu0
      %v5741 = vadd.f32 0.0, %v5740
      %v5742 = vpop.f32.mrb[0].mxu0
      %5743 = vmatprep.mubr.bf16.mxu0 0
      %5744 = vmatmul.mubr.bf16.gmra.mrb[0].mxu0 %v5651
      %v5745 = vpop.f32.mrb[0].mxu0
      %v5746 = vadd.f32 0.0, %v5745
      %v5747 = vpop.f32.mrb[0].mxu0
      %v5748 = vpop.f32.mrb[0].mxu0
      %v5749 = vadd.f32 0.0, %v5748
      %v5750 = vpop.f32.mrb[0].mxu0
      %5751 = vmatprep.mubr.bf16.mxu0 0
      %5752 = vmatmul.mubr.bf16.gmra.mrb[0].mxu0 %v5654
      %v5753 = vpop.f32.mrb[0].mxu0
      %v5754 = vadd.f32 0.0, %v5753
      %v5755 = vpop.f32.mrb[0].mxu0
      %v5756 = vpop.f32.mrb[0].mxu0
      %v5757 = vadd.f32 0.0, %v5756
      %v5758 = vpop.f32.mrb[0].mxu0
      %5759 = vmatprep.mubr.bf16.mxu0 0
      %5760 = vmatmul.mubr.bf16.gmra.mrb[0].mxu0 %v5657
      %v5761 = vpop.f32.mrb[0].mxu0
      %v5762 = vadd.f32 0.0, %v5761
      %v5763 = vpop.f32.mrb[0].mxu0
      %v5764 = vpop.f32.mrb[0].mxu0
      %v5765 = vadd.f32 0.0, %v5764
      %v5766 = vpop.f32.mrb[0].mxu0
      %5767 = vmatprep.mubr.bf16.mxu0 0
      %5768 = vmatmul.mubr.bf16.gmra.mrb[0].mxu0 %v5660
      %v5769 = vpop.f32.mrb[0].mxu0
      %v5770 = vadd.f32 0.0, %v5769
      %v5771 = vpop.f32.mrb[0].mxu0
      %v5772 = vpop.f32.mrb[0].mxu0
      %v5773 = vadd.f32 0.0, %v5772
      %v5774 = vpop.f32.mrb[0].mxu0
      %5775 = vmatprep.mubr.bf16.mxu0 0
      %5776 = vmatmul.mubr.bf16.gmra.mrb[0].mxu0 %v5663
      %v5777 = vpop.f32.mrb[0].mxu0
      %v5778 = vadd.f32 0.0, %v5777
      %v5779 = vpop.f32.mrb[0].mxu0
      %v5780 = vpop.f32.mrb[0].mxu0
      %v5781 = vadd.f32 0.0, %v5780
      %v5782 = vpop.f32.mrb[0].mxu0
      %5783 = vmatprep.mubr.bf16.mxu0 0
      %5784 = vmatmul.mubr.bf16.gmra.mrb[0].mxu0 %v5666
      %v5785 = vpop.f32.mrb[0].mxu0
      %v5786 = vadd.f32 0.0, %v5785
      %v5787 = vpop.f32.mrb[0].mxu0
      %v5788 = vpop.f32.mrb[0].mxu0
      %v5789 = vadd.f32 0.0, %v5788
      %v5790 = vpop.f32.mrb[0].mxu0
      %5791 = vmatprep.mubr.bf16.mxu0 0
      %5792 = vmatmul.mubr.bf16.gmra.mrb[0].mxu0 %v5669
      %v5793 = vpop.f32.mrb[0].mxu0
      %v5794 = vadd.f32 0.0, %v5793
      %v5795 = vpop.f32.mrb[0].mxu0
      %v5796 = vpop.f32.mrb[0].mxu0
      %v5797 = vadd.f32 0.0, %v5796
      %v5798 = vpop.f32.mrb[0].mxu0
      %5799 = vmatprep.mubr.bf16.mxu0 0
      %5800 = vmatmul.mubr.bf16.gmra.mrb[0].mxu0 %v5672
      %v5801 = vpop.f32.mrb[0].mxu0
      %v5802 = vadd.f32 0.0, %v5801
      %v5803 = vpop.f32.mrb[0].mxu0
      %v5804 = vpop.f32.mrb[0].mxu0
      %v5805 = vadd.f32 0.0, %v5804
      %v5806 = vpop.f32.mrb[0].mxu0
      %5807 = vmatprep.mubr.bf16.mxu0 0
      %5808 = vmatmul.mubr.bf16.gmra.mrb[0].mxu0 %v5675
      %v5809 = vpop.f32.mrb[0].mxu0
      %v5810 = vadd.f32 0.0, %v5809
      %v5811 = vpop.f32.mrb[0].mxu0
      %v5812 = vpop.f32.mrb[0].mxu0
      %v5813 = vadd.f32 0.0, %v5812
      %v5814 = vpop.f32.mrb[0].mxu0
      %5815 = vmatprep.mubr.bf16.mxu0 0
      %5816 = vmatmul.mubr.bf16.gmra.mrb[0].mxu0 %v5678
      %v5817 = vpop.f32.mrb[0].mxu0
      %v5818 = vadd.f32 0.0, %v5817
      %v5819 = vpop.f32.mrb[0].mxu0
      %v5820 = vpop.f32.mrb[0].mxu0
      %v5821 = vadd.f32 0.0, %v5820
      %v5822 = vpop.f32.mrb[0].mxu0
      %5823 = vmatprep.mubr.bf16.mxu0 0
      %5824 = vmatmul.mubr.bf16.gmra.mrb[0].mxu0 %v5681
      %v5825 = vpop.f32.mrb[0].mxu0
      %v5826 = vadd.f32 0.0, %v5825
      %v5827 = vpop.f32.mrb[0].mxu0
      %v5828 = vpop.f32.mrb[0].mxu0
      %v5829 = vadd.f32 0.0, %v5828
      %v5830 = vpop.f32.mrb[0].mxu0
      %5831 = vmatprep.mubr.bf16.mxu0 0
      %5832 = vmatmul.mubr.bf16.gmra.mrb[0].mxu0 %v5684
      %v5833 = vpop.f32.mrb[0].mxu0
      %v5834 = vadd.f32 0.0, %v5833
      %v5835 = vpop.f32.mrb[0].mxu0
      %v5836 = vpop.f32.mrb[0].mxu0
      %v5837 = vadd.f32 0.0, %v5836
      %v5838 = vpop.f32.mrb[0].mxu0
      %5839 = vmatprep.mubr.bf16.mxu0 0
      %5840 = vmatmul.mubr.bf16.gmra.mrb[0].mxu0 %v5687
      %v5841 = vpop.f32.mrb[0].mxu0
      %v5842 = vadd.f32 0.0, %v5841
      %v5843 = vpop.f32.mrb[0].mxu0
      %v5844 = vpop.f32.mrb[0].mxu0
      %v5845 = vadd.f32 0.0, %v5844
      %v5846 = vpop.f32.mrb[0].mxu0
      %5847 = vmatprep.mubr.bf16.mxu0 0
      %5848 = vmatmul.mubr.bf16.gmra.mrb[0].mxu0 %v5690
      %v5849 = vpop.f32.mrb[0].mxu0
      %v5850 = vadd.f32 0.0, %v5849
      %v5851 = vpop.f32.mrb[0].mxu0
      %v5852 = vpop.f32.mrb[0].mxu0
      %v5853 = vadd.f32 0.0, %v5852
      %v5854 = vpop.f32.mrb[0].mxu0
      %5855 = vdwg.mxu0
      %v5856 = vadd.f32 %v5351, %v5730
      %v5857 = vadd.f32 %v5354, %v5733
      %v5858 = vadd.f32 %v5359, %v5738
      %v5859 = vadd.f32 %v5362, %v5741
      %v5860 = vadd.f32 %v5367, %v5746
      %v5861 = vadd.f32 %v5370, %v5749
      %v5862 = vadd.f32 %v5375, %v5754
      %v5863 = vadd.f32 %v5378, %v5757
      %v5864 = vadd.f32 %v5383, %v5762
      %v5865 = vadd.f32 %v5386, %v5765
      %v5866 = vadd.f32 %v5391, %v5770
      %v5867 = vadd.f32 %v5394, %v5773
      %v5868 = vadd.f32 %v5399, %v5778
      %v5869 = vadd.f32 %v5402, %v5781
      %v5870 = vadd.f32 %v5407, %v5786
      %v5871 = vadd.f32 %v5410, %v5789
      %v5872 = vadd.f32 %v5415, %v5794
      %v5873 = vadd.f32 %v5418, %v5797
      %v5874 = vadd.f32 %v5423, %v5802
      %v5875 = vadd.f32 %v5426, %v5805
      %v5876 = vadd.f32 %v5431, %v5810
      %v5877 = vadd.f32 %v5434, %v5813
      %v5878 = vadd.f32 %v5439, %v5818
      %v5879 = vadd.f32 %v5442, %v5821
      %v5880 = vadd.f32 %v5447, %v5826
      %v5881 = vadd.f32 %v5450, %v5829
      %v5882 = vadd.f32 %v5455, %v5834
      %v5883 = vadd.f32 %v5458, %v5837
      %v5884 = vadd.f32 %v5463, %v5842
      %v5885 = vadd.f32 %v5466, %v5845
      %v5886 = vadd.f32 %v5471, %v5850
      %v5887 = vadd.f32 %v5474, %v5853
      %v5888 = vld [vmem:[#allocation3 + $0x8] sm:$0x80]
      %v5889 = vld [vmem:[#allocation3 + $0x88] sm:$0xff]
      %v5890 = vsel %vm1265, %v5888, 0
      %v5891 = vsel %vm1266, %v5478, 0
      %v5892 = vsel %vm1267, %v5479, 0
      %v5893 = vsel %vm1268, %v5480, 0
      %v5894 = vsel %vm1269, %v5481, 0
      %v5895 = vsel %vm1270, %v5482, 0
      %v5896 = vsel %vm1271, %v5483, 0
      %v5897 = vsel %vm1272, %v5484, 0
      %v5898 = vsel %vm1273, %v5485, 0
      %v5899 = vsel %vm1274, %v5486, 0
      %v5900 = vsel %vm1275, %v5487, 0
      %v5901 = vsel %vm1276, %v5488, 0
      %v5902 = vsel %vm1277, %v5489, 0
      %v5903 = vsel %vm1278, %v5490, 0
      %v5904 = vsel %vm1279, %v5491, 0
      %v5905 = vsel %vm1280, %v5492, 0
      %v5906 = vsel %vm1281, %v5889, 0
      %v5907 = vld [vmem:[%s3 + $0xc] sm:$0xf]
      %v5909 = vshrl.u32 %v5890, 16
      %v5911 = vrot.slane %v5909, 7
      %v5913 = vshrl.u32 %v5891, 16
      %v5915 = vrot.slane %v5913, 7
      %v5916 = vshll.u32 %v5891, 16
      %v5918 = vor.u32 %v5915, %v5916
      %v5919 = vsel %vm1518, %v5911, %v5918
      %v5921 = vshrl.u32 %v5892, 16
      %v5923 = vrot.slane %v5921, 7
      %v5924 = vshll.u32 %v5892, 16
      %v5926 = vor.u32 %v5923, %v5924
      %v5927 = vsel %vm1518, %v5915, %v5926
      %v5929 = vshrl.u32 %v5893, 16
      %v5931 = vrot.slane %v5929, 7
      %v5932 = vshll.u32 %v5893, 16
      %v5934 = vor.u32 %v5931, %v5932
      %v5935 = vsel %vm1518, %v5923, %v5934
      %v5937 = vshrl.u32 %v5894, 16
      %v5939 = vrot.slane %v5937, 7
      %v5940 = vshll.u32 %v5894, 16
      %v5942 = vor.u32 %v5939, %v5940
      %v5943 = vsel %vm1518, %v5931, %v5942
      %v5945 = vshrl.u32 %v5895, 16
      %v5947 = vrot.slane %v5945, 7
      %v5948 = vshll.u32 %v5895, 16
      %v5950 = vor.u32 %v5947, %v5948
      %v5951 = vsel %vm1518, %v5939, %v5950
      %v5953 = vshrl.u32 %v5896, 16
      %v5955 = vrot.slane %v5953, 7
      %v5956 = vshll.u32 %v5896, 16
      %v5958 = vor.u32 %v5955, %v5956
      %v5959 = vsel %vm1518, %v5947, %v5958
      %v5961 = vshrl.u32 %v5897, 16
      %v5963 = vrot.slane %v5961, 7
      %v5964 = vshll.u32 %v5897, 16
      %v5966 = vor.u32 %v5963, %v5964
      %v5967 = vsel %vm1518, %v5955, %v5966
      %v5969 = vshrl.u32 %v5898, 16
      %v5971 = vrot.slane %v5969, 7
      %v5972 = vshll.u32 %v5898, 16
      %v5974 = vor.u32 %v5971, %v5972
      %v5975 = vsel %vm1518, %v5963, %v5974
      %v5977 = vshrl.u32 %v5899, 16
      %v5979 = vrot.slane %v5977, 7
      %v5980 = vshll.u32 %v5899, 16
      %v5982 = vor.u32 %v5979, %v5980
      %v5983 = vsel %vm1518, %v5971, %v5982
      %v5985 = vshrl.u32 %v5900, 16
      %v5987 = vrot.slane %v5985, 7
      %v5988 = vshll.u32 %v5900, 16
      %v5990 = vor.u32 %v5987, %v5988
      %v5991 = vsel %vm1518, %v5979, %v5990
      %v5993 = vshrl.u32 %v5901, 16
      %v5995 = vrot.slane %v5993, 7
      %v5996 = vshll.u32 %v5901, 16
      %v5998 = vor.u32 %v5995, %v5996
      %v5999 = vsel %vm1518, %v5987, %v5998
      %v6001 = vshrl.u32 %v5902, 16
      %v6003 = vrot.slane %v6001, 7
      %v6004 = vshll.u32 %v5902, 16
      %v6006 = vor.u32 %v6003, %v6004
      %v6007 = vsel %vm1518, %v5995, %v6006
      %v6009 = vshrl.u32 %v5903, 16
      %v6011 = vrot.slane %v6009, 7
      %v6012 = vshll.u32 %v5903, 16
      %v6014 = vor.u32 %v6011, %v6012
      %v6015 = vsel %vm1518, %v6003, %v6014
      %v6017 = vshrl.u32 %v5904, 16
      %v6019 = vrot.slane %v6017, 7
      %v6020 = vshll.u32 %v5904, 16
      %v6022 = vor.u32 %v6019, %v6020
      %v6023 = vsel %vm1518, %v6011, %v6022
      %v6025 = vshrl.u32 %v5905, 16
      %v6027 = vrot.slane %v6025, 7
      %v6028 = vshll.u32 %v5905, 16
      %v6030 = vor.u32 %v6027, %v6028
      %v6031 = vsel %vm1518, %v6019, %v6030
      %v6033 = vshrl.u32 %v5906, 16
      %v6035 = vrot.slane %v6033, 7
      %v6036 = vshll.u32 %v5906, 16
      %v6038 = vor.u32 %v6035, %v6036
      %v6039 = vsel %vm1518, %v6027, %v6038
      %v6041 = vsel %vm939, %v5919, 0
      %v6044 = vsel %vm939, %v5927, 0
      %v6047 = vsel %vm939, %v5935, 0
      %v6050 = vsel %vm939, %v5943, 0
      %v6053 = vsel %vm939, %v5951, 0
      %v6056 = vsel %vm939, %v5959, 0
      %v6059 = vsel %vm939, %v5967, 0
      %v6062 = vsel %vm939, %v5975, 0
      %v6065 = vsel %vm939, %v5983, 0
      %v6068 = vsel %vm939, %v5991, 0
      %v6071 = vsel %vm939, %v5999, 0
      %v6074 = vsel %vm939, %v6007, 0
      %v6077 = vsel %vm939, %v6015, 0
      %v6080 = vsel %vm939, %v6023, 0
      %v6083 = vsel %vm939, %v6031, 0
      %v6086 = vsel %vm939, %v6039, 0
      %v6089 = vsel %vm4968, %v5907, 0
      %6091 = vmatprep.subr.bf16.mxu0 0
      %6092 = vmatpush1.bf16.msra.mxu0 %v6089
      %6093 = vmatprep.subr.bf16.mxu0 0
      %6094 = vmatpush1.bf16.msra.mxu0 0
      %6095 = vmatprep.subr.bf16.mxu0 0
      %6096 = vmatpush1.bf16.msra.mxu0 0
      %6097 = vmatprep.subr.bf16.mxu0 0
      %6098 = vmatpush1.bf16.msra.mxu0 0
      %6099 = vmatprep.subr.bf16.mxu0 0
      %6100 = vmatpush1.bf16.msra.mxu0 0
      %6101 = vmatprep.subr.bf16.mxu0 0
      %6102 = vmatpush1.bf16.msra.mxu0 0
      %6103 = vmatprep.subr.bf16.mxu0 0
      %6104 = vmatpush1.bf16.msra.mxu0 0
      %6105 = vmatprep.subr.bf16.mxu0 0
      %6106 = vmatpush1.bf16.msra.mxu0 0
      %6107 = vmatprep.subr.bf16.mxu0 0
      %6108 = vmatpush1.bf16.msra.mxu0 0
      %6109 = vmatprep.subr.bf16.mxu0 0
      %6110 = vmatpush1.bf16.msra.mxu0 0
      %6111 = vmatprep.subr.bf16.mxu0 0
      %6112 = vmatpush1.bf16.msra.mxu0 0
      %6113 = vmatprep.subr.bf16.mxu0 0
      %6114 = vmatpush1.bf16.msra.mxu0 0
      %6115 = vmatprep.subr.bf16.mxu0 0
      %6116 = vmatpush1.bf16.msra.mxu0 0
      %6117 = vmatprep.subr.bf16.mxu0 0
      %6118 = vmatpush1.bf16.msra.mxu0 0
      %6119 = vmatprep.subr.bf16.mxu0 0
      %6120 = vmatpush1.bf16.msra.mxu0 0
      %6121 = vmatprep.subr.bf16.mxu0 0
      %6122 = vmatpush1.bf16.msra.mxu0 0
      %6123 = vmatprep.mubr.bf16.mxu0 0
      %6124 = vmatmul.mubr.bf16.gmra.mrb[0].mxu0 %v6041
      %v6125 = vpop.f32.mrb[0].mxu0
      %v6126 = vadd.f32 0.0, %v6125
      %v6127 = vpop.f32.mrb[0].mxu0
      %v6128 = vpop.f32.mrb[0].mxu0
      %v6129 = vadd.f32 0.0, %v6128
      %v6130 = vpop.f32.mrb[0].mxu0
      %6131 = vmatprep.mubr.bf16.mxu0 0
      %6132 = vmatmul.mubr.bf16.gmra.mrb[0].mxu0 %v6044
      %v6133 = vpop.f32.mrb[0].mxu0
      %v6134 = vadd.f32 0.0, %v6133
      %v6135 = vpop.f32.mrb[0].mxu0
      %v6136 = vpop.f32.mrb[0].mxu0
      %v6137 = vadd.f32 0.0, %v6136
      %v6138 = vpop.f32.mrb[0].mxu0
      %6139 = vmatprep.mubr.bf16.mxu0 0
      %6140 = vmatmul.mubr.bf16.gmra.mrb[0].mxu0 %v6047
      %v6141 = vpop.f32.mrb[0].mxu0
      %v6142 = vadd.f32 0.0, %v6141
      %v6143 = vpop.f32.mrb[0].mxu0
      %v6144 = vpop.f32.mrb[0].mxu0
      %v6145 = vadd.f32 0.0, %v6144
      %v6146 = vpop.f32.mrb[0].mxu0
      %6147 = vmatprep.mubr.bf16.mxu0 0
      %6148 = vmatmul.mubr.bf16.gmra.mrb[0].mxu0 %v6050
      %v6149 = vpop.f32.mrb[0].mxu0
      %v6150 = vadd.f32 0.0, %v6149
      %v6151 = vpop.f32.mrb[0].mxu0
      %v6152 = vpop.f32.mrb[0].mxu0
      %v6153 = vadd.f32 0.0, %v6152
      %v6154 = vpop.f32.mrb[0].mxu0
      %6155 = vmatprep.mubr.bf16.mxu0 0
      %6156 = vmatmul.mubr.bf16.gmra.mrb[0].mxu0 %v6053
      %v6157 = vpop.f32.mrb[0].mxu0
      %v6158 = vadd.f32 0.0, %v6157
      %v6159 = vpop.f32.mrb[0].mxu0
      %v6160 = vpop.f32.mrb[0].mxu0
      %v6161 = vadd.f32 0.0, %v6160
      %v6162 = vpop.f32.mrb[0].mxu0
      %6163 = vmatprep.mubr.bf16.mxu0 0
      %6164 = vmatmul.mubr.bf16.gmra.mrb[0].mxu0 %v6056
      %v6165 = vpop.f32.mrb[0].mxu0
      %v6166 = vadd.f32 0.0, %v6165
      %v6167 = vpop.f32.mrb[0].mxu0
      %v6168 = vpop.f32.mrb[0].mxu0
      %v6169 = vadd.f32 0.0, %v6168
      %v6170 = vpop.f32.mrb[0].mxu0
      %6171 = vmatprep.mubr.bf16.mxu0 0
      %6172 = vmatmul.mubr.bf16.gmra.mrb[0].mxu0 %v6059
      %v6173 = vpop.f32.mrb[0].mxu0
      %v6174 = vadd.f32 0.0, %v6173
      %v6175 = vpop.f32.mrb[0].mxu0
      %v6176 = vpop.f32.mrb[0].mxu0
      %v6177 = vadd.f32 0.0, %v6176
      %v6178 = vpop.f32.mrb[0].mxu0
      %6179 = vmatprep.mubr.bf16.mxu0 0
      %6180 = vmatmul.mubr.bf16.gmra.mrb[0].mxu0 %v6062
      %v6181 = vpop.f32.mrb[0].mxu0
      %v6182 = vadd.f32 0.0, %v6181
      %v6183 = vpop.f32.mrb[0].mxu0
      %v6184 = vpop.f32.mrb[0].mxu0
      %v6185 = vadd.f32 0.0, %v6184
      %v6186 = vpop.f32.mrb[0].mxu0
      %6187 = vmatprep.mubr.bf16.mxu0 0
      %6188 = vmatmul.mubr.bf16.gmra.mrb[0].mxu0 %v6065
      %v6189 = vpop.f32.mrb[0].mxu0
      %v6190 = vadd.f32 0.0, %v6189
      %v6191 = vpop.f32.mrb[0].mxu0
      %v6192 = vpop.f32.mrb[0].mxu0
      %v6193 = vadd.f32 0.0, %v6192
      %v6194 = vpop.f32.mrb[0].mxu0
      %6195 = vmatprep.mubr.bf16.mxu0 0
      %6196 = vmatmul.mubr.bf16.gmra.mrb[0].mxu0 %v6068
      %v6197 = vpop.f32.mrb[0].mxu0
      %v6198 = vadd.f32 0.0, %v6197
      %v6199 = vpop.f32.mrb[0].mxu0
      %v6200 = vpop.f32.mrb[0].mxu0
      %v6201 = vadd.f32 0.0, %v6200
      %v6202 = vpop.f32.mrb[0].mxu0
      %6203 = vmatprep.mubr.bf16.mxu0 0
      %6204 = vmatmul.mubr.bf16.gmra.mrb[0].mxu0 %v6071
      %v6205 = vpop.f32.mrb[0].mxu0
      %v6206 = vadd.f32 0.0, %v6205
      %v6207 = vpop.f32.mrb[0].mxu0
      %v6208 = vpop.f32.mrb[0].mxu0
      %v6209 = vadd.f32 0.0, %v6208
      %v6210 = vpop.f32.mrb[0].mxu0
      %6211 = vmatprep.mubr.bf16.mxu0 0
      %6212 = vmatmul.mubr.bf16.gmra.mrb[0].mxu0 %v6074
      %v6213 = vpop.f32.mrb[0].mxu0
      %v6214 = vadd.f32 0.0, %v6213
      %v6215 = vpop.f32.mrb[0].mxu0
      %v6216 = vpop.f32.mrb[0].mxu0
      %v6217 = vadd.f32 0.0, %v6216
      %v6218 = vpop.f32.mrb[0].mxu0
      %6219 = vmatprep.mubr.bf16.mxu0 0
      %6220 = vmatmul.mubr.bf16.gmra.mrb[0].mxu0 %v6077
      %v6221 = vpop.f32.mrb[0].mxu0
      %v6222 = vadd.f32 0.0, %v6221
      %v6223 = vpop.f32.mrb[0].mxu0
      %v6224 = vpop.f32.mrb[0].mxu0
      %v6225 = vadd.f32 0.0, %v6224
      %v6226 = vpop.f32.mrb[0].mxu0
      %6227 = vmatprep.mubr.bf16.mxu0 0
      %6228 = vmatmul.mubr.bf16.gmra.mrb[0].mxu0 %v6080
      %v6229 = vpop.f32.mrb[0].mxu0
      %v6230 = vadd.f32 0.0, %v6229
      %v6231 = vpop.f32.mrb[0].mxu0
      %v6232 = vpop.f32.mrb[0].mxu0
      %v6233 = vadd.f32 0.0, %v6232
      %v6234 = vpop.f32.mrb[0].mxu0
      %6235 = vmatprep.mubr.bf16.mxu0 0
      %6236 = vmatmul.mubr.bf16.gmra.mrb[0].mxu0 %v6083
      %v6237 = vpop.f32.mrb[0].mxu0
      %v6238 = vadd.f32 0.0, %v6237
      %v6239 = vpop.f32.mrb[0].mxu0
      %v6240 = vpop.f32.mrb[0].mxu0
      %v6241 = vadd.f32 0.0, %v6240
      %v6242 = vpop.f32.mrb[0].mxu0
      %6243 = vmatprep.mubr.bf16.mxu0 0
      %6244 = vmatmul.mubr.bf16.gmra.mrb[0].mxu0 %v6086
      %v6245 = vpop.f32.mrb[0].mxu0
      %v6246 = vadd.f32 0.0, %v6245
      %v6247 = vpop.f32.mrb[0].mxu0
      %v6248 = vpop.f32.mrb[0].mxu0
      %v6249 = vadd.f32 0.0, %v6248
      %v6250 = vpop.f32.mrb[0].mxu0
      %6251 = vdwg.mxu0
      %v6252 = vadd.f32 %v5856, %v6126
      %v6253 = vadd.f32 %v5857, %v6129
      %v6254 = vadd.f32 %v5858, %v6134
      %v6255 = vadd.f32 %v5859, %v6137
      %v6256 = vadd.f32 %v5860, %v6142
      %v6257 = vadd.f32 %v5861, %v6145
      %v6258 = vadd.f32 %v5862, %v6150
      %v6259 = vadd.f32 %v5863, %v6153
      %v6260 = vadd.f32 %v5864, %v6158
      %v6261 = vadd.f32 %v5865, %v6161
      %v6262 = vadd.f32 %v5866, %v6166
      %v6263 = vadd.f32 %v5867, %v6169
      %v6264 = vadd.f32 %v5868, %v6174
      %v6265 = vadd.f32 %v5869, %v6177
      %v6266 = vadd.f32 %v5870, %v6182
      %v6267 = vadd.f32 %v5871, %v6185
      %v6268 = vadd.f32 %v5872, %v6190
      %v6269 = vadd.f32 %v5873, %v6193
      %v6270 = vadd.f32 %v5874, %v6198
      %v6271 = vadd.f32 %v5875, %v6201
      %v6272 = vadd.f32 %v5876, %v6206
      %v6273 = vadd.f32 %v5877, %v6209
      %v6274 = vadd.f32 %v5878, %v6214
      %v6275 = vadd.f32 %v5879, %v6217
      %v6276 = vadd.f32 %v5880, %v6222
      %v6277 = vadd.f32 %v5881, %v6225
      %v6278 = vadd.f32 %v5882, %v6230
      %v6279 = vadd.f32 %v5883, %v6233
      %v6280 = vadd.f32 %v5884, %v6238
      %v6281 = vadd.f32 %v5885, %v6241
      %v6282 = vadd.f32 %v5886, %v6246
      %v6283 = vadd.f32 %v5887, %v6249
      %v6284 = vld [vmem:[%s3 + $0x10] sm:$0xf]
      %v6286 = vsel %vm939, %v5478, 0
      %v6289 = vsel %vm939, %v5479, 0
      %v6292 = vsel %vm939, %v5480, 0
      %v6295 = vsel %vm939, %v5481, 0
      %v6298 = vsel %vm939, %v5482, 0
      %v6301 = vsel %vm939, %v5483, 0
      %v6304 = vsel %vm939, %v5484, 0
      %v6307 = vsel %vm939, %v5485, 0
      %v6310 = vsel %vm939, %v5486, 0
      %v6313 = vsel %vm939, %v5487, 0
      %v6316 = vsel %vm939, %v5488, 0
      %v6319 = vsel %vm939, %v5489, 0
      %v6322 = vsel %vm939, %v5490, 0
      %v6325 = vsel %vm939, %v5491, 0
      %v6328 = vsel %vm939, %v5492, 0
      %v6331 = vsel %vm939, %v5889, 0
      %v6334 = vsel %vm4968, %v6284, 0
      %6336 = vmatprep.subr.bf16.mxu0 0
      %6337 = vmatpush1.bf16.msra.mxu0 %v6334
      %6338 = vmatprep.subr.bf16.mxu0 0
      %6339 = vmatpush1.bf16.msra.mxu0 0
      %6340 = vmatprep.subr.bf16.mxu0 0
      %6341 = vmatpush1.bf16.msra.mxu0 0
      %6342 = vmatprep.subr.bf16.mxu0 0
      %6343 = vmatpush1.bf16.msra.mxu0 0
      %6344 = vmatprep.subr.bf16.mxu0 0
      %6345 = vmatpush1.bf16.msra.mxu0 0
      %6346 = vmatprep.subr.bf16.mxu0 0
      %6347 = vmatpush1.bf16.msra.mxu0 0
      %6348 = vmatprep.subr.bf16.mxu0 0
      %6349 = vmatpush1.bf16.msra.mxu0 0
      %6350 = vmatprep.subr.bf16.mxu0 0
      %6351 = vmatpush1.bf16.msra.mxu0 0
      %6352 = vmatprep.subr.bf16.mxu0 0
      %6353 = vmatpush1.bf16.msra.mxu0 0
      %6354 = vmatprep.subr.bf16.mxu0 0
      %6355 = vmatpush1.bf16.msra.mxu0 0
      %6356 = vmatprep.subr.bf16.mxu0 0
      %6357 = vmatpush1.bf16.msra.mxu0 0
      %6358 = vmatprep.subr.bf16.mxu0 0
      %6359 = vmatpush1.bf16.msra.mxu0 0
      %6360 = vmatprep.subr.bf16.mxu0 0
      %6361 = vmatpush1.bf16.msra.mxu0 0
      %6362 = vmatprep.subr.bf16.mxu0 0
      %6363 = vmatpush1.bf16.msra.mxu0 0
      %6364 = vmatprep.subr.bf16.mxu0 0
      %6365 = vmatpush1.bf16.msra.mxu0 0
      %6366 = vmatprep.subr.bf16.mxu0 0
      %6367 = vmatpush1.bf16.msra.mxu0 0
      %6368 = vmatprep.mubr.bf16.mxu0 0
      %6369 = vmatmul.mubr.bf16.gmra.mrb[0].mxu0 %v6286
      %v6370 = vpop.f32.mrb[0].mxu0
      %v6371 = vadd.f32 0.0, %v6370
      %v6372 = vpop.f32.mrb[0].mxu0
      %v6373 = vpop.f32.mrb[0].mxu0
      %v6374 = vadd.f32 0.0, %v6373
      %v6375 = vpop.f32.mrb[0].mxu0
      %6376 = vmatprep.mubr.bf16.mxu0 0
      %6377 = vmatmul.mubr.bf16.gmra.mrb[0].mxu0 %v6289
      %v6378 = vpop.f32.mrb[0].mxu0
      %v6379 = vadd.f32 0.0, %v6378
      %v6380 = vpop.f32.mrb[0].mxu0
      %v6381 = vpop.f32.mrb[0].mxu0
      %v6382 = vadd.f32 0.0, %v6381
      %v6383 = vpop.f32.mrb[0].mxu0
      %6384 = vmatprep.mubr.bf16.mxu0 0
      %6385 = vmatmul.mubr.bf16.gmra.mrb[0].mxu0 %v6292
      %v6386 = vpop.f32.mrb[0].mxu0
      %v6387 = vadd.f32 0.0, %v6386
      %v6388 = vpop.f32.mrb[0].mxu0
      %v6389 = vpop.f32.mrb[0].mxu0
      %v6390 = vadd.f32 0.0, %v6389
      %v6391 = vpop.f32.mrb[0].mxu0
      %6392 = vmatprep.mubr.bf16.mxu0 0
      %6393 = vmatmul.mubr.bf16.gmra.mrb[0].mxu0 %v6295
      %v6394 = vpop.f32.mrb[0].mxu0
      %v6395 = vadd.f32 0.0, %v6394
      %v6396 = vpop.f32.mrb[0].mxu0
      %v6397 = vpop.f32.mrb[0].mxu0
      %v6398 = vadd.f32 0.0, %v6397
      %v6399 = vpop.f32.mrb[0].mxu0
      %6400 = vmatprep.mubr.bf16.mxu0 0
      %6401 = vmatmul.mubr.bf16.gmra.mrb[0].mxu0 %v6298
      %v6402 = vpop.f32.mrb[0].mxu0
      %v6403 = vadd.f32 0.0, %v6402
      %v6404 = vpop.f32.mrb[0].mxu0
      %v6405 = vpop.f32.mrb[0].mxu0
      %v6406 = vadd.f32 0.0, %v6405
      %v6407 = vpop.f32.mrb[0].mxu0
      %6408 = vmatprep.mubr.bf16.mxu0 0
      %6409 = vmatmul.mubr.bf16.gmra.mrb[0].mxu0 %v6301
      %v6410 = vpop.f32.mrb[0].mxu0
      %v6411 = vadd.f32 0.0, %v6410
      %v6412 = vpop.f32.mrb[0].mxu0
      %v6413 = vpop.f32.mrb[0].mxu0
      %v6414 = vadd.f32 0.0, %v6413
      %v6415 = vpop.f32.mrb[0].mxu0
      %6416 = vmatprep.mubr.bf16.mxu0 0
      %6417 = vmatmul.mubr.bf16.gmra.mrb[0].mxu0 %v6304
      %v6418 = vpop.f32.mrb[0].mxu0
      %v6419 = vadd.f32 0.0, %v6418
      %v6420 = vpop.f32.mrb[0].mxu0
      %v6421 = vpop.f32.mrb[0].mxu0
      %v6422 = vadd.f32 0.0, %v6421
      %v6423 = vpop.f32.mrb[0].mxu0
      %6424 = vmatprep.mubr.bf16.mxu0 0
      %6425 = vmatmul.mubr.bf16.gmra.mrb[0].mxu0 %v6307
      %v6426 = vpop.f32.mrb[0].mxu0
      %v6427 = vadd.f32 0.0, %v6426
      %v6428 = vpop.f32.mrb[0].mxu0
      %v6429 = vpop.f32.mrb[0].mxu0
      %v6430 = vadd.f32 0.0, %v6429
      %v6431 = vpop.f32.mrb[0].mxu0
      %6432 = vmatprep.mubr.bf16.mxu0 0
      %6433 = vmatmul.mubr.bf16.gmra.mrb[0].mxu0 %v6310
      %v6434 = vpop.f32.mrb[0].mxu0
      %v6435 = vadd.f32 0.0, %v6434
      %v6436 = vpop.f32.mrb[0].mxu0
      %v6437 = vpop.f32.mrb[0].mxu0
      %v6438 = vadd.f32 0.0, %v6437
      %v6439 = vpop.f32.mrb[0].mxu0
      %6440 = vmatprep.mubr.bf16.mxu0 0
      %6441 = vmatmul.mubr.bf16.gmra.mrb[0].mxu0 %v6313
      %v6442 = vpop.f32.mrb[0].mxu0
      %v6443 = vadd.f32 0.0, %v6442
      %v6444 = vpop.f32.mrb[0].mxu0
      %v6445 = vpop.f32.mrb[0].mxu0
      %v6446 = vadd.f32 0.0, %v6445
      %v6447 = vpop.f32.mrb[0].mxu0
      %6448 = vmatprep.mubr.bf16.mxu0 0
      %6449 = vmatmul.mubr.bf16.gmra.mrb[0].mxu0 %v6316
      %v6450 = vpop.f32.mrb[0].mxu0
      %v6451 = vadd.f32 0.0, %v6450
      %v6452 = vpop.f32.mrb[0].mxu0
      %v6453 = vpop.f32.mrb[0].mxu0
      %v6454 = vadd.f32 0.0, %v6453
      %v6455 = vpop.f32.mrb[0].mxu0
      %6456 = vmatprep.mubr.bf16.mxu0 0
      %6457 = vmatmul.mubr.bf16.gmra.mrb[0].mxu0 %v6319
      %v6458 = vpop.f32.mrb[0].mxu0
      %v6459 = vadd.f32 0.0, %v6458
      %v6460 = vpop.f32.mrb[0].mxu0
      %v6461 = vpop.f32.mrb[0].mxu0
      %v6462 = vadd.f32 0.0, %v6461
      %v6463 = vpop.f32.mrb[0].mxu0
      %6464 = vmatprep.mubr.bf16.mxu0 0
      %6465 = vmatmul.mubr.bf16.gmra.mrb[0].mxu0 %v6322
      %v6466 = vpop.f32.mrb[0].mxu0
      %v6467 = vadd.f32 0.0, %v6466
      %v6468 = vpop.f32.mrb[0].mxu0
      %v6469 = vpop.f32.mrb[0].mxu0
      %v6470 = vadd.f32 0.0, %v6469
      %v6471 = vpop.f32.mrb[0].mxu0
      %6472 = vmatprep.mubr.bf16.mxu0 0
      %6473 = vmatmul.mubr.bf16.gmra.mrb[0].mxu0 %v6325
      %v6474 = vpop.f32.mrb[0].mxu0
      %v6475 = vadd.f32 0.0, %v6474
      %v6476 = vpop.f32.mrb[0].mxu0
      %v6477 = vpop.f32.mrb[0].mxu0
      %v6478 = vadd.f32 0.0, %v6477
      %v6479 = vpop.f32.mrb[0].mxu0
      %6480 = vmatprep.mubr.bf16.mxu0 0
      %6481 = vmatmul.mubr.bf16.gmra.mrb[0].mxu0 %v6328
      %v6482 = vpop.f32.mrb[0].mxu0
      %v6483 = vadd.f32 0.0, %v6482
      %v6484 = vpop.f32.mrb[0].mxu0
      %v6485 = vpop.f32.mrb[0].mxu0
      %v6486 = vadd.f32 0.0, %v6485
      %v6487 = vpop.f32.mrb[0].mxu0
      %6488 = vmatprep.mubr.bf16.mxu0 0
      %6489 = vmatmul.mubr.bf16.gmra.mrb[0].mxu0 %v6331
      %v6490 = vpop.f32.mrb[0].mxu0
      %v6491 = vadd.f32 0.0, %v6490
      %v6492 = vpop.f32.mrb[0].mxu0
      %v6493 = vpop.f32.mrb[0].mxu0
      %v6494 = vadd.f32 0.0, %v6493
      %v6495 = vpop.f32.mrb[0].mxu0
      %6496 = vdwg.mxu0
      %v6497 = vadd.f32 %v6252, %v6371
      %v6498 = vadd.f32 %v6253, %v6374
      %v6499 = vadd.f32 %v6254, %v6379
      %v6500 = vadd.f32 %v6255, %v6382
      %v6501 = vadd.f32 %v6256, %v6387
      %v6502 = vadd.f32 %v6257, %v6390
      %v6503 = vadd.f32 %v6258, %v6395
      %v6504 = vadd.f32 %v6259, %v6398
      %v6505 = vadd.f32 %v6260, %v6403
      %v6506 = vadd.f32 %v6261, %v6406
      %v6507 = vadd.f32 %v6262, %v6411
      %v6508 = vadd.f32 %v6263, %v6414
      %v6509 = vadd.f32 %v6264, %v6419
      %v6510 = vadd.f32 %v6265, %v6422
      %v6511 = vadd.f32 %v6266, %v6427
      %v6512 = vadd.f32 %v6267, %v6430
      %v6513 = vadd.f32 %v6268, %v6435
      %v6514 = vadd.f32 %v6269, %v6438
      %v6515 = vadd.f32 %v6270, %v6443
      %v6516 = vadd.f32 %v6271, %v6446
      %v6517 = vadd.f32 %v6272, %v6451
      %v6518 = vadd.f32 %v6273, %v6454
      %v6519 = vadd.f32 %v6274, %v6459
      %v6520 = vadd.f32 %v6275, %v6462
      %v6521 = vadd.f32 %v6276, %v6467
      %v6522 = vadd.f32 %v6277, %v6470
      %v6523 = vadd.f32 %v6278, %v6475
      %v6524 = vadd.f32 %v6279, %v6478
      %v6525 = vadd.f32 %v6280, %v6483
      %v6526 = vadd.f32 %v6281, %v6486
      %v6527 = vadd.f32 %v6282, %v6491
      %v6528 = vadd.f32 %v6283, %v6494
      %v6529 = vld [vmem:[#allocation3 + $0x10] sm:$0xff]
      %v6530 = vld [vmem:[#allocation3 + $0x18] sm:$0xff]
      %v6531 = vld [vmem:[#allocation3 + $0x20] sm:$0xff]
      %v6532 = vld [vmem:[#allocation3 + $0x28] sm:$0xff]
      %v6533 = vld [vmem:[#allocation3 + $0x30] sm:$0xff]
      %v6534 = vld [vmem:[#allocation3 + $0x38] sm:$0xff]
      %v6535 = vld [vmem:[#allocation3 + $0x40] sm:$0xff]
      %v6536 = vld [vmem:[#allocation3 + $0x48] sm:$0xff]
      %v6537 = vld [vmem:[#allocation3 + $0x50] sm:$0xff]
      %v6538 = vld [vmem:[#allocation3 + $0x58] sm:$0xff]
      %v6539 = vld [vmem:[#allocation3 + $0x60] sm:$0xff]
      %v6540 = vld [vmem:[#allocation3 + $0x68] sm:$0xff]
      %v6541 = vld [vmem:[#allocation3 + $0x70] sm:$0xff]
      %v6542 = vld [vmem:[#allocation3 + $0x78] sm:$0xff]
      %v6543 = vld [vmem:[#allocation3 + $0x80] sm:$0xff]
      %v6544 = vld [vmem:[#allocation3 + $0x88] sm:$0xff]
      %v6545 = vld [vmem:[#allocation3 + $0x90] sm:$0x1]
      %v6546 = vsel %vm2183, %v6529, 0
      %v6547 = vsel %vm2184, %v6530, 0
      %v6548 = vsel %vm2185, %v6531, 0
      %v6549 = vsel %vm2186, %v6532, 0
      %v6550 = vsel %vm2187, %v6533, 0
      %v6551 = vsel %vm2188, %v6534, 0
      %v6552 = vsel %vm2189, %v6535, 0
      %v6553 = vsel %vm2190, %v6536, 0
      %v6554 = vsel %vm2191, %v6537, 0
      %v6555 = vsel %vm2192, %v6538, 0
      %v6556 = vsel %vm2193, %v6539, 0
      %v6557 = vsel %vm2194, %v6540, 0
      %v6558 = vsel %vm2195, %v6541, 0
      %v6559 = vsel %vm2196, %v6542, 0
      %v6560 = vsel %vm2197, %v6543, 0
      %v6561 = vsel %vm2198, %v6544, 0
      %v6562 = vsel %vm2199, %v6545, 0
      %v6563 = vld [vmem:[%s3 + $0x14] sm:$0xf]
      %v6565 = vshrl.u32 %v6546, 16
      %v6567 = vshll.u32 %v6546, 16
      %v6569 = vrot.slane %v6567, 1
      %v6570 = vor.u32 %v6565, %v6569
      %v6572 = vshll.u32 %v6547, 16
      %v6574 = vrot.slane %v6572, 1
      %v6575 = vsel %vm1137, %v6570, %v6574
      %v6576 = vshrl.u32 %v6547, 16
      %v6578 = vor.u32 %v6576, %v6574
      %v6580 = vshll.u32 %v6548, 16
      %v6582 = vrot.slane %v6580, 1
      %v6583 = vsel %vm1137, %v6578, %v6582
      %v6584 = vshrl.u32 %v6548, 16
      %v6586 = vor.u32 %v6584, %v6582
      %v6588 = vshll.u32 %v6549, 16
      %v6590 = vrot.slane %v6588, 1
      %v6591 = vsel %vm1137, %v6586, %v6590
      %v6592 = vshrl.u32 %v6549, 16
      %v6594 = vor.u32 %v6592, %v6590
      %v6596 = vshll.u32 %v6550, 16
      %v6598 = vrot.slane %v6596, 1
      %v6599 = vsel %vm1137, %v6594, %v6598
      %v6600 = vshrl.u32 %v6550, 16
      %v6602 = vor.u32 %v6600, %v6598
      %v6604 = vshll.u32 %v6551, 16
      %v6606 = vrot.slane %v6604, 1
      %v6607 = vsel %vm1137, %v6602, %v6606
      %v6608 = vshrl.u32 %v6551, 16
      %v6610 = vor.u32 %v6608, %v6606
      %v6612 = vshll.u32 %v6552, 16
      %v6614 = vrot.slane %v6612, 1
      %v6615 = vsel %vm1137, %v6610, %v6614
      %v6616 = vshrl.u32 %v6552, 16
      %v6618 = vor.u32 %v6616, %v6614
      %v6620 = vshll.u32 %v6553, 16
      %v6622 = vrot.slane %v6620, 1
      %v6623 = vsel %vm1137, %v6618, %v6622
      %v6624 = vshrl.u32 %v6553, 16
      %v6626 = vor.u32 %v6624, %v6622
      %v6628 = vshll.u32 %v6554, 16
      %v6630 = vrot.slane %v6628, 1
      %v6631 = vsel %vm1137, %v6626, %v6630
      %v6632 = vshrl.u32 %v6554, 16
      %v6634 = vor.u32 %v6632, %v6630
      %v6636 = vshll.u32 %v6555, 16
      %v6638 = vrot.slane %v6636, 1
      %v6639 = vsel %vm1137, %v6634, %v6638
      %v6640 = vshrl.u32 %v6555, 16
      %v6642 = vor.u32 %v6640, %v6638
      %v6644 = vshll.u32 %v6556, 16
      %v6646 = vrot.slane %v6644, 1
      %v6647 = vsel %vm1137, %v6642, %v6646
      %v6648 = vshrl.u32 %v6556, 16
      %v6650 = vor.u32 %v6648, %v6646
      %v6652 = vshll.u32 %v6557, 16
      %v6654 = vrot.slane %v6652, 1
      %v6655 = vsel %vm1137, %v6650, %v6654
      %v6656 = vshrl.u32 %v6557, 16
      %v6658 = vor.u32 %v6656, %v6654
      %v6660 = vshll.u32 %v6558, 16
      %v6662 = vrot.slane %v6660, 1
      %v6663 = vsel %vm1137, %v6658, %v6662
      %v6664 = vshrl.u32 %v6558, 16
      %v6666 = vor.u32 %v6664, %v6662
      %v6668 = vshll.u32 %v6559, 16
      %v6670 = vrot.slane %v6668, 1
      %v6671 = vsel %vm1137, %v6666, %v6670
      %v6672 = vshrl.u32 %v6559, 16
      %v6674 = vor.u32 %v6672, %v6670
      %v6676 = vshll.u32 %v6560, 16
      %v6678 = vrot.slane %v6676, 1
      %v6679 = vsel %vm1137, %v6674, %v6678
      %v6680 = vshrl.u32 %v6560, 16
      %v6682 = vor.u32 %v6680, %v6678
      %v6684 = vshll.u32 %v6561, 16
      %v6686 = vrot.slane %v6684, 1
      %v6687 = vsel %vm1137, %v6682, %v6686
      %v6688 = vshrl.u32 %v6561, 16
      %v6690 = vor.u32 %v6688, %v6686
      %v6692 = vshll.u32 %v6562, 16
      %v6694 = vrot.slane %v6692, 1
      %v6695 = vsel %vm1137, %v6690, %v6694
      %v6697 = vsel %vm939, %v6575, 0
      %v6700 = vsel %vm939, %v6583, 0
      %v6703 = vsel %vm939, %v6591, 0
      %v6706 = vsel %vm939, %v6599, 0
      %v6709 = vsel %vm939, %v6607, 0
      %v6712 = vsel %vm939, %v6615, 0
      %v6715 = vsel %vm939, %v6623, 0
      %v6718 = vsel %vm939, %v6631, 0
      %v6721 = vsel %vm939, %v6639, 0
      %v6724 = vsel %vm939, %v6647, 0
      %v6727 = vsel %vm939, %v6655, 0
      %v6730 = vsel %vm939, %v6663, 0
      %v6733 = vsel %vm939, %v6671, 0
      %v6736 = vsel %vm939, %v6679, 0
      %v6739 = vsel %vm939, %v6687, 0
      %v6742 = vsel %vm939, %v6695, 0
      %v6745 = vsel %vm4968, %v6563, 0
      %6747 = vmatprep.subr.bf16.mxu0 0
      %6748 = vmatpush1.bf16.msra.mxu0 %v6745
      %6749 = vmatprep.subr.bf16.mxu0 0
      %6750 = vmatpush1.bf16.msra.mxu0 0
      %6751 = vmatprep.subr.bf16.mxu0 0
      %6752 = vmatpush1.bf16.msra.mxu0 0
      %6753 = vmatprep.subr.bf16.mxu0 0
      %6754 = vmatpush1.bf16.msra.mxu0 0
      %6755 = vmatprep.subr.bf16.mxu0 0
      %6756 = vmatpush1.bf16.msra.mxu0 0
      %6757 = vmatprep.subr.bf16.mxu0 0
      %6758 = vmatpush1.bf16.msra.mxu0 0
      %6759 = vmatprep.subr.bf16.mxu0 0
      %6760 = vmatpush1.bf16.msra.mxu0 0
      %6761 = vmatprep.subr.bf16.mxu0 0
      %6762 = vmatpush1.bf16.msra.mxu0 0
      %6763 = vmatprep.subr.bf16.mxu0 0
      %6764 = vmatpush1.bf16.msra.mxu0 0
      %6765 = vmatprep.subr.bf16.mxu0 0
      %6766 = vmatpush1.bf16.msra.mxu0 0
      %6767 = vmatprep.subr.bf16.mxu0 0
      %6768 = vmatpush1.bf16.msra.mxu0 0
      %6769 = vmatprep.subr.bf16.mxu0 0
      %6770 = vmatpush1.bf16.msra.mxu0 0
      %6771 = vmatprep.subr.bf16.mxu0 0
      %6772 = vmatpush1.bf16.msra.mxu0 0
      %6773 = vmatprep.subr.bf16.mxu0 0
      %6774 = vmatpush1.bf16.msra.mxu0 0
      %6775 = vmatprep.subr.bf16.mxu0 0
      %6776 = vmatpush1.bf16.msra.mxu0 0
      %6777 = vmatprep.subr.bf16.mxu0 0
      %6778 = vmatpush1.bf16.msra.mxu0 0
      %6779 = vmatprep.mubr.bf16.mxu0 0
      %6780 = vmatmul.mubr.bf16.gmra.mrb[0].mxu0 %v6697
      %v6781 = vpop.f32.mrb[0].mxu0
      %v6782 = vadd.f32 0.0, %v6781
      %v6783 = vpop.f32.mrb[0].mxu0
      %v6784 = vpop.f32.mrb[0].mxu0
      %v6785 = vadd.f32 0.0, %v6784
      %v6786 = vpop.f32.mrb[0].mxu0
      %6787 = vmatprep.mubr.bf16.mxu0 0
      %6788 = vmatmul.mubr.bf16.gmra.mrb[0].mxu0 %v6700
      %v6789 = vpop.f32.mrb[0].mxu0
      %v6790 = vadd.f32 0.0, %v6789
      %v6791 = vpop.f32.mrb[0].mxu0
      %v6792 = vpop.f32.mrb[0].mxu0
      %v6793 = vadd.f32 0.0, %v6792
      %v6794 = vpop.f32.mrb[0].mxu0
      %6795 = vmatprep.mubr.bf16.mxu0 0
      %6796 = vmatmul.mubr.bf16.gmra.mrb[0].mxu0 %v6703
      %v6797 = vpop.f32.mrb[0].mxu0
      %v6798 = vadd.f32 0.0, %v6797
      %v6799 = vpop.f32.mrb[0].mxu0
      %v6800 = vpop.f32.mrb[0].mxu0
      %v6801 = vadd.f32 0.0, %v6800
      %v6802 = vpop.f32.mrb[0].mxu0
      %6803 = vmatprep.mubr.bf16.mxu0 0
      %6804 = vmatmul.mubr.bf16.gmra.mrb[0].mxu0 %v6706
      %v6805 = vpop.f32.mrb[0].mxu0
      %v6806 = vadd.f32 0.0, %v6805
      %v6807 = vpop.f32.mrb[0].mxu0
      %v6808 = vpop.f32.mrb[0].mxu0
      %v6809 = vadd.f32 0.0, %v6808
      %v6810 = vpop.f32.mrb[0].mxu0
      %6811 = vmatprep.mubr.bf16.mxu0 0
      %6812 = vmatmul.mubr.bf16.gmra.mrb[0].mxu0 %v6709
      %v6813 = vpop.f32.mrb[0].mxu0
      %v6814 = vadd.f32 0.0, %v6813
      %v6815 = vpop.f32.mrb[0].mxu0
      %v6816 = vpop.f32.mrb[0].mxu0
      %v6817 = vadd.f32 0.0, %v6816
      %v6818 = vpop.f32.mrb[0].mxu0
      %6819 = vmatprep.mubr.bf16.mxu0 0
      %6820 = vmatmul.mubr.bf16.gmra.mrb[0].mxu0 %v6712
      %v6821 = vpop.f32.mrb[0].mxu0
      %v6822 = vadd.f32 0.0, %v6821
      %v6823 = vpop.f32.mrb[0].mxu0
      %v6824 = vpop.f32.mrb[0].mxu0
      %v6825 = vadd.f32 0.0, %v6824
      %v6826 = vpop.f32.mrb[0].mxu0
      %6827 = vmatprep.mubr.bf16.mxu0 0
      %6828 = vmatmul.mubr.bf16.gmra.mrb[0].mxu0 %v6715
      %v6829 = vpop.f32.mrb[0].mxu0
      %v6830 = vadd.f32 0.0, %v6829
      %v6831 = vpop.f32.mrb[0].mxu0
      %v6832 = vpop.f32.mrb[0].mxu0
      %v6833 = vadd.f32 0.0, %v6832
      %v6834 = vpop.f32.mrb[0].mxu0
      %6835 = vmatprep.mubr.bf16.mxu0 0
      %6836 = vmatmul.mubr.bf16.gmra.mrb[0].mxu0 %v6718
      %v6837 = vpop.f32.mrb[0].mxu0
      %v6838 = vadd.f32 0.0, %v6837
      %v6839 = vpop.f32.mrb[0].mxu0
      %v6840 = vpop.f32.mrb[0].mxu0
      %v6841 = vadd.f32 0.0, %v6840
      %v6842 = vpop.f32.mrb[0].mxu0
      %6843 = vmatprep.mubr.bf16.mxu0 0
      %6844 = vmatmul.mubr.bf16.gmra.mrb[0].mxu0 %v6721
      %v6845 = vpop.f32.mrb[0].mxu0
      %v6846 = vadd.f32 0.0, %v6845
      %v6847 = vpop.f32.mrb[0].mxu0
      %v6848 = vpop.f32.mrb[0].mxu0
      %v6849 = vadd.f32 0.0, %v6848
      %v6850 = vpop.f32.mrb[0].mxu0
      %6851 = vmatprep.mubr.bf16.mxu0 0
      %6852 = vmatmul.mubr.bf16.gmra.mrb[0].mxu0 %v6724
      %v6853 = vpop.f32.mrb[0].mxu0
      %v6854 = vadd.f32 0.0, %v6853
      %v6855 = vpop.f32.mrb[0].mxu0
      %v6856 = vpop.f32.mrb[0].mxu0
      %v6857 = vadd.f32 0.0, %v6856
      %v6858 = vpop.f32.mrb[0].mxu0
      %6859 = vmatprep.mubr.bf16.mxu0 0
      %6860 = vmatmul.mubr.bf16.gmra.mrb[0].mxu0 %v6727
      %v6861 = vpop.f32.mrb[0].mxu0
      %v6862 = vadd.f32 0.0, %v6861
      %v6863 = vpop.f32.mrb[0].mxu0
      %v6864 = vpop.f32.mrb[0].mxu0
      %v6865 = vadd.f32 0.0, %v6864
      %v6866 = vpop.f32.mrb[0].mxu0
      %6867 = vmatprep.mubr.bf16.mxu0 0
      %6868 = vmatmul.mubr.bf16.gmra.mrb[0].mxu0 %v6730
      %v6869 = vpop.f32.mrb[0].mxu0
      %v6870 = vadd.f32 0.0, %v6869
      %v6871 = vpop.f32.mrb[0].mxu0
      %v6872 = vpop.f32.mrb[0].mxu0
      %v6873 = vadd.f32 0.0, %v6872
      %v6874 = vpop.f32.mrb[0].mxu0
      %6875 = vmatprep.mubr.bf16.mxu0 0
      %6876 = vmatmul.mubr.bf16.gmra.mrb[0].mxu0 %v6733
      %v6877 = vpop.f32.mrb[0].mxu0
      %v6878 = vadd.f32 0.0, %v6877
      %v6879 = vpop.f32.mrb[0].mxu0
      %v6880 = vpop.f32.mrb[0].mxu0
      %v6881 = vadd.f32 0.0, %v6880
      %v6882 = vpop.f32.mrb[0].mxu0
      %6883 = vmatprep.mubr.bf16.mxu0 0
      %6884 = vmatmul.mubr.bf16.gmra.mrb[0].mxu0 %v6736
      %v6885 = vpop.f32.mrb[0].mxu0
      %v6886 = vadd.f32 0.0, %v6885
      %v6887 = vpop.f32.mrb[0].mxu0
      %v6888 = vpop.f32.mrb[0].mxu0
      %v6889 = vadd.f32 0.0, %v6888
      %v6890 = vpop.f32.mrb[0].mxu0
      %6891 = vmatprep.mubr.bf16.mxu0 0
      %6892 = vmatmul.mubr.bf16.gmra.mrb[0].mxu0 %v6739
      %v6893 = vpop.f32.mrb[0].mxu0
      %v6894 = vadd.f32 0.0, %v6893
      %v6895 = vpop.f32.mrb[0].mxu0
      %v6896 = vpop.f32.mrb[0].mxu0
      %v6897 = vadd.f32 0.0, %v6896
      %v6898 = vpop.f32.mrb[0].mxu0
      %6899 = vmatprep.mubr.bf16.mxu0 0
      %6900 = vmatmul.mubr.bf16.gmra.mrb[0].mxu0 %v6742
      %v6901 = vpop.f32.mrb[0].mxu0
      %v6902 = vadd.f32 0.0, %v6901
      %v6903 = vpop.f32.mrb[0].mxu0
      %v6904 = vpop.f32.mrb[0].mxu0
      %v6905 = vadd.f32 0.0, %v6904
      %v6906 = vpop.f32.mrb[0].mxu0
      %6907 = vdwg.mxu0
      %v6908 = vadd.f32 %v6497, %v6782
      %v6909 = vadd.f32 %v6498, %v6785
      %v6910 = vadd.f32 %v6499, %v6790
      %v6911 = vadd.f32 %v6500, %v6793
      %v6912 = vadd.f32 %v6501, %v6798
      %v6913 = vadd.f32 %v6502, %v6801
      %v6914 = vadd.f32 %v6503, %v6806
      %v6915 = vadd.f32 %v6504, %v6809
      %v6916 = vadd.f32 %v6505, %v6814
      %v6917 = vadd.f32 %v6506, %v6817
      %v6918 = vadd.f32 %v6507, %v6822
      %v6919 = vadd.f32 %v6508, %v6825
      %v6920 = vadd.f32 %v6509, %v6830
      %v6921 = vadd.f32 %v6510, %v6833
      %v6922 = vadd.f32 %v6511, %v6838
      %v6923 = vadd.f32 %v6512, %v6841
      %v6924 = vadd.f32 %v6513, %v6846
      %v6925 = vadd.f32 %v6514, %v6849
      %v6926 = vadd.f32 %v6515, %v6854
      %v6927 = vadd.f32 %v6516, %v6857
      %v6928 = vadd.f32 %v6517, %v6862
      %v6929 = vadd.f32 %v6518, %v6865
      %v6930 = vadd.f32 %v6519, %v6870
      %v6931 = vadd.f32 %v6520, %v6873
      %v6932 = vadd.f32 %v6521, %v6878
      %v6933 = vadd.f32 %v6522, %v6881
      %v6934 = vadd.f32 %v6523, %v6886
      %v6935 = vadd.f32 %v6524, %v6889
      %v6936 = vadd.f32 %v6525, %v6894
      %v6937 = vadd.f32 %v6526, %v6897
      %v6938 = vadd.f32 %v6527, %v6902
      %v6939 = vadd.f32 %v6528, %v6905
      %v6940 = vld [vmem:[#allocation3 + $0x10] sm:$0x80]
      %v6941 = vld [vmem:[#allocation3 + $0x90] sm:$0xff]
      %v6942 = vsel %vm1265, %v6940, 0
      %v6943 = vsel %vm1266, %v6530, 0
      %v6944 = vsel %vm1267, %v6531, 0
      %v6945 = vsel %vm1268, %v6532, 0
      %v6946 = vsel %vm1269, %v6533, 0
      %v6947 = vsel %vm1270, %v6534, 0
      %v6948 = vsel %vm1271, %v6535, 0
      %v6949 = vsel %vm1272, %v6536, 0
      %v6950 = vsel %vm1273, %v6537, 0
      %v6951 = vsel %vm1274, %v6538, 0
      %v6952 = vsel %vm1275, %v6539, 0
      %v6953 = vsel %vm1276, %v6540, 0
      %v6954 = vsel %vm1277, %v6541, 0
      %v6955 = vsel %vm1278, %v6542, 0
      %v6956 = vsel %vm1279, %v6543, 0
      %v6957 = vsel %vm1280, %v6544, 0
      %v6958 = vsel %vm1281, %v6941, 0
      %v6959 = vld [vmem:[%s3 + $0x18] sm:$0xf]
      %v6961 = vshrl.u32 %v6942, 16
      %v6963 = vrot.slane %v6961, 7
      %v6965 = vshrl.u32 %v6943, 16
      %v6967 = vrot.slane %v6965, 7
      %v6968 = vshll.u32 %v6943, 16
      %v6970 = vor.u32 %v6967, %v6968
      %v6971 = vsel %vm1518, %v6963, %v6970
      %v6973 = vshrl.u32 %v6944, 16
      %v6975 = vrot.slane %v6973, 7
      %v6976 = vshll.u32 %v6944, 16
      %v6978 = vor.u32 %v6975, %v6976
      %v6979 = vsel %vm1518, %v6967, %v6978
      %v6981 = vshrl.u32 %v6945, 16
      %v6983 = vrot.slane %v6981, 7
      %v6984 = vshll.u32 %v6945, 16
      %v6986 = vor.u32 %v6983, %v6984
      %v6987 = vsel %vm1518, %v6975, %v6986
      %v6989 = vshrl.u32 %v6946, 16
      %v6991 = vrot.slane %v6989, 7
      %v6992 = vshll.u32 %v6946, 16
      %v6994 = vor.u32 %v6991, %v6992
      %v6995 = vsel %vm1518, %v6983, %v6994
      %v6997 = vshrl.u32 %v6947, 16
      %v6999 = vrot.slane %v6997, 7
      %v7000 = vshll.u32 %v6947, 16
      %v7002 = vor.u32 %v6999, %v7000
      %v7003 = vsel %vm1518, %v6991, %v7002
      %v7005 = vshrl.u32 %v6948, 16
      %v7007 = vrot.slane %v7005, 7
      %v7008 = vshll.u32 %v6948, 16
      %v7010 = vor.u32 %v7007, %v7008
      %v7011 = vsel %vm1518, %v6999, %v7010
      %v7013 = vshrl.u32 %v6949, 16
      %v7015 = vrot.slane %v7013, 7
      %v7016 = vshll.u32 %v6949, 16
      %v7018 = vor.u32 %v7015, %v7016
      %v7019 = vsel %vm1518, %v7007, %v7018
      %v7021 = vshrl.u32 %v6950, 16
      %v7023 = vrot.slane %v7021, 7
      %v7024 = vshll.u32 %v6950, 16
      %v7026 = vor.u32 %v7023, %v7024
      %v7027 = vsel %vm1518, %v7015, %v7026
      %v7029 = vshrl.u32 %v6951, 16
      %v7031 = vrot.slane %v7029, 7
      %v7032 = vshll.u32 %v6951, 16
      %v7034 = vor.u32 %v7031, %v7032
      %v7035 = vsel %vm1518, %v7023, %v7034
      %v7037 = vshrl.u32 %v6952, 16
      %v7039 = vrot.slane %v7037, 7
      %v7040 = vshll.u32 %v6952, 16
      %v7042 = vor.u32 %v7039, %v7040
      %v7043 = vsel %vm1518, %v7031, %v7042
      %v7045 = vshrl.u32 %v6953, 16
      %v7047 = vrot.slane %v7045, 7
      %v7048 = vshll.u32 %v6953, 16
      %v7050 = vor.u32 %v7047, %v7048
      %v7051 = vsel %vm1518, %v7039, %v7050
      %v7053 = vshrl.u32 %v6954, 16
      %v7055 = vrot.slane %v7053, 7
      %v7056 = vshll.u32 %v6954, 16
      %v7058 = vor.u32 %v7055, %v7056
      %v7059 = vsel %vm1518, %v7047, %v7058
      %v7061 = vshrl.u32 %v6955, 16
      %v7063 = vrot.slane %v7061, 7
      %v7064 = vshll.u32 %v6955, 16
      %v7066 = vor.u32 %v7063, %v7064
      %v7067 = vsel %vm1518, %v7055, %v7066
      %v7069 = vshrl.u32 %v6956, 16
      %v7071 = vrot.slane %v7069, 7
      %v7072 = vshll.u32 %v6956, 16
      %v7074 = vor.u32 %v7071, %v7072
      %v7075 = vsel %vm1518, %v7063, %v7074
      %v7077 = vshrl.u32 %v6957, 16
      %v7079 = vrot.slane %v7077, 7
      %v7080 = vshll.u32 %v6957, 16
      %v7082 = vor.u32 %v7079, %v7080
      %v7083 = vsel %vm1518, %v7071, %v7082
      %v7085 = vshrl.u32 %v6958, 16
      %v7087 = vrot.slane %v7085, 7
      %v7088 = vshll.u32 %v6958, 16
      %v7090 = vor.u32 %v7087, %v7088
      %v7091 = vsel %vm1518, %v7079, %v7090
      %v7093 = vsel %vm939, %v6971, 0
      %v7096 = vsel %vm939, %v6979, 0
      %v7099 = vsel %vm939, %v6987, 0
      %v7102 = vsel %vm939, %v6995, 0
      %v7105 = vsel %vm939, %v7003, 0
      %v7108 = vsel %vm939, %v7011, 0
      %v7111 = vsel %vm939, %v7019, 0
      %v7114 = vsel %vm939, %v7027, 0
      %v7117 = vsel %vm939, %v7035, 0
      %v7120 = vsel %vm939, %v7043, 0
      %v7123 = vsel %vm939, %v7051, 0
      %v7126 = vsel %vm939, %v7059, 0
      %v7129 = vsel %vm939, %v7067, 0
      %v7132 = vsel %vm939, %v7075, 0
      %v7135 = vsel %vm939, %v7083, 0
      %v7138 = vsel %vm939, %v7091, 0
      %v7141 = vsel %vm4968, %v6959, 0
      %7143 = vmatprep.subr.bf16.mxu0 0
      %7144 = vmatpush1.bf16.msra.mxu0 %v7141
      %7145 = vmatprep.subr.bf16.mxu0 0
      %7146 = vmatpush1.bf16.msra.mxu0 0
      %7147 = vmatprep.subr.bf16.mxu0 0
      %7148 = vmatpush1.bf16.msra.mxu0 0
      %7149 = vmatprep.subr.bf16.mxu0 0
      %7150 = vmatpush1.bf16.msra.mxu0 0
      %7151 = vmatprep.subr.bf16.mxu0 0
      %7152 = vmatpush1.bf16.msra.mxu0 0
      %7153 = vmatprep.subr.bf16.mxu0 0
      %7154 = vmatpush1.bf16.msra.mxu0 0
      %7155 = vmatprep.subr.bf16.mxu0 0
      %7156 = vmatpush1.bf16.msra.mxu0 0
      %7157 = vmatprep.subr.bf16.mxu0 0
      %7158 = vmatpush1.bf16.msra.mxu0 0
      %7159 = vmatprep.subr.bf16.mxu0 0
      %7160 = vmatpush1.bf16.msra.mxu0 0
      %7161 = vmatprep.subr.bf16.mxu0 0
      %7162 = vmatpush1.bf16.msra.mxu0 0
      %7163 = vmatprep.subr.bf16.mxu0 0
      %7164 = vmatpush1.bf16.msra.mxu0 0
      %7165 = vmatprep.subr.bf16.mxu0 0
      %7166 = vmatpush1.bf16.msra.mxu0 0
      %7167 = vmatprep.subr.bf16.mxu0 0
      %7168 = vmatpush1.bf16.msra.mxu0 0
      %7169 = vmatprep.subr.bf16.mxu0 0
      %7170 = vmatpush1.bf16.msra.mxu0 0
      %7171 = vmatprep.subr.bf16.mxu0 0
      %7172 = vmatpush1.bf16.msra.mxu0 0
      %7173 = vmatprep.subr.bf16.mxu0 0
      %7174 = vmatpush1.bf16.msra.mxu0 0
      %7175 = vmatprep.mubr.bf16.mxu0 0
      %7176 = vmatmul.mubr.bf16.gmra.mrb[0].mxu0 %v7093
      %v7177 = vpop.f32.mrb[0].mxu0
      %v7178 = vadd.f32 0.0, %v7177
      %v7179 = vpop.f32.mrb[0].mxu0
      %v7180 = vpop.f32.mrb[0].mxu0
      %v7181 = vadd.f32 0.0, %v7180
      %v7182 = vpop.f32.mrb[0].mxu0
      %7183 = vmatprep.mubr.bf16.mxu0 0
      %7184 = vmatmul.mubr.bf16.gmra.mrb[0].mxu0 %v7096
      %v7185 = vpop.f32.mrb[0].mxu0
      %v7186 = vadd.f32 0.0, %v7185
      %v7187 = vpop.f32.mrb[0].mxu0
      %v7188 = vpop.f32.mrb[0].mxu0
      %v7189 = vadd.f32 0.0, %v7188
      %v7190 = vpop.f32.mrb[0].mxu0
      %7191 = vmatprep.mubr.bf16.mxu0 0
      %7192 = vmatmul.mubr.bf16.gmra.mrb[0].mxu0 %v7099
      %v7193 = vpop.f32.mrb[0].mxu0
      %v7194 = vadd.f32 0.0, %v7193
      %v7195 = vpop.f32.mrb[0].mxu0
      %v7196 = vpop.f32.mrb[0].mxu0
      %v7197 = vadd.f32 0.0, %v7196
      %v7198 = vpop.f32.mrb[0].mxu0
      %7199 = vmatprep.mubr.bf16.mxu0 0
      %7200 = vmatmul.mubr.bf16.gmra.mrb[0].mxu0 %v7102
      %v7201 = vpop.f32.mrb[0].mxu0
      %v7202 = vadd.f32 0.0, %v7201
      %v7203 = vpop.f32.mrb[0].mxu0
      %v7204 = vpop.f32.mrb[0].mxu0
      %v7205 = vadd.f32 0.0, %v7204
      %v7206 = vpop.f32.mrb[0].mxu0
      %7207 = vmatprep.mubr.bf16.mxu0 0
      %7208 = vmatmul.mubr.bf16.gmra.mrb[0].mxu0 %v7105
      %v7209 = vpop.f32.mrb[0].mxu0
      %v7210 = vadd.f32 0.0, %v7209
      %v7211 = vpop.f32.mrb[0].mxu0
      %v7212 = vpop.f32.mrb[0].mxu0
      %v7213 = vadd.f32 0.0, %v7212
      %v7214 = vpop.f32.mrb[0].mxu0
      %7215 = vmatprep.mubr.bf16.mxu0 0
      %7216 = vmatmul.mubr.bf16.gmra.mrb[0].mxu0 %v7108
      %v7217 = vpop.f32.mrb[0].mxu0
      %v7218 = vadd.f32 0.0, %v7217
      %v7219 = vpop.f32.mrb[0].mxu0
      %v7220 = vpop.f32.mrb[0].mxu0
      %v7221 = vadd.f32 0.0, %v7220
      %v7222 = vpop.f32.mrb[0].mxu0
      %7223 = vmatprep.mubr.bf16.mxu0 0
      %7224 = vmatmul.mubr.bf16.gmra.mrb[0].mxu0 %v7111
      %v7225 = vpop.f32.mrb[0].mxu0
      %v7226 = vadd.f32 0.0, %v7225
      %v7227 = vpop.f32.mrb[0].mxu0
      %v7228 = vpop.f32.mrb[0].mxu0
      %v7229 = vadd.f32 0.0, %v7228
      %v7230 = vpop.f32.mrb[0].mxu0
      %7231 = vmatprep.mubr.bf16.mxu0 0
      %7232 = vmatmul.mubr.bf16.gmra.mrb[0].mxu0 %v7114
      %v7233 = vpop.f32.mrb[0].mxu0
      %v7234 = vadd.f32 0.0, %v7233
      %v7235 = vpop.f32.mrb[0].mxu0
      %v7236 = vpop.f32.mrb[0].mxu0
      %v7237 = vadd.f32 0.0, %v7236
      %v7238 = vpop.f32.mrb[0].mxu0
      %7239 = vmatprep.mubr.bf16.mxu0 0
      %7240 = vmatmul.mubr.bf16.gmra.mrb[0].mxu0 %v7117
      %v7241 = vpop.f32.mrb[0].mxu0
      %v7242 = vadd.f32 0.0, %v7241
      %v7243 = vpop.f32.mrb[0].mxu0
      %v7244 = vpop.f32.mrb[0].mxu0
      %v7245 = vadd.f32 0.0, %v7244
      %v7246 = vpop.f32.mrb[0].mxu0
      %7247 = vmatprep.mubr.bf16.mxu0 0
      %7248 = vmatmul.mubr.bf16.gmra.mrb[0].mxu0 %v7120
      %v7249 = vpop.f32.mrb[0].mxu0
      %v7250 = vadd.f32 0.0, %v7249
      %v7251 = vpop.f32.mrb[0].mxu0
      %v7252 = vpop.f32.mrb[0].mxu0
      %v7253 = vadd.f32 0.0, %v7252
      %v7254 = vpop.f32.mrb[0].mxu0
      %7255 = vmatprep.mubr.bf16.mxu0 0
      %7256 = vmatmul.mubr.bf16.gmra.mrb[0].mxu0 %v7123
      %v7257 = vpop.f32.mrb[0].mxu0
      %v7258 = vadd.f32 0.0, %v7257
      %v7259 = vpop.f32.mrb[0].mxu0
      %v7260 = vpop.f32.mrb[0].mxu0
      %v7261 = vadd.f32 0.0, %v7260
      %v7262 = vpop.f32.mrb[0].mxu0
      %7263 = vmatprep.mubr.bf16.mxu0 0
      %7264 = vmatmul.mubr.bf16.gmra.mrb[0].mxu0 %v7126
      %v7265 = vpop.f32.mrb[0].mxu0
      %v7266 = vadd.f32 0.0, %v7265
      %v7267 = vpop.f32.mrb[0].mxu0
      %v7268 = vpop.f32.mrb[0].mxu0
      %v7269 = vadd.f32 0.0, %v7268
      %v7270 = vpop.f32.mrb[0].mxu0
      %7271 = vmatprep.mubr.bf16.mxu0 0
      %7272 = vmatmul.mubr.bf16.gmra.mrb[0].mxu0 %v7129
      %v7273 = vpop.f32.mrb[0].mxu0
      %v7274 = vadd.f32 0.0, %v7273
      %v7275 = vpop.f32.mrb[0].mxu0
      %v7276 = vpop.f32.mrb[0].mxu0
      %v7277 = vadd.f32 0.0, %v7276
      %v7278 = vpop.f32.mrb[0].mxu0
      %7279 = vmatprep.mubr.bf16.mxu0 0
      %7280 = vmatmul.mubr.bf16.gmra.mrb[0].mxu0 %v7132
      %v7281 = vpop.f32.mrb[0].mxu0
      %v7282 = vadd.f32 0.0, %v7281
      %v7283 = vpop.f32.mrb[0].mxu0
      %v7284 = vpop.f32.mrb[0].mxu0
      %v7285 = vadd.f32 0.0, %v7284
      %v7286 = vpop.f32.mrb[0].mxu0
      %7287 = vmatprep.mubr.bf16.mxu0 0
      %7288 = vmatmul.mubr.bf16.gmra.mrb[0].mxu0 %v7135
      %v7289 = vpop.f32.mrb[0].mxu0
      %v7290 = vadd.f32 0.0, %v7289
      %v7291 = vpop.f32.mrb[0].mxu0
      %v7292 = vpop.f32.mrb[0].mxu0
      %v7293 = vadd.f32 0.0, %v7292
      %v7294 = vpop.f32.mrb[0].mxu0
      %7295 = vmatprep.mubr.bf16.mxu0 0
      %7296 = vmatmul.mubr.bf16.gmra.mrb[0].mxu0 %v7138
      %v7297 = vpop.f32.mrb[0].mxu0
      %v7298 = vadd.f32 0.0, %v7297
      %v7299 = vpop.f32.mrb[0].mxu0
      %v7300 = vpop.f32.mrb[0].mxu0
      %v7301 = vadd.f32 0.0, %v7300
      %v7302 = vpop.f32.mrb[0].mxu0
      %7303 = vdwg.mxu0
      %v7304 = vadd.f32 %v6908, %v7178
      %v7305 = vadd.f32 %v6909, %v7181
      %v7306 = vadd.f32 %v6910, %v7186
      %v7307 = vadd.f32 %v6911, %v7189
      %v7308 = vadd.f32 %v6912, %v7194
      %v7309 = vadd.f32 %v6913, %v7197
      %v7310 = vadd.f32 %v6914, %v7202
      %v7311 = vadd.f32 %v6915, %v7205
      %v7312 = vadd.f32 %v6916, %v7210
      %v7313 = vadd.f32 %v6917, %v7213
      %v7314 = vadd.f32 %v6918, %v7218
      %v7315 = vadd.f32 %v6919, %v7221
      %v7316 = vadd.f32 %v6920, %v7226
      %v7317 = vadd.f32 %v6921, %v7229
      %v7318 = vadd.f32 %v6922, %v7234
      %v7319 = vadd.f32 %v6923, %v7237
      %v7320 = vadd.f32 %v6924, %v7242
      %v7321 = vadd.f32 %v6925, %v7245
      %v7322 = vadd.f32 %v6926, %v7250
      %v7323 = vadd.f32 %v6927, %v7253
      %v7324 = vadd.f32 %v6928, %v7258
      %v7325 = vadd.f32 %v6929, %v7261
      %v7326 = vadd.f32 %v6930, %v7266
      %v7327 = vadd.f32 %v6931, %v7269
      %v7328 = vadd.f32 %v6932, %v7274
      %v7329 = vadd.f32 %v6933, %v7277
      %v7330 = vadd.f32 %v6934, %v7282
      %v7331 = vadd.f32 %v6935, %v7285
      %v7332 = vadd.f32 %v6936, %v7290
      %v7333 = vadd.f32 %v6937, %v7293
      %v7334 = vadd.f32 %v6938, %v7298
      %v7335 = vadd.f32 %v6939, %v7301
      %v7336 = vld [vmem:[%s3 + $0x1c] sm:$0xf]
      %v7338 = vsel %vm939, %v6530, 0
      %v7341 = vsel %vm939, %v6531, 0
      %v7344 = vsel %vm939, %v6532, 0
      %v7347 = vsel %vm939, %v6533, 0
      %v7350 = vsel %vm939, %v6534, 0
      %v7353 = vsel %vm939, %v6535, 0
      %v7356 = vsel %vm939, %v6536, 0
      %v7359 = vsel %vm939, %v6537, 0
      %v7362 = vsel %vm939, %v6538, 0
      %v7365 = vsel %vm939, %v6539, 0
      %v7368 = vsel %vm939, %v6540, 0
      %v7371 = vsel %vm939, %v6541, 0
      %v7374 = vsel %vm939, %v6542, 0
      %v7377 = vsel %vm939, %v6543, 0
      %v7380 = vsel %vm939, %v6544, 0
      %v7383 = vsel %vm939, %v6941, 0
      %v7386 = vsel %vm4968, %v7336, 0
      %7388 = vmatprep.subr.bf16.mxu0 0
      %7389 = vmatpush1.bf16.msra.mxu0 %v7386
      %7390 = vmatprep.subr.bf16.mxu0 0
      %7391 = vmatpush1.bf16.msra.mxu0 0
      %7392 = vmatprep.subr.bf16.mxu0 0
      %7393 = vmatpush1.bf16.msra.mxu0 0
      %7394 = vmatprep.subr.bf16.mxu0 0
      %7395 = vmatpush1.bf16.msra.mxu0 0
      %7396 = vmatprep.subr.bf16.mxu0 0
      %7397 = vmatpush1.bf16.msra.mxu0 0
      %7398 = vmatprep.subr.bf16.mxu0 0
      %7399 = vmatpush1.bf16.msra.mxu0 0
      %7400 = vmatprep.subr.bf16.mxu0 0
      %7401 = vmatpush1.bf16.msra.mxu0 0
      %7402 = vmatprep.subr.bf16.mxu0 0
      %7403 = vmatpush1.bf16.msra.mxu0 0
      %7404 = vmatprep.subr.bf16.mxu0 0
      %7405 = vmatpush1.bf16.msra.mxu0 0
      %7406 = vmatprep.subr.bf16.mxu0 0
      %7407 = vmatpush1.bf16.msra.mxu0 0
      %7408 = vmatprep.subr.bf16.mxu0 0
      %7409 = vmatpush1.bf16.msra.mxu0 0
      %7410 = vmatprep.subr.bf16.mxu0 0
      %7411 = vmatpush1.bf16.msra.mxu0 0
      %7412 = vmatprep.subr.bf16.mxu0 0
      %7413 = vmatpush1.bf16.msra.mxu0 0
      %7414 = vmatprep.subr.bf16.mxu0 0
      %7415 = vmatpush1.bf16.msra.mxu0 0
      %7416 = vmatprep.subr.bf16.mxu0 0
      %7417 = vmatpush1.bf16.msra.mxu0 0
      %7418 = vmatprep.subr.bf16.mxu0 0
      %7419 = vmatpush1.bf16.msra.mxu0 0
      %7420 = vmatprep.mubr.bf16.mxu0 0
      %7421 = vmatmul.mubr.bf16.gmra.mrb[0].mxu0 %v7338
      %v7422 = vpop.f32.mrb[0].mxu0
      %v7423 = vadd.f32 0.0, %v7422
      %v7424 = vpop.f32.mrb[0].mxu0
      %v7425 = vpop.f32.mrb[0].mxu0
      %v7426 = vadd.f32 0.0, %v7425
      %v7427 = vpop.f32.mrb[0].mxu0
      %7428 = vmatprep.mubr.bf16.mxu0 0
      %7429 = vmatmul.mubr.bf16.gmra.mrb[0].mxu0 %v7341
      %v7430 = vpop.f32.mrb[0].mxu0
      %v7431 = vadd.f32 0.0, %v7430
      %v7432 = vpop.f32.mrb[0].mxu0
      %v7433 = vpop.f32.mrb[0].mxu0
      %v7434 = vadd.f32 0.0, %v7433
      %v7435 = vpop.f32.mrb[0].mxu0
      %7436 = vmatprep.mubr.bf16.mxu0 0
      %7437 = vmatmul.mubr.bf16.gmra.mrb[0].mxu0 %v7344
      %v7438 = vpop.f32.mrb[0].mxu0
      %v7439 = vadd.f32 0.0, %v7438
      %v7440 = vpop.f32.mrb[0].mxu0
      %v7441 = vpop.f32.mrb[0].mxu0
      %v7442 = vadd.f32 0.0, %v7441
      %v7443 = vpop.f32.mrb[0].mxu0
      %7444 = vmatprep.mubr.bf16.mxu0 0
      %7445 = vmatmul.mubr.bf16.gmra.mrb[0].mxu0 %v7347
      %v7446 = vpop.f32.mrb[0].mxu0
      %v7447 = vadd.f32 0.0, %v7446
      %v7448 = vpop.f32.mrb[0].mxu0
      %v7449 = vpop.f32.mrb[0].mxu0
      %v7450 = vadd.f32 0.0, %v7449
      %v7451 = vpop.f32.mrb[0].mxu0
      %7452 = vmatprep.mubr.bf16.mxu0 0
      %7453 = vmatmul.mubr.bf16.gmra.mrb[0].mxu0 %v7350
      %v7454 = vpop.f32.mrb[0].mxu0
      %v7455 = vadd.f32 0.0, %v7454
      %v7456 = vpop.f32.mrb[0].mxu0
      %v7457 = vpop.f32.mrb[0].mxu0
      %v7458 = vadd.f32 0.0, %v7457
      %v7459 = vpop.f32.mrb[0].mxu0
      %7460 = vmatprep.mubr.bf16.mxu0 0
      %7461 = vmatmul.mubr.bf16.gmra.mrb[0].mxu0 %v7353
      %v7462 = vpop.f32.mrb[0].mxu0
      %v7463 = vadd.f32 0.0, %v7462
      %v7464 = vpop.f32.mrb[0].mxu0
      %v7465 = vpop.f32.mrb[0].mxu0
      %v7466 = vadd.f32 0.0, %v7465
      %v7467 = vpop.f32.mrb[0].mxu0
      %7468 = vmatprep.mubr.bf16.mxu0 0
      %7469 = vmatmul.mubr.bf16.gmra.mrb[0].mxu0 %v7356
      %v7470 = vpop.f32.mrb[0].mxu0
      %v7471 = vadd.f32 0.0, %v7470
      %v7472 = vpop.f32.mrb[0].mxu0
      %v7473 = vpop.f32.mrb[0].mxu0
      %v7474 = vadd.f32 0.0, %v7473
      %v7475 = vpop.f32.mrb[0].mxu0
      %7476 = vmatprep.mubr.bf16.mxu0 0
      %7477 = vmatmul.mubr.bf16.gmra.mrb[0].mxu0 %v7359
      %v7478 = vpop.f32.mrb[0].mxu0
      %v7479 = vadd.f32 0.0, %v7478
      %v7480 = vpop.f32.mrb[0].mxu0
      %v7481 = vpop.f32.mrb[0].mxu0
      %v7482 = vadd.f32 0.0, %v7481
      %v7483 = vpop.f32.mrb[0].mxu0
      %7484 = vmatprep.mubr.bf16.mxu0 0
      %7485 = vmatmul.mubr.bf16.gmra.mrb[0].mxu0 %v7362
      %v7486 = vpop.f32.mrb[0].mxu0
      %v7487 = vadd.f32 0.0, %v7486
      %v7488 = vpop.f32.mrb[0].mxu0
      %v7489 = vpop.f32.mrb[0].mxu0
      %v7490 = vadd.f32 0.0, %v7489
      %v7491 = vpop.f32.mrb[0].mxu0
      %7492 = vmatprep.mubr.bf16.mxu0 0
      %7493 = vmatmul.mubr.bf16.gmra.mrb[0].mxu0 %v7365
      %v7494 = vpop.f32.mrb[0].mxu0
      %v7495 = vadd.f32 0.0, %v7494
      %v7496 = vpop.f32.mrb[0].mxu0
      %v7497 = vpop.f32.mrb[0].mxu0
      %v7498 = vadd.f32 0.0, %v7497
      %v7499 = vpop.f32.mrb[0].mxu0
      %7500 = vmatprep.mubr.bf16.mxu0 0
      %7501 = vmatmul.mubr.bf16.gmra.mrb[0].mxu0 %v7368
      %v7502 = vpop.f32.mrb[0].mxu0
      %v7503 = vadd.f32 0.0, %v7502
      %v7504 = vpop.f32.mrb[0].mxu0
      %v7505 = vpop.f32.mrb[0].mxu0
      %v7506 = vadd.f32 0.0, %v7505
      %v7507 = vpop.f32.mrb[0].mxu0
      %7508 = vmatprep.mubr.bf16.mxu0 0
      %7509 = vmatmul.mubr.bf16.gmra.mrb[0].mxu0 %v7371
      %v7510 = vpop.f32.mrb[0].mxu0
      %v7511 = vadd.f32 0.0, %v7510
      %v7512 = vpop.f32.mrb[0].mxu0
      %v7513 = vpop.f32.mrb[0].mxu0
      %v7514 = vadd.f32 0.0, %v7513
      %v7515 = vpop.f32.mrb[0].mxu0
      %7516 = vmatprep.mubr.bf16.mxu0 0
      %7517 = vmatmul.mubr.bf16.gmra.mrb[0].mxu0 %v7374
      %v7518 = vpop.f32.mrb[0].mxu0
      %v7519 = vadd.f32 0.0, %v7518
      %v7520 = vpop.f32.mrb[0].mxu0
      %v7521 = vpop.f32.mrb[0].mxu0
      %v7522 = vadd.f32 0.0, %v7521
      %v7523 = vpop.f32.mrb[0].mxu0
      %7524 = vmatprep.mubr.bf16.mxu0 0
      %7525 = vmatmul.mubr.bf16.gmra.mrb[0].mxu0 %v7377
      %v7526 = vpop.f32.mrb[0].mxu0
      %v7527 = vadd.f32 0.0, %v7526
      %v7528 = vpop.f32.mrb[0].mxu0
      %v7529 = vpop.f32.mrb[0].mxu0
      %v7530 = vadd.f32 0.0, %v7529
      %v7531 = vpop.f32.mrb[0].mxu0
      %7532 = vmatprep.mubr.bf16.mxu0 0
      %7533 = vmatmul.mubr.bf16.gmra.mrb[0].mxu0 %v7380
      %v7534 = vpop.f32.mrb[0].mxu0
      %v7535 = vadd.f32 0.0, %v7534
      %v7536 = vpop.f32.mrb[0].mxu0
      %v7537 = vpop.f32.mrb[0].mxu0
      %v7538 = vadd.f32 0.0, %v7537
      %v7539 = vpop.f32.mrb[0].mxu0
      %7540 = vmatprep.mubr.bf16.mxu0 0
      %7541 = vmatmul.mubr.bf16.gmra.mrb[0].mxu0 %v7383
      %v7542 = vpop.f32.mrb[0].mxu0
      %v7543 = vadd.f32 0.0, %v7542
      %v7544 = vpop.f32.mrb[0].mxu0
      %v7545 = vpop.f32.mrb[0].mxu0
      %v7546 = vadd.f32 0.0, %v7545
      %v7547 = vpop.f32.mrb[0].mxu0
      %7548 = vdwg.mxu0
      %v7549 = vadd.f32 %v7304, %v7423
      %v7550 = vadd.f32 %v7305, %v7426
      %v7551 = vadd.f32 %v7306, %v7431
      %v7552 = vadd.f32 %v7307, %v7434
      %v7553 = vadd.f32 %v7308, %v7439
      %v7554 = vadd.f32 %v7309, %v7442
      %v7555 = vadd.f32 %v7310, %v7447
      %v7556 = vadd.f32 %v7311, %v7450
      %v7557 = vadd.f32 %v7312, %v7455
      %v7558 = vadd.f32 %v7313, %v7458
      %v7559 = vadd.f32 %v7314, %v7463
      %v7560 = vadd.f32 %v7315, %v7466
      %v7561 = vadd.f32 %v7316, %v7471
      %v7562 = vadd.f32 %v7317, %v7474
      %v7563 = vadd.f32 %v7318, %v7479
      %v7564 = vadd.f32 %v7319, %v7482
      %v7565 = vadd.f32 %v7320, %v7487
      %v7566 = vadd.f32 %v7321, %v7490
      %v7567 = vadd.f32 %v7322, %v7495
      %v7568 = vadd.f32 %v7323, %v7498
      %v7569 = vadd.f32 %v7324, %v7503
      %v7570 = vadd.f32 %v7325, %v7506
      %v7571 = vadd.f32 %v7326, %v7511
      %v7572 = vadd.f32 %v7327, %v7514
      %v7573 = vadd.f32 %v7328, %v7519
      %v7574 = vadd.f32 %v7329, %v7522
      %v7575 = vadd.f32 %v7330, %v7527
      %v7576 = vadd.f32 %v7331, %v7530
      %v7577 = vadd.f32 %v7332, %v7535
      %v7578 = vadd.f32 %v7333, %v7538
      %v7579 = vadd.f32 %v7334, %v7543
      %v7580 = vadd.f32 %v7335, %v7546
      %v7581 = vld [vmem:[#allocation3 + $0x18] sm:$0xff]
      %v7582 = vld [vmem:[#allocation3 + $0x20] sm:$0xff]
      %v7583 = vld [vmem:[#allocation3 + $0x28] sm:$0xff]
      %v7584 = vld [vmem:[#allocation3 + $0x30] sm:$0xff]
      %v7585 = vld [vmem:[#allocation3 + $0x38] sm:$0xff]
      %v7586 = vld [vmem:[#allocation3 + $0x40] sm:$0xff]
      %v7587 = vld [vmem:[#allocation3 + $0x48] sm:$0xff]
      %v7588 = vld [vmem:[#allocation3 + $0x50] sm:$0xff]
      %v7589 = vld [vmem:[#allocation3 + $0x58] sm:$0xff]
      %v7590 = vld [vmem:[#allocation3 + $0x60] sm:$0xff]
      %v7591 = vld [vmem:[#allocation3 + $0x68] sm:$0xff]
      %v7592 = vld [vmem:[#allocation3 + $0x70] sm:$0xff]
      %v7593 = vld [vmem:[#allocation3 + $0x78] sm:$0xff]
      %v7594 = vld [vmem:[#allocation3 + $0x80] sm:$0xff]
      %v7595 = vld [vmem:[#allocation3 + $0x88] sm:$0xff]
      %v7596 = vld [vmem:[#allocation3 + $0x90] sm:$0xff]
      %v7597 = vld [vmem:[#allocation3 + $0x98] sm:$0x1]
      %v7598 = vsel %vm2183, %v7581, 0
      %v7599 = vsel %vm2184, %v7582, 0
      %v7600 = vsel %vm2185, %v7583, 0
      %v7601 = vsel %vm2186, %v7584, 0
      %v7602 = vsel %vm2187, %v7585, 0
      %v7603 = vsel %vm2188, %v7586, 0
      %v7604 = vsel %vm2189, %v7587, 0
      %v7605 = vsel %vm2190, %v7588, 0
      %v7606 = vsel %vm2191, %v7589, 0
      %v7607 = vsel %vm2192, %v7590, 0
      %v7608 = vsel %vm2193, %v7591, 0
      %v7609 = vsel %vm2194, %v7592, 0
      %v7610 = vsel %vm2195, %v7593, 0
      %v7611 = vsel %vm2196, %v7594, 0
      %v7612 = vsel %vm2197, %v7595, 0
      %v7613 = vsel %vm2198, %v7596, 0
      %v7614 = vsel %vm2199, %v7597, 0
      %v7615 = vld [vmem:[%s3 + $0x20] sm:$0xf]
      %v7617 = vshrl.u32 %v7598, 16
      %v7619 = vshll.u32 %v7598, 16
      %v7621 = vrot.slane %v7619, 1
      %v7622 = vor.u32 %v7617, %v7621
      %v7624 = vshll.u32 %v7599, 16
      %v7626 = vrot.slane %v7624, 1
      %v7627 = vsel %vm1137, %v7622, %v7626
      %v7628 = vshrl.u32 %v7599, 16
      %v7630 = vor.u32 %v7628, %v7626
      %v7632 = vshll.u32 %v7600, 16
      %v7634 = vrot.slane %v7632, 1
      %v7635 = vsel %vm1137, %v7630, %v7634
      %v7636 = vshrl.u32 %v7600, 16
      %v7638 = vor.u32 %v7636, %v7634
      %v7640 = vshll.u32 %v7601, 16
      %v7642 = vrot.slane %v7640, 1
      %v7643 = vsel %vm1137, %v7638, %v7642
      %v7644 = vshrl.u32 %v7601, 16
      %v7646 = vor.u32 %v7644, %v7642
      %v7648 = vshll.u32 %v7602, 16
      %v7650 = vrot.slane %v7648, 1
      %v7651 = vsel %vm1137, %v7646, %v7650
      %v7652 = vshrl.u32 %v7602, 16
      %v7654 = vor.u32 %v7652, %v7650
      %v7656 = vshll.u32 %v7603, 16
      %v7658 = vrot.slane %v7656, 1
      %v7659 = vsel %vm1137, %v7654, %v7658
      %v7660 = vshrl.u32 %v7603, 16
      %v7662 = vor.u32 %v7660, %v7658
      %v7664 = vshll.u32 %v7604, 16
      %v7666 = vrot.slane %v7664, 1
      %v7667 = vsel %vm1137, %v7662, %v7666
      %v7668 = vshrl.u32 %v7604, 16
      %v7670 = vor.u32 %v7668, %v7666
      %v7672 = vshll.u32 %v7605, 16
      %v7674 = vrot.slane %v7672, 1
      %v7675 = vsel %vm1137, %v7670, %v7674
      %v7676 = vshrl.u32 %v7605, 16
      %v7678 = vor.u32 %v7676, %v7674
      %v7680 = vshll.u32 %v7606, 16
      %v7682 = vrot.slane %v7680, 1
      %v7683 = vsel %vm1137, %v7678, %v7682
      %v7684 = vshrl.u32 %v7606, 16
      %v7686 = vor.u32 %v7684, %v7682
      %v7688 = vshll.u32 %v7607, 16
      %v7690 = vrot.slane %v7688, 1
      %v7691 = vsel %vm1137, %v7686, %v7690
      %v7692 = vshrl.u32 %v7607, 16
      %v7694 = vor.u32 %v7692, %v7690
      %v7696 = vshll.u32 %v7608, 16
      %v7698 = vrot.slane %v7696, 1
      %v7699 = vsel %vm1137, %v7694, %v7698
      %v7700 = vshrl.u32 %v7608, 16
      %v7702 = vor.u32 %v7700, %v7698
      %v7704 = vshll.u32 %v7609, 16
      %v7706 = vrot.slane %v7704, 1
      %v7707 = vsel %vm1137, %v7702, %v7706
      %v7708 = vshrl.u32 %v7609, 16
      %v7710 = vor.u32 %v7708, %v7706
      %v7712 = vshll.u32 %v7610, 16
      %v7714 = vrot.slane %v7712, 1
      %v7715 = vsel %vm1137, %v7710, %v7714
      %v7716 = vshrl.u32 %v7610, 16
      %v7718 = vor.u32 %v7716, %v7714
      %v7720 = vshll.u32 %v7611, 16
      %v7722 = vrot.slane %v7720, 1
      %v7723 = vsel %vm1137, %v7718, %v7722
      %v7724 = vshrl.u32 %v7611, 16
      %v7726 = vor.u32 %v7724, %v7722
      %v7728 = vshll.u32 %v7612, 16
      %v7730 = vrot.slane %v7728, 1
      %v7731 = vsel %vm1137, %v7726, %v7730
      %v7732 = vshrl.u32 %v7612, 16
      %v7734 = vor.u32 %v7732, %v7730
      %v7736 = vshll.u32 %v7613, 16
      %v7738 = vrot.slane %v7736, 1
      %v7739 = vsel %vm1137, %v7734, %v7738
      %v7740 = vshrl.u32 %v7613, 16
      %v7742 = vor.u32 %v7740, %v7738
      %v7744 = vshll.u32 %v7614, 16
      %v7746 = vrot.slane %v7744, 1
      %v7747 = vsel %vm1137, %v7742, %v7746
      %v7749 = vsel %vm939, %v7627, 0
      %v7752 = vsel %vm939, %v7635, 0
      %v7755 = vsel %vm939, %v7643, 0
      %v7758 = vsel %vm939, %v7651, 0
      %v7761 = vsel %vm939, %v7659, 0
      %v7764 = vsel %vm939, %v7667, 0
      %v7767 = vsel %vm939, %v7675, 0
      %v7770 = vsel %vm939, %v7683, 0
      %v7773 = vsel %vm939, %v7691, 0
      %v7776 = vsel %vm939, %v7699, 0
      %v7779 = vsel %vm939, %v7707, 0
      %v7782 = vsel %vm939, %v7715, 0
      %v7785 = vsel %vm939, %v7723, 0
      %v7788 = vsel %vm939, %v7731, 0
      %v7791 = vsel %vm939, %v7739, 0
      %v7794 = vsel %vm939, %v7747, 0
      %v7797 = vsel %vm4968, %v7615, 0
      %7799 = vmatprep.subr.bf16.mxu0 0
      %7800 = vmatpush1.bf16.msra.mxu0 %v7797
      %7801 = vmatprep.subr.bf16.mxu0 0
      %7802 = vmatpush1.bf16.msra.mxu0 0
      %7803 = vmatprep.subr.bf16.mxu0 0
      %7804 = vmatpush1.bf16.msra.mxu0 0
      %7805 = vmatprep.subr.bf16.mxu0 0
      %7806 = vmatpush1.bf16.msra.mxu0 0
      %7807 = vmatprep.subr.bf16.mxu0 0
      %7808 = vmatpush1.bf16.msra.mxu0 0
      %7809 = vmatprep.subr.bf16.mxu0 0
      %7810 = vmatpush1.bf16.msra.mxu0 0
      %7811 = vmatprep.subr.bf16.mxu0 0
      %7812 = vmatpush1.bf16.msra.mxu0 0
      %7813 = vmatprep.subr.bf16.mxu0 0
      %7814 = vmatpush1.bf16.msra.mxu0 0
      %7815 = vmatprep.subr.bf16.mxu0 0
      %7816 = vmatpush1.bf16.msra.mxu0 0
      %7817 = vmatprep.subr.bf16.mxu0 0
      %7818 = vmatpush1.bf16.msra.mxu0 0
      %7819 = vmatprep.subr.bf16.mxu0 0
      %7820 = vmatpush1.bf16.msra.mxu0 0
      %7821 = vmatprep.subr.bf16.mxu0 0
      %7822 = vmatpush1.bf16.msra.mxu0 0
      %7823 = vmatprep.subr.bf16.mxu0 0
      %7824 = vmatpush1.bf16.msra.mxu0 0
      %7825 = vmatprep.subr.bf16.mxu0 0
      %7826 = vmatpush1.bf16.msra.mxu0 0
      %7827 = vmatprep.subr.bf16.mxu0 0
      %7828 = vmatpush1.bf16.msra.mxu0 0
      %7829 = vmatprep.subr.bf16.mxu0 0
      %7830 = vmatpush1.bf16.msra.mxu0 0
      %7831 = vmatprep.mubr.bf16.mxu0 0
      %7832 = vmatmul.mubr.bf16.gmra.mrb[0].mxu0 %v7749
      %v7833 = vpop.f32.mrb[0].mxu0
      %v7834 = vadd.f32 0.0, %v7833
      %v7835 = vpop.f32.mrb[0].mxu0
      %v7836 = vpop.f32.mrb[0].mxu0
      %v7837 = vadd.f32 0.0, %v7836
      %v7838 = vpop.f32.mrb[0].mxu0
      %7839 = vmatprep.mubr.bf16.mxu0 0
      %7840 = vmatmul.mubr.bf16.gmra.mrb[0].mxu0 %v7752
      %v7841 = vpop.f32.mrb[0].mxu0
      %v7842 = vadd.f32 0.0, %v7841
      %v7843 = vpop.f32.mrb[0].mxu0
      %v7844 = vpop.f32.mrb[0].mxu0
      %v7845 = vadd.f32 0.0, %v7844
      %v7846 = vpop.f32.mrb[0].mxu0
      %7847 = vmatprep.mubr.bf16.mxu0 0
      %7848 = vmatmul.mubr.bf16.gmra.mrb[0].mxu0 %v7755
      %v7849 = vpop.f32.mrb[0].mxu0
      %v7850 = vadd.f32 0.0, %v7849
      %v7851 = vpop.f32.mrb[0].mxu0
      %v7852 = vpop.f32.mrb[0].mxu0
      %v7853 = vadd.f32 0.0, %v7852
      %v7854 = vpop.f32.mrb[0].mxu0
      %7855 = vmatprep.mubr.bf16.mxu0 0
      %7856 = vmatmul.mubr.bf16.gmra.mrb[0].mxu0 %v7758
      %v7857 = vpop.f32.mrb[0].mxu0
      %v7858 = vadd.f32 0.0, %v7857
      %v7859 = vpop.f32.mrb[0].mxu0
      %v7860 = vpop.f32.mrb[0].mxu0
      %v7861 = vadd.f32 0.0, %v7860
      %v7862 = vpop.f32.mrb[0].mxu0
      %7863 = vmatprep.mubr.bf16.mxu0 0
      %7864 = vmatmul.mubr.bf16.gmra.mrb[0].mxu0 %v7761
      %v7865 = vpop.f32.mrb[0].mxu0
      %v7866 = vadd.f32 0.0, %v7865
      %v7867 = vpop.f32.mrb[0].mxu0
      %v7868 = vpop.f32.mrb[0].mxu0
      %v7869 = vadd.f32 0.0, %v7868
      %v7870 = vpop.f32.mrb[0].mxu0
      %7871 = vmatprep.mubr.bf16.mxu0 0
      %7872 = vmatmul.mubr.bf16.gmra.mrb[0].mxu0 %v7764
      %v7873 = vpop.f32.mrb[0].mxu0
      %v7874 = vadd.f32 0.0, %v7873
      %v7875 = vpop.f32.mrb[0].mxu0
      %v7876 = vpop.f32.mrb[0].mxu0
      %v7877 = vadd.f32 0.0, %v7876
      %v7878 = vpop.f32.mrb[0].mxu0
      %7879 = vmatprep.mubr.bf16.mxu0 0
      %7880 = vmatmul.mubr.bf16.gmra.mrb[0].mxu0 %v7767
      %v7881 = vpop.f32.mrb[0].mxu0
      %v7882 = vadd.f32 0.0, %v7881
      %v7883 = vpop.f32.mrb[0].mxu0
      %v7884 = vpop.f32.mrb[0].mxu0
      %v7885 = vadd.f32 0.0, %v7884
      %v7886 = vpop.f32.mrb[0].mxu0
      %7887 = vmatprep.mubr.bf16.mxu0 0
      %7888 = vmatmul.mubr.bf16.gmra.mrb[0].mxu0 %v7770
      %v7889 = vpop.f32.mrb[0].mxu0
      %v7890 = vadd.f32 0.0, %v7889
      %v7891 = vpop.f32.mrb[0].mxu0
      %v7892 = vpop.f32.mrb[0].mxu0
      %v7893 = vadd.f32 0.0, %v7892
      %v7894 = vpop.f32.mrb[0].mxu0
      %7895 = vmatprep.mubr.bf16.mxu0 0
      %7896 = vmatmul.mubr.bf16.gmra.mrb[0].mxu0 %v7773
      %v7897 = vpop.f32.mrb[0].mxu0
      %v7898 = vadd.f32 0.0, %v7897
      %v7899 = vpop.f32.mrb[0].mxu0
      %v7900 = vpop.f32.mrb[0].mxu0
      %v7901 = vadd.f32 0.0, %v7900
      %v7902 = vpop.f32.mrb[0].mxu0
      %7903 = vmatprep.mubr.bf16.mxu0 0
      %7904 = vmatmul.mubr.bf16.gmra.mrb[0].mxu0 %v7776
      %v7905 = vpop.f32.mrb[0].mxu0
      %v7906 = vadd.f32 0.0, %v7905
      %v7907 = vpop.f32.mrb[0].mxu0
      %v7908 = vpop.f32.mrb[0].mxu0
      %v7909 = vadd.f32 0.0, %v7908
      %v7910 = vpop.f32.mrb[0].mxu0
      %7911 = vmatprep.mubr.bf16.mxu0 0
      %7912 = vmatmul.mubr.bf16.gmra.mrb[0].mxu0 %v7779
      %v7913 = vpop.f32.mrb[0].mxu0
      %v7914 = vadd.f32 0.0, %v7913
      %v7915 = vpop.f32.mrb[0].mxu0
      %v7916 = vpop.f32.mrb[0].mxu0
      %v7917 = vadd.f32 0.0, %v7916
      %v7918 = vpop.f32.mrb[0].mxu0
      %7919 = vmatprep.mubr.bf16.mxu0 0
      %7920 = vmatmul.mubr.bf16.gmra.mrb[0].mxu0 %v7782
      %v7921 = vpop.f32.mrb[0].mxu0
      %v7922 = vadd.f32 0.0, %v7921
      %v7923 = vpop.f32.mrb[0].mxu0
      %v7924 = vpop.f32.mrb[0].mxu0
      %v7925 = vadd.f32 0.0, %v7924
      %v7926 = vpop.f32.mrb[0].mxu0
      %7927 = vmatprep.mubr.bf16.mxu0 0
      %7928 = vmatmul.mubr.bf16.gmra.mrb[0].mxu0 %v7785
      %v7929 = vpop.f32.mrb[0].mxu0
      %v7930 = vadd.f32 0.0, %v7929
      %v7931 = vpop.f32.mrb[0].mxu0
      %v7932 = vpop.f32.mrb[0].mxu0
      %v7933 = vadd.f32 0.0, %v7932
      %v7934 = vpop.f32.mrb[0].mxu0
      %7935 = vmatprep.mubr.bf16.mxu0 0
      %7936 = vmatmul.mubr.bf16.gmra.mrb[0].mxu0 %v7788
      %v7937 = vpop.f32.mrb[0].mxu0
      %v7938 = vadd.f32 0.0, %v7937
      %v7939 = vpop.f32.mrb[0].mxu0
      %v7940 = vpop.f32.mrb[0].mxu0
      %v7941 = vadd.f32 0.0, %v7940
      %v7942 = vpop.f32.mrb[0].mxu0
      %7943 = vmatprep.mubr.bf16.mxu0 0
      %7944 = vmatmul.mubr.bf16.gmra.mrb[0].mxu0 %v7791
      %v7945 = vpop.f32.mrb[0].mxu0
      %v7946 = vadd.f32 0.0, %v7945
      %v7947 = vpop.f32.mrb[0].mxu0
      %v7948 = vpop.f32.mrb[0].mxu0
      %v7949 = vadd.f32 0.0, %v7948
      %v7950 = vpop.f32.mrb[0].mxu0
      %7951 = vmatprep.mubr.bf16.mxu0 0
      %7952 = vmatmul.mubr.bf16.gmra.mrb[0].mxu0 %v7794
      %v7953 = vpop.f32.mrb[0].mxu0
      %v7954 = vadd.f32 0.0, %v7953
      %v7955 = vpop.f32.mrb[0].mxu0
      %v7956 = vpop.f32.mrb[0].mxu0
      %v7957 = vadd.f32 0.0, %v7956
      %v7958 = vpop.f32.mrb[0].mxu0
      %7959 = vdwg.mxu0
      %v7960 = vadd.f32 %v7549, %v7834
      %v7961 = vadd.f32 %v7550, %v7837
      %v7962 = vadd.f32 %v7551, %v7842
      %v7963 = vadd.f32 %v7552, %v7845
      %v7964 = vadd.f32 %v7553, %v7850
      %v7965 = vadd.f32 %v7554, %v7853
      %v7966 = vadd.f32 %v7555, %v7858
      %v7967 = vadd.f32 %v7556, %v7861
      %v7968 = vadd.f32 %v7557, %v7866
      %v7969 = vadd.f32 %v7558, %v7869
      %v7970 = vadd.f32 %v7559, %v7874
      %v7971 = vadd.f32 %v7560, %v7877
      %v7972 = vadd.f32 %v7561, %v7882
      %v7973 = vadd.f32 %v7562, %v7885
      %v7974 = vadd.f32 %v7563, %v7890
      %v7975 = vadd.f32 %v7564, %v7893
      %v7976 = vadd.f32 %v7565, %v7898
      %v7977 = vadd.f32 %v7566, %v7901
      %v7978 = vadd.f32 %v7567, %v7906
      %v7979 = vadd.f32 %v7568, %v7909
      %v7980 = vadd.f32 %v7569, %v7914
      %v7981 = vadd.f32 %v7570, %v7917
      %v7982 = vadd.f32 %v7571, %v7922
      %v7983 = vadd.f32 %v7572, %v7925
      %v7984 = vadd.f32 %v7573, %v7930
      %v7985 = vadd.f32 %v7574, %v7933
      %v7986 = vadd.f32 %v7575, %v7938
      %v7987 = vadd.f32 %v7576, %v7941
      %v7988 = vadd.f32 %v7577, %v7946
      %v7989 = vadd.f32 %v7578, %v7949
      %v7990 = vadd.f32 %v7579, %v7954
      %v7991 = vadd.f32 %v7580, %v7957
      %v7992 = vld [vmem:[%s6] sm:$0x1]
      %v7994 = vlaneseq
      %v7995 = vshrl.u32 %v7994, 7
      %v7996 = vsub.s32 0, %v7995
      %v7997 = vrot.slane %v7992, %v7996
      %v7999 = vmul.f32 %v7960, %v7997
      %v8000 = vmul.f32 %v7961, %v7997
      %v8001 = vmul.f32 %v7962, %v7997
      %v8002 = vmul.f32 %v7963, %v7997
      %v8003 = vmul.f32 %v7964, %v7997
      %v8004 = vmul.f32 %v7965, %v7997
      %v8005 = vmul.f32 %v7966, %v7997
      %v8006 = vmul.f32 %v7967, %v7997
      %v8007 = vmul.f32 %v7968, %v7997
      %v8008 = vmul.f32 %v7969, %v7997
      %v8009 = vmul.f32 %v7970, %v7997
      %v8010 = vmul.f32 %v7971, %v7997
      %v8011 = vmul.f32 %v7972, %v7997
      %v8012 = vmul.f32 %v7973, %v7997
      %v8013 = vmul.f32 %v7974, %v7997
      %v8014 = vmul.f32 %v7975, %v7997
      %v8015 = vmul.f32 %v7976, %v7997
      %v8016 = vmul.f32 %v7977, %v7997
      %v8017 = vmul.f32 %v7978, %v7997
      %v8018 = vmul.f32 %v7979, %v7997
      %v8019 = vmul.f32 %v7980, %v7997
      %v8020 = vmul.f32 %v7981, %v7997
      %v8021 = vmul.f32 %v7982, %v7997
      %v8022 = vmul.f32 %v7983, %v7997
      %v8023 = vmul.f32 %v7984, %v7997
      %v8024 = vmul.f32 %v7985, %v7997
      %v8025 = vmul.f32 %v7986, %v7997
      %v8026 = vmul.f32 %v7987, %v7997
      %v8027 = vmul.f32 %v7988, %v7997
      %v8028 = vmul.f32 %v7989, %v7997
      %v8029 = vmul.f32 %v7990, %v7997
      %v8030 = vmul.f32 %v7991, %v7997
      %v8031 = vld [vmem:[%s7] sm:$0x1]
      %v8033 = vlaneseq
      %v8034 = vshrl.u32 %v8033, 7
      %v8035 = vsub.s32 0, %v8034
      %v8036 = vrot.slane %v8031, %v8035
      %v8038 = vadd.f32 %v7999, %v8036
      %v8039 = vadd.f32 %v8000, %v8036
      %v8040 = vadd.f32 %v8001, %v8036
      %v8041 = vadd.f32 %v8002, %v8036
      %v8042 = vadd.f32 %v8003, %v8036
      %v8043 = vadd.f32 %v8004, %v8036
      %v8044 = vadd.f32 %v8005, %v8036
      %v8045 = vadd.f32 %v8006, %v8036
      %v8046 = vadd.f32 %v8007, %v8036
      %v8047 = vadd.f32 %v8008, %v8036
      %v8048 = vadd.f32 %v8009, %v8036
      %v8049 = vadd.f32 %v8010, %v8036
      %v8050 = vadd.f32 %v8011, %v8036
      %v8051 = vadd.f32 %v8012, %v8036
      %v8052 = vadd.f32 %v8013, %v8036
      %v8053 = vadd.f32 %v8014, %v8036
      %v8054 = vadd.f32 %v8015, %v8036
      %v8055 = vadd.f32 %v8016, %v8036
      %v8056 = vadd.f32 %v8017, %v8036
      %v8057 = vadd.f32 %v8018, %v8036
      %v8058 = vadd.f32 %v8019, %v8036
      %v8059 = vadd.f32 %v8020, %v8036
      %v8060 = vadd.f32 %v8021, %v8036
      %v8061 = vadd.f32 %v8022, %v8036
      %v8062 = vadd.f32 %v8023, %v8036
      %v8063 = vadd.f32 %v8024, %v8036
      %v8064 = vadd.f32 %v8025, %v8036
      %v8065 = vadd.f32 %v8026, %v8036
      %v8066 = vadd.f32 %v8027, %v8036
      %v8067 = vadd.f32 %v8028, %v8036
      %v8068 = vadd.f32 %v8029, %v8036
      %v8069 = vadd.f32 %v8030, %v8036
      %v8070 = vld [vmem:[%s300] sm:$0xf]
      %v8071 = vld [vmem:[%s300 + $0x4] sm:$0xf]
      %v8072 = vld [vmem:[%s300 + $0x8] sm:$0xf]
      %v8073 = vld [vmem:[%s300 + $0xc] sm:$0xf]
      %v8074 = vld [vmem:[%s300 + $0x10] sm:$0xf]
      %v8075 = vld [vmem:[%s300 + $0x14] sm:$0xf]
      %v8076 = vld [vmem:[%s300 + $0x18] sm:$0xf]
      %v8077 = vld [vmem:[%s300 + $0x1c] sm:$0xf]
      %v8078 = vld [vmem:[%s300 + $0x20] sm:$0xf]
      %v8079 = vld [vmem:[%s300 + $0x24] sm:$0xf]
      %v8080 = vld [vmem:[%s300 + $0x28] sm:$0xf]
      %v8081 = vld [vmem:[%s300 + $0x2c] sm:$0xf]
      %v8082 = vld [vmem:[%s300 + $0x30] sm:$0xf]
      %v8083 = vld [vmem:[%s300 + $0x34] sm:$0xf]
      %v8084 = vld [vmem:[%s300 + $0x38] sm:$0xf]
      %v8085 = vld [vmem:[%s300 + $0x3c] sm:$0xf]
      %v8086 = vld [vmem:[%s300 + $0x40] sm:$0xf]
      %v8087 = vld [vmem:[%s300 + $0x44] sm:$0xf]
      %v8088 = vld [vmem:[%s300 + $0x48] sm:$0xf]
      %v8089 = vld [vmem:[%s300 + $0x4c] sm:$0xf]
      %v8090 = vld [vmem:[%s300 + $0x50] sm:$0xf]
      %v8091 = vld [vmem:[%s300 + $0x54] sm:$0xf]
      %v8092 = vld [vmem:[%s300 + $0x58] sm:$0xf]
      %v8093 = vld [vmem:[%s300 + $0x5c] sm:$0xf]
      %v8094 = vld [vmem:[%s300 + $0x60] sm:$0xf]
      %v8095 = vld [vmem:[%s300 + $0x64] sm:$0xf]
      %v8096 = vld [vmem:[%s300 + $0x68] sm:$0xf]
      %v8097 = vld [vmem:[%s300 + $0x6c] sm:$0xf]
      %v8098 = vld [vmem:[%s300 + $0x70] sm:$0xf]
      %v8099 = vld [vmem:[%s300 + $0x74] sm:$0xf]
      %v8100 = vld [vmem:[%s300 + $0x78] sm:$0xf]
      %v8101 = vld [vmem:[%s300 + $0x7c] sm:$0xf]
      %v8102 = vld [vmem:[%s1] sm:$0x3]
      %v8135 = vunpack.c.l.b16 %v8070
      %v8136 = vunpack.c.l.b16 %v8071
      %v8137 = vunpack.c.l.b16 %v8072
      %v8138 = vunpack.c.l.b16 %v8073
      %v8139 = vunpack.c.l.b16 %v8074
      %v8140 = vunpack.c.l.b16 %v8075
      %v8141 = vunpack.c.l.b16 %v8076
      %v8142 = vunpack.c.l.b16 %v8077
      %v8143 = vunpack.c.l.b16 %v8078
      %v8144 = vunpack.c.l.b16 %v8079
      %v8145 = vunpack.c.l.b16 %v8080
      %v8146 = vunpack.c.l.b16 %v8081
      %v8147 = vunpack.c.l.b16 %v8082
      %v8148 = vunpack.c.l.b16 %v8083
      %v8149 = vunpack.c.l.b16 %v8084
      %v8150 = vunpack.c.l.b16 %v8085
      %v8151 = vunpack.c.l.b16 %v8086
      %v8152 = vunpack.c.l.b16 %v8087
      %v8153 = vunpack.c.l.b16 %v8088
      %v8154 = vunpack.c.l.b16 %v8089
      %v8155 = vunpack.c.l.b16 %v8090
      %v8156 = vunpack.c.l.b16 %v8091
      %v8157 = vunpack.c.l.b16 %v8092
      %v8158 = vunpack.c.l.b16 %v8093
      %v8159 = vunpack.c.l.b16 %v8094
      %v8160 = vunpack.c.l.b16 %v8095
      %v8161 = vunpack.c.l.b16 %v8096
      %v8162 = vunpack.c.l.b16 %v8097
      %v8163 = vunpack.c.l.b16 %v8098
      %v8164 = vunpack.c.l.b16 %v8099
      %v8165 = vunpack.c.l.b16 %v8100
      %v8166 = vunpack.c.l.b16 %v8101
      %v8167 = vpack.c.b16 %v8136, %v8135
      %v8168 = vpack.c.b16 %v8138, %v8137
      %v8169 = vpack.c.b16 %v8140, %v8139
      %v8170 = vpack.c.b16 %v8142, %v8141
      %v8171 = vpack.c.b16 %v8144, %v8143
      %v8172 = vpack.c.b16 %v8146, %v8145
      %v8173 = vpack.c.b16 %v8148, %v8147
      %v8174 = vpack.c.b16 %v8150, %v8149
      %v8175 = vpack.c.b16 %v8152, %v8151
      %v8176 = vpack.c.b16 %v8154, %v8153
      %v8177 = vpack.c.b16 %v8156, %v8155
      %v8178 = vpack.c.b16 %v8158, %v8157
      %v8179 = vpack.c.b16 %v8160, %v8159
      %v8180 = vpack.c.b16 %v8162, %v8161
      %v8181 = vpack.c.b16 %v8164, %v8163
      %v8182 = vpack.c.b16 %v8166, %v8165
      %v8184 = vsel %vm790, %v8167, 0
      %v8187 = vsel %vm790, %v8168, 0
      %v8190 = vsel %vm790, %v8169, 0
      %v8193 = vsel %vm790, %v8170, 0
      %v8196 = vsel %vm790, %v8171, 0
      %v8199 = vsel %vm790, %v8172, 0
      %v8202 = vsel %vm790, %v8173, 0
      %v8205 = vsel %vm790, %v8174, 0
      %v8208 = vsel %vm790, %v8175, 0
      %v8211 = vsel %vm790, %v8176, 0
      %v8214 = vsel %vm790, %v8177, 0
      %v8217 = vsel %vm790, %v8178, 0
      %v8220 = vsel %vm790, %v8179, 0
      %v8223 = vsel %vm790, %v8180, 0
      %v8226 = vsel %vm790, %v8181, 0
      %v8229 = vsel %vm790, %v8182, 0
      %v8232 = vsel %vm1353, %v8102, 0
      %8234 = vmatprep.subr.bf16.mxu0 0
      %8235 = vmatpush1.bf16.msra.mxu0 %v8232
      %8236 = vmatprep.subr.bf16.mxu0 0
      %8237 = vmatpush1.bf16.msra.mxu0 0
      %8238 = vmatprep.subr.bf16.mxu0 0
      %8239 = vmatpush1.bf16.msra.mxu0 0
      %8240 = vmatprep.subr.bf16.mxu0 0
      %8241 = vmatpush1.bf16.msra.mxu0 0
      %8242 = vmatprep.subr.bf16.mxu0 0
      %8243 = vmatpush1.bf16.msra.mxu0 0
      %8244 = vmatprep.subr.bf16.mxu0 0
      %8245 = vmatpush1.bf16.msra.mxu0 0
      %8246 = vmatprep.subr.bf16.mxu0 0
      %8247 = vmatpush1.bf16.msra.mxu0 0
      %8248 = vmatprep.subr.bf16.mxu0 0
      %8249 = vmatpush1.bf16.msra.mxu0 0
      %8250 = vmatprep.subr.bf16.mxu0 0
      %8251 = vmatpush1.bf16.msra.mxu0 0
      %8252 = vmatprep.subr.bf16.mxu0 0
      %8253 = vmatpush1.bf16.msra.mxu0 0
      %8254 = vmatprep.subr.bf16.mxu0 0
      %8255 = vmatpush1.bf16.msra.mxu0 0
      %8256 = vmatprep.subr.bf16.mxu0 0
      %8257 = vmatpush1.bf16.msra.mxu0 0
      %8258 = vmatprep.subr.bf16.mxu0 0
      %8259 = vmatpush1.bf16.msra.mxu0 0
      %8260 = vmatprep.subr.bf16.mxu0 0
      %8261 = vmatpush1.bf16.msra.mxu0 0
      %8262 = vmatprep.subr.bf16.mxu0 0
      %8263 = vmatpush1.bf16.msra.mxu0 0
      %8264 = vmatprep.subr.bf16.mxu0 0
      %8265 = vmatpush1.bf16.msra.mxu0 0
      %8266 = vmatprep.mubr.bf16.mxu0 0
      %8267 = vmatmul.mubr.bf16.gmra.mrb[0].mxu0 %v8184
      %v8268 = vpop.f32.mrb[0].mxu0
      %v8269 = vadd.f32 0.0, %v8268
      %v8270 = vpop.f32.mrb[0].mxu0
      %v8271 = vpop.f32.mrb[0].mxu0
      %v8272 = vadd.f32 0.0, %v8271
      %v8273 = vpop.f32.mrb[0].mxu0
      %8274 = vmatprep.mubr.bf16.mxu0 0
      %8275 = vmatmul.mubr.bf16.gmra.mrb[0].mxu0 %v8187
      %v8276 = vpop.f32.mrb[0].mxu0
      %v8277 = vadd.f32 0.0, %v8276
      %v8278 = vpop.f32.mrb[0].mxu0
      %v8279 = vpop.f32.mrb[0].mxu0
      %v8280 = vadd.f32 0.0, %v8279
      %v8281 = vpop.f32.mrb[0].mxu0
      %8282 = vmatprep.mubr.bf16.mxu0 0
      %8283 = vmatmul.mubr.bf16.gmra.mrb[0].mxu0 %v8190
      %v8284 = vpop.f32.mrb[0].mxu0
      %v8285 = vadd.f32 0.0, %v8284
      %v8286 = vpop.f32.mrb[0].mxu0
      %v8287 = vpop.f32.mrb[0].mxu0
      %v8288 = vadd.f32 0.0, %v8287
      %v8289 = vpop.f32.mrb[0].mxu0
      %8290 = vmatprep.mubr.bf16.mxu0 0
      %8291 = vmatmul.mubr.bf16.gmra.mrb[0].mxu0 %v8193
      %v8292 = vpop.f32.mrb[0].mxu0
      %v8293 = vadd.f32 0.0, %v8292
      %v8294 = vpop.f32.mrb[0].mxu0
      %v8295 = vpop.f32.mrb[0].mxu0
      %v8296 = vadd.f32 0.0, %v8295
      %v8297 = vpop.f32.mrb[0].mxu0
      %8298 = vmatprep.mubr.bf16.mxu0 0
      %8299 = vmatmul.mubr.bf16.gmra.mrb[0].mxu0 %v8196
      %v8300 = vpop.f32.mrb[0].mxu0
      %v8301 = vadd.f32 0.0, %v8300
      %v8302 = vpop.f32.mrb[0].mxu0
      %v8303 = vpop.f32.mrb[0].mxu0
      %v8304 = vadd.f32 0.0, %v8303
      %v8305 = vpop.f32.mrb[0].mxu0
      %8306 = vmatprep.mubr.bf16.mxu0 0
      %8307 = vmatmul.mubr.bf16.gmra.mrb[0].mxu0 %v8199
      %v8308 = vpop.f32.mrb[0].mxu0
      %v8309 = vadd.f32 0.0, %v8308
      %v8310 = vpop.f32.mrb[0].mxu0
      %v8311 = vpop.f32.mrb[0].mxu0
      %v8312 = vadd.f32 0.0, %v8311
      %v8313 = vpop.f32.mrb[0].mxu0
      %8314 = vmatprep.mubr.bf16.mxu0 0
      %8315 = vmatmul.mubr.bf16.gmra.mrb[0].mxu0 %v8202
      %v8316 = vpop.f32.mrb[0].mxu0
      %v8317 = vadd.f32 0.0, %v8316
      %v8318 = vpop.f32.mrb[0].mxu0
      %v8319 = vpop.f32.mrb[0].mxu0
      %v8320 = vadd.f32 0.0, %v8319
      %v8321 = vpop.f32.mrb[0].mxu0
      %8322 = vmatprep.mubr.bf16.mxu0 0
      %8323 = vmatmul.mubr.bf16.gmra.mrb[0].mxu0 %v8205
      %v8324 = vpop.f32.mrb[0].mxu0
      %v8325 = vadd.f32 0.0, %v8324
      %v8326 = vpop.f32.mrb[0].mxu0
      %v8327 = vpop.f32.mrb[0].mxu0
      %v8328 = vadd.f32 0.0, %v8327
      %v8329 = vpop.f32.mrb[0].mxu0
      %8330 = vmatprep.mubr.bf16.mxu0 0
      %8331 = vmatmul.mubr.bf16.gmra.mrb[0].mxu0 %v8208
      %v8332 = vpop.f32.mrb[0].mxu0
      %v8333 = vadd.f32 0.0, %v8332
      %v8334 = vpop.f32.mrb[0].mxu0
      %v8335 = vpop.f32.mrb[0].mxu0
      %v8336 = vadd.f32 0.0, %v8335
      %v8337 = vpop.f32.mrb[0].mxu0
      %8338 = vmatprep.mubr.bf16.mxu0 0
      %8339 = vmatmul.mubr.bf16.gmra.mrb[0].mxu0 %v8211
      %v8340 = vpop.f32.mrb[0].mxu0
      %v8341 = vadd.f32 0.0, %v8340
      %v8342 = vpop.f32.mrb[0].mxu0
      %v8343 = vpop.f32.mrb[0].mxu0
      %v8344 = vadd.f32 0.0, %v8343
      %v8345 = vpop.f32.mrb[0].mxu0
      %8346 = vmatprep.mubr.bf16.mxu0 0
      %8347 = vmatmul.mubr.bf16.gmra.mrb[0].mxu0 %v8214
      %v8348 = vpop.f32.mrb[0].mxu0
      %v8349 = vadd.f32 0.0, %v8348
      %v8350 = vpop.f32.mrb[0].mxu0
      %v8351 = vpop.f32.mrb[0].mxu0
      %v8352 = vadd.f32 0.0, %v8351
      %v8353 = vpop.f32.mrb[0].mxu0
      %8354 = vmatprep.mubr.bf16.mxu0 0
      %8355 = vmatmul.mubr.bf16.gmra.mrb[0].mxu0 %v8217
      %v8356 = vpop.f32.mrb[0].mxu0
      %v8357 = vadd.f32 0.0, %v8356
      %v8358 = vpop.f32.mrb[0].mxu0
      %v8359 = vpop.f32.mrb[0].mxu0
      %v8360 = vadd.f32 0.0, %v8359
      %v8361 = vpop.f32.mrb[0].mxu0
      %8362 = vmatprep.mubr.bf16.mxu0 0
      %8363 = vmatmul.mubr.bf16.gmra.mrb[0].mxu0 %v8220
      %v8364 = vpop.f32.mrb[0].mxu0
      %v8365 = vadd.f32 0.0, %v8364
      %v8366 = vpop.f32.mrb[0].mxu0
      %v8367 = vpop.f32.mrb[0].mxu0
      %v8368 = vadd.f32 0.0, %v8367
      %v8369 = vpop.f32.mrb[0].mxu0
      %8370 = vmatprep.mubr.bf16.mxu0 0
      %8371 = vmatmul.mubr.bf16.gmra.mrb[0].mxu0 %v8223
      %v8372 = vpop.f32.mrb[0].mxu0
      %v8373 = vadd.f32 0.0, %v8372
      %v8374 = vpop.f32.mrb[0].mxu0
      %v8375 = vpop.f32.mrb[0].mxu0
      %v8376 = vadd.f32 0.0, %v8375
      %v8377 = vpop.f32.mrb[0].mxu0
      %8378 = vmatprep.mubr.bf16.mxu0 0
      %8379 = vmatmul.mubr.bf16.gmra.mrb[0].mxu0 %v8226
      %v8380 = vpop.f32.mrb[0].mxu0
      %v8381 = vadd.f32 0.0, %v8380
      %v8382 = vpop.f32.mrb[0].mxu0
      %v8383 = vpop.f32.mrb[0].mxu0
      %v8384 = vadd.f32 0.0, %v8383
      %v8385 = vpop.f32.mrb[0].mxu0
      %8386 = vmatprep.mubr.bf16.mxu0 0
      %8387 = vmatmul.mubr.bf16.gmra.mrb[0].mxu0 %v8229
      %v8388 = vpop.f32.mrb[0].mxu0
      %v8389 = vadd.f32 0.0, %v8388
      %v8390 = vpop.f32.mrb[0].mxu0
      %v8391 = vpop.f32.mrb[0].mxu0
      %v8392 = vadd.f32 0.0, %v8391
      %v8393 = vpop.f32.mrb[0].mxu0
      %8394 = vdwg.mxu0
      %v8395 = vadd.f32 %v8038, %v8269
      %v8396 = vadd.f32 %v8039, %v8272
      %v8397 = vadd.f32 %v8040, %v8277
      %v8398 = vadd.f32 %v8041, %v8280
      %v8399 = vadd.f32 %v8042, %v8285
      %v8400 = vadd.f32 %v8043, %v8288
      %v8401 = vadd.f32 %v8044, %v8293
      %v8402 = vadd.f32 %v8045, %v8296
      %v8403 = vadd.f32 %v8046, %v8301
      %v8404 = vadd.f32 %v8047, %v8304
      %v8405 = vadd.f32 %v8048, %v8309
      %v8406 = vadd.f32 %v8049, %v8312
      %v8407 = vadd.f32 %v8050, %v8317
      %v8408 = vadd.f32 %v8051, %v8320
      %v8409 = vadd.f32 %v8052, %v8325
      %v8410 = vadd.f32 %v8053, %v8328
      %v8411 = vadd.f32 %v8054, %v8333
      %v8412 = vadd.f32 %v8055, %v8336
      %v8413 = vadd.f32 %v8056, %v8341
      %v8414 = vadd.f32 %v8057, %v8344
      %v8415 = vadd.f32 %v8058, %v8349
      %v8416 = vadd.f32 %v8059, %v8352
      %v8417 = vadd.f32 %v8060, %v8357
      %v8418 = vadd.f32 %v8061, %v8360
      %v8419 = vadd.f32 %v8062, %v8365
      %v8420 = vadd.f32 %v8063, %v8368
      %v8421 = vadd.f32 %v8064, %v8373
      %v8422 = vadd.f32 %v8065, %v8376
      %v8423 = vadd.f32 %v8066, %v8381
      %v8424 = vadd.f32 %v8067, %v8384
      %v8425 = vadd.f32 %v8068, %v8389
      %v8426 = vadd.f32 %v8069, %v8392
      %v8427 = vmul.f32 %v8395, 0.2
      %v8428 = vmul.f32 %v8396, 0.2
      %v8429 = vmul.f32 %v8397, 0.2
      %v8430 = vmul.f32 %v8398, 0.2
      %v8431 = vmul.f32 %v8399, 0.2
      %v8432 = vmul.f32 %v8400, 0.2
      %v8433 = vmul.f32 %v8401, 0.2
      %v8434 = vmul.f32 %v8402, 0.2
      %v8435 = vmul.f32 %v8403, 0.2
      %v8436 = vmul.f32 %v8404, 0.2
      %v8437 = vmul.f32 %v8405, 0.2
      %v8438 = vmul.f32 %v8406, 0.2
      %v8439 = vmul.f32 %v8407, 0.2
      %v8440 = vmul.f32 %v8408, 0.2
      %v8441 = vmul.f32 %v8409, 0.2
      %v8442 = vmul.f32 %v8410, 0.2
      %v8443 = vmul.f32 %v8411, 0.2
      %v8444 = vmul.f32 %v8412, 0.2
      %v8445 = vmul.f32 %v8413, 0.2
      %v8446 = vmul.f32 %v8414, 0.2
      %v8447 = vmul.f32 %v8415, 0.2
      %v8448 = vmul.f32 %v8416, 0.2
      %v8449 = vmul.f32 %v8417, 0.2
      %v8450 = vmul.f32 %v8418, 0.2
      %v8451 = vmul.f32 %v8419, 0.2
      %v8452 = vmul.f32 %v8420, 0.2
      %v8453 = vmul.f32 %v8421, 0.2
      %v8454 = vmul.f32 %v8422, 0.2
      %v8455 = vmul.f32 %v8423, 0.2
      %v8456 = vmul.f32 %v8424, 0.2
      %v8457 = vmul.f32 %v8425, 0.2
      %v8458 = vmul.f32 %v8426, 0.2
      %v8459 = vmax.f32 %v8395, %v8427
      %v8460 = vmax.f32 %v8396, %v8428
      %v8461 = vmax.f32 %v8397, %v8429
      %v8462 = vmax.f32 %v8398, %v8430
      %v8463 = vmax.f32 %v8399, %v8431
      %v8464 = vmax.f32 %v8400, %v8432
      %v8465 = vmax.f32 %v8401, %v8433
      %v8466 = vmax.f32 %v8402, %v8434
      %v8467 = vmax.f32 %v8403, %v8435
      %v8468 = vmax.f32 %v8404, %v8436
      %v8469 = vmax.f32 %v8405, %v8437
      %v8470 = vmax.f32 %v8406, %v8438
      %v8471 = vmax.f32 %v8407, %v8439
      %v8472 = vmax.f32 %v8408, %v8440
      %v8473 = vmax.f32 %v8409, %v8441
      %v8474 = vmax.f32 %v8410, %v8442
      %v8475 = vmax.f32 %v8411, %v8443
      %v8476 = vmax.f32 %v8412, %v8444
      %v8477 = vmax.f32 %v8413, %v8445
      %v8478 = vmax.f32 %v8414, %v8446
      %v8479 = vmax.f32 %v8415, %v8447
      %v8480 = vmax.f32 %v8416, %v8448
      %v8481 = vmax.f32 %v8417, %v8449
      %v8482 = vmax.f32 %v8418, %v8450
      %v8483 = vmax.f32 %v8419, %v8451
      %v8484 = vmax.f32 %v8420, %v8452
      %v8485 = vmax.f32 %v8421, %v8453
      %v8486 = vmax.f32 %v8422, %v8454
      %v8487 = vmax.f32 %v8423, %v8455
      %v8488 = vmax.f32 %v8424, %v8456
      %v8489 = vmax.f32 %v8425, %v8457
      %v8490 = vmax.f32 %v8426, %v8458
      %8491 = vst.msk [vmem:[%s305] sm:$0xff] %vm939, %v8459
      %8492 = vst.msk [vmem:[%s305 + $0x8] sm:$0xff] %vm939, %v8460
      %8493 = vst.msk [vmem:[%s305 + $0x10] sm:$0xff] %vm939, %v8461
      %8494 = vst.msk [vmem:[%s305 + $0x18] sm:$0xff] %vm939, %v8462
      %8495 = vst.msk [vmem:[%s305 + $0x20] sm:$0xff] %vm939, %v8463
      %8496 = vst.msk [vmem:[%s305 + $0x28] sm:$0xff] %vm939, %v8464
      %8497 = vst.msk [vmem:[%s305 + $0x30] sm:$0xff] %vm939, %v8465
      %8498 = vst.msk [vmem:[%s305 + $0x38] sm:$0xff] %vm939, %v8466
      %8499 = vst.msk [vmem:[%s305 + $0x40] sm:$0xff] %vm939, %v8467
      %8500 = vst.msk [vmem:[%s305 + $0x48] sm:$0xff] %vm939, %v8468
      %8501 = vst.msk [vmem:[%s305 + $0x50] sm:$0xff] %vm939, %v8469
      %8502 = vst.msk [vmem:[%s305 + $0x58] sm:$0xff] %vm939, %v8470
      %8503 = vst.msk [vmem:[%s305 + $0x60] sm:$0xff] %vm939, %v8471
      %8504 = vst.msk [vmem:[%s305 + $0x68] sm:$0xff] %vm939, %v8472
      %8505 = vst.msk [vmem:[%s305 + $0x70] sm:$0xff] %vm939, %v8473
      %8506 = vst.msk [vmem:[%s305 + $0x78] sm:$0xff] %vm939, %v8474
      %8507 = vst.msk [vmem:[%s305 + $0x80] sm:$0xff] %vm939, %v8475
      %8508 = vst.msk [vmem:[%s305 + $0x88] sm:$0xff] %vm939, %v8476
      %8509 = vst.msk [vmem:[%s305 + $0x90] sm:$0xff] %vm939, %v8477
      %8510 = vst.msk [vmem:[%s305 + $0x98] sm:$0xff] %vm939, %v8478
      %8511 = vst.msk [vmem:[%s305 + $0xa0] sm:$0xff] %vm939, %v8479
      %8512 = vst.msk [vmem:[%s305 + $0xa8] sm:$0xff] %vm939, %v8480
      %8513 = vst.msk [vmem:[%s305 + $0xb0] sm:$0xff] %vm939, %v8481
      %8514 = vst.msk [vmem:[%s305 + $0xb8] sm:$0xff] %vm939, %v8482
      %8515 = vst.msk [vmem:[%s305 + $0xc0] sm:$0xff] %vm939, %v8483
      %8516 = vst.msk [vmem:[%s305 + $0xc8] sm:$0xff] %vm939, %v8484
      %8517 = vst.msk [vmem:[%s305 + $0xd0] sm:$0xff] %vm939, %v8485
      %8518 = vst.msk [vmem:[%s305 + $0xd8] sm:$0xff] %vm939, %v8486
      %8519 = vst.msk [vmem:[%s305 + $0xe0] sm:$0xff] %vm939, %v8487
      %8520 = vst.msk [vmem:[%s305 + $0xe8] sm:$0xff] %vm939, %v8488
      %8521 = vst.msk [vmem:[%s305 + $0xf0] sm:$0xff] %vm939, %v8489
      %8522 = vst.msk [vmem:[%s305 + $0xf8] sm:$0xff] %vm939, %v8490
      %p8523 = scmp.lt.s32.totalorder %s19, 1
      %s8524 = scalar_select %p8523, %s19, 1
      %s8525 = smul.addr %s8524, 32
      %s8526 = smul.addr %s8525, 8
      %s8527 = scalar_lea.vmem %s8, %s8526
      // Predicated region
      $region53: #{tpu_custom_call.1} parent=51 // pred_check
        %p8528 = pneg %p210
      $region54: #{tpu_custom_call.1} parent=51 // pred_check_branch
        %8530 = sbr.rel (%p8528) target = $region56
      $region55: #{tpu_custom_call.1} parent=51 // pred_region
        _
      $region56: #{tpu_custom_call.1} parent=51 // pred_fallthru
        _
    $region52: #{tpu_custom_call.1} parent=5 // pred_fallthru
      _
    %p8531 = scmp.le.s32.totalorder 2, %s14
    // Predicated region
    $region57: #{tpu_custom_call.1} parent=5 // pred_check
      %p8532 = pneg %p8531
    $region58: #{tpu_custom_call.1} parent=5 // pred_check_branch
      %8534 = sbr.rel (%p8532) target = $region60
    $region59: #{tpu_custom_call.1} parent=5 // pred_region
      %s8535 = ssub.s32 %s14, 2
      // Predicated region
      $region61: #{tpu_custom_call.1} parent=59 // pred_check
        %p8536 = pneg %p216
      $region62: #{tpu_custom_call.1} parent=59 // pred_check_branch
        %8538 = sbr.rel (%p8536) target = $region64
      $region63: #{tpu_custom_call.1} parent=59 // pred_region
        %p8539 = scmp.lt.s32.totalorder %s20, 1
        %s8540 = scalar_select %p8539, %s20, 1
        %s8541 = smul.addr %s8540, 32
        %s8542 = smul.addr %s8541, 8
        %s8543 = scalar_lea.vmem %s8, %s8542
      $region64: #{tpu_custom_call.1} parent=59 // pred_fallthru
        _
    $region60: #{tpu_custom_call.1} parent=5 // pred_fallthru
      _
  $region6: #{tpu_custom_call.1} parent=0 // loop_footer
    %s18 = sadd.s32 1, %s14
  $region7: #{tpu_custom_call.1} parent=0 // loop_footer_branch
    %13 = sbr.rel target = $region3
  $region8: #{tpu_custom_call.1} parent=0 // loop_exit
    _

</llo_original>
